<compile_context>
chip_gen: v7x
topology: tpu7x:2x2x1
jax: 0.10.0
libtpu: 0.0.40
codegen_flags: <defaults>
</compile_context>

<pallas_src>
import jax
import jax.numpy as jnp
from jax.experimental import pallas as pl
from jax.experimental.pallas import tpu as pltpu


_VMEM = pl.BlockSpec(memory_space=pltpu.MemorySpace.VMEM)
_SMEM = pl.BlockSpec(memory_space=pltpu.MemorySpace.SMEM)


# --------------------------------------------------------------------------
# Kernel 1: conv1(1->6, 3x3) + ReLU + maxpool 2x2   (fully fused, VPU only)
#
# xph_ref : (4, N, 16, 16)  polyphase components of the 32x32 input:
#           xph[p*2+q][n, r, c] = x[n, 2r+p, 2c+q]
# w1_ref  : (6, 9)  SMEM scalars, w1[o, i*3+j]
# b1_ref  : (6,)    SMEM scalars
# out_ref : (6, N, 15, 15)  pooled activations, layout (c, n, h, w)
#
# pooled[n,o,a,b] = relu(b1[o] + max_{di,dj} sum_{i,j} w1[o,i,j] * x[n,2a+di+i,2b+dj+j])
# and x[n, 2a+t, 2b+u] == xph[t%2, u%2][n, a + t//2, b + u//2]  -> non-strided slices.
# --------------------------------------------------------------------------
def _conv1_pool1_kernel(xph_ref, w1_ref, b1_ref, out_ref):
    # Hoist the 16 distinct 15x15 windows of the 4 polyphase planes.
    win = {}
    for rp in range(2):
        for cp in range(2):
            plane = xph_ref[rp * 2 + cp]                      # (N, 16, 16)
            for rs in range(2):
                for cs in range(2):
                    win[(rp, cp, rs, cs)] = plane[:, rs:rs + 15, cs:cs + 15]

    for o in range(6):
        wv = [w1_ref[o, k] for k in range(9)]                 # SMEM scalar reads
        corners = []
        for di in range(2):
            for dj in range(2):
                acc = None
                for i in range(3):
                    for j in range(3):
                        t, u = di + i, dj + j
                        s = win[(t % 2, u % 2, t // 2, u // 2)]   # (N,15,15)
                        term = wv[i * 3 + j] * s
                        acc = term if acc is None else acc + term
                corners.append(acc)
        m = jnp.maximum(jnp.maximum(corners[0], corners[1]),
                        jnp.maximum(corners[2], corners[3]))
        out_ref[o] = jnp.maximum(m + b1_ref[o], 0.0)


def conv1_pool1(xph, w1, b1):
    n = xph.shape[1]
    return pl.pallas_call(
        _conv1_pool1_kernel,
        out_shape=jax.ShapeDtypeStruct((6, n, 15, 15), jnp.float32),
        in_specs=[_VMEM, _SMEM, _SMEM],
        out_specs=_VMEM,
    )(xph, w1, b1)


# --------------------------------------------------------------------------
# Kernel 2: conv2(6->16, 3x3) + ReLU + maxpool 2x2 + fc1 + ReLU + fc2 + ReLU + fc3
#
# cols_ref : (4, 36*N, 54) corner im2col matrices; rows ordered (a, b, n),
#            columns ordered (c, i, j) to match conv2_w.reshape(16, 54).
# w2_ref   : (54, 16)      conv2 weight, already transposed offline
# b2_ref   : (1, 16)
# w1k_ref  : (576, 120)    fc1 weight, rows permuted offline to (r=h*6+w, c) order
# b1k_ref  : (1, 120)      ; w2k/b2k, w3k/b3k: fc2 / fc3 (already transposed)
# out_ref  : (N, 10)
#
# fc1 is computed as sum_r  z[r*N:(r+1)*N, :] @ w1k[r*16:(r+1)*16, :]
# which reproduces PyTorch's x.view(-1, 576) @ fc1_w.T without any in-kernel
# reshape/transpose of the activation.
# --------------------------------------------------------------------------
def _conv2_fc_kernel(cols_ref, w2_ref, b2_ref, w1k_ref, b1k_ref,
                     w2k_ref, b2k_ref, w3k_ref, b3k_ref, out_ref):
    n = out_ref.shape[0]
    w2m = w2_ref[...]                                          # (54, 16)

    # conv2 at the four pooling corners -> max -> bias -> relu  (pooled output)
    z = None
    for k in range(4):
        zk = jnp.dot(cols_ref[k], w2m, preferred_element_type=jnp.float32)
        z = zk if z is None else jnp.maximum(z, zk)
    z = jnp.maximum(z + b2_ref[...], 0.0)                      # (36*N, 16), rows (a,b,n)

    # fc1 accumulated over the 36 spatial positions (avoids any flatten/reshape)
    h1 = jnp.zeros((n, 120), jnp.float32)
    for r in range(36):
        blk = z[r * n:(r + 1) * n, :]                          # (N, 16)
        wblk = w1k_ref[r * 16:(r + 1) * 16, :]                 # (16, 120)
        h1 = h1 + jnp.dot(blk, wblk, preferred_element_type=jnp.float32)
    h1 = jnp.maximum(h1 + b1k_ref[...], 0.0)                   # (N, 120)

    h2 = jnp.maximum(
        jnp.dot(h1, w2k_ref[...], preferred_element_type=jnp.float32) + b2k_ref[...],
        0.0)                                                   # (N, 84)
    out_ref[...] = (jnp.dot(h2, w3k_ref[...], preferred_element_type=jnp.float32)
                    + b3k_ref[...]).astype(out_ref.dtype)      # (N, 10)


def conv2_fc(cols, kp):
    n = cols.shape[1] // 36
    return pl.pallas_call(
        _conv2_fc_kernel,
        out_shape=jax.ShapeDtypeStruct((n, 10), jnp.float32),
        in_specs=[_VMEM] * 9,
        out_specs=_VMEM,
    )(cols, kp["w2m"], kp["b2"], kp["wk1"], kp["bk1"],
      kp["wk2"], kp["bk2"], kp["wk3"], kp["bk3"])


# ------------------------------- parameters --------------------------------
def init_params(key):
    """PyTorch-layout parameters (Conv2d: (O,C,kh,kw), Linear: (out,in))."""
    ks = jax.random.split(key, 10)

    def u(k, shape, fan_in):
        bound = 1.0 / (fan_in ** 0.5)
        return jax.random.uniform(k, shape, jnp.float32, -bound, bound)

    return {
        "conv1_w": u(ks[0], (6, 1, 3, 3), 9),    "conv1_b": u(ks[1], (6,), 9),
        "conv2_w": u(ks[2], (16, 6, 3, 3), 54),  "conv2_b": u(ks[3], (16,), 54),
        "fc1_w": u(ks[4], (120, 576), 576),      "fc1_b": u(ks[5], (120,), 576),
        "fc2_w": u(ks[6], (84, 120), 120),       "fc2_b": u(ks[7], (84,), 120),
        "fc3_w": u(ks[8], (10, 84), 84),         "fc3_b": u(ks[9], (10,), 84),
    }


def prepare_params(p):
    """One-time, offline layout transforms (nothing layout-related per forward).

    wk1 row permutation folds PyTorch's x.view(-1, 16*6*6) flatten order into
    the fc1 weight:  wk1[r*16 + c, o] == fc1_w[o, c*36 + r]  with r = h*6 + w.
    """
    return {
        "w1": p["conv1_w"].reshape(6, 9),
        "b1": p["conv1_b"],
        "w2m": p["conv2_w"].reshape(16, 54).T,                       # (54, 16), rows (c,i,j)
        "b2": p["conv2_b"].reshape(1, 16),
        "wk1": p["fc1_w"].reshape(120, 16, 36).transpose(2, 1, 0).reshape(576, 120),
        "bk1": p["fc1_b"].reshape(1, 120),
        "wk2": p["fc2_w"].T,                                         # (120, 84)
        "bk2": p["fc2_b"].reshape(1, 84),
        "wk3": p["fc3_w"].T,                                         # (84, 10)
        "bk3": p["fc3_b"].reshape(1, 10),
    }


# ------------------------------- the network -------------------------------
def net_forward(kp, x_nchw):
    n = x_nchw.shape[0]
    x = x_nchw.reshape(n, 32, 32).astype(jnp.float32)            # Cin = 1

    # Polyphase components of the input (4 tiny strided views, one-time glue):
    xph = jnp.stack([x[:, 0::2, 0::2], x[:, 0::2, 1::2],
                     x[:, 1::2, 0::2], x[:, 1::2, 1::2]], axis=0)  # (4, N, 16, 16)

    p1 = conv1_pool1(xph, kp["w1"], kp["b1"])                     # (6, N, 15, 15) = (c,n,h,w)

    # Glue: stride-2 conv2 window views -> 4 corner im2col matrices (~60 KB total).
    # Rows ordered (a, b, n); columns ordered (c, i, j) to match w2m.
    corners = []
    for di in range(2):
        for dj in range(2):
            taps = [p1[:, :, di + i:di + i + 11:2, dj + j:dj + j + 11:2]   # (6, N, 6, 6)
                    for i in range(3) for j in range(3)]
            t = jnp.stack(taps, axis=-1)                          # (c, n, a, b, tap)
            t = t.transpose(2, 3, 1, 0, 4)                        # (a, b, n, c, tap)
            corners.append(t.reshape(36 * n, 54))
    cols = jnp.stack(corners, axis=0)                             # (4, 36*N, 54)

    return conv2_fc(cols, kp)                                     # (N, 10)


# --------------------------- pure-JAX reference -----------------------------
def reference_forward(p, x):
    dn = ("NCHW", "OIHW", "NCHW")
    hi = jax.lax.Precision.HIGHEST
    y = jax.lax.conv_general_dilated(x, p["conv1_w"], (1, 1), "VALID",
                                     dimension_numbers=dn, precision=hi)
    y = jnp.maximum(y + p["conv1_b"][None, :, None, None], 0.0)
    y = jax.lax.reduce_window(y, -jnp.inf, jax.lax.max, (1, 1, 2, 2), (1, 1, 2, 2), "VALID")
    y = jax.lax.conv_general_dilated(y, p["conv2_w"], (1, 1), "VALID",
                                     dimension_numbers=dn, precision=hi)
    y = jnp.maximum(y + p["conv2_b"][None, :, None, None], 0.0)
    y = jax.lax.reduce_window(y, -jnp.inf, jax.lax.max, (1, 1, 2, 2), (1, 1, 2, 2), "VALID")
    f = y.reshape(y.shape[0], -1)                                  # x.view(-1, 576)
    h = jnp.maximum(jnp.dot(f, p["fc1_w"].T, precision=hi) + p["fc1_b"], 0.0)
    h = jnp.maximum(jnp.dot(h, p["fc2_w"].T, precision=hi) + p["fc2_b"], 0.0)
    return jnp.dot(h, p["fc3_w"].T, precision=hi) + p["fc3_b"]


if __name__ == "__main__":
    key = jax.random.PRNGKey(0)
    pkey, xkey = jax.random.split(key)
    params = init_params(pkey)
    kparams = prepare_params(params)           # offline weight layout transforms
    # fc1 = Linear(16*6*6, 120) implies a 1x32x32 input.
    x = jax.random.normal(xkey, (2, 1, 32, 32), dtype=jnp.float32)

    fwd = jax.jit(net_forward)
    out = jax.block_until_ready(fwd(kparams, x))

    assert out.shape == (2, 10), out.shape
    assert out.dtype == jnp.float32
    assert bool(jnp.all(jnp.isfinite(out)))

    ref = jax.block_until_ready(reference_forward(params, x))
    err = float(jnp.max(jnp.abs(out - ref)))
    assert err < 2e-2, f"mismatch vs reference: max abs err {err}"

    print("KERNEL_OK")
</pallas_src>

<mosaic_0001>
module attributes {stable_mosaic.version = 11 : i64} {
  func.func @_conv1_pool1_kernel(%arg0: memref<4x2x16x16xf32, #tpu.memory_space<vmem>>, %arg1: memref<6x9xf32, #tpu.memory_space<smem>>, %arg2: memref<6xf32, #tpu.memory_space<smem>>, %arg3: memref<6x2x15x15xf32, #tpu.memory_space<vmem>>) attributes {dimension_semantics = [], scalar_prefetch = 0 : i64, scratch_operands = 0 : i64, tpu.core_type = #tpu.core_type<tc>} {
    %c0 = arith.constant 0 : index
    %c0_0 = arith.constant 0 : index
    %c0_1 = arith.constant 0 : index
    %c0_2 = arith.constant 0 : index
    %0 = vector.load %arg0[%c0, %c0_0, %c0_1, %c0_2] : memref<4x2x16x16xf32, #tpu.memory_space<vmem>>, vector<1x2x16x16xf32>
    %1 = vector.shape_cast %0 : vector<1x2x16x16xf32> to vector<2x16x16xf32>
    %2 = vector.extract_strided_slice %1 {offsets = [0, 0, 0], sizes = [2, 15, 15], strides = [1, 1, 1]} : vector<2x16x16xf32> to vector<2x15x15xf32>
    %3 = vector.extract_strided_slice %1 {offsets = [0, 0, 1], sizes = [2, 15, 15], strides = [1, 1, 1]} : vector<2x16x16xf32> to vector<2x15x15xf32>
    %4 = vector.extract_strided_slice %1 {offsets = [0, 1, 0], sizes = [2, 15, 15], strides = [1, 1, 1]} : vector<2x16x16xf32> to vector<2x15x15xf32>
    %5 = vector.extract_strided_slice %1 {offsets = [0, 1, 1], sizes = [2, 15, 15], strides = [1, 1, 1]} : vector<2x16x16xf32> to vector<2x15x15xf32>
    %c1 = arith.constant 1 : index
    %c0_3 = arith.constant 0 : index
    %c0_4 = arith.constant 0 : index
    %c0_5 = arith.constant 0 : index
    %6 = vector.load %arg0[%c1, %c0_3, %c0_4, %c0_5] : memref<4x2x16x16xf32, #tpu.memory_space<vmem>>, vector<1x2x16x16xf32>
    %7 = vector.shape_cast %6 : vector<1x2x16x16xf32> to vector<2x16x16xf32>
    %8 = vector.extract_strided_slice %7 {offsets = [0, 0, 0], sizes = [2, 15, 15], strides = [1, 1, 1]} : vector<2x16x16xf32> to vector<2x15x15xf32>
    %9 = vector.extract_strided_slice %7 {offsets = [0, 0, 1], sizes = [2, 15, 15], strides = [1, 1, 1]} : vector<2x16x16xf32> to vector<2x15x15xf32>
    %10 = vector.extract_strided_slice %7 {offsets = [0, 1, 0], sizes = [2, 15, 15], strides = [1, 1, 1]} : vector<2x16x16xf32> to vector<2x15x15xf32>
    %11 = vector.extract_strided_slice %7 {offsets = [0, 1, 1], sizes = [2, 15, 15], strides = [1, 1, 1]} : vector<2x16x16xf32> to vector<2x15x15xf32>
    %c2 = arith.constant 2 : index
    %c0_6 = arith.constant 0 : index
    %c0_7 = arith.constant 0 : index
    %c0_8 = arith.constant 0 : index
    %12 = vector.load %arg0[%c2, %c0_6, %c0_7, %c0_8] : memref<4x2x16x16xf32, #tpu.memory_space<vmem>>, vector<1x2x16x16xf32>
    %13 = vector.shape_cast %12 : vector<1x2x16x16xf32> to vector<2x16x16xf32>
    %14 = vector.extract_strided_slice %13 {offsets = [0, 0, 0], sizes = [2, 15, 15], strides = [1, 1, 1]} : vector<2x16x16xf32> to vector<2x15x15xf32>
    %15 = vector.extract_strided_slice %13 {offsets = [0, 0, 1], sizes = [2, 15, 15], strides = [1, 1, 1]} : vector<2x16x16xf32> to vector<2x15x15xf32>
    %16 = vector.extract_strided_slice %13 {offsets = [0, 1, 0], sizes = [2, 15, 15], strides = [1, 1, 1]} : vector<2x16x16xf32> to vector<2x15x15xf32>
    %17 = vector.extract_strided_slice %13 {offsets = [0, 1, 1], sizes = [2, 15, 15], strides = [1, 1, 1]} : vector<2x16x16xf32> to vector<2x15x15xf32>
    %c3 = arith.constant 3 : index
    %c0_9 = arith.constant 0 : index
    %c0_10 = arith.constant 0 : index
    %c0_11 = arith.constant 0 : index
    %18 = vector.load %arg0[%c3, %c0_9, %c0_10, %c0_11] : memref<4x2x16x16xf32, #tpu.memory_space<vmem>>, vector<1x2x16x16xf32>
    %19 = vector.shape_cast %18 : vector<1x2x16x16xf32> to vector<2x16x16xf32>
    %20 = vector.extract_strided_slice %19 {offsets = [0, 0, 0], sizes = [2, 15, 15], strides = [1, 1, 1]} : vector<2x16x16xf32> to vector<2x15x15xf32>
    %21 = vector.extract_strided_slice %19 {offsets = [0, 0, 1], sizes = [2, 15, 15], strides = [1, 1, 1]} : vector<2x16x16xf32> to vector<2x15x15xf32>
    %22 = vector.extract_strided_slice %19 {offsets = [0, 1, 0], sizes = [2, 15, 15], strides = [1, 1, 1]} : vector<2x16x16xf32> to vector<2x15x15xf32>
    %23 = vector.extract_strided_slice %19 {offsets = [0, 1, 1], sizes = [2, 15, 15], strides = [1, 1, 1]} : vector<2x16x16xf32> to vector<2x15x15xf32>
    %c0_12 = arith.constant 0 : index
    %c0_13 = arith.constant 0 : index
    %24 = memref.load %arg1[%c0_12, %c0_13] : memref<6x9xf32, #tpu.memory_space<smem>>
    %c0_14 = arith.constant 0 : index
    %c1_15 = arith.constant 1 : index
    %25 = memref.load %arg1[%c0_14, %c1_15] : memref<6x9xf32, #tpu.memory_space<smem>>
    %c0_16 = arith.constant 0 : index
    %c2_17 = arith.constant 2 : index
    %26 = memref.load %arg1[%c0_16, %c2_17] : memref<6x9xf32, #tpu.memory_space<smem>>
    %c0_18 = arith.constant 0 : index
    %c3_19 = arith.constant 3 : index
    %27 = memref.load %arg1[%c0_18, %c3_19] : memref<6x9xf32, #tpu.memory_space<smem>>
    %c0_20 = arith.constant 0 : index
    %c4 = arith.constant 4 : index
    %28 = memref.load %arg1[%c0_20, %c4] : memref<6x9xf32, #tpu.memory_space<smem>>
    %c0_21 = arith.constant 0 : index
    %c5 = arith.constant 5 : index
    %29 = memref.load %arg1[%c0_21, %c5] : memref<6x9xf32, #tpu.memory_space<smem>>
    %c0_22 = arith.constant 0 : index
    %c6 = arith.constant 6 : index
    %30 = memref.load %arg1[%c0_22, %c6] : memref<6x9xf32, #tpu.memory_space<smem>>
    %c0_23 = arith.constant 0 : index
    %c7 = arith.constant 7 : index
    %31 = memref.load %arg1[%c0_23, %c7] : memref<6x9xf32, #tpu.memory_space<smem>>
    %c0_24 = arith.constant 0 : index
    %c8 = arith.constant 8 : index
    %32 = memref.load %arg1[%c0_24, %c8] : memref<6x9xf32, #tpu.memory_space<smem>>
    %33 = vector.broadcast %24 : f32 to vector<2x15x15xf32>
    %34 = arith.mulf %33, %2 : vector<2x15x15xf32>
    %35 = vector.broadcast %25 : f32 to vector<2x15x15xf32>
    %36 = arith.mulf %35, %8 : vector<2x15x15xf32>
    %37 = arith.addf %34, %36 : vector<2x15x15xf32>
    %38 = vector.broadcast %26 : f32 to vector<2x15x15xf32>
    %39 = arith.mulf %38, %3 : vector<2x15x15xf32>
    %40 = arith.addf %37, %39 : vector<2x15x15xf32>
    %41 = vector.broadcast %27 : f32 to vector<2x15x15xf32>
    %42 = arith.mulf %41, %14 : vector<2x15x15xf32>
    %43 = arith.addf %40, %42 : vector<2x15x15xf32>
    %44 = vector.broadcast %28 : f32 to vector<2x15x15xf32>
    %45 = arith.mulf %44, %20 : vector<2x15x15xf32>
    %46 = arith.addf %43, %45 : vector<2x15x15xf32>
    %47 = vector.broadcast %29 : f32 to vector<2x15x15xf32>
    %48 = arith.mulf %47, %15 : vector<2x15x15xf32>
    %49 = arith.addf %46, %48 : vector<2x15x15xf32>
    %50 = vector.broadcast %30 : f32 to vector<2x15x15xf32>
    %51 = arith.mulf %50, %4 : vector<2x15x15xf32>
    %52 = arith.addf %49, %51 : vector<2x15x15xf32>
    %53 = vector.broadcast %31 : f32 to vector<2x15x15xf32>
    %54 = arith.mulf %53, %10 : vector<2x15x15xf32>
    %55 = arith.addf %52, %54 : vector<2x15x15xf32>
    %56 = vector.broadcast %32 : f32 to vector<2x15x15xf32>
    %57 = arith.mulf %56, %5 : vector<2x15x15xf32>
    %58 = arith.addf %55, %57 : vector<2x15x15xf32>
    %59 = vector.broadcast %24 : f32 to vector<2x15x15xf32>
    %60 = arith.mulf %59, %8 : vector<2x15x15xf32>
    %61 = vector.broadcast %25 : f32 to vector<2x15x15xf32>
    %62 = arith.mulf %61, %3 : vector<2x15x15xf32>
    %63 = arith.addf %60, %62 : vector<2x15x15xf32>
    %64 = vector.broadcast %26 : f32 to vector<2x15x15xf32>
    %65 = arith.mulf %64, %9 : vector<2x15x15xf32>
    %66 = arith.addf %63, %65 : vector<2x15x15xf32>
    %67 = vector.broadcast %27 : f32 to vector<2x15x15xf32>
    %68 = arith.mulf %67, %20 : vector<2x15x15xf32>
    %69 = arith.addf %66, %68 : vector<2x15x15xf32>
    %70 = vector.broadcast %28 : f32 to vector<2x15x15xf32>
    %71 = arith.mulf %70, %15 : vector<2x15x15xf32>
    %72 = arith.addf %69, %71 : vector<2x15x15xf32>
    %73 = vector.broadcast %29 : f32 to vector<2x15x15xf32>
    %74 = arith.mulf %73, %21 : vector<2x15x15xf32>
    %75 = arith.addf %72, %74 : vector<2x15x15xf32>
    %76 = vector.broadcast %30 : f32 to vector<2x15x15xf32>
    %77 = arith.mulf %76, %10 : vector<2x15x15xf32>
    %78 = arith.addf %75, %77 : vector<2x15x15xf32>
    %79 = vector.broadcast %31 : f32 to vector<2x15x15xf32>
    %80 = arith.mulf %79, %5 : vector<2x15x15xf32>
    %81 = arith.addf %78, %80 : vector<2x15x15xf32>
    %82 = vector.broadcast %32 : f32 to vector<2x15x15xf32>
    %83 = arith.mulf %82, %11 : vector<2x15x15xf32>
    %84 = arith.addf %81, %83 : vector<2x15x15xf32>
    %85 = vector.broadcast %24 : f32 to vector<2x15x15xf32>
    %86 = arith.mulf %85, %14 : vector<2x15x15xf32>
    %87 = vector.broadcast %25 : f32 to vector<2x15x15xf32>
    %88 = arith.mulf %87, %20 : vector<2x15x15xf32>
    %89 = arith.addf %86, %88 : vector<2x15x15xf32>
    %90 = vector.broadcast %26 : f32 to vector<2x15x15xf32>
    %91 = arith.mulf %90, %15 : vector<2x15x15xf32>
    %92 = arith.addf %89, %91 : vector<2x15x15xf32>
    %93 = vector.broadcast %27 : f32 to vector<2x15x15xf32>
    %94 = arith.mulf %93, %4 : vector<2x15x15xf32>
    %95 = arith.addf %92, %94 : vector<2x15x15xf32>
    %96 = vector.broadcast %28 : f32 to vector<2x15x15xf32>
    %97 = arith.mulf %96, %10 : vector<2x15x15xf32>
    %98 = arith.addf %95, %97 : vector<2x15x15xf32>
    %99 = vector.broadcast %29 : f32 to vector<2x15x15xf32>
    %100 = arith.mulf %99, %5 : vector<2x15x15xf32>
    %101 = arith.addf %98, %100 : vector<2x15x15xf32>
    %102 = vector.broadcast %30 : f32 to vector<2x15x15xf32>
    %103 = arith.mulf %102, %16 : vector<2x15x15xf32>
    %104 = arith.addf %101, %103 : vector<2x15x15xf32>
    %105 = vector.broadcast %31 : f32 to vector<2x15x15xf32>
    %106 = arith.mulf %105, %22 : vector<2x15x15xf32>
    %107 = arith.addf %104, %106 : vector<2x15x15xf32>
    %108 = vector.broadcast %32 : f32 to vector<2x15x15xf32>
    %109 = arith.mulf %108, %17 : vector<2x15x15xf32>
    %110 = arith.addf %107, %109 : vector<2x15x15xf32>
    %111 = vector.broadcast %24 : f32 to vector<2x15x15xf32>
    %112 = arith.mulf %111, %20 : vector<2x15x15xf32>
    %113 = vector.broadcast %25 : f32 to vector<2x15x15xf32>
    %114 = arith.mulf %113, %15 : vector<2x15x15xf32>
    %115 = arith.addf %112, %114 : vector<2x15x15xf32>
    %116 = vector.broadcast %26 : f32 to vector<2x15x15xf32>
    %117 = arith.mulf %116, %21 : vector<2x15x15xf32>
    %118 = arith.addf %115, %117 : vector<2x15x15xf32>
    %119 = vector.broadcast %27 : f32 to vector<2x15x15xf32>
    %120 = arith.mulf %119, %10 : vector<2x15x15xf32>
    %121 = arith.addf %118, %120 : vector<2x15x15xf32>
    %122 = vector.broadcast %28 : f32 to vector<2x15x15xf32>
    %123 = arith.mulf %122, %5 : vector<2x15x15xf32>
    %124 = arith.addf %121, %123 : vector<2x15x15xf32>
    %125 = vector.broadcast %29 : f32 to vector<2x15x15xf32>
    %126 = arith.mulf %125, %11 : vector<2x15x15xf32>
    %127 = arith.addf %124, %126 : vector<2x15x15xf32>
    %128 = vector.broadcast %30 : f32 to vector<2x15x15xf32>
    %129 = arith.mulf %128, %22 : vector<2x15x15xf32>
    %130 = arith.addf %127, %129 : vector<2x15x15xf32>
    %131 = vector.broadcast %31 : f32 to vector<2x15x15xf32>
    %132 = arith.mulf %131, %17 : vector<2x15x15xf32>
    %133 = arith.addf %130, %132 : vector<2x15x15xf32>
    %134 = vector.broadcast %32 : f32 to vector<2x15x15xf32>
    %135 = arith.mulf %134, %23 : vector<2x15x15xf32>
    %136 = arith.addf %133, %135 : vector<2x15x15xf32>
    %137 = arith.maximumf %58, %84 : vector<2x15x15xf32>
    %138 = arith.maximumf %110, %136 : vector<2x15x15xf32>
    %139 = arith.maximumf %137, %138 : vector<2x15x15xf32>
    %c0_25 = arith.constant 0 : index
    %140 = memref.load %arg2[%c0_25] : memref<6xf32, #tpu.memory_space<smem>>
    %141 = vector.broadcast %140 : f32 to vector<2x15x15xf32>
    %142 = arith.addf %139, %141 : vector<2x15x15xf32>
    %cst = arith.constant 0.000000e+00 : f32
    %143 = vector.broadcast %cst : f32 to vector<2x15x15xf32>
    %144 = arith.maximumf %142, %143 : vector<2x15x15xf32>
    %c0_26 = arith.constant 0 : index
    %c0_27 = arith.constant 0 : index
    %c0_28 = arith.constant 0 : index
    %c0_29 = arith.constant 0 : index
    %145 = vector.load %arg3[%c0_26, %c0_27, %c0_28, %c0_29] : memref<6x2x15x15xf32, #tpu.memory_space<vmem>>, vector<1x2x15x15xf32>
    %146 = vector.shape_cast %145 : vector<1x2x15x15xf32> to vector<2x15x15xf32>
    %147 = vector.shape_cast %144 : vector<2x15x15xf32> to vector<1x2x15x15xf32>
    tpu.vector_store %arg3[%c0_26, %c0_27, %c0_28, %c0_29], %147 {strides = array<i32>} : memref<6x2x15x15xf32, #tpu.memory_space<vmem>>, vector<1x2x15x15xf32>,
    %c1_30 = arith.constant 1 : index
    %c0_31 = arith.constant 0 : index
    %148 = memref.load %arg1[%c1_30, %c0_31] : memref<6x9xf32, #tpu.memory_space<smem>>
    %c1_32 = arith.constant 1 : index
    %c1_33 = arith.constant 1 : index
    %149 = memref.load %arg1[%c1_32, %c1_33] : memref<6x9xf32, #tpu.memory_space<smem>>
    %c1_34 = arith.constant 1 : index
    %c2_35 = arith.constant 2 : index
    %150 = memref.load %arg1[%c1_34, %c2_35] : memref<6x9xf32, #tpu.memory_space<smem>>
    %c1_36 = arith.constant 1 : index
    %c3_37 = arith.constant 3 : index
    %151 = memref.load %arg1[%c1_36, %c3_37] : memref<6x9xf32, #tpu.memory_space<smem>>
    %c1_38 = arith.constant 1 : index
    %c4_39 = arith.constant 4 : index
    %152 = memref.load %arg1[%c1_38, %c4_39] : memref<6x9xf32, #tpu.memory_space<smem>>
    %c1_40 = arith.constant 1 : index
    %c5_41 = arith.constant 5 : index
    %153 = memref.load %arg1[%c1_40, %c5_41] : memref<6x9xf32, #tpu.memory_space<smem>>
    %c1_42 = arith.constant 1 : index
    %c6_43 = arith.constant 6 : index
    %154 = memref.load %arg1[%c1_42, %c6_43] : memref<6x9xf32, #tpu.memory_space<smem>>
    %c1_44 = arith.constant 1 : index
    %c7_45 = arith.constant 7 : index
    %155 = memref.load %arg1[%c1_44, %c7_45] : memref<6x9xf32, #tpu.memory_space<smem>>
    %c1_46 = arith.constant 1 : index
    %c8_47 = arith.constant 8 : index
    %156 = memref.load %arg1[%c1_46, %c8_47] : memref<6x9xf32, #tpu.memory_space<smem>>
    %157 = vector.broadcast %148 : f32 to vector<2x15x15xf32>
    %158 = arith.mulf %157, %2 : vector<2x15x15xf32>
    %159 = vector.broadcast %149 : f32 to vector<2x15x15xf32>
    %160 = arith.mulf %159, %8 : vector<2x15x15xf32>
    %161 = arith.addf %158, %160 : vector<2x15x15xf32>
    %162 = vector.broadcast %150 : f32 to vector<2x15x15xf32>
    %163 = arith.mulf %162, %3 : vector<2x15x15xf32>
    %164 = arith.addf %161, %163 : vector<2x15x15xf32>
    %165 = vector.broadcast %151 : f32 to vector<2x15x15xf32>
    %166 = arith.mulf %165, %14 : vector<2x15x15xf32>
    %167 = arith.addf %164, %166 : vector<2x15x15xf32>
    %168 = vector.broadcast %152 : f32 to vector<2x15x15xf32>
    %169 = arith.mulf %168, %20 : vector<2x15x15xf32>
    %170 = arith.addf %167, %169 : vector<2x15x15xf32>
    %171 = vector.broadcast %153 : f32 to vector<2x15x15xf32>
    %172 = arith.mulf %171, %15 : vector<2x15x15xf32>
    %173 = arith.addf %170, %172 : vector<2x15x15xf32>
    %174 = vector.broadcast %154 : f32 to vector<2x15x15xf32>
    %175 = arith.mulf %174, %4 : vector<2x15x15xf32>
    %176 = arith.addf %173, %175 : vector<2x15x15xf32>
    %177 = vector.broadcast %155 : f32 to vector<2x15x15xf32>
    %178 = arith.mulf %177, %10 : vector<2x15x15xf32>
    %179 = arith.addf %176, %178 : vector<2x15x15xf32>
    %180 = vector.broadcast %156 : f32 to vector<2x15x15xf32>
    %181 = arith.mulf %180, %5 : vector<2x15x15xf32>
    %182 = arith.addf %179, %181 : vector<2x15x15xf32>
    %183 = vector.broadcast %148 : f32 to vector<2x15x15xf32>
    %184 = arith.mulf %183, %8 : vector<2x15x15xf32>
    %185 = vector.broadcast %149 : f32 to vector<2x15x15xf32>
    %186 = arith.mulf %185, %3 : vector<2x15x15xf32>
    %187 = arith.addf %184, %186 : vector<2x15x15xf32>
    %188 = vector.broadcast %150 : f32 to vector<2x15x15xf32>
    %189 = arith.mulf %188, %9 : vector<2x15x15xf32>
    %190 = arith.addf %187, %189 : vector<2x15x15xf32>
    %191 = vector.broadcast %151 : f32 to vector<2x15x15xf32>
    %192 = arith.mulf %191, %20 : vector<2x15x15xf32>
    %193 = arith.addf %190, %192 : vector<2x15x15xf32>
    %194 = vector.broadcast %152 : f32 to vector<2x15x15xf32>
    %195 = arith.mulf %194, %15 : vector<2x15x15xf32>
    %196 = arith.addf %193, %195 : vector<2x15x15xf32>
    %197 = vector.broadcast %153 : f32 to vector<2x15x15xf32>
    %198 = arith.mulf %197, %21 : vector<2x15x15xf32>
    %199 = arith.addf %196, %198 : vector<2x15x15xf32>
    %200 = vector.broadcast %154 : f32 to vector<2x15x15xf32>
    %201 = arith.mulf %200, %10 : vector<2x15x15xf32>
    %202 = arith.addf %199, %201 : vector<2x15x15xf32>
    %203 = vector.broadcast %155 : f32 to vector<2x15x15xf32>
    %204 = arith.mulf %203, %5 : vector<2x15x15xf32>
    %205 = arith.addf %202, %204 : vector<2x15x15xf32>
    %206 = vector.broadcast %156 : f32 to vector<2x15x15xf32>
    %207 = arith.mulf %206, %11 : vector<2x15x15xf32>
    %208 = arith.addf %205, %207 : vector<2x15x15xf32>
    %209 = vector.broadcast %148 : f32 to vector<2x15x15xf32>
    %210 = arith.mulf %209, %14 : vector<2x15x15xf32>
    %211 = vector.broadcast %149 : f32 to vector<2x15x15xf32>
    %212 = arith.mulf %211, %20 : vector<2x15x15xf32>
    %213 = arith.addf %210, %212 : vector<2x15x15xf32>
    %214 = vector.broadcast %150 : f32 to vector<2x15x15xf32>
    %215 = arith.mulf %214, %15 : vector<2x15x15xf32>
    %216 = arith.addf %213, %215 : vector<2x15x15xf32>
    %217 = vector.broadcast %151 : f32 to vector<2x15x15xf32>
    %218 = arith.mulf %217, %4 : vector<2x15x15xf32>
    %219 = arith.addf %216, %218 : vector<2x15x15xf32>
    %220 = vector.broadcast %152 : f32 to vector<2x15x15xf32>
    %221 = arith.mulf %220, %10 : vector<2x15x15xf32>
    %222 = arith.addf %219, %221 : vector<2x15x15xf32>
    %223 = vector.broadcast %153 : f32 to vector<2x15x15xf32>
    %224 = arith.mulf %223, %5 : vector<2x15x15xf32>
    %225 = arith.addf %222, %224 : vector<2x15x15xf32>
    %226 = vector.broadcast %154 : f32 to vector<2x15x15xf32>
    %227 = arith.mulf %226, %16 : vector<2x15x15xf32>
    %228 = arith.addf %225, %227 : vector<2x15x15xf32>
    %229 = vector.broadcast %155 : f32 to vector<2x15x15xf32>
    %230 = arith.mulf %229, %22 : vector<2x15x15xf32>
    %231 = arith.addf %228, %230 : vector<2x15x15xf32>
    %232 = vector.broadcast %156 : f32 to vector<2x15x15xf32>
    %233 = arith.mulf %232, %17 : vector<2x15x15xf32>
    %234 = arith.addf %231, %233 : vector<2x15x15xf32>
    %235 = vector.broadcast %148 : f32 to vector<2x15x15xf32>
    %236 = arith.mulf %235, %20 : vector<2x15x15xf32>
    %237 = vector.broadcast %149 : f32 to vector<2x15x15xf32>
    %238 = arith.mulf %237, %15 : vector<2x15x15xf32>
    %239 = arith.addf %236, %238 : vector<2x15x15xf32>
    %240 = vector.broadcast %150 : f32 to vector<2x15x15xf32>
    %241 = arith.mulf %240, %21 : vector<2x15x15xf32>
    %242 = arith.addf %239, %241 : vector<2x15x15xf32>
    %243 = vector.broadcast %151 : f32 to vector<2x15x15xf32>
    %244 = arith.mulf %243, %10 : vector<2x15x15xf32>
    %245 = arith.addf %242, %244 : vector<2x15x15xf32>
    %246 = vector.broadcast %152 : f32 to vector<2x15x15xf32>
    %247 = arith.mulf %246, %5 : vector<2x15x15xf32>
    %248 = arith.addf %245, %247 : vector<2x15x15xf32>
    %249 = vector.broadcast %153 : f32 to vector<2x15x15xf32>
    %250 = arith.mulf %249, %11 : vector<2x15x15xf32>
    %251 = arith.addf %248, %250 : vector<2x15x15xf32>
    %252 = vector.broadcast %154 : f32 to vector<2x15x15xf32>
    %253 = arith.mulf %252, %22 : vector<2x15x15xf32>
    %254 = arith.addf %251, %253 : vector<2x15x15xf32>
    %255 = vector.broadcast %155 : f32 to vector<2x15x15xf32>
    %256 = arith.mulf %255, %17 : vector<2x15x15xf32>
    %257 = arith.addf %254, %256 : vector<2x15x15xf32>
    %258 = vector.broadcast %156 : f32 to vector<2x15x15xf32>
    %259 = arith.mulf %258, %23 : vector<2x15x15xf32>
    %260 = arith.addf %257, %259 : vector<2x15x15xf32>
    %261 = arith.maximumf %182, %208 : vector<2x15x15xf32>
    %262 = arith.maximumf %234, %260 : vector<2x15x15xf32>
    %263 = arith.maximumf %261, %262 : vector<2x15x15xf32>
    %c1_48 = arith.constant 1 : index
    %264 = memref.load %arg2[%c1_48] : memref<6xf32, #tpu.memory_space<smem>>
    %265 = vector.broadcast %264 : f32 to vector<2x15x15xf32>
    %266 = arith.addf %263, %265 : vector<2x15x15xf32>
    %cst_49 = arith.constant 0.000000e+00 : f32
    %267 = vector.broadcast %cst_49 : f32 to vector<2x15x15xf32>
    %268 = arith.maximumf %266, %267 : vector<2x15x15xf32>
    %c1_50 = arith.constant 1 : index
    %c0_51 = arith.constant 0 : index
    %c0_52 = arith.constant 0 : index
    %c0_53 = arith.constant 0 : index
    %269 = vector.load %arg3[%c1_50, %c0_51, %c0_52, %c0_53] : memref<6x2x15x15xf32, #tpu.memory_space<vmem>>, vector<1x2x15x15xf32>
    %270 = vector.shape_cast %269 : vector<1x2x15x15xf32> to vector<2x15x15xf32>
    %271 = vector.shape_cast %268 : vector<2x15x15xf32> to vector<1x2x15x15xf32>
    tpu.vector_store %arg3[%c1_50, %c0_51, %c0_52, %c0_53], %271 {strides = array<i32>} : memref<6x2x15x15xf32, #tpu.memory_space<vmem>>, vector<1x2x15x15xf32>,
    %c2_54 = arith.constant 2 : index
    %c0_55 = arith.constant 0 : index
    %272 = memref.load %arg1[%c2_54, %c0_55] : memref<6x9xf32, #tpu.memory_space<smem>>
    %c2_56 = arith.constant 2 : index
    %c1_57 = arith.constant 1 : index
    %273 = memref.load %arg1[%c2_56, %c1_57] : memref<6x9xf32, #tpu.memory_space<smem>>
    %c2_58 = arith.constant 2 : index
    %c2_59 = arith.constant 2 : index
    %274 = memref.load %arg1[%c2_58, %c2_59] : memref<6x9xf32, #tpu.memory_space<smem>>
    %c2_60 = arith.constant 2 : index
    %c3_61 = arith.constant 3 : index
    %275 = memref.load %arg1[%c2_60, %c3_61] : memref<6x9xf32, #tpu.memory_space<smem>>
    %c2_62 = arith.constant 2 : index
    %c4_63 = arith.constant 4 : index
    %276 = memref.load %arg1[%c2_62, %c4_63] : memref<6x9xf32, #tpu.memory_space<smem>>
    %c2_64 = arith.constant 2 : index
    %c5_65 = arith.constant 5 : index
    %277 = memref.load %arg1[%c2_64, %c5_65] : memref<6x9xf32, #tpu.memory_space<smem>>
    %c2_66 = arith.constant 2 : index
    %c6_67 = arith.constant 6 : index
    %278 = memref.load %arg1[%c2_66, %c6_67] : memref<6x9xf32, #tpu.memory_space<smem>>
    %c2_68 = arith.constant 2 : index
    %c7_69 = arith.constant 7 : index
    %279 = memref.load %arg1[%c2_68, %c7_69] : memref<6x9xf32, #tpu.memory_space<smem>>
    %c2_70 = arith.constant 2 : index
    %c8_71 = arith.constant 8 : index
    %280 = memref.load %arg1[%c2_70, %c8_71] : memref<6x9xf32, #tpu.memory_space<smem>>
    %281 = vector.broadcast %272 : f32 to vector<2x15x15xf32>
    %282 = arith.mulf %281, %2 : vector<2x15x15xf32>
    %283 = vector.broadcast %273 : f32 to vector<2x15x15xf32>
    %284 = arith.mulf %283, %8 : vector<2x15x15xf32>
    %285 = arith.addf %282, %284 : vector<2x15x15xf32>
    %286 = vector.broadcast %274 : f32 to vector<2x15x15xf32>
    %287 = arith.mulf %286, %3 : vector<2x15x15xf32>
    %288 = arith.addf %285, %287 : vector<2x15x15xf32>
    %289 = vector.broadcast %275 : f32 to vector<2x15x15xf32>
    %290 = arith.mulf %289, %14 : vector<2x15x15xf32>
    %291 = arith.addf %288, %290 : vector<2x15x15xf32>
    %292 = vector.broadcast %276 : f32 to vector<2x15x15xf32>
    %293 = arith.mulf %292, %20 : vector<2x15x15xf32>
    %294 = arith.addf %291, %293 : vector<2x15x15xf32>
    %295 = vector.broadcast %277 : f32 to vector<2x15x15xf32>
    %296 = arith.mulf %295, %15 : vector<2x15x15xf32>
    %297 = arith.addf %294, %296 : vector<2x15x15xf32>
    %298 = vector.broadcast %278 : f32 to vector<2x15x15xf32>
    %299 = arith.mulf %298, %4 : vector<2x15x15xf32>
    %300 = arith.addf %297, %299 : vector<2x15x15xf32>
    %301 = vector.broadcast %279 : f32 to vector<2x15x15xf32>
    %302 = arith.mulf %301, %10 : vector<2x15x15xf32>
    %303 = arith.addf %300, %302 : vector<2x15x15xf32>
    %304 = vector.broadcast %280 : f32 to vector<2x15x15xf32>
    %305 = arith.mulf %304, %5 : vector<2x15x15xf32>
    %306 = arith.addf %303, %305 : vector<2x15x15xf32>
    %307 = vector.broadcast %272 : f32 to vector<2x15x15xf32>
    %308 = arith.mulf %307, %8 : vector<2x15x15xf32>
    %309 = vector.broadcast %273 : f32 to vector<2x15x15xf32>
    %310 = arith.mulf %309, %3 : vector<2x15x15xf32>
    %311 = arith.addf %308, %310 : vector<2x15x15xf32>
    %312 = vector.broadcast %274 : f32 to vector<2x15x15xf32>
    %313 = arith.mulf %312, %9 : vector<2x15x15xf32>
    %314 = arith.addf %311, %313 : vector<2x15x15xf32>
    %315 = vector.broadcast %275 : f32 to vector<2x15x15xf32>
    %316 = arith.mulf %315, %20 : vector<2x15x15xf32>
    %317 = arith.addf %314, %316 : vector<2x15x15xf32>
    %318 = vector.broadcast %276 : f32 to vector<2x15x15xf32>
    %319 = arith.mulf %318, %15 : vector<2x15x15xf32>
    %320 = arith.addf %317, %319 : vector<2x15x15xf32>
    %321 = vector.broadcast %277 : f32 to vector<2x15x15xf32>
    %322 = arith.mulf %321, %21 : vector<2x15x15xf32>
    %323 = arith.addf %320, %322 : vector<2x15x15xf32>
    %324 = vector.broadcast %278 : f32 to vector<2x15x15xf32>
    %325 = arith.mulf %324, %10 : vector<2x15x15xf32>
    %326 = arith.addf %323, %325 : vector<2x15x15xf32>
    %327 = vector.broadcast %279 : f32 to vector<2x15x15xf32>
    %328 = arith.mulf %327, %5 : vector<2x15x15xf32>
    %329 = arith.addf %326, %328 : vector<2x15x15xf32>
    %330 = vector.broadcast %280 : f32 to vector<2x15x15xf32>
    %331 = arith.mulf %330, %11 : vector<2x15x15xf32>
    %332 = arith.addf %329, %331 : vector<2x15x15xf32>
    %333 = vector.broadcast %272 : f32 to vector<2x15x15xf32>
    %334 = arith.mulf %333, %14 : vector<2x15x15xf32>
    %335 = vector.broadcast %273 : f32 to vector<2x15x15xf32>
    %336 = arith.mulf %335, %20 : vector<2x15x15xf32>
    %337 = arith.addf %334, %336 : vector<2x15x15xf32>
    %338 = vector.broadcast %274 : f32 to vector<2x15x15xf32>
    %339 = arith.mulf %338, %15 : vector<2x15x15xf32>
    %340 = arith.addf %337, %339 : vector<2x15x15xf32>
    %341 = vector.broadcast %275 : f32 to vector<2x15x15xf32>
    %342 = arith.mulf %341, %4 : vector<2x15x15xf32>
    %343 = arith.addf %340, %342 : vector<2x15x15xf32>
    %344 = vector.broadcast %276 : f32 to vector<2x15x15xf32>
    %345 = arith.mulf %344, %10 : vector<2x15x15xf32>
    %346 = arith.addf %343, %345 : vector<2x15x15xf32>
    %347 = vector.broadcast %277 : f32 to vector<2x15x15xf32>
    %348 = arith.mulf %347, %5 : vector<2x15x15xf32>
    %349 = arith.addf %346, %348 : vector<2x15x15xf32>
    %350 = vector.broadcast %278 : f32 to vector<2x15x15xf32>
    %351 = arith.mulf %350, %16 : vector<2x15x15xf32>
    %352 = arith.addf %349, %351 : vector<2x15x15xf32>
    %353 = vector.broadcast %279 : f32 to vector<2x15x15xf32>
    %354 = arith.mulf %353, %22 : vector<2x15x15xf32>
    %355 = arith.addf %352, %354 : vector<2x15x15xf32>
    %356 = vector.broadcast %280 : f32 to vector<2x15x15xf32>
    %357 = arith.mulf %356, %17 : vector<2x15x15xf32>
    %358 = arith.addf %355, %357 : vector<2x15x15xf32>
    %359 = vector.broadcast %272 : f32 to vector<2x15x15xf32>
    %360 = arith.mulf %359, %20 : vector<2x15x15xf32>
    %361 = vector.broadcast %273 : f32 to vector<2x15x15xf32>
    %362 = arith.mulf %361, %15 : vector<2x15x15xf32>
    %363 = arith.addf %360, %362 : vector<2x15x15xf32>
    %364 = vector.broadcast %274 : f32 to vector<2x15x15xf32>
    %365 = arith.mulf %364, %21 : vector<2x15x15xf32>
    %366 = arith.addf %363, %365 : vector<2x15x15xf32>
    %367 = vector.broadcast %275 : f32 to vector<2x15x15xf32>
    %368 = arith.mulf %367, %10 : vector<2x15x15xf32>
    %369 = arith.addf %366, %368 : vector<2x15x15xf32>
    %370 = vector.broadcast %276 : f32 to vector<2x15x15xf32>
    %371 = arith.mulf %370, %5 : vector<2x15x15xf32>
    %372 = arith.addf %369, %371 : vector<2x15x15xf32>
    %373 = vector.broadcast %277 : f32 to vector<2x15x15xf32>
    %374 = arith.mulf %373, %11 : vector<2x15x15xf32>
    %375 = arith.addf %372, %374 : vector<2x15x15xf32>
    %376 = vector.broadcast %278 : f32 to vector<2x15x15xf32>
    %377 = arith.mulf %376, %22 : vector<2x15x15xf32>
    %378 = arith.addf %375, %377 : vector<2x15x15xf32>
    %379 = vector.broadcast %279 : f32 to vector<2x15x15xf32>
    %380 = arith.mulf %379, %17 : vector<2x15x15xf32>
    %381 = arith.addf %378, %380 : vector<2x15x15xf32>
    %382 = vector.broadcast %280 : f32 to vector<2x15x15xf32>
    %383 = arith.mulf %382, %23 : vector<2x15x15xf32>
    %384 = arith.addf %381, %383 : vector<2x15x15xf32>
    %385 = arith.maximumf %306, %332 : vector<2x15x15xf32>
    %386 = arith.maximumf %358, %384 : vector<2x15x15xf32>
    %387 = arith.maximumf %385, %386 : vector<2x15x15xf32>
    %c2_72 = arith.constant 2 : index
    %388 = memref.load %arg2[%c2_72] : memref<6xf32, #tpu.memory_space<smem>>
    %389 = vector.broadcast %388 : f32 to vector<2x15x15xf32>
    %390 = arith.addf %387, %389 : vector<2x15x15xf32>
    %cst_73 = arith.constant 0.000000e+00 : f32
    %391 = vector.broadcast %cst_73 : f32 to vector<2x15x15xf32>
    %392 = arith.maximumf %390, %391 : vector<2x15x15xf32>
    %c2_74 = arith.constant 2 : index
    %c0_75 = arith.constant 0 : index
    %c0_76 = arith.constant 0 : index
    %c0_77 = arith.constant 0 : index
    %393 = vector.load %arg3[%c2_74, %c0_75, %c0_76, %c0_77] : memref<6x2x15x15xf32, #tpu.memory_space<vmem>>, vector<1x2x15x15xf32>
    %394 = vector.shape_cast %393 : vector<1x2x15x15xf32> to vector<2x15x15xf32>
    %395 = vector.shape_cast %392 : vector<2x15x15xf32> to vector<1x2x15x15xf32>
    tpu.vector_store %arg3[%c2_74, %c0_75, %c0_76, %c0_77], %395 {strides = array<i32>} : memref<6x2x15x15xf32, #tpu.memory_space<vmem>>, vector<1x2x15x15xf32>,
    %c3_78 = arith.constant 3 : index
    %c0_79 = arith.constant 0 : index
    %396 = memref.load %arg1[%c3_78, %c0_79] : memref<6x9xf32, #tpu.memory_space<smem>>
    %c3_80 = arith.constant 3 : index
    %c1_81 = arith.constant 1 : index
    %397 = memref.load %arg1[%c3_80, %c1_81] : memref<6x9xf32, #tpu.memory_space<smem>>
    %c3_82 = arith.constant 3 : index
    %c2_83 = arith.constant 2 : index
    %398 = memref.load %arg1[%c3_82, %c2_83] : memref<6x9xf32, #tpu.memory_space<smem>>
    %c3_84 = arith.constant 3 : index
    %c3_85 = arith.constant 3 : index
    %399 = memref.load %arg1[%c3_84, %c3_85] : memref<6x9xf32, #tpu.memory_space<smem>>
    %c3_86 = arith.constant 3 : index
    %c4_87 = arith.constant 4 : index
    %400 = memref.load %arg1[%c3_86, %c4_87] : memref<6x9xf32, #tpu.memory_space<smem>>
    %c3_88 = arith.constant 3 : index
    %c5_89 = arith.constant 5 : index
    %401 = memref.load %arg1[%c3_88, %c5_89] : memref<6x9xf32, #tpu.memory_space<smem>>
    %c3_90 = arith.constant 3 : index
    %c6_91 = arith.constant 6 : index
    %402 = memref.load %arg1[%c3_90, %c6_91] : memref<6x9xf32, #tpu.memory_space<smem>>
    %c3_92 = arith.constant 3 : index
    %c7_93 = arith.constant 7 : index
    %403 = memref.load %arg1[%c3_92, %c7_93] : memref<6x9xf32, #tpu.memory_space<smem>>
    %c3_94 = arith.constant 3 : index
    %c8_95 = arith.constant 8 : index
    %404 = memref.load %arg1[%c3_94, %c8_95] : memref<6x9xf32, #tpu.memory_space<smem>>
    %405 = vector.broadcast %396 : f32 to vector<2x15x15xf32>
    %406 = arith.mulf %405, %2 : vector<2x15x15xf32>
    %407 = vector.broadcast %397 : f32 to vector<2x15x15xf32>
    %408 = arith.mulf %407, %8 : vector<2x15x15xf32>
    %409 = arith.addf %406, %408 : vector<2x15x15xf32>
    %410 = vector.broadcast %398 : f32 to vector<2x15x15xf32>
    %411 = arith.mulf %410, %3 : vector<2x15x15xf32>
    %412 = arith.addf %409, %411 : vector<2x15x15xf32>
    %413 = vector.broadcast %399 : f32 to vector<2x15x15xf32>
    %414 = arith.mulf %413, %14 : vector<2x15x15xf32>
    %415 = arith.addf %412, %414 : vector<2x15x15xf32>
    %416 = vector.broadcast %400 : f32 to vector<2x15x15xf32>
    %417 = arith.mulf %416, %20 : vector<2x15x15xf32>
    %418 = arith.addf %415, %417 : vector<2x15x15xf32>
    %419 = vector.broadcast %401 : f32 to vector<2x15x15xf32>
    %420 = arith.mulf %419, %15 : vector<2x15x15xf32>
    %421 = arith.addf %418, %420 : vector<2x15x15xf32>
    %422 = vector.broadcast %402 : f32 to vector<2x15x15xf32>
    %423 = arith.mulf %422, %4 : vector<2x15x15xf32>
    %424 = arith.addf %421, %423 : vector<2x15x15xf32>
    %425 = vector.broadcast %403 : f32 to vector<2x15x15xf32>
    %426 = arith.mulf %425, %10 : vector<2x15x15xf32>
    %427 = arith.addf %424, %426 : vector<2x15x15xf32>
    %428 = vector.broadcast %404 : f32 to vector<2x15x15xf32>
    %429 = arith.mulf %428, %5 : vector<2x15x15xf32>
    %430 = arith.addf %427, %429 : vector<2x15x15xf32>
    %431 = vector.broadcast %396 : f32 to vector<2x15x15xf32>
    %432 = arith.mulf %431, %8 : vector<2x15x15xf32>
    %433 = vector.broadcast %397 : f32 to vector<2x15x15xf32>
    %434 = arith.mulf %433, %3 : vector<2x15x15xf32>
    %435 = arith.addf %432, %434 : vector<2x15x15xf32>
    %436 = vector.broadcast %398 : f32 to vector<2x15x15xf32>
    %437 = arith.mulf %436, %9 : vector<2x15x15xf32>
    %438 = arith.addf %435, %437 : vector<2x15x15xf32>
    %439 = vector.broadcast %399 : f32 to vector<2x15x15xf32>
    %440 = arith.mulf %439, %20 : vector<2x15x15xf32>
    %441 = arith.addf %438, %440 : vector<2x15x15xf32>
    %442 = vector.broadcast %400 : f32 to vector<2x15x15xf32>
    %443 = arith.mulf %442, %15 : vector<2x15x15xf32>
    %444 = arith.addf %441, %443 : vector<2x15x15xf32>
    %445 = vector.broadcast %401 : f32 to vector<2x15x15xf32>
    %446 = arith.mulf %445, %21 : vector<2x15x15xf32>
    %447 = arith.addf %444, %446 : vector<2x15x15xf32>
    %448 = vector.broadcast %402 : f32 to vector<2x15x15xf32>
    %449 = arith.mulf %448, %10 : vector<2x15x15xf32>
    %450 = arith.addf %447, %449 : vector<2x15x15xf32>
    %451 = vector.broadcast %403 : f32 to vector<2x15x15xf32>
    %452 = arith.mulf %451, %5 : vector<2x15x15xf32>
    %453 = arith.addf %450, %452 : vector<2x15x15xf32>
    %454 = vector.broadcast %404 : f32 to vector<2x15x15xf32>
    %455 = arith.mulf %454, %11 : vector<2x15x15xf32>
    %456 = arith.addf %453, %455 : vector<2x15x15xf32>
    %457 = vector.broadcast %396 : f32 to vector<2x15x15xf32>
    %458 = arith.mulf %457, %14 : vector<2x15x15xf32>
    %459 = vector.broadcast %397 : f32 to vector<2x15x15xf32>
    %460 = arith.mulf %459, %20 : vector<2x15x15xf32>
    %461 = arith.addf %458, %460 : vector<2x15x15xf32>
    %462 = vector.broadcast %398 : f32 to vector<2x15x15xf32>
    %463 = arith.mulf %462, %15 : vector<2x15x15xf32>
    %464 = arith.addf %461, %463 : vector<2x15x15xf32>
    %465 = vector.broadcast %399 : f32 to vector<2x15x15xf32>
    %466 = arith.mulf %465, %4 : vector<2x15x15xf32>
    %467 = arith.addf %464, %466 : vector<2x15x15xf32>
    %468 = vector.broadcast %400 : f32 to vector<2x15x15xf32>
    %469 = arith.mulf %468, %10 : vector<2x15x15xf32>
    %470 = arith.addf %467, %469 : vector<2x15x15xf32>
    %471 = vector.broadcast %401 : f32 to vector<2x15x15xf32>
    %472 = arith.mulf %471, %5 : vector<2x15x15xf32>
    %473 = arith.addf %470, %472 : vector<2x15x15xf32>
    %474 = vector.broadcast %402 : f32 to vector<2x15x15xf32>
    %475 = arith.mulf %474, %16 : vector<2x15x15xf32>
    %476 = arith.addf %473, %475 : vector<2x15x15xf32>
    %477 = vector.broadcast %403 : f32 to vector<2x15x15xf32>
    %478 = arith.mulf %477, %22 : vector<2x15x15xf32>
    %479 = arith.addf %476, %478 : vector<2x15x15xf32>
    %480 = vector.broadcast %404 : f32 to vector<2x15x15xf32>
    %481 = arith.mulf %480, %17 : vector<2x15x15xf32>
    %482 = arith.addf %479, %481 : vector<2x15x15xf32>
    %483 = vector.broadcast %396 : f32 to vector<2x15x15xf32>
    %484 = arith.mulf %483, %20 : vector<2x15x15xf32>
    %485 = vector.broadcast %397 : f32 to vector<2x15x15xf32>
    %486 = arith.mulf %485, %15 : vector<2x15x15xf32>
    %487 = arith.addf %484, %486 : vector<2x15x15xf32>
    %488 = vector.broadcast %398 : f32 to vector<2x15x15xf32>
    %489 = arith.mulf %488, %21 : vector<2x15x15xf32>
    %490 = arith.addf %487, %489 : vector<2x15x15xf32>
    %491 = vector.broadcast %399 : f32 to vector<2x15x15xf32>
    %492 = arith.mulf %491, %10 : vector<2x15x15xf32>
    %493 = arith.addf %490, %492 : vector<2x15x15xf32>
    %494 = vector.broadcast %400 : f32 to vector<2x15x15xf32>
    %495 = arith.mulf %494, %5 : vector<2x15x15xf32>
    %496 = arith.addf %493, %495 : vector<2x15x15xf32>
    %497 = vector.broadcast %401 : f32 to vector<2x15x15xf32>
    %498 = arith.mulf %497, %11 : vector<2x15x15xf32>
    %499 = arith.addf %496, %498 : vector<2x15x15xf32>
    %500 = vector.broadcast %402 : f32 to vector<2x15x15xf32>
    %501 = arith.mulf %500, %22 : vector<2x15x15xf32>
    %502 = arith.addf %499, %501 : vector<2x15x15xf32>
    %503 = vector.broadcast %403 : f32 to vector<2x15x15xf32>
    %504 = arith.mulf %503, %17 : vector<2x15x15xf32>
    %505 = arith.addf %502, %504 : vector<2x15x15xf32>
    %506 = vector.broadcast %404 : f32 to vector<2x15x15xf32>
    %507 = arith.mulf %506, %23 : vector<2x15x15xf32>
    %508 = arith.addf %505, %507 : vector<2x15x15xf32>
    %509 = arith.maximumf %430, %456 : vector<2x15x15xf32>
    %510 = arith.maximumf %482, %508 : vector<2x15x15xf32>
    %511 = arith.maximumf %509, %510 : vector<2x15x15xf32>
    %c3_96 = arith.constant 3 : index
    %512 = memref.load %arg2[%c3_96] : memref<6xf32, #tpu.memory_space<smem>>
    %513 = vector.broadcast %512 : f32 to vector<2x15x15xf32>
    %514 = arith.addf %511, %513 : vector<2x15x15xf32>
    %cst_97 = arith.constant 0.000000e+00 : f32
    %515 = vector.broadcast %cst_97 : f32 to vector<2x15x15xf32>
    %516 = arith.maximumf %514, %515 : vector<2x15x15xf32>
    %c3_98 = arith.constant 3 : index
    %c0_99 = arith.constant 0 : index
    %c0_100 = arith.constant 0 : index
    %c0_101 = arith.constant 0 : index
    %517 = vector.load %arg3[%c3_98, %c0_99, %c0_100, %c0_101] : memref<6x2x15x15xf32, #tpu.memory_space<vmem>>, vector<1x2x15x15xf32>
    %518 = vector.shape_cast %517 : vector<1x2x15x15xf32> to vector<2x15x15xf32>
    %519 = vector.shape_cast %516 : vector<2x15x15xf32> to vector<1x2x15x15xf32>
    tpu.vector_store %arg3[%c3_98, %c0_99, %c0_100, %c0_101], %519 {strides = array<i32>} : memref<6x2x15x15xf32, #tpu.memory_space<vmem>>, vector<1x2x15x15xf32>,
    %c4_102 = arith.constant 4 : index
    %c0_103 = arith.constant 0 : index
    %520 = memref.load %arg1[%c4_102, %c0_103] : memref<6x9xf32, #tpu.memory_space<smem>>
    %c4_104 = arith.constant 4 : index
    %c1_105 = arith.constant 1 : index
    %521 = memref.load %arg1[%c4_104, %c1_105] : memref<6x9xf32, #tpu.memory_space<smem>>
    %c4_106 = arith.constant 4 : index
    %c2_107 = arith.constant 2 : index
    %522 = memref.load %arg1[%c4_106, %c2_107] : memref<6x9xf32, #tpu.memory_space<smem>>
    %c4_108 = arith.constant 4 : index
    %c3_109 = arith.constant 3 : index
    %523 = memref.load %arg1[%c4_108, %c3_109] : memref<6x9xf32, #tpu.memory_space<smem>>
    %c4_110 = arith.constant 4 : index
    %c4_111 = arith.constant 4 : index
    %524 = memref.load %arg1[%c4_110, %c4_111] : memref<6x9xf32, #tpu.memory_space<smem>>
    %c4_112 = arith.constant 4 : index
    %c5_113 = arith.constant 5 : index
    %525 = memref.load %arg1[%c4_112, %c5_113] : memref<6x9xf32, #tpu.memory_space<smem>>
    %c4_114 = arith.constant 4 : index
    %c6_115 = arith.constant 6 : index
    %526 = memref.load %arg1[%c4_114, %c6_115] : memref<6x9xf32, #tpu.memory_space<smem>>
    %c4_116 = arith.constant 4 : index
    %c7_117 = arith.constant 7 : index
    %527 = memref.load %arg1[%c4_116, %c7_117] : memref<6x9xf32, #tpu.memory_space<smem>>
    %c4_118 = arith.constant 4 : index
    %c8_119 = arith.constant 8 : index
    %528 = memref.load %arg1[%c4_118, %c8_119] : memref<6x9xf32, #tpu.memory_space<smem>>
    %529 = vector.broadcast %520 : f32 to vector<2x15x15xf32>
    %530 = arith.mulf %529, %2 : vector<2x15x15xf32>
    %531 = vector.broadcast %521 : f32 to vector<2x15x15xf32>
    %532 = arith.mulf %531, %8 : vector<2x15x15xf32>
    %533 = arith.addf %530, %532 : vector<2x15x15xf32>
    %534 = vector.broadcast %522 : f32 to vector<2x15x15xf32>
    %535 = arith.mulf %534, %3 : vector<2x15x15xf32>
    %536 = arith.addf %533, %535 : vector<2x15x15xf32>
    %537 = vector.broadcast %523 : f32 to vector<2x15x15xf32>
    %538 = arith.mulf %537, %14 : vector<2x15x15xf32>
    %539 = arith.addf %536, %538 : vector<2x15x15xf32>
    %540 = vector.broadcast %524 : f32 to vector<2x15x15xf32>
    %541 = arith.mulf %540, %20 : vector<2x15x15xf32>
    %542 = arith.addf %539, %541 : vector<2x15x15xf32>
    %543 = vector.broadcast %525 : f32 to vector<2x15x15xf32>
    %544 = arith.mulf %543, %15 : vector<2x15x15xf32>
    %545 = arith.addf %542, %544 : vector<2x15x15xf32>
    %546 = vector.broadcast %526 : f32 to vector<2x15x15xf32>
    %547 = arith.mulf %546, %4 : vector<2x15x15xf32>
    %548 = arith.addf %545, %547 : vector<2x15x15xf32>
    %549 = vector.broadcast %527 : f32 to vector<2x15x15xf32>
    %550 = arith.mulf %549, %10 : vector<2x15x15xf32>
    %551 = arith.addf %548, %550 : vector<2x15x15xf32>
    %552 = vector.broadcast %528 : f32 to vector<2x15x15xf32>
    %553 = arith.mulf %552, %5 : vector<2x15x15xf32>
    %554 = arith.addf %551, %553 : vector<2x15x15xf32>
    %555 = vector.broadcast %520 : f32 to vector<2x15x15xf32>
    %556 = arith.mulf %555, %8 : vector<2x15x15xf32>
    %557 = vector.broadcast %521 : f32 to vector<2x15x15xf32>
    %558 = arith.mulf %557, %3 : vector<2x15x15xf32>
    %559 = arith.addf %556, %558 : vector<2x15x15xf32>
    %560 = vector.broadcast %522 : f32 to vector<2x15x15xf32>
    %561 = arith.mulf %560, %9 : vector<2x15x15xf32>
    %562 = arith.addf %559, %561 : vector<2x15x15xf32>
    %563 = vector.broadcast %523 : f32 to vector<2x15x15xf32>
    %564 = arith.mulf %563, %20 : vector<2x15x15xf32>
    %565 = arith.addf %562, %564 : vector<2x15x15xf32>
    %566 = vector.broadcast %524 : f32 to vector<2x15x15xf32>
    %567 = arith.mulf %566, %15 : vector<2x15x15xf32>
    %568 = arith.addf %565, %567 : vector<2x15x15xf32>
    %569 = vector.broadcast %525 : f32 to vector<2x15x15xf32>
    %570 = arith.mulf %569, %21 : vector<2x15x15xf32>
    %571 = arith.addf %568, %570 : vector<2x15x15xf32>
    %572 = vector.broadcast %526 : f32 to vector<2x15x15xf32>
    %573 = arith.mulf %572, %10 : vector<2x15x15xf32>
    %574 = arith.addf %571, %573 : vector<2x15x15xf32>
    %575 = vector.broadcast %527 : f32 to vector<2x15x15xf32>
    %576 = arith.mulf %575, %5 : vector<2x15x15xf32>
    %577 = arith.addf %574, %576 : vector<2x15x15xf32>
    %578 = vector.broadcast %528 : f32 to vector<2x15x15xf32>
    %579 = arith.mulf %578, %11 : vector<2x15x15xf32>
    %580 = arith.addf %577, %579 : vector<2x15x15xf32>
    %581 = vector.broadcast %520 : f32 to vector<2x15x15xf32>
    %582 = arith.mulf %581, %14 : vector<2x15x15xf32>
    %583 = vector.broadcast %521 : f32 to vector<2x15x15xf32>
    %584 = arith.mulf %583, %20 : vector<2x15x15xf32>
    %585 = arith.addf %582, %584 : vector<2x15x15xf32>
    %586 = vector.broadcast %522 : f32 to vector<2x15x15xf32>
    %587 = arith.mulf %586, %15 : vector<2x15x15xf32>
    %588 = arith.addf %585, %587 : vector<2x15x15xf32>
    %589 = vector.broadcast %523 : f32 to vector<2x15x15xf32>
    %590 = arith.mulf %589, %4 : vector<2x15x15xf32>
    %591 = arith.addf %588, %590 : vector<2x15x15xf32>
    %592 = vector.broadcast %524 : f32 to vector<2x15x15xf32>
    %593 = arith.mulf %592, %10 : vector<2x15x15xf32>
    %594 = arith.addf %591, %593 : vector<2x15x15xf32>
    %595 = vector.broadcast %525 : f32 to vector<2x15x15xf32>
    %596 = arith.mulf %595, %5 : vector<2x15x15xf32>
    %597 = arith.addf %594, %596 : vector<2x15x15xf32>
    %598 = vector.broadcast %526 : f32 to vector<2x15x15xf32>
    %599 = arith.mulf %598, %16 : vector<2x15x15xf32>
    %600 = arith.addf %597, %599 : vector<2x15x15xf32>
    %601 = vector.broadcast %527 : f32 to vector<2x15x15xf32>
    %602 = arith.mulf %601, %22 : vector<2x15x15xf32>
    %603 = arith.addf %600, %602 : vector<2x15x15xf32>
    %604 = vector.broadcast %528 : f32 to vector<2x15x15xf32>
    %605 = arith.mulf %604, %17 : vector<2x15x15xf32>
    %606 = arith.addf %603, %605 : vector<2x15x15xf32>
    %607 = vector.broadcast %520 : f32 to vector<2x15x15xf32>
    %608 = arith.mulf %607, %20 : vector<2x15x15xf32>
    %609 = vector.broadcast %521 : f32 to vector<2x15x15xf32>
    %610 = arith.mulf %609, %15 : vector<2x15x15xf32>
    %611 = arith.addf %608, %610 : vector<2x15x15xf32>
    %612 = vector.broadcast %522 : f32 to vector<2x15x15xf32>
    %613 = arith.mulf %612, %21 : vector<2x15x15xf32>
    %614 = arith.addf %611, %613 : vector<2x15x15xf32>
    %615 = vector.broadcast %523 : f32 to vector<2x15x15xf32>
    %616 = arith.mulf %615, %10 : vector<2x15x15xf32>
    %617 = arith.addf %614, %616 : vector<2x15x15xf32>
    %618 = vector.broadcast %524 : f32 to vector<2x15x15xf32>
    %619 = arith.mulf %618, %5 : vector<2x15x15xf32>
    %620 = arith.addf %617, %619 : vector<2x15x15xf32>
    %621 = vector.broadcast %525 : f32 to vector<2x15x15xf32>
    %622 = arith.mulf %621, %11 : vector<2x15x15xf32>
    %623 = arith.addf %620, %622 : vector<2x15x15xf32>
    %624 = vector.broadcast %526 : f32 to vector<2x15x15xf32>
    %625 = arith.mulf %624, %22 : vector<2x15x15xf32>
    %626 = arith.addf %623, %625 : vector<2x15x15xf32>
    %627 = vector.broadcast %527 : f32 to vector<2x15x15xf32>
    %628 = arith.mulf %627, %17 : vector<2x15x15xf32>
    %629 = arith.addf %626, %628 : vector<2x15x15xf32>
    %630 = vector.broadcast %528 : f32 to vector<2x15x15xf32>
    %631 = arith.mulf %630, %23 : vector<2x15x15xf32>
    %632 = arith.addf %629, %631 : vector<2x15x15xf32>
    %633 = arith.maximumf %554, %580 : vector<2x15x15xf32>
    %634 = arith.maximumf %606, %632 : vector<2x15x15xf32>
    %635 = arith.maximumf %633, %634 : vector<2x15x15xf32>
    %c4_120 = arith.constant 4 : index
    %636 = memref.load %arg2[%c4_120] : memref<6xf32, #tpu.memory_space<smem>>
    %637 = vector.broadcast %636 : f32 to vector<2x15x15xf32>
    %638 = arith.addf %635, %637 : vector<2x15x15xf32>
    %cst_121 = arith.constant 0.000000e+00 : f32
    %639 = vector.broadcast %cst_121 : f32 to vector<2x15x15xf32>
    %640 = arith.maximumf %638, %639 : vector<2x15x15xf32>
    %c4_122 = arith.constant 4 : index
    %c0_123 = arith.constant 0 : index
    %c0_124 = arith.constant 0 : index
    %c0_125 = arith.constant 0 : index
    %641 = vector.load %arg3[%c4_122, %c0_123, %c0_124, %c0_125] : memref<6x2x15x15xf32, #tpu.memory_space<vmem>>, vector<1x2x15x15xf32>
    %642 = vector.shape_cast %641 : vector<1x2x15x15xf32> to vector<2x15x15xf32>
    %643 = vector.shape_cast %640 : vector<2x15x15xf32> to vector<1x2x15x15xf32>
    tpu.vector_store %arg3[%c4_122, %c0_123, %c0_124, %c0_125], %643 {strides = array<i32>} : memref<6x2x15x15xf32, #tpu.memory_space<vmem>>, vector<1x2x15x15xf32>,
    %c5_126 = arith.constant 5 : index
    %c0_127 = arith.constant 0 : index
    %644 = memref.load %arg1[%c5_126, %c0_127] : memref<6x9xf32, #tpu.memory_space<smem>>
    %c5_128 = arith.constant 5 : index
    %c1_129 = arith.constant 1 : index
    %645 = memref.load %arg1[%c5_128, %c1_129] : memref<6x9xf32, #tpu.memory_space<smem>>
    %c5_130 = arith.constant 5 : index
    %c2_131 = arith.constant 2 : index
    %646 = memref.load %arg1[%c5_130, %c2_131] : memref<6x9xf32, #tpu.memory_space<smem>>
    %c5_132 = arith.constant 5 : index
    %c3_133 = arith.constant 3 : index
    %647 = memref.load %arg1[%c5_132, %c3_133] : memref<6x9xf32, #tpu.memory_space<smem>>
    %c5_134 = arith.constant 5 : index
    %c4_135 = arith.constant 4 : index
    %648 = memref.load %arg1[%c5_134, %c4_135] : memref<6x9xf32, #tpu.memory_space<smem>>
    %c5_136 = arith.constant 5 : index
    %c5_137 = arith.constant 5 : index
    %649 = memref.load %arg1[%c5_136, %c5_137] : memref<6x9xf32, #tpu.memory_space<smem>>
    %c5_138 = arith.constant 5 : index
    %c6_139 = arith.constant 6 : index
    %650 = memref.load %arg1[%c5_138, %c6_139] : memref<6x9xf32, #tpu.memory_space<smem>>
    %c5_140 = arith.constant 5 : index
    %c7_141 = arith.constant 7 : index
    %651 = memref.load %arg1[%c5_140, %c7_141] : memref<6x9xf32, #tpu.memory_space<smem>>
    %c5_142 = arith.constant 5 : index
    %c8_143 = arith.constant 8 : index
    %652 = memref.load %arg1[%c5_142, %c8_143] : memref<6x9xf32, #tpu.memory_space<smem>>
    %653 = vector.broadcast %644 : f32 to vector<2x15x15xf32>
    %654 = arith.mulf %653, %2 : vector<2x15x15xf32>
    %655 = vector.broadcast %645 : f32 to vector<2x15x15xf32>
    %656 = arith.mulf %655, %8 : vector<2x15x15xf32>
    %657 = arith.addf %654, %656 : vector<2x15x15xf32>
    %658 = vector.broadcast %646 : f32 to vector<2x15x15xf32>
    %659 = arith.mulf %658, %3 : vector<2x15x15xf32>
    %660 = arith.addf %657, %659 : vector<2x15x15xf32>
    %661 = vector.broadcast %647 : f32 to vector<2x15x15xf32>
    %662 = arith.mulf %661, %14 : vector<2x15x15xf32>
    %663 = arith.addf %660, %662 : vector<2x15x15xf32>
    %664 = vector.broadcast %648 : f32 to vector<2x15x15xf32>
    %665 = arith.mulf %664, %20 : vector<2x15x15xf32>
    %666 = arith.addf %663, %665 : vector<2x15x15xf32>
    %667 = vector.broadcast %649 : f32 to vector<2x15x15xf32>
    %668 = arith.mulf %667, %15 : vector<2x15x15xf32>
    %669 = arith.addf %666, %668 : vector<2x15x15xf32>
    %670 = vector.broadcast %650 : f32 to vector<2x15x15xf32>
    %671 = arith.mulf %670, %4 : vector<2x15x15xf32>
    %672 = arith.addf %669, %671 : vector<2x15x15xf32>
    %673 = vector.broadcast %651 : f32 to vector<2x15x15xf32>
    %674 = arith.mulf %673, %10 : vector<2x15x15xf32>
    %675 = arith.addf %672, %674 : vector<2x15x15xf32>
    %676 = vector.broadcast %652 : f32 to vector<2x15x15xf32>
    %677 = arith.mulf %676, %5 : vector<2x15x15xf32>
    %678 = arith.addf %675, %677 : vector<2x15x15xf32>
    %679 = vector.broadcast %644 : f32 to vector<2x15x15xf32>
    %680 = arith.mulf %679, %8 : vector<2x15x15xf32>
    %681 = vector.broadcast %645 : f32 to vector<2x15x15xf32>
    %682 = arith.mulf %681, %3 : vector<2x15x15xf32>
    %683 = arith.addf %680, %682 : vector<2x15x15xf32>
    %684 = vector.broadcast %646 : f32 to vector<2x15x15xf32>
    %685 = arith.mulf %684, %9 : vector<2x15x15xf32>
    %686 = arith.addf %683, %685 : vector<2x15x15xf32>
    %687 = vector.broadcast %647 : f32 to vector<2x15x15xf32>
    %688 = arith.mulf %687, %20 : vector<2x15x15xf32>
    %689 = arith.addf %686, %688 : vector<2x15x15xf32>
    %690 = vector.broadcast %648 : f32 to vector<2x15x15xf32>
    %691 = arith.mulf %690, %15 : vector<2x15x15xf32>
    %692 = arith.addf %689, %691 : vector<2x15x15xf32>
    %693 = vector.broadcast %649 : f32 to vector<2x15x15xf32>
    %694 = arith.mulf %693, %21 : vector<2x15x15xf32>
    %695 = arith.addf %692, %694 : vector<2x15x15xf32>
    %696 = vector.broadcast %650 : f32 to vector<2x15x15xf32>
    %697 = arith.mulf %696, %10 : vector<2x15x15xf32>
    %698 = arith.addf %695, %697 : vector<2x15x15xf32>
    %699 = vector.broadcast %651 : f32 to vector<2x15x15xf32>
    %700 = arith.mulf %699, %5 : vector<2x15x15xf32>
    %701 = arith.addf %698, %700 : vector<2x15x15xf32>
    %702 = vector.broadcast %652 : f32 to vector<2x15x15xf32>
    %703 = arith.mulf %702, %11 : vector<2x15x15xf32>
    %704 = arith.addf %701, %703 : vector<2x15x15xf32>
    %705 = vector.broadcast %644 : f32 to vector<2x15x15xf32>
    %706 = arith.mulf %705, %14 : vector<2x15x15xf32>
    %707 = vector.broadcast %645 : f32 to vector<2x15x15xf32>
    %708 = arith.mulf %707, %20 : vector<2x15x15xf32>
    %709 = arith.addf %706, %708 : vector<2x15x15xf32>
    %710 = vector.broadcast %646 : f32 to vector<2x15x15xf32>
    %711 = arith.mulf %710, %15 : vector<2x15x15xf32>
    %712 = arith.addf %709, %711 : vector<2x15x15xf32>
    %713 = vector.broadcast %647 : f32 to vector<2x15x15xf32>
    %714 = arith.mulf %713, %4 : vector<2x15x15xf32>
    %715 = arith.addf %712, %714 : vector<2x15x15xf32>
    %716 = vector.broadcast %648 : f32 to vector<2x15x15xf32>
    %717 = arith.mulf %716, %10 : vector<2x15x15xf32>
    %718 = arith.addf %715, %717 : vector<2x15x15xf32>
    %719 = vector.broadcast %649 : f32 to vector<2x15x15xf32>
    %720 = arith.mulf %719, %5 : vector<2x15x15xf32>
    %721 = arith.addf %718, %720 : vector<2x15x15xf32>
    %722 = vector.broadcast %650 : f32 to vector<2x15x15xf32>
    %723 = arith.mulf %722, %16 : vector<2x15x15xf32>
    %724 = arith.addf %721, %723 : vector<2x15x15xf32>
    %725 = vector.broadcast %651 : f32 to vector<2x15x15xf32>
    %726 = arith.mulf %725, %22 : vector<2x15x15xf32>
    %727 = arith.addf %724, %726 : vector<2x15x15xf32>
    %728 = vector.broadcast %652 : f32 to vector<2x15x15xf32>
    %729 = arith.mulf %728, %17 : vector<2x15x15xf32>
    %730 = arith.addf %727, %729 : vector<2x15x15xf32>
    %731 = vector.broadcast %644 : f32 to vector<2x15x15xf32>
    %732 = arith.mulf %731, %20 : vector<2x15x15xf32>
    %733 = vector.broadcast %645 : f32 to vector<2x15x15xf32>
    %734 = arith.mulf %733, %15 : vector<2x15x15xf32>
    %735 = arith.addf %732, %734 : vector<2x15x15xf32>
    %736 = vector.broadcast %646 : f32 to vector<2x15x15xf32>
    %737 = arith.mulf %736, %21 : vector<2x15x15xf32>
    %738 = arith.addf %735, %737 : vector<2x15x15xf32>
    %739 = vector.broadcast %647 : f32 to vector<2x15x15xf32>
    %740 = arith.mulf %739, %10 : vector<2x15x15xf32>
    %741 = arith.addf %738, %740 : vector<2x15x15xf32>
    %742 = vector.broadcast %648 : f32 to vector<2x15x15xf32>
    %743 = arith.mulf %742, %5 : vector<2x15x15xf32>
    %744 = arith.addf %741, %743 : vector<2x15x15xf32>
    %745 = vector.broadcast %649 : f32 to vector<2x15x15xf32>
    %746 = arith.mulf %745, %11 : vector<2x15x15xf32>
    %747 = arith.addf %744, %746 : vector<2x15x15xf32>
    %748 = vector.broadcast %650 : f32 to vector<2x15x15xf32>
    %749 = arith.mulf %748, %22 : vector<2x15x15xf32>
    %750 = arith.addf %747, %749 : vector<2x15x15xf32>
    %751 = vector.broadcast %651 : f32 to vector<2x15x15xf32>
    %752 = arith.mulf %751, %17 : vector<2x15x15xf32>
    %753 = arith.addf %750, %752 : vector<2x15x15xf32>
    %754 = vector.broadcast %652 : f32 to vector<2x15x15xf32>
    %755 = arith.mulf %754, %23 : vector<2x15x15xf32>
    %756 = arith.addf %753, %755 : vector<2x15x15xf32>
    %757 = arith.maximumf %678, %704 : vector<2x15x15xf32>
    %758 = arith.maximumf %730, %756 : vector<2x15x15xf32>
    %759 = arith.maximumf %757, %758 : vector<2x15x15xf32>
    %c5_144 = arith.constant 5 : index
    %760 = memref.load %arg2[%c5_144] : memref<6xf32, #tpu.memory_space<smem>>
    %761 = vector.broadcast %760 : f32 to vector<2x15x15xf32>
    %762 = arith.addf %759, %761 : vector<2x15x15xf32>
    %cst_145 = arith.constant 0.000000e+00 : f32
    %763 = vector.broadcast %cst_145 : f32 to vector<2x15x15xf32>
    %764 = arith.maximumf %762, %763 : vector<2x15x15xf32>
    %c5_146 = arith.constant 5 : index
    %c0_147 = arith.constant 0 : index
    %c0_148 = arith.constant 0 : index
    %c0_149 = arith.constant 0 : index
    %765 = vector.load %arg3[%c5_146, %c0_147, %c0_148, %c0_149] : memref<6x2x15x15xf32, #tpu.memory_space<vmem>>, vector<1x2x15x15xf32>
    %766 = vector.shape_cast %765 : vector<1x2x15x15xf32> to vector<2x15x15xf32>
    %767 = vector.shape_cast %764 : vector<2x15x15xf32> to vector<1x2x15x15xf32>
    tpu.vector_store %arg3[%c5_146, %c0_147, %c0_148, %c0_149], %767 {strides = array<i32>} : memref<6x2x15x15xf32, #tpu.memory_space<vmem>>, vector<1x2x15x15xf32>,
    return
  }
}

module attributes {stable_mosaic.version = 11 : i64} {
  func.func @_conv2_fc_kernel(%arg0: memref<4x72x54xf32, #tpu.memory_space<vmem>>, %arg1: memref<54x16xf32, #tpu.memory_space<vmem>>, %arg2: memref<1x16xf32, #tpu.memory_space<vmem>>, %arg3: memref<576x120xf32, #tpu.memory_space<vmem>>, %arg4: memref<1x120xf32, #tpu.memory_space<vmem>>, %arg5: memref<120x84xf32, #tpu.memory_space<vmem>>, %arg6: memref<1x84xf32, #tpu.memory_space<vmem>>, %arg7: memref<84x10xf32, #tpu.memory_space<vmem>>, %arg8: memref<1x10xf32, #tpu.memory_space<vmem>>, %arg9: memref<2x10xf32, #tpu.memory_space<vmem>>) attributes {dimension_semantics = [], scalar_prefetch = 0 : i64, scratch_operands = 0 : i64, tpu.core_type = #tpu.core_type<tc>} {
    %c0 = arith.constant 0 : index
    %c0_0 = arith.constant 0 : index
    %0 = vector.load %arg1[%c0, %c0_0] : memref<54x16xf32, #tpu.memory_space<vmem>>, vector<54x16xf32>
    %c0_1 = arith.constant 0 : index
    %c0_2 = arith.constant 0 : index
    %c0_3 = arith.constant 0 : index
    %1 = vector.load %arg0[%c0_1, %c0_2, %c0_3] : memref<4x72x54xf32, #tpu.memory_space<vmem>>, vector<1x72x54xf32>
    %2 = vector.shape_cast %1 : vector<1x72x54xf32> to vector<72x54xf32>
    %cst = arith.constant dense<0.000000e+00> : vector<72x16xf32>
    %3 = tpu.matmul %2, %0, %cst {dimension_numbers = #tpu.dot_dimension_numbers<[1], [0], [0], [1], [0, 0, 1, 1], [], []>} : vector<72x54xf32>, vector<54x16xf32>, vector<72x16xf32> -> vector<72x16xf32>
    %c1 = arith.constant 1 : index
    %c0_4 = arith.constant 0 : index
    %c0_5 = arith.constant 0 : index
    %4 = vector.load %arg0[%c1, %c0_4, %c0_5] : memref<4x72x54xf32, #tpu.memory_space<vmem>>, vector<1x72x54xf32>
    %5 = vector.shape_cast %4 : vector<1x72x54xf32> to vector<72x54xf32>
    %cst_6 = arith.constant dense<0.000000e+00> : vector<72x16xf32>
    %6 = tpu.matmul %5, %0, %cst_6 {dimension_numbers = #tpu.dot_dimension_numbers<[1], [0], [0], [1], [0, 0, 1, 1], [], []>} : vector<72x54xf32>, vector<54x16xf32>, vector<72x16xf32> -> vector<72x16xf32>
    %7 = arith.maximumf %3, %6 : vector<72x16xf32>
    %c2 = arith.constant 2 : index
    %c0_7 = arith.constant 0 : index
    %c0_8 = arith.constant 0 : index
    %8 = vector.load %arg0[%c2, %c0_7, %c0_8] : memref<4x72x54xf32, #tpu.memory_space<vmem>>, vector<1x72x54xf32>
    %9 = vector.shape_cast %8 : vector<1x72x54xf32> to vector<72x54xf32>
    %cst_9 = arith.constant dense<0.000000e+00> : vector<72x16xf32>
    %10 = tpu.matmul %9, %0, %cst_9 {dimension_numbers = #tpu.dot_dimension_numbers<[1], [0], [0], [1], [0, 0, 1, 1], [], []>} : vector<72x54xf32>, vector<54x16xf32>, vector<72x16xf32> -> vector<72x16xf32>
    %11 = arith.maximumf %7, %10 : vector<72x16xf32>
    %c3 = arith.constant 3 : index
    %c0_10 = arith.constant 0 : index
    %c0_11 = arith.constant 0 : index
    %12 = vector.load %arg0[%c3, %c0_10, %c0_11] : memref<4x72x54xf32, #tpu.memory_space<vmem>>, vector<1x72x54xf32>
    %13 = vector.shape_cast %12 : vector<1x72x54xf32> to vector<72x54xf32>
    %cst_12 = arith.constant dense<0.000000e+00> : vector<72x16xf32>
    %14 = tpu.matmul %13, %0, %cst_12 {dimension_numbers = #tpu.dot_dimension_numbers<[1], [0], [0], [1], [0, 0, 1, 1], [], []>} : vector<72x54xf32>, vector<54x16xf32>, vector<72x16xf32> -> vector<72x16xf32>
    %15 = arith.maximumf %11, %14 : vector<72x16xf32>
    %c0_13 = arith.constant 0 : index
    %c0_14 = arith.constant 0 : index
    %16 = vector.load %arg2[%c0_13, %c0_14] : memref<1x16xf32, #tpu.memory_space<vmem>>, vector<1x16xf32>
    %17 = vector.broadcast %16 : vector<1x16xf32> to vector<72x16xf32>
    %18 = arith.addf %15, %17 : vector<72x16xf32>
    %cst_15 = arith.constant 0.000000e+00 : f32
    %19 = vector.broadcast %cst_15 : f32 to vector<72x16xf32>
    %20 = arith.maximumf %18, %19 : vector<72x16xf32>
    %cst_16 = arith.constant 0.000000e+00 : f32
    %21 = vector.broadcast %cst_16 : f32 to vector<2x120xf32>
    %22 = vector.extract_strided_slice %20 {offsets = [0, 0], sizes = [2, 16], strides = [1, 1]} : vector<72x16xf32> to vector<2x16xf32>
    %c0_17 = arith.constant 0 : index
    %c0_18 = arith.constant 0 : index
    %23 = vector.load %arg3[%c0_17, %c0_18] : memref<576x120xf32, #tpu.memory_space<vmem>>, vector<16x120xf32>
    %cst_19 = arith.constant dense<0.000000e+00> : vector<2x120xf32>
    %24 = tpu.matmul %22, %23, %cst_19 {dimension_numbers = #tpu.dot_dimension_numbers<[1], [0], [0], [1], [0, 0, 1, 1], [], []>} : vector<2x16xf32>, vector<16x120xf32>, vector<2x120xf32> -> vector<2x120xf32>
    %25 = arith.addf %21, %24 : vector<2x120xf32>
    %26 = vector.extract_strided_slice %20 {offsets = [2, 0], sizes = [2, 16], strides = [1, 1]} : vector<72x16xf32> to vector<2x16xf32>
    %c16 = arith.constant 16 : index
    %c0_20 = arith.constant 0 : index
    %27 = vector.load %arg3[%c16, %c0_20] : memref<576x120xf32, #tpu.memory_space<vmem>>, vector<16x120xf32>
    %cst_21 = arith.constant dense<0.000000e+00> : vector<2x120xf32>
    %28 = tpu.matmul %26, %27, %cst_21 {dimension_numbers = #tpu.dot_dimension_numbers<[1], [0], [0], [1], [0, 0, 1, 1], [], []>} : vector<2x16xf32>, vector<16x120xf32>, vector<2x120xf32> -> vector<2x120xf32>
    %29 = arith.addf %25, %28 : vector<2x120xf32>
    %30 = vector.extract_strided_slice %20 {offsets = [4, 0], sizes = [2, 16], strides = [1, 1]} : vector<72x16xf32> to vector<2x16xf32>
    %c32 = arith.constant 32 : index
    %c0_22 = arith.constant 0 : index
    %31 = vector.load %arg3[%c32, %c0_22] : memref<576x120xf32, #tpu.memory_space<vmem>>, vector<16x120xf32>
    %cst_23 = arith.constant dense<0.000000e+00> : vector<2x120xf32>
    %32 = tpu.matmul %30, %31, %cst_23 {dimension_numbers = #tpu.dot_dimension_numbers<[1], [0], [0], [1], [0, 0, 1, 1], [], []>} : vector<2x16xf32>, vector<16x120xf32>, vector<2x120xf32> -> vector<2x120xf32>
    %33 = arith.addf %29, %32 : vector<2x120xf32>
    %34 = vector.extract_strided_slice %20 {offsets = [6, 0], sizes = [2, 16], strides = [1, 1]} : vector<72x16xf32> to vector<2x16xf32>
    %c48 = arith.constant 48 : index
    %c0_24 = arith.constant 0 : index
    %35 = vector.load %arg3[%c48, %c0_24] : memref<576x120xf32, #tpu.memory_space<vmem>>, vector<16x120xf32>
    %cst_25 = arith.constant dense<0.000000e+00> : vector<2x120xf32>
    %36 = tpu.matmul %34, %35, %cst_25 {dimension_numbers = #tpu.dot_dimension_numbers<[1], [0], [0], [1], [0, 0, 1, 1], [], []>} : vector<2x16xf32>, vector<16x120xf32>, vector<2x120xf32> -> vector<2x120xf32>
    %37 = arith.addf %33, %36 : vector<2x120xf32>
    %38 = vector.extract_strided_slice %20 {offsets = [8, 0], sizes = [2, 16], strides = [1, 1]} : vector<72x16xf32> to vector<2x16xf32>
    %c64 = arith.constant 64 : index
    %c0_26 = arith.constant 0 : index
    %39 = vector.load %arg3[%c64, %c0_26] : memref<576x120xf32, #tpu.memory_space<vmem>>, vector<16x120xf32>
    %cst_27 = arith.constant dense<0.000000e+00> : vector<2x120xf32>
    %40 = tpu.matmul %38, %39, %cst_27 {dimension_numbers = #tpu.dot_dimension_numbers<[1], [0], [0], [1], [0, 0, 1, 1], [], []>} : vector<2x16xf32>, vector<16x120xf32>, vector<2x120xf32> -> vector<2x120xf32>
    %41 = arith.addf %37, %40 : vector<2x120xf32>
    %42 = vector.extract_strided_slice %20 {offsets = [10, 0], sizes = [2, 16], strides = [1, 1]} : vector<72x16xf32> to vector<2x16xf32>
    %c80 = arith.constant 80 : index
    %c0_28 = arith.constant 0 : index
    %43 = vector.load %arg3[%c80, %c0_28] : memref<576x120xf32, #tpu.memory_space<vmem>>, vector<16x120xf32>
    %cst_29 = arith.constant dense<0.000000e+00> : vector<2x120xf32>
    %44 = tpu.matmul %42, %43, %cst_29 {dimension_numbers = #tpu.dot_dimension_numbers<[1], [0], [0], [1], [0, 0, 1, 1], [], []>} : vector<2x16xf32>, vector<16x120xf32>, vector<2x120xf32> -> vector<2x120xf32>
    %45 = arith.addf %41, %44 : vector<2x120xf32>
    %46 = vector.extract_strided_slice %20 {offsets = [12, 0], sizes = [2, 16], strides = [1, 1]} : vector<72x16xf32> to vector<2x16xf32>
    %c96 = arith.constant 96 : index
    %c0_30 = arith.constant 0 : index
    %47 = vector.load %arg3[%c96, %c0_30] : memref<576x120xf32, #tpu.memory_space<vmem>>, vector<16x120xf32>
    %cst_31 = arith.constant dense<0.000000e+00> : vector<2x120xf32>
    %48 = tpu.matmul %46, %47, %cst_31 {dimension_numbers = #tpu.dot_dimension_numbers<[1], [0], [0], [1], [0, 0, 1, 1], [], []>} : vector<2x16xf32>, vector<16x120xf32>, vector<2x120xf32> -> vector<2x120xf32>
    %49 = arith.addf %45, %48 : vector<2x120xf32>
    %50 = vector.extract_strided_slice %20 {offsets = [14, 0], sizes = [2, 16], strides = [1, 1]} : vector<72x16xf32> to vector<2x16xf32>
    %c112 = arith.constant 112 : index
    %c0_32 = arith.constant 0 : index
    %51 = vector.load %arg3[%c112, %c0_32] : memref<576x120xf32, #tpu.memory_space<vmem>>, vector<16x120xf32>
    %cst_33 = arith.constant dense<0.000000e+00> : vector<2x120xf32>
    %52 = tpu.matmul %50, %51, %cst_33 {dimension_numbers = #tpu.dot_dimension_numbers<[1], [0], [0], [1], [0, 0, 1, 1], [], []>} : vector<2x16xf32>, vector<16x120xf32>, vector<2x120xf32> -> vector<2x120xf32>
    %53 = arith.addf %49, %52 : vector<2x120xf32>
    %54 = vector.extract_strided_slice %20 {offsets = [16, 0], sizes = [2, 16], strides = [1, 1]} : vector<72x16xf32> to vector<2x16xf32>
    %c128 = arith.constant 128 : index
    %c0_34 = arith.constant 0 : index
    %55 = vector.load %arg3[%c128, %c0_34] : memref<576x120xf32, #tpu.memory_space<vmem>>, vector<16x120xf32>
    %cst_35 = arith.constant dense<0.000000e+00> : vector<2x120xf32>
    %56 = tpu.matmul %54, %55, %cst_35 {dimension_numbers = #tpu.dot_dimension_numbers<[1], [0], [0], [1], [0, 0, 1, 1], [], []>} : vector<2x16xf32>, vector<16x120xf32>, vector<2x120xf32> -> vector<2x120xf32>
    %57 = arith.addf %53, %56 : vector<2x120xf32>
    %58 = vector.extract_strided_slice %20 {offsets = [18, 0], sizes = [2, 16], strides = [1, 1]} : vector<72x16xf32> to vector<2x16xf32>
    %c144 = arith.constant 144 : index
    %c0_36 = arith.constant 0 : index
    %59 = vector.load %arg3[%c144, %c0_36] : memref<576x120xf32, #tpu.memory_space<vmem>>, vector<16x120xf32>
    %cst_37 = arith.constant dense<0.000000e+00> : vector<2x120xf32>
    %60 = tpu.matmul %58, %59, %cst_37 {dimension_numbers = #tpu.dot_dimension_numbers<[1], [0], [0], [1], [0, 0, 1, 1], [], []>} : vector<2x16xf32>, vector<16x120xf32>, vector<2x120xf32> -> vector<2x120xf32>
    %61 = arith.addf %57, %60 : vector<2x120xf32>
    %62 = vector.extract_strided_slice %20 {offsets = [20, 0], sizes = [2, 16], strides = [1, 1]} : vector<72x16xf32> to vector<2x16xf32>
    %c160 = arith.constant 160 : index
    %c0_38 = arith.constant 0 : index
    %63 = vector.load %arg3[%c160, %c0_38] : memref<576x120xf32, #tpu.memory_space<vmem>>, vector<16x120xf32>
    %cst_39 = arith.constant dense<0.000000e+00> : vector<2x120xf32>
    %64 = tpu.matmul %62, %63, %cst_39 {dimension_numbers = #tpu.dot_dimension_numbers<[1], [0], [0], [1], [0, 0, 1, 1], [], []>} : vector<2x16xf32>, vector<16x120xf32>, vector<2x120xf32> -> vector<2x120xf32>
    %65 = arith.addf %61, %64 : vector<2x120xf32>
    %66 = vector.extract_strided_slice %20 {offsets = [22, 0], sizes = [2, 16], strides = [1, 1]} : vector<72x16xf32> to vector<2x16xf32>
    %c176 = arith.constant 176 : index
    %c0_40 = arith.constant 0 : index
    %67 = vector.load %arg3[%c176, %c0_40] : memref<576x120xf32, #tpu.memory_space<vmem>>, vector<16x120xf32>
    %cst_41 = arith.constant dense<0.000000e+00> : vector<2x120xf32>
    %68 = tpu.matmul %66, %67, %cst_41 {dimension_numbers = #tpu.dot_dimension_numbers<[1], [0], [0], [1], [0, 0, 1, 1], [], []>} : vector<2x16xf32>, vector<16x120xf32>, vector<2x120xf32> -> vector<2x120xf32>
    %69 = arith.addf %65, %68 : vector<2x120xf32>
    %70 = vector.extract_strided_slice %20 {offsets = [24, 0], sizes = [2, 16], strides = [1, 1]} : vector<72x16xf32> to vector<2x16xf32>
    %c192 = arith.constant 192 : index
    %c0_42 = arith.constant 0 : index
    %71 = vector.load %arg3[%c192, %c0_42] : memref<576x120xf32, #tpu.memory_space<vmem>>, vector<16x120xf32>
    %cst_43 = arith.constant dense<0.000000e+00> : vector<2x120xf32>
    %72 = tpu.matmul %70, %71, %cst_43 {dimension_numbers = #tpu.dot_dimension_numbers<[1], [0], [0], [1], [0, 0, 1, 1], [], []>} : vector<2x16xf32>, vector<16x120xf32>, vector<2x120xf32> -> vector<2x120xf32>
    %73 = arith.addf %69, %72 : vector<2x120xf32>
    %74 = vector.extract_strided_slice %20 {offsets = [26, 0], sizes = [2, 16], strides = [1, 1]} : vector<72x16xf32> to vector<2x16xf32>
    %c208 = arith.constant 208 : index
    %c0_44 = arith.constant 0 : index
    %75 = vector.load %arg3[%c208, %c0_44] : memref<576x120xf32, #tpu.memory_space<vmem>>, vector<16x120xf32>
    %cst_45 = arith.constant dense<0.000000e+00> : vector<2x120xf32>
    %76 = tpu.matmul %74, %75, %cst_45 {dimension_numbers = #tpu.dot_dimension_numbers<[1], [0], [0], [1], [0, 0, 1, 1], [], []>} : vector<2x16xf32>, vector<16x120xf32>, vector<2x120xf32> -> vector<2x120xf32>
    %77 = arith.addf %73, %76 : vector<2x120xf32>
    %78 = vector.extract_strided_slice %20 {offsets = [28, 0], sizes = [2, 16], strides = [1, 1]} : vector<72x16xf32> to vector<2x16xf32>
    %c224 = arith.constant 224 : index
    %c0_46 = arith.constant 0 : index
    %79 = vector.load %arg3[%c224, %c0_46] : memref<576x120xf32, #tpu.memory_space<vmem>>, vector<16x120xf32>
    %cst_47 = arith.constant dense<0.000000e+00> : vector<2x120xf32>
    %80 = tpu.matmul %78, %79, %cst_47 {dimension_numbers = #tpu.dot_dimension_numbers<[1], [0], [0], [1], [0, 0, 1, 1], [], []>} : vector<2x16xf32>, vector<16x120xf32>, vector<2x120xf32> -> vector<2x120xf32>
    %81 = arith.addf %77, %80 : vector<2x120xf32>
    %82 = vector.extract_strided_slice %20 {offsets = [30, 0], sizes = [2, 16], strides = [1, 1]} : vector<72x16xf32> to vector<2x16xf32>
    %c240 = arith.constant 240 : index
    %c0_48 = arith.constant 0 : index
    %83 = vector.load %arg3[%c240, %c0_48] : memref<576x120xf32, #tpu.memory_space<vmem>>, vector<16x120xf32>
    %cst_49 = arith.constant dense<0.000000e+00> : vector<2x120xf32>
    %84 = tpu.matmul %82, %83, %cst_49 {dimension_numbers = #tpu.dot_dimension_numbers<[1], [0], [0], [1], [0, 0, 1, 1], [], []>} : vector<2x16xf32>, vector<16x120xf32>, vector<2x120xf32> -> vector<2x120xf32>
    %85 = arith.addf %81, %84 : vector<2x120xf32>
    %86 = vector.extract_strided_slice %20 {offsets = [32, 0], sizes = [2, 16], strides = [1, 1]} : vector<72x16xf32> to vector<2x16xf32>
    %c256 = arith.constant 256 : index
    %c0_50 = arith.constant 0 : index
    %87 = vector.load %arg3[%c256, %c0_50] : memref<576x120xf32, #tpu.memory_space<vmem>>, vector<16x120xf32>
    %cst_51 = arith.constant dense<0.000000e+00> : vector<2x120xf32>
    %88 = tpu.matmul %86, %87, %cst_51 {dimension_numbers = #tpu.dot_dimension_numbers<[1], [0], [0], [1], [0, 0, 1, 1], [], []>} : vector<2x16xf32>, vector<16x120xf32>, vector<2x120xf32> -> vector<2x120xf32>
    %89 = arith.addf %85, %88 : vector<2x120xf32>
    %90 = vector.extract_strided_slice %20 {offsets = [34, 0], sizes = [2, 16], strides = [1, 1]} : vector<72x16xf32> to vector<2x16xf32>
    %c272 = arith.constant 272 : index
    %c0_52 = arith.constant 0 : index
    %91 = vector.load %arg3[%c272, %c0_52] : memref<576x120xf32, #tpu.memory_space<vmem>>, vector<16x120xf32>
    %cst_53 = arith.constant dense<0.000000e+00> : vector<2x120xf32>
    %92 = tpu.matmul %90, %91, %cst_53 {dimension_numbers = #tpu.dot_dimension_numbers<[1], [0], [0], [1], [0, 0, 1, 1], [], []>} : vector<2x16xf32>, vector<16x120xf32>, vector<2x120xf32> -> vector<2x120xf32>
    %93 = arith.addf %89, %92 : vector<2x120xf32>
    %94 = vector.extract_strided_slice %20 {offsets = [36, 0], sizes = [2, 16], strides = [1, 1]} : vector<72x16xf32> to vector<2x16xf32>
    %c288 = arith.constant 288 : index
    %c0_54 = arith.constant 0 : index
    %95 = vector.load %arg3[%c288, %c0_54] : memref<576x120xf32, #tpu.memory_space<vmem>>, vector<16x120xf32>
    %cst_55 = arith.constant dense<0.000000e+00> : vector<2x120xf32>
    %96 = tpu.matmul %94, %95, %cst_55 {dimension_numbers = #tpu.dot_dimension_numbers<[1], [0], [0], [1], [0, 0, 1, 1], [], []>} : vector<2x16xf32>, vector<16x120xf32>, vector<2x120xf32> -> vector<2x120xf32>
    %97 = arith.addf %93, %96 : vector<2x120xf32>
    %98 = vector.extract_strided_slice %20 {offsets = [38, 0], sizes = [2, 16], strides = [1, 1]} : vector<72x16xf32> to vector<2x16xf32>
    %c304 = arith.constant 304 : index
    %c0_56 = arith.constant 0 : index
    %99 = vector.load %arg3[%c304, %c0_56] : memref<576x120xf32, #tpu.memory_space<vmem>>, vector<16x120xf32>
    %cst_57 = arith.constant dense<0.000000e+00> : vector<2x120xf32>
    %100 = tpu.matmul %98, %99, %cst_57 {dimension_numbers = #tpu.dot_dimension_numbers<[1], [0], [0], [1], [0, 0, 1, 1], [], []>} : vector<2x16xf32>, vector<16x120xf32>, vector<2x120xf32> -> vector<2x120xf32>
    %101 = arith.addf %97, %100 : vector<2x120xf32>
    %102 = vector.extract_strided_slice %20 {offsets = [40, 0], sizes = [2, 16], strides = [1, 1]} : vector<72x16xf32> to vector<2x16xf32>
    %c320 = arith.constant 320 : index
    %c0_58 = arith.constant 0 : index
    %103 = vector.load %arg3[%c320, %c0_58] : memref<576x120xf32, #tpu.memory_space<vmem>>, vector<16x120xf32>
    %cst_59 = arith.constant dense<0.000000e+00> : vector<2x120xf32>
    %104 = tpu.matmul %102, %103, %cst_59 {dimension_numbers = #tpu.dot_dimension_numbers<[1], [0], [0], [1], [0, 0, 1, 1], [], []>} : vector<2x16xf32>, vector<16x120xf32>, vector<2x120xf32> -> vector<2x120xf32>
    %105 = arith.addf %101, %104 : vector<2x120xf32>
    %106 = vector.extract_strided_slice %20 {offsets = [42, 0], sizes = [2, 16], strides = [1, 1]} : vector<72x16xf32> to vector<2x16xf32>
    %c336 = arith.constant 336 : index
    %c0_60 = arith.constant 0 : index
    %107 = vector.load %arg3[%c336, %c0_60] : memref<576x120xf32, #tpu.memory_space<vmem>>, vector<16x120xf32>
    %cst_61 = arith.constant dense<0.000000e+00> : vector<2x120xf32>
    %108 = tpu.matmul %106, %107, %cst_61 {dimension_numbers = #tpu.dot_dimension_numbers<[1], [0], [0], [1], [0, 0, 1, 1], [], []>} : vector<2x16xf32>, vector<16x120xf32>, vector<2x120xf32> -> vector<2x120xf32>
    %109 = arith.addf %105, %108 : vector<2x120xf32>
    %110 = vector.extract_strided_slice %20 {offsets = [44, 0], sizes = [2, 16], strides = [1, 1]} : vector<72x16xf32> to vector<2x16xf32>
    %c352 = arith.constant 352 : index
    %c0_62 = arith.constant 0 : index
    %111 = vector.load %arg3[%c352, %c0_62] : memref<576x120xf32, #tpu.memory_space<vmem>>, vector<16x120xf32>
    %cst_63 = arith.constant dense<0.000000e+00> : vector<2x120xf32>
    %112 = tpu.matmul %110, %111, %cst_63 {dimension_numbers = #tpu.dot_dimension_numbers<[1], [0], [0], [1], [0, 0, 1, 1], [], []>} : vector<2x16xf32>, vector<16x120xf32>, vector<2x120xf32> -> vector<2x120xf32>
    %113 = arith.addf %109, %112 : vector<2x120xf32>
    %114 = vector.extract_strided_slice %20 {offsets = [46, 0], sizes = [2, 16], strides = [1, 1]} : vector<72x16xf32> to vector<2x16xf32>
    %c368 = arith.constant 368 : index
    %c0_64 = arith.constant 0 : index
    %115 = vector.load %arg3[%c368, %c0_64] : memref<576x120xf32, #tpu.memory_space<vmem>>, vector<16x120xf32>
    %cst_65 = arith.constant dense<0.000000e+00> : vector<2x120xf32>
    %116 = tpu.matmul %114, %115, %cst_65 {dimension_numbers = #tpu.dot_dimension_numbers<[1], [0], [0], [1], [0, 0, 1, 1], [], []>} : vector<2x16xf32>, vector<16x120xf32>, vector<2x120xf32> -> vector<2x120xf32>
    %117 = arith.addf %113, %116 : vector<2x120xf32>
    %118 = vector.extract_strided_slice %20 {offsets = [48, 0], sizes = [2, 16], strides = [1, 1]} : vector<72x16xf32> to vector<2x16xf32>
    %c384 = arith.constant 384 : index
    %c0_66 = arith.constant 0 : index
    %119 = vector.load %arg3[%c384, %c0_66] : memref<576x120xf32, #tpu.memory_space<vmem>>, vector<16x120xf32>
    %cst_67 = arith.constant dense<0.000000e+00> : vector<2x120xf32>
    %120 = tpu.matmul %118, %119, %cst_67 {dimension_numbers = #tpu.dot_dimension_numbers<[1], [0], [0], [1], [0, 0, 1, 1], [], []>} : vector<2x16xf32>, vector<16x120xf32>, vector<2x120xf32> -> vector<2x120xf32>
    %121 = arith.addf %117, %120 : vector<2x120xf32>
    %122 = vector.extract_strided_slice %20 {offsets = [50, 0], sizes = [2, 16], strides = [1, 1]} : vector<72x16xf32> to vector<2x16xf32>
    %c400 = arith.constant 400 : index
    %c0_68 = arith.constant 0 : index
    %123 = vector.load %arg3[%c400, %c0_68] : memref<576x120xf32, #tpu.memory_space<vmem>>, vector<16x120xf32>
    %cst_69 = arith.constant dense<0.000000e+00> : vector<2x120xf32>
    %124 = tpu.matmul %122, %123, %cst_69 {dimension_numbers = #tpu.dot_dimension_numbers<[1], [0], [0], [1], [0, 0, 1, 1], [], []>} : vector<2x16xf32>, vector<16x120xf32>, vector<2x120xf32> -> vector<2x120xf32>
    %125 = arith.addf %121, %124 : vector<2x120xf32>
    %126 = vector.extract_strided_slice %20 {offsets = [52, 0], sizes = [2, 16], strides = [1, 1]} : vector<72x16xf32> to vector<2x16xf32>
    %c416 = arith.constant 416 : index
    %c0_70 = arith.constant 0 : index
    %127 = vector.load %arg3[%c416, %c0_70] : memref<576x120xf32, #tpu.memory_space<vmem>>, vector<16x120xf32>
    %cst_71 = arith.constant dense<0.000000e+00> : vector<2x120xf32>
    %128 = tpu.matmul %126, %127, %cst_71 {dimension_numbers = #tpu.dot_dimension_numbers<[1], [0], [0], [1], [0, 0, 1, 1], [], []>} : vector<2x16xf32>, vector<16x120xf32>, vector<2x120xf32> -> vector<2x120xf32>
    %129 = arith.addf %125, %128 : vector<2x120xf32>
    %130 = vector.extract_strided_slice %20 {offsets = [54, 0], sizes = [2, 16], strides = [1, 1]} : vector<72x16xf32> to vector<2x16xf32>
    %c432 = arith.constant 432 : index
    %c0_72 = arith.constant 0 : index
    %131 = vector.load %arg3[%c432, %c0_72] : memref<576x120xf32, #tpu.memory_space<vmem>>, vector<16x120xf32>
    %cst_73 = arith.constant dense<0.000000e+00> : vector<2x120xf32>
    %132 = tpu.matmul %130, %131, %cst_73 {dimension_numbers = #tpu.dot_dimension_numbers<[1], [0], [0], [1], [0, 0, 1, 1], [], []>} : vector<2x16xf32>, vector<16x120xf32>, vector<2x120xf32> -> vector<2x120xf32>
    %133 = arith.addf %129, %132 : vector<2x120xf32>
    %134 = vector.extract_strided_slice %20 {offsets = [56, 0], sizes = [2, 16], strides = [1, 1]} : vector<72x16xf32> to vector<2x16xf32>
    %c448 = arith.constant 448 : index
    %c0_74 = arith.constant 0 : index
    %135 = vector.load %arg3[%c448, %c0_74] : memref<576x120xf32, #tpu.memory_space<vmem>>, vector<16x120xf32>
    %cst_75 = arith.constant dense<0.000000e+00> : vector<2x120xf32>
    %136 = tpu.matmul %134, %135, %cst_75 {dimension_numbers = #tpu.dot_dimension_numbers<[1], [0], [0], [1], [0, 0, 1, 1], [], []>} : vector<2x16xf32>, vector<16x120xf32>, vector<2x120xf32> -> vector<2x120xf32>
    %137 = arith.addf %133, %136 : vector<2x120xf32>
    %138 = vector.extract_strided_slice %20 {offsets = [58, 0], sizes = [2, 16], strides = [1, 1]} : vector<72x16xf32> to vector<2x16xf32>
    %c464 = arith.constant 464 : index
    %c0_76 = arith.constant 0 : index
    %139 = vector.load %arg3[%c464, %c0_76] : memref<576x120xf32, #tpu.memory_space<vmem>>, vector<16x120xf32>
    %cst_77 = arith.constant dense<0.000000e+00> : vector<2x120xf32>
    %140 = tpu.matmul %138, %139, %cst_77 {dimension_numbers = #tpu.dot_dimension_numbers<[1], [0], [0], [1], [0, 0, 1, 1], [], []>} : vector<2x16xf32>, vector<16x120xf32>, vector<2x120xf32> -> vector<2x120xf32>
    %141 = arith.addf %137, %140 : vector<2x120xf32>
    %142 = vector.extract_strided_slice %20 {offsets = [60, 0], sizes = [2, 16], strides = [1, 1]} : vector<72x16xf32> to vector<2x16xf32>
    %c480 = arith.constant 480 : index
    %c0_78 = arith.constant 0 : index
    %143 = vector.load %arg3[%c480, %c0_78] : memref<576x120xf32, #tpu.memory_space<vmem>>, vector<16x120xf32>
    %cst_79 = arith.constant dense<0.000000e+00> : vector<2x120xf32>
    %144 = tpu.matmul %142, %143, %cst_79 {dimension_numbers = #tpu.dot_dimension_numbers<[1], [0], [0], [1], [0, 0, 1, 1], [], []>} : vector<2x16xf32>, vector<16x120xf32>, vector<2x120xf32> -> vector<2x120xf32>
    %145 = arith.addf %141, %144 : vector<2x120xf32>
    %146 = vector.extract_strided_slice %20 {offsets = [62, 0], sizes = [2, 16], strides = [1, 1]} : vector<72x16xf32> to vector<2x16xf32>
    %c496 = arith.constant 496 : index
    %c0_80 = arith.constant 0 : index
    %147 = vector.load %arg3[%c496, %c0_80] : memref<576x120xf32, #tpu.memory_space<vmem>>, vector<16x120xf32>
    %cst_81 = arith.constant dense<0.000000e+00> : vector<2x120xf32>
    %148 = tpu.matmul %146, %147, %cst_81 {dimension_numbers = #tpu.dot_dimension_numbers<[1], [0], [0], [1], [0, 0, 1, 1], [], []>} : vector<2x16xf32>, vector<16x120xf32>, vector<2x120xf32> -> vector<2x120xf32>
    %149 = arith.addf %145, %148 : vector<2x120xf32>
    %150 = vector.extract_strided_slice %20 {offsets = [64, 0], sizes = [2, 16], strides = [1, 1]} : vector<72x16xf32> to vector<2x16xf32>
    %c512 = arith.constant 512 : index
    %c0_82 = arith.constant 0 : index
    %151 = vector.load %arg3[%c512, %c0_82] : memref<576x120xf32, #tpu.memory_space<vmem>>, vector<16x120xf32>
    %cst_83 = arith.constant dense<0.000000e+00> : vector<2x120xf32>
    %152 = tpu.matmul %150, %151, %cst_83 {dimension_numbers = #tpu.dot_dimension_numbers<[1], [0], [0], [1], [0, 0, 1, 1], [], []>} : vector<2x16xf32>, vector<16x120xf32>, vector<2x120xf32> -> vector<2x120xf32>
    %153 = arith.addf %149, %152 : vector<2x120xf32>
    %154 = vector.extract_strided_slice %20 {offsets = [66, 0], sizes = [2, 16], strides = [1, 1]} : vector<72x16xf32> to vector<2x16xf32>
    %c528 = arith.constant 528 : index
    %c0_84 = arith.constant 0 : index
    %155 = vector.load %arg3[%c528, %c0_84] : memref<576x120xf32, #tpu.memory_space<vmem>>, vector<16x120xf32>
    %cst_85 = arith.constant dense<0.000000e+00> : vector<2x120xf32>
    %156 = tpu.matmul %154, %155, %cst_85 {dimension_numbers = #tpu.dot_dimension_numbers<[1], [0], [0], [1], [0, 0, 1, 1], [], []>} : vector<2x16xf32>, vector<16x120xf32>, vector<2x120xf32> -> vector<2x120xf32>
    %157 = arith.addf %153, %156 : vector<2x120xf32>
    %158 = vector.extract_strided_slice %20 {offsets = [68, 0], sizes = [2, 16], strides = [1, 1]} : vector<72x16xf32> to vector<2x16xf32>
    %c544 = arith.constant 544 : index
    %c0_86 = arith.constant 0 : index
    %159 = vector.load %arg3[%c544, %c0_86] : memref<576x120xf32, #tpu.memory_space<vmem>>, vector<16x120xf32>
    %cst_87 = arith.constant dense<0.000000e+00> : vector<2x120xf32>
    %160 = tpu.matmul %158, %159, %cst_87 {dimension_numbers = #tpu.dot_dimension_numbers<[1], [0], [0], [1], [0, 0, 1, 1], [], []>} : vector<2x16xf32>, vector<16x120xf32>, vector<2x120xf32> -> vector<2x120xf32>
    %161 = arith.addf %157, %160 : vector<2x120xf32>
    %162 = vector.extract_strided_slice %20 {offsets = [70, 0], sizes = [2, 16], strides = [1, 1]} : vector<72x16xf32> to vector<2x16xf32>
    %c560 = arith.constant 560 : index
    %c0_88 = arith.constant 0 : index
    %163 = vector.load %arg3[%c560, %c0_88] : memref<576x120xf32, #tpu.memory_space<vmem>>, vector<16x120xf32>
    %cst_89 = arith.constant dense<0.000000e+00> : vector<2x120xf32>
    %164 = tpu.matmul %162, %163, %cst_89 {dimension_numbers = #tpu.dot_dimension_numbers<[1], [0], [0], [1], [0, 0, 1, 1], [], []>} : vector<2x16xf32>, vector<16x120xf32>, vector<2x120xf32> -> vector<2x120xf32>
    %165 = arith.addf %161, %164 : vector<2x120xf32>
    %c0_90 = arith.constant 0 : index
    %c0_91 = arith.constant 0 : index
    %166 = vector.load %arg4[%c0_90, %c0_91] : memref<1x120xf32, #tpu.memory_space<vmem>>, vector<1x120xf32>
    %167 = vector.broadcast %166 : vector<1x120xf32> to vector<2x120xf32>
    %168 = arith.addf %165, %167 : vector<2x120xf32>
    %cst_92 = arith.constant 0.000000e+00 : f32
    %169 = vector.broadcast %cst_92 : f32 to vector<2x120xf32>
    %170 = arith.maximumf %168, %169 : vector<2x120xf32>
    %c0_93 = arith.constant 0 : index
    %c0_94 = arith.constant 0 : index
    %171 = vector.load %arg5[%c0_93, %c0_94] : memref<120x84xf32, #tpu.memory_space<vmem>>, vector<120x84xf32>
    %cst_95 = arith.constant dense<0.000000e+00> : vector<2x84xf32>
    %172 = tpu.matmul %170, %171, %cst_95 {dimension_numbers = #tpu.dot_dimension_numbers<[1], [0], [0], [1], [0, 0, 1, 1], [], []>} : vector<2x120xf32>, vector<120x84xf32>, vector<2x84xf32> -> vector<2x84xf32>
    %c0_96 = arith.constant 0 : index
    %c0_97 = arith.constant 0 : index
    %173 = vector.load %arg6[%c0_96, %c0_97] : memref<1x84xf32, #tpu.memory_space<vmem>>, vector<1x84xf32>
    %174 = vector.broadcast %173 : vector<1x84xf32> to vector<2x84xf32>
    %175 = arith.addf %172, %174 : vector<2x84xf32>
    %cst_98 = arith.constant 0.000000e+00 : f32
    %176 = vector.broadcast %cst_98 : f32 to vector<2x84xf32>
    %177 = arith.maximumf %175, %176 : vector<2x84xf32>
    %c0_99 = arith.constant 0 : index
    %c0_100 = arith.constant 0 : index
    %178 = vector.load %arg7[%c0_99, %c0_100] : memref<84x10xf32, #tpu.memory_space<vmem>>, vector<84x10xf32>
    %cst_101 = arith.constant dense<0.000000e+00> : vector<2x10xf32>
    %179 = tpu.matmul %177, %178, %cst_101 {dimension_numbers = #tpu.dot_dimension_numbers<[1], [0], [0], [1], [0, 0, 1, 1], [], []>} : vector<2x84xf32>, vector<84x10xf32>, vector<2x10xf32> -> vector<2x10xf32>
    %c0_102 = arith.constant 0 : index
    %c0_103 = arith.constant 0 : index
    %180 = vector.load %arg8[%c0_102, %c0_103] : memref<1x10xf32, #tpu.memory_space<vmem>>, vector<1x10xf32>
    %181 = vector.broadcast %180 : vector<1x10xf32> to vector<2x10xf32>
    %182 = arith.addf %179, %181 : vector<2x10xf32>
    %c0_104 = arith.constant 0 : index
    %c0_105 = arith.constant 0 : index
    %183 = vector.load %arg9[%c0_104, %c0_105] : memref<2x10xf32, #tpu.memory_space<vmem>>, vector<2x10xf32>
    tpu.vector_store %arg9[%c0_104, %c0_105], %182 {strides = array<i32>} : memref<2x10xf32, #tpu.memory_space<vmem>>, vector<2x10xf32>,
    return
  }
}

</mosaic_0001>

<llo_original>
// kernel: net_forward.2
$region0: #{net_forward.2}
  #allocation0 [shape = 'u32[]', space=smem, size = 0x4, offset = 0x4, fixed_abs, tag = 'smem constant byte address 0x4 - core index']
  #allocation1 [shape = 'u32[144,128]{1,0:T(1,128)}', space=vmem, size = 0x12000, scoped, tag = 'internal scratch']
  %s0 = inlined_call_operand.vmem [shape: f32[4,2,16,16], index: 0, kind: input, shape index: {}]
  %s1 = inlined_call_operand.vmem [shape: f32[6,9], index: 1, kind: input, shape index: {}]
  %s2 = inlined_call_operand.vmem [shape: f32[6], index: 2, kind: input, shape index: {}]
  %s3 = inlined_call_operand.vmem [shape: f32[6,2,15,15], index: 3, kind: output, shape index: {}]
  %s4 = sld [smem:[#allocation0]]
  $region30: #{net_forward.2} parent=0
    _
  %s6 = ssub.s32 1, %s4
  %s7 = scalar_select 0, %s6, %s4
  $region1: #{net_forward.2} parent=0
    #allocation2 [shape = 'u8[4096]{0}', space=smem, size = 0x1000, scoped, tag = 'input window, operand 1, single buffered']
    #allocation3 [shape = 's32[1]{0}', space=sflag, size = 0x4, scoped, tag = 'scoped memory for net_forward.2']
    #allocation4 [shape = 'u8[512]{0}', space=smem, size = 0x200, scoped, tag = 'input window, operand 2, single buffered']
    #allocation5 [shape = 's32[1]{0}', space=sflag, size = 0x4, scoped, tag = 'scoped memory for net_forward.2']
    %8 = vsyncpa [#allocation3], 0
    %9 = vsyncpa [#allocation5], 0
    // Predicated region
    $region2: #{net_forward.2} parent=1 // pred_check
      _
    $region3: #{net_forward.2} parent=1 // pred_check_branch
      %11 = sbr.rel (0) target = $region5
    $region4: #{net_forward.2} parent=1 // pred_region
      _
    $region5: #{net_forward.2} parent=1 // pred_fallthru
      _
    // Predicated region
    $region6: #{net_forward.2} parent=1 // pred_check
      _
    $region7: #{net_forward.2} parent=1 // pred_check_branch
      %13 = sbr.rel (0) target = $region9
    $region8: #{net_forward.2} parent=1 // pred_region
      %s15 = ssub.s32 128, 128
      %16 = vsyncadd [#allocation3], %s15
      %s18 = sshll.u32 %s1, 4
      %s19 = int_to_ptr.vmem [resolvable:$true] %s18
      %21 = dma.vmem_to_smem %s19, 128, [#allocation2], [#allocation3]
    $region9: #{net_forward.2} parent=1 // pred_fallthru
      _
    // Predicated region
    $region10: #{net_forward.2} parent=1 // pred_check
      _
    $region11: #{net_forward.2} parent=1 // pred_check_branch
      %23 = sbr.rel (0) target = $region13
    $region12: #{net_forward.2} parent=1 // pred_region
      %s25 = ssub.s32 16, 16
      %26 = vsyncadd [#allocation5], %s25
      %s28 = sshll.u32 %s2, 4
      %s29 = int_to_ptr.vmem [resolvable:$true] %s28
      %31 = dma.vmem_to_smem %s29, 16, [#allocation4], [#allocation5]
    $region13: #{net_forward.2} parent=1 // pred_fallthru
      _
    // Predicated region
    $region14: #{net_forward.2} parent=1 // pred_check
      _
    $region15: #{net_forward.2} parent=1 // pred_check_branch
      %33 = sbr.rel (0) target = $region17
    $region16: #{net_forward.2} parent=1 // pred_region
      %34 = dma.done [#allocation3], 128
    $region17: #{net_forward.2} parent=1 // pred_fallthru
      _
    // Predicated region
    $region18: #{net_forward.2} parent=1 // pred_check
      _
    $region19: #{net_forward.2} parent=1 // pred_check_branch
      %36 = sbr.rel (0) target = $region21
    $region20: #{net_forward.2} parent=1 // pred_region
      %37 = dma.done [#allocation5], 16
    $region21: #{net_forward.2} parent=1 // pred_fallthru
      _
    %38 = sfence
    %v39 = vld [vmem:[%s0] sm:$0xff]
    %v40 = vld [vmem:[%s0 + $0x8] sm:$0xff]
    %v41 = vld [vmem:[%s0 + $0x10] sm:$0xff]
    %v42 = vld [vmem:[%s0 + $0x18] sm:$0xff]
    %s43 = scalar_lea.vmem %s0, 32
    %v44 = vld [vmem:[%s43] sm:$0xff]
    %v45 = vld [vmem:[%s43 + $0x8] sm:$0xff]
    %v46 = vld [vmem:[%s43 + $0x10] sm:$0xff]
    %v47 = vld [vmem:[%s43 + $0x18] sm:$0xff]
    %s48 = scalar_lea.vmem %s0, 64
    %v49 = vld [vmem:[%s48] sm:$0xff]
    %v50 = vld [vmem:[%s48 + $0x8] sm:$0xff]
    %v51 = vld [vmem:[%s48 + $0x10] sm:$0xff]
    %v52 = vld [vmem:[%s48 + $0x18] sm:$0xff]
    %s53 = scalar_lea.vmem %s0, 96
    %v54 = vld [vmem:[%s53] sm:$0xff]
    %v55 = vld [vmem:[%s53 + $0x8] sm:$0xff]
    %v56 = vld [vmem:[%s53 + $0x10] sm:$0xff]
    %v57 = vld [vmem:[%s53 + $0x18] sm:$0xff]
    %s58 = sld [smem:[#allocation2]]
    %s59 = sld [smem:[#allocation2 + $0x1]]
    %s60 = sld [smem:[#allocation2 + $0x2]]
    %s61 = sld [smem:[#allocation2 + $0x3]]
    %s62 = sld [smem:[#allocation2 + $0x4]]
    %s63 = sld [smem:[#allocation2 + $0x5]]
    %s64 = sld [smem:[#allocation2 + $0x6]]
    %s65 = sld [smem:[#allocation2 + $0x7]]
    %s66 = sld [smem:[#allocation2 + $0x8]]
    %v67 = vstv %s58
    %v68 = vmul.f32 %v67, %v39
    %v69 = vmul.f32 %v67, %v40
    %v70 = vmul.f32 %v67, %v41
    %v71 = vmul.f32 %v67, %v42
    %v72 = vstv %s59
    %v73 = vmul.f32 %v72, %v44
    %v74 = vmul.f32 %v72, %v45
    %v75 = vmul.f32 %v72, %v46
    %v76 = vmul.f32 %v72, %v47
    %v77 = vadd.f32 %v68, %v73
    %v78 = vadd.f32 %v69, %v74
    %v79 = vadd.f32 %v70, %v75
    %v80 = vadd.f32 %v71, %v76
    %v81 = vstv %s60
    %v82 = vmul.f32 %v81, %v39
    %v83 = vmul.f32 %v81, %v40
    %v84 = vmul.f32 %v81, %v41
    %v85 = vmul.f32 %v81, %v42
    %90 = vrot.lane.b32.xlu0 %v82, 127
    %v91 = vpop.permute.xlu0 %90
    %92 = vrot.lane.b32.xlu0 %v83, 127
    %v93 = vpop.permute.xlu0 %92
    %94 = vrot.lane.b32.xlu0 %v84, 127
    %v95 = vpop.permute.xlu0 %94
    %96 = vrot.lane.b32.xlu0 %v85, 127
    %v97 = vpop.permute.xlu0 %96
    %v102 = vadd.f32 %v77, %v91
    %v103 = vadd.f32 %v78, %v93
    %v104 = vadd.f32 %v79, %v95
    %v105 = vadd.f32 %v80, %v97
    %v106 = vstv %s61
    %v107 = vmul.f32 %v106, %v49
    %v108 = vmul.f32 %v106, %v50
    %v109 = vmul.f32 %v106, %v51
    %v110 = vmul.f32 %v106, %v52
    %v111 = vadd.f32 %v102, %v107
    %v112 = vadd.f32 %v103, %v108
    %v113 = vadd.f32 %v104, %v109
    %v114 = vadd.f32 %v105, %v110
    %v115 = vstv %s62
    %v116 = vmul.f32 %v115, %v54
    %v117 = vmul.f32 %v115, %v55
    %v118 = vmul.f32 %v115, %v56
    %v119 = vmul.f32 %v115, %v57
    %v120 = vadd.f32 %v111, %v116
    %v121 = vadd.f32 %v112, %v117
    %v122 = vadd.f32 %v113, %v118
    %v123 = vadd.f32 %v114, %v119
    %v124 = vstv %s63
    %v125 = vmul.f32 %v124, %v49
    %v126 = vmul.f32 %v124, %v50
    %v127 = vmul.f32 %v124, %v51
    %v128 = vmul.f32 %v124, %v52
    %133 = vrot.lane.b32.xlu0 %v125, 127
    %v134 = vpop.permute.xlu0 %133
    %135 = vrot.lane.b32.xlu0 %v126, 127
    %v136 = vpop.permute.xlu0 %135
    %137 = vrot.lane.b32.xlu0 %v127, 127
    %v138 = vpop.permute.xlu0 %137
    %139 = vrot.lane.b32.xlu0 %v128, 127
    %v140 = vpop.permute.xlu0 %139
    %v145 = vadd.f32 %v120, %v134
    %v146 = vadd.f32 %v121, %v136
    %v147 = vadd.f32 %v122, %v138
    %v148 = vadd.f32 %v123, %v140
    %v149 = vstv %s64
    %v150 = vmul.f32 %v149, %v39
    %v151 = vmul.f32 %v149, %v40
    %v152 = vmul.f32 %v149, %v41
    %v153 = vmul.f32 %v149, %v42
    %vm158 = vcmask 1046528
    %v159 = vrot.slane %v150, 1
    %v160 = vrot.slane %v151, 1
    %v161 = vsel %vm158, %v159, %v160
    %v162 = vrot.slane %v152, 1
    %v163 = vrot.slane %v153, 1
    %v164 = vsel %vm158, %v162, %v163
    %v169 = vadd.f32 %v145, %v161
    %v170 = vadd.f32 %v146, %v160
    %v171 = vadd.f32 %v147, %v164
    %v172 = vadd.f32 %v148, %v163
    %v173 = vstv %s65
    %v174 = vmul.f32 %v173, %v44
    %v175 = vmul.f32 %v173, %v45
    %v176 = vmul.f32 %v173, %v46
    %v177 = vmul.f32 %v173, %v47
    %v182 = vrot.slane %v174, 1
    %v183 = vrot.slane %v175, 1
    %v184 = vsel %vm158, %v182, %v183
    %v185 = vrot.slane %v176, 1
    %v186 = vrot.slane %v177, 1
    %v187 = vsel %vm158, %v185, %v186
    %v192 = vadd.f32 %v169, %v184
    %v193 = vadd.f32 %v170, %v183
    %v194 = vadd.f32 %v171, %v187
    %v195 = vadd.f32 %v172, %v186
    %v196 = vstv %s66
    %v197 = vmul.f32 %v196, %v39
    %v198 = vmul.f32 %v196, %v40
    %v199 = vmul.f32 %v196, %v41
    %v200 = vmul.f32 %v196, %v42
    %v205 = vrot.slane %v197, 1
    %v206 = vrot.slane %v198, 1
    %v207 = vsel %vm158, %v205, %v206
    %v208 = vrot.slane %v199, 1
    %v209 = vrot.slane %v200, 1
    %v210 = vsel %vm158, %v208, %v209
    %211 = vrot.lane.b32.xlu0 %v207, 127
    %v212 = vpop.permute.xlu0 %211
    %213 = vrot.lane.b32.xlu0 %v206, 127
    %v214 = vpop.permute.xlu0 %213
    %215 = vrot.lane.b32.xlu0 %v210, 127
    %v216 = vpop.permute.xlu0 %215
    %217 = vrot.lane.b32.xlu0 %v209, 127
    %v218 = vpop.permute.xlu0 %217
    %v223 = vadd.f32 %v192, %v212
    %v224 = vadd.f32 %v193, %v214
    %v225 = vadd.f32 %v194, %v216
    %v226 = vadd.f32 %v195, %v218
    %v227 = vmul.f32 %v67, %v44
    %v228 = vmul.f32 %v67, %v45
    %v229 = vmul.f32 %v67, %v46
    %v230 = vmul.f32 %v67, %v47
    %v231 = vmul.f32 %v72, %v39
    %v232 = vmul.f32 %v72, %v40
    %v233 = vmul.f32 %v72, %v41
    %v234 = vmul.f32 %v72, %v42
    %239 = vrot.lane.b32.xlu0 %v231, 127
    %v240 = vpop.permute.xlu0 %239
    %241 = vrot.lane.b32.xlu0 %v232, 127
    %v242 = vpop.permute.xlu0 %241
    %243 = vrot.lane.b32.xlu0 %v233, 127
    %v244 = vpop.permute.xlu0 %243
    %245 = vrot.lane.b32.xlu0 %v234, 127
    %v246 = vpop.permute.xlu0 %245
    %v251 = vadd.f32 %v227, %v240
    %v252 = vadd.f32 %v228, %v242
    %v253 = vadd.f32 %v229, %v244
    %v254 = vadd.f32 %v230, %v246
    %v255 = vmul.f32 %v81, %v44
    %v256 = vmul.f32 %v81, %v45
    %v257 = vmul.f32 %v81, %v46
    %v258 = vmul.f32 %v81, %v47
    %263 = vrot.lane.b32.xlu0 %v255, 127
    %v264 = vpop.permute.xlu0 %263
    %265 = vrot.lane.b32.xlu0 %v256, 127
    %v266 = vpop.permute.xlu0 %265
    %267 = vrot.lane.b32.xlu0 %v257, 127
    %v268 = vpop.permute.xlu0 %267
    %269 = vrot.lane.b32.xlu0 %v258, 127
    %v270 = vpop.permute.xlu0 %269
    %v275 = vadd.f32 %v251, %v264
    %v276 = vadd.f32 %v252, %v266
    %v277 = vadd.f32 %v253, %v268
    %v278 = vadd.f32 %v254, %v270
    %v279 = vmul.f32 %v106, %v54
    %v280 = vmul.f32 %v106, %v55
    %v281 = vmul.f32 %v106, %v56
    %v282 = vmul.f32 %v106, %v57
    %v283 = vadd.f32 %v275, %v279
    %v284 = vadd.f32 %v276, %v280
    %v285 = vadd.f32 %v277, %v281
    %v286 = vadd.f32 %v278, %v282
    %v287 = vmul.f32 %v115, %v49
    %v288 = vmul.f32 %v115, %v50
    %v289 = vmul.f32 %v115, %v51
    %v290 = vmul.f32 %v115, %v52
    %295 = vrot.lane.b32.xlu0 %v287, 127
    %v296 = vpop.permute.xlu0 %295
    %297 = vrot.lane.b32.xlu0 %v288, 127
    %v298 = vpop.permute.xlu0 %297
    %299 = vrot.lane.b32.xlu0 %v289, 127
    %v300 = vpop.permute.xlu0 %299
    %301 = vrot.lane.b32.xlu0 %v290, 127
    %v302 = vpop.permute.xlu0 %301
    %v307 = vadd.f32 %v283, %v296
    %v308 = vadd.f32 %v284, %v298
    %v309 = vadd.f32 %v285, %v300
    %v310 = vadd.f32 %v286, %v302
    %v311 = vmul.f32 %v124, %v54
    %v312 = vmul.f32 %v124, %v55
    %v313 = vmul.f32 %v124, %v56
    %v314 = vmul.f32 %v124, %v57
    %319 = vrot.lane.b32.xlu0 %v311, 127
    %v320 = vpop.permute.xlu0 %319
    %321 = vrot.lane.b32.xlu0 %v312, 127
    %v322 = vpop.permute.xlu0 %321
    %323 = vrot.lane.b32.xlu0 %v313, 127
    %v324 = vpop.permute.xlu0 %323
    %325 = vrot.lane.b32.xlu0 %v314, 127
    %v326 = vpop.permute.xlu0 %325
    %v331 = vadd.f32 %v307, %v320
    %v332 = vadd.f32 %v308, %v322
    %v333 = vadd.f32 %v309, %v324
    %v334 = vadd.f32 %v310, %v326
    %v335 = vmul.f32 %v149, %v44
    %v336 = vmul.f32 %v149, %v45
    %v337 = vmul.f32 %v149, %v46
    %v338 = vmul.f32 %v149, %v47
    %v343 = vrot.slane %v335, 1
    %v344 = vrot.slane %v336, 1
    %v345 = vsel %vm158, %v343, %v344
    %v346 = vrot.slane %v337, 1
    %v347 = vrot.slane %v338, 1
    %v348 = vsel %vm158, %v346, %v347
    %v353 = vadd.f32 %v331, %v345
    %v354 = vadd.f32 %v332, %v344
    %v355 = vadd.f32 %v333, %v348
    %v356 = vadd.f32 %v334, %v347
    %v357 = vmul.f32 %v173, %v39
    %v358 = vmul.f32 %v173, %v40
    %v359 = vmul.f32 %v173, %v41
    %v360 = vmul.f32 %v173, %v42
    %v365 = vrot.slane %v357, 1
    %v366 = vrot.slane %v358, 1
    %v367 = vsel %vm158, %v365, %v366
    %v368 = vrot.slane %v359, 1
    %v369 = vrot.slane %v360, 1
    %v370 = vsel %vm158, %v368, %v369
    %371 = vrot.lane.b32.xlu0 %v367, 127
    %v372 = vpop.permute.xlu0 %371
    %373 = vrot.lane.b32.xlu0 %v366, 127
    %v374 = vpop.permute.xlu0 %373
    %375 = vrot.lane.b32.xlu0 %v370, 127
    %v376 = vpop.permute.xlu0 %375
    %377 = vrot.lane.b32.xlu0 %v369, 127
    %v378 = vpop.permute.xlu0 %377
    %v383 = vadd.f32 %v353, %v372
    %v384 = vadd.f32 %v354, %v374
    %v385 = vadd.f32 %v355, %v376
    %v386 = vadd.f32 %v356, %v378
    %v387 = vmul.f32 %v196, %v44
    %v388 = vmul.f32 %v196, %v45
    %v389 = vmul.f32 %v196, %v46
    %v390 = vmul.f32 %v196, %v47
    %v395 = vrot.slane %v387, 1
    %v396 = vrot.slane %v388, 1
    %v397 = vsel %vm158, %v395, %v396
    %v398 = vrot.slane %v389, 1
    %v399 = vrot.slane %v390, 1
    %v400 = vsel %vm158, %v398, %v399
    %401 = vrot.lane.b32.xlu0 %v397, 127
    %v402 = vpop.permute.xlu0 %401
    %403 = vrot.lane.b32.xlu0 %v396, 127
    %v404 = vpop.permute.xlu0 %403
    %405 = vrot.lane.b32.xlu0 %v400, 127
    %v406 = vpop.permute.xlu0 %405
    %407 = vrot.lane.b32.xlu0 %v399, 127
    %v408 = vpop.permute.xlu0 %407
    %v413 = vadd.f32 %v383, %v402
    %v414 = vadd.f32 %v384, %v404
    %v415 = vadd.f32 %v385, %v406
    %v416 = vadd.f32 %v386, %v408
    %v417 = vmul.f32 %v67, %v49
    %v418 = vmul.f32 %v67, %v50
    %v419 = vmul.f32 %v67, %v51
    %v420 = vmul.f32 %v67, %v52
    %v421 = vmul.f32 %v72, %v54
    %v422 = vmul.f32 %v72, %v55
    %v423 = vmul.f32 %v72, %v56
    %v424 = vmul.f32 %v72, %v57
    %v425 = vadd.f32 %v417, %v421
    %v426 = vadd.f32 %v418, %v422
    %v427 = vadd.f32 %v419, %v423
    %v428 = vadd.f32 %v420, %v424
    %v429 = vmul.f32 %v81, %v49
    %v430 = vmul.f32 %v81, %v50
    %v431 = vmul.f32 %v81, %v51
    %v432 = vmul.f32 %v81, %v52
    %437 = vrot.lane.b32.xlu0 %v429, 127
    %v438 = vpop.permute.xlu0 %437
    %439 = vrot.lane.b32.xlu0 %v430, 127
    %v440 = vpop.permute.xlu0 %439
    %441 = vrot.lane.b32.xlu0 %v431, 127
    %v442 = vpop.permute.xlu0 %441
    %443 = vrot.lane.b32.xlu0 %v432, 127
    %v444 = vpop.permute.xlu0 %443
    %v449 = vadd.f32 %v425, %v438
    %v450 = vadd.f32 %v426, %v440
    %v451 = vadd.f32 %v427, %v442
    %v452 = vadd.f32 %v428, %v444
    %v453 = vmul.f32 %v106, %v39
    %v454 = vmul.f32 %v106, %v40
    %v455 = vmul.f32 %v106, %v41
    %v456 = vmul.f32 %v106, %v42
    %v461 = vrot.slane %v453, 1
    %v462 = vrot.slane %v454, 1
    %v463 = vsel %vm158, %v461, %v462
    %v464 = vrot.slane %v455, 1
    %v465 = vrot.slane %v456, 1
    %v466 = vsel %vm158, %v464, %v465
    %v471 = vadd.f32 %v449, %v463
    %v472 = vadd.f32 %v450, %v462
    %v473 = vadd.f32 %v451, %v466
    %v474 = vadd.f32 %v452, %v465
    %v475 = vmul.f32 %v115, %v44
    %v476 = vmul.f32 %v115, %v45
    %v477 = vmul.f32 %v115, %v46
    %v478 = vmul.f32 %v115, %v47
    %v483 = vrot.slane %v475, 1
    %v484 = vrot.slane %v476, 1
    %v485 = vsel %vm158, %v483, %v484
    %v486 = vrot.slane %v477, 1
    %v487 = vrot.slane %v478, 1
    %v488 = vsel %vm158, %v486, %v487
    %v493 = vadd.f32 %v471, %v485
    %v494 = vadd.f32 %v472, %v484
    %v495 = vadd.f32 %v473, %v488
    %v496 = vadd.f32 %v474, %v487
    %v497 = vmul.f32 %v124, %v39
    %v498 = vmul.f32 %v124, %v40
    %v499 = vmul.f32 %v124, %v41
    %v500 = vmul.f32 %v124, %v42
    %v505 = vrot.slane %v497, 1
    %v506 = vrot.slane %v498, 1
    %v507 = vsel %vm158, %v505, %v506
    %v508 = vrot.slane %v499, 1
    %v509 = vrot.slane %v500, 1
    %v510 = vsel %vm158, %v508, %v509
    %511 = vrot.lane.b32.xlu0 %v507, 127
    %v512 = vpop.permute.xlu0 %511
    %513 = vrot.lane.b32.xlu0 %v506, 127
    %v514 = vpop.permute.xlu0 %513
    %515 = vrot.lane.b32.xlu0 %v510, 127
    %v516 = vpop.permute.xlu0 %515
    %517 = vrot.lane.b32.xlu0 %v509, 127
    %v518 = vpop.permute.xlu0 %517
    %v523 = vadd.f32 %v493, %v512
    %v524 = vadd.f32 %v494, %v514
    %v525 = vadd.f32 %v495, %v516
    %v526 = vadd.f32 %v496, %v518
    %v527 = vmul.f32 %v149, %v49
    %v528 = vmul.f32 %v149, %v50
    %v529 = vmul.f32 %v149, %v51
    %v530 = vmul.f32 %v149, %v52
    %v535 = vrot.slane %v527, 1
    %v536 = vrot.slane %v528, 1
    %v537 = vsel %vm158, %v535, %v536
    %v538 = vrot.slane %v529, 1
    %v539 = vrot.slane %v530, 1
    %v540 = vsel %vm158, %v538, %v539
    %v545 = vadd.f32 %v523, %v537
    %v546 = vadd.f32 %v524, %v536
    %v547 = vadd.f32 %v525, %v540
    %v548 = vadd.f32 %v526, %v539
    %v549 = vmul.f32 %v173, %v54
    %v550 = vmul.f32 %v173, %v55
    %v551 = vmul.f32 %v173, %v56
    %v552 = vmul.f32 %v173, %v57
    %v557 = vrot.slane %v549, 1
    %v558 = vrot.slane %v550, 1
    %v559 = vsel %vm158, %v557, %v558
    %v560 = vrot.slane %v551, 1
    %v561 = vrot.slane %v552, 1
    %v562 = vsel %vm158, %v560, %v561
    %v567 = vadd.f32 %v545, %v559
    %v568 = vadd.f32 %v546, %v558
    %v569 = vadd.f32 %v547, %v562
    %v570 = vadd.f32 %v548, %v561
    %v571 = vmul.f32 %v196, %v49
    %v572 = vmul.f32 %v196, %v50
    %v573 = vmul.f32 %v196, %v51
    %v574 = vmul.f32 %v196, %v52
    %v579 = vrot.slane %v571, 1
    %v580 = vrot.slane %v572, 1
    %v581 = vsel %vm158, %v579, %v580
    %v582 = vrot.slane %v573, 1
    %v583 = vrot.slane %v574, 1
    %v584 = vsel %vm158, %v582, %v583
    %585 = vrot.lane.b32.xlu0 %v581, 127
    %v586 = vpop.permute.xlu0 %585
    %587 = vrot.lane.b32.xlu0 %v580, 127
    %v588 = vpop.permute.xlu0 %587
    %589 = vrot.lane.b32.xlu0 %v584, 127
    %v590 = vpop.permute.xlu0 %589
    %591 = vrot.lane.b32.xlu0 %v583, 127
    %v592 = vpop.permute.xlu0 %591
    %v597 = vadd.f32 %v567, %v586
    %v598 = vadd.f32 %v568, %v588
    %v599 = vadd.f32 %v569, %v590
    %v600 = vadd.f32 %v570, %v592
    %v601 = vmul.f32 %v67, %v54
    %v602 = vmul.f32 %v67, %v55
    %v603 = vmul.f32 %v67, %v56
    %v604 = vmul.f32 %v67, %v57
    %v605 = vmul.f32 %v72, %v49
    %v606 = vmul.f32 %v72, %v50
    %v607 = vmul.f32 %v72, %v51
    %v608 = vmul.f32 %v72, %v52
    %613 = vrot.lane.b32.xlu0 %v605, 127
    %v614 = vpop.permute.xlu0 %613
    %615 = vrot.lane.b32.xlu0 %v606, 127
    %v616 = vpop.permute.xlu0 %615
    %617 = vrot.lane.b32.xlu0 %v607, 127
    %v618 = vpop.permute.xlu0 %617
    %619 = vrot.lane.b32.xlu0 %v608, 127
    %v620 = vpop.permute.xlu0 %619
    %v625 = vadd.f32 %v601, %v614
    %v626 = vadd.f32 %v602, %v616
    %v627 = vadd.f32 %v603, %v618
    %v628 = vadd.f32 %v604, %v620
    %v629 = vmul.f32 %v81, %v54
    %v630 = vmul.f32 %v81, %v55
    %v631 = vmul.f32 %v81, %v56
    %v632 = vmul.f32 %v81, %v57
    %637 = vrot.lane.b32.xlu0 %v629, 127
    %v638 = vpop.permute.xlu0 %637
    %639 = vrot.lane.b32.xlu0 %v630, 127
    %v640 = vpop.permute.xlu0 %639
    %641 = vrot.lane.b32.xlu0 %v631, 127
    %v642 = vpop.permute.xlu0 %641
    %643 = vrot.lane.b32.xlu0 %v632, 127
    %v644 = vpop.permute.xlu0 %643
    %v649 = vadd.f32 %v625, %v638
    %v650 = vadd.f32 %v626, %v640
    %v651 = vadd.f32 %v627, %v642
    %v652 = vadd.f32 %v628, %v644
    %v653 = vmul.f32 %v106, %v44
    %v654 = vmul.f32 %v106, %v45
    %v655 = vmul.f32 %v106, %v46
    %v656 = vmul.f32 %v106, %v47
    %v661 = vrot.slane %v653, 1
    %v662 = vrot.slane %v654, 1
    %v663 = vsel %vm158, %v661, %v662
    %v664 = vrot.slane %v655, 1
    %v665 = vrot.slane %v656, 1
    %v666 = vsel %vm158, %v664, %v665
    %v671 = vadd.f32 %v649, %v663
    %v672 = vadd.f32 %v650, %v662
    %v673 = vadd.f32 %v651, %v666
    %v674 = vadd.f32 %v652, %v665
    %v675 = vmul.f32 %v115, %v39
    %v676 = vmul.f32 %v115, %v40
    %v677 = vmul.f32 %v115, %v41
    %v678 = vmul.f32 %v115, %v42
    %v683 = vrot.slane %v675, 1
    %v684 = vrot.slane %v676, 1
    %v685 = vsel %vm158, %v683, %v684
    %v686 = vrot.slane %v677, 1
    %v687 = vrot.slane %v678, 1
    %v688 = vsel %vm158, %v686, %v687
    %689 = vrot.lane.b32.xlu0 %v685, 127
    %v690 = vpop.permute.xlu0 %689
    %691 = vrot.lane.b32.xlu0 %v684, 127
    %v692 = vpop.permute.xlu0 %691
    %693 = vrot.lane.b32.xlu0 %v688, 127
    %v694 = vpop.permute.xlu0 %693
    %695 = vrot.lane.b32.xlu0 %v687, 127
    %v696 = vpop.permute.xlu0 %695
    %v701 = vadd.f32 %v671, %v690
    %v702 = vadd.f32 %v672, %v692
    %v703 = vadd.f32 %v673, %v694
    %v704 = vadd.f32 %v674, %v696
    %v705 = vmul.f32 %v124, %v44
    %v706 = vmul.f32 %v124, %v45
    %v707 = vmul.f32 %v124, %v46
    %v708 = vmul.f32 %v124, %v47
    %v713 = vrot.slane %v705, 1
    %v714 = vrot.slane %v706, 1
    %v715 = vsel %vm158, %v713, %v714
    %v716 = vrot.slane %v707, 1
    %v717 = vrot.slane %v708, 1
    %v718 = vsel %vm158, %v716, %v717
    %719 = vrot.lane.b32.xlu0 %v715, 127
    %v720 = vpop.permute.xlu0 %719
    %721 = vrot.lane.b32.xlu0 %v714, 127
    %v722 = vpop.permute.xlu0 %721
    %723 = vrot.lane.b32.xlu0 %v718, 127
    %v724 = vpop.permute.xlu0 %723
    %725 = vrot.lane.b32.xlu0 %v717, 127
    %v726 = vpop.permute.xlu0 %725
    %v731 = vadd.f32 %v701, %v720
    %v732 = vadd.f32 %v702, %v722
    %v733 = vadd.f32 %v703, %v724
    %v734 = vadd.f32 %v704, %v726
    %v735 = vmul.f32 %v149, %v54
    %v736 = vmul.f32 %v149, %v55
    %v737 = vmul.f32 %v149, %v56
    %v738 = vmul.f32 %v149, %v57
    %v743 = vrot.slane %v735, 1
    %v744 = vrot.slane %v736, 1
    %v745 = vsel %vm158, %v743, %v744
    %v746 = vrot.slane %v737, 1
    %v747 = vrot.slane %v738, 1
    %v748 = vsel %vm158, %v746, %v747
    %v753 = vadd.f32 %v731, %v745
    %v754 = vadd.f32 %v732, %v744
    %v755 = vadd.f32 %v733, %v748
    %v756 = vadd.f32 %v734, %v747
    %v757 = vmul.f32 %v173, %v49
    %v758 = vmul.f32 %v173, %v50
    %v759 = vmul.f32 %v173, %v51
    %v760 = vmul.f32 %v173, %v52
    %v765 = vrot.slane %v757, 1
    %v766 = vrot.slane %v758, 1
    %v767 = vsel %vm158, %v765, %v766
    %v768 = vrot.slane %v759, 1
    %v769 = vrot.slane %v760, 1
    %v770 = vsel %vm158, %v768, %v769
    %771 = vrot.lane.b32.xlu0 %v767, 127
    %v772 = vpop.permute.xlu0 %771
    %773 = vrot.lane.b32.xlu0 %v766, 127
    %v774 = vpop.permute.xlu0 %773
    %775 = vrot.lane.b32.xlu0 %v770, 127
    %v776 = vpop.permute.xlu0 %775
    %777 = vrot.lane.b32.xlu0 %v769, 127
    %v778 = vpop.permute.xlu0 %777
    %v783 = vadd.f32 %v753, %v772
    %v784 = vadd.f32 %v754, %v774
    %v785 = vadd.f32 %v755, %v776
    %v786 = vadd.f32 %v756, %v778
    %v787 = vmul.f32 %v196, %v54
    %v788 = vmul.f32 %v196, %v55
    %v789 = vmul.f32 %v196, %v56
    %v790 = vmul.f32 %v196, %v57
    %v795 = vrot.slane %v787, 1
    %v796 = vrot.slane %v788, 1
    %v797 = vsel %vm158, %v795, %v796
    %v798 = vrot.slane %v789, 1
    %v799 = vrot.slane %v790, 1
    %v800 = vsel %vm158, %v798, %v799
    %801 = vrot.lane.b32.xlu0 %v797, 127
    %v802 = vpop.permute.xlu0 %801
    %803 = vrot.lane.b32.xlu0 %v796, 127
    %v804 = vpop.permute.xlu0 %803
    %805 = vrot.lane.b32.xlu0 %v800, 127
    %v806 = vpop.permute.xlu0 %805
    %807 = vrot.lane.b32.xlu0 %v799, 127
    %v808 = vpop.permute.xlu0 %807
    %v813 = vadd.f32 %v783, %v802
    %v814 = vadd.f32 %v784, %v804
    %v815 = vadd.f32 %v785, %v806
    %v816 = vadd.f32 %v786, %v808
    %v817 = vmax.f32 %v223, %v413
    %v818 = vmax.f32 %v224, %v414
    %v819 = vmax.f32 %v225, %v415
    %v820 = vmax.f32 %v226, %v416
    %v821 = vmax.f32 %v597, %v813
    %v822 = vmax.f32 %v598, %v814
    %v823 = vmax.f32 %v599, %v815
    %v824 = vmax.f32 %v600, %v816
    %v825 = vmax.f32 %v817, %v821
    %v826 = vmax.f32 %v818, %v822
    %v827 = vmax.f32 %v819, %v823
    %v828 = vmax.f32 %v820, %v824
    %s829 = sld [smem:[#allocation4]]
    %v830 = vstv %s829
    %v831 = vadd.f32 %v825, %v830
    %v832 = vadd.f32 %v826, %v830
    %v833 = vadd.f32 %v827, %v830
    %v834 = vadd.f32 %v828, %v830
    %v835 = vmax.f32 %v831, 0.0
    %v836 = vmax.f32 %v832, 0.0
    %v837 = vmax.f32 %v833, 0.0
    %v838 = vmax.f32 %v834, 0.0
    %vm839 = vcmask 121856
    %840 = vst.msk [vmem:[%s3] sm:$0xff] %vm839, %v835
    %vm841 = vcmask 120832
    %842 = vst.msk [vmem:[%s3 + $0x8] sm:$0x7f] %vm841, %v836
    %843 = vst.msk [vmem:[%s3 + $0x10] sm:$0xff] %vm839, %v837
    %844 = vst.msk [vmem:[%s3 + $0x18] sm:$0x7f] %vm841, %v838
    %s845 = sld [smem:[#allocation2 + $0x80]]
    %s846 = sld [smem:[#allocation2 + $0x81]]
    %s847 = sld [smem:[#allocation2 + $0x82]]
    %s848 = sld [smem:[#allocation2 + $0x83]]
    %s849 = sld [smem:[#allocation2 + $0x84]]
    %s850 = sld [smem:[#allocation2 + $0x85]]
    %s851 = sld [smem:[#allocation2 + $0x86]]
    %s852 = sld [smem:[#allocation2 + $0x87]]
    %s853 = sld [smem:[#allocation2 + $0x88]]
    %v854 = vstv %s845
    %v855 = vmul.f32 %v854, %v39
    %v856 = vmul.f32 %v854, %v40
    %v857 = vmul.f32 %v854, %v41
    %v858 = vmul.f32 %v854, %v42
    %v859 = vstv %s846
    %v860 = vmul.f32 %v859, %v44
    %v861 = vmul.f32 %v859, %v45
    %v862 = vmul.f32 %v859, %v46
    %v863 = vmul.f32 %v859, %v47
    %v864 = vadd.f32 %v855, %v860
    %v865 = vadd.f32 %v856, %v861
    %v866 = vadd.f32 %v857, %v862
    %v867 = vadd.f32 %v858, %v863
    %v868 = vstv %s847
    %v869 = vmul.f32 %v868, %v39
    %v870 = vmul.f32 %v868, %v40
    %v871 = vmul.f32 %v868, %v41
    %v872 = vmul.f32 %v868, %v42
    %877 = vrot.lane.b32.xlu0 %v869, 127
    %v878 = vpop.permute.xlu0 %877
    %879 = vrot.lane.b32.xlu0 %v870, 127
    %v880 = vpop.permute.xlu0 %879
    %881 = vrot.lane.b32.xlu0 %v871, 127
    %v882 = vpop.permute.xlu0 %881
    %883 = vrot.lane.b32.xlu0 %v872, 127
    %v884 = vpop.permute.xlu0 %883
    %v889 = vadd.f32 %v864, %v878
    %v890 = vadd.f32 %v865, %v880
    %v891 = vadd.f32 %v866, %v882
    %v892 = vadd.f32 %v867, %v884
    %v893 = vstv %s848
    %v894 = vmul.f32 %v893, %v49
    %v895 = vmul.f32 %v893, %v50
    %v896 = vmul.f32 %v893, %v51
    %v897 = vmul.f32 %v893, %v52
    %v898 = vadd.f32 %v889, %v894
    %v899 = vadd.f32 %v890, %v895
    %v900 = vadd.f32 %v891, %v896
    %v901 = vadd.f32 %v892, %v897
    %v902 = vstv %s849
    %v903 = vmul.f32 %v902, %v54
    %v904 = vmul.f32 %v902, %v55
    %v905 = vmul.f32 %v902, %v56
    %v906 = vmul.f32 %v902, %v57
    %v907 = vadd.f32 %v898, %v903
    %v908 = vadd.f32 %v899, %v904
    %v909 = vadd.f32 %v900, %v905
    %v910 = vadd.f32 %v901, %v906
    %v911 = vstv %s850
    %v912 = vmul.f32 %v911, %v49
    %v913 = vmul.f32 %v911, %v50
    %v914 = vmul.f32 %v911, %v51
    %v915 = vmul.f32 %v911, %v52
    %920 = vrot.lane.b32.xlu0 %v912, 127
    %v921 = vpop.permute.xlu0 %920
    %922 = vrot.lane.b32.xlu0 %v913, 127
    %v923 = vpop.permute.xlu0 %922
    %924 = vrot.lane.b32.xlu0 %v914, 127
    %v925 = vpop.permute.xlu0 %924
    %926 = vrot.lane.b32.xlu0 %v915, 127
    %v927 = vpop.permute.xlu0 %926
    %v932 = vadd.f32 %v907, %v921
    %v933 = vadd.f32 %v908, %v923
    %v934 = vadd.f32 %v909, %v925
    %v935 = vadd.f32 %v910, %v927
    %v936 = vstv %s851
    %v937 = vmul.f32 %v936, %v39
    %v938 = vmul.f32 %v936, %v40
    %v939 = vmul.f32 %v936, %v41
    %v940 = vmul.f32 %v936, %v42
    %v945 = vrot.slane %v937, 1
    %v946 = vrot.slane %v938, 1
    %v947 = vsel %vm158, %v945, %v946
    %v948 = vrot.slane %v939, 1
    %v949 = vrot.slane %v940, 1
    %v950 = vsel %vm158, %v948, %v949
    %v955 = vadd.f32 %v932, %v947
    %v956 = vadd.f32 %v933, %v946
    %v957 = vadd.f32 %v934, %v950
    %v958 = vadd.f32 %v935, %v949
    %v959 = vstv %s852
    %v960 = vmul.f32 %v959, %v44
    %v961 = vmul.f32 %v959, %v45
    %v962 = vmul.f32 %v959, %v46
    %v963 = vmul.f32 %v959, %v47
    %v968 = vrot.slane %v960, 1
    %v969 = vrot.slane %v961, 1
    %v970 = vsel %vm158, %v968, %v969
    %v971 = vrot.slane %v962, 1
    %v972 = vrot.slane %v963, 1
    %v973 = vsel %vm158, %v971, %v972
    %v978 = vadd.f32 %v955, %v970
    %v979 = vadd.f32 %v956, %v969
    %v980 = vadd.f32 %v957, %v973
    %v981 = vadd.f32 %v958, %v972
    %v982 = vstv %s853
    %v983 = vmul.f32 %v982, %v39
    %v984 = vmul.f32 %v982, %v40
    %v985 = vmul.f32 %v982, %v41
    %v986 = vmul.f32 %v982, %v42
    %v991 = vrot.slane %v983, 1
    %v992 = vrot.slane %v984, 1
    %v993 = vsel %vm158, %v991, %v992
    %v994 = vrot.slane %v985, 1
    %v995 = vrot.slane %v986, 1
    %v996 = vsel %vm158, %v994, %v995
    %997 = vrot.lane.b32.xlu0 %v993, 127
    %v998 = vpop.permute.xlu0 %997
    %999 = vrot.lane.b32.xlu0 %v992, 127
    %v1000 = vpop.permute.xlu0 %999
    %1001 = vrot.lane.b32.xlu0 %v996, 127
    %v1002 = vpop.permute.xlu0 %1001
    %1003 = vrot.lane.b32.xlu0 %v995, 127
    %v1004 = vpop.permute.xlu0 %1003
    %v1009 = vadd.f32 %v978, %v998
    %v1010 = vadd.f32 %v979, %v1000
    %v1011 = vadd.f32 %v980, %v1002
    %v1012 = vadd.f32 %v981, %v1004
    %v1013 = vmul.f32 %v854, %v44
    %v1014 = vmul.f32 %v854, %v45
    %v1015 = vmul.f32 %v854, %v46
    %v1016 = vmul.f32 %v854, %v47
    %v1017 = vmul.f32 %v859, %v39
    %v1018 = vmul.f32 %v859, %v40
    %v1019 = vmul.f32 %v859, %v41
    %v1020 = vmul.f32 %v859, %v42
    %1025 = vrot.lane.b32.xlu0 %v1017, 127
    %v1026 = vpop.permute.xlu0 %1025
    %1027 = vrot.lane.b32.xlu0 %v1018, 127
    %v1028 = vpop.permute.xlu0 %1027
    %1029 = vrot.lane.b32.xlu0 %v1019, 127
    %v1030 = vpop.permute.xlu0 %1029
    %1031 = vrot.lane.b32.xlu0 %v1020, 127
    %v1032 = vpop.permute.xlu0 %1031
    %v1037 = vadd.f32 %v1013, %v1026
    %v1038 = vadd.f32 %v1014, %v1028
    %v1039 = vadd.f32 %v1015, %v1030
    %v1040 = vadd.f32 %v1016, %v1032
    %v1041 = vmul.f32 %v868, %v44
    %v1042 = vmul.f32 %v868, %v45
    %v1043 = vmul.f32 %v868, %v46
    %v1044 = vmul.f32 %v868, %v47
    %1049 = vrot.lane.b32.xlu0 %v1041, 127
    %v1050 = vpop.permute.xlu0 %1049
    %1051 = vrot.lane.b32.xlu0 %v1042, 127
    %v1052 = vpop.permute.xlu0 %1051
    %1053 = vrot.lane.b32.xlu0 %v1043, 127
    %v1054 = vpop.permute.xlu0 %1053
    %1055 = vrot.lane.b32.xlu0 %v1044, 127
    %v1056 = vpop.permute.xlu0 %1055
    %v1061 = vadd.f32 %v1037, %v1050
    %v1062 = vadd.f32 %v1038, %v1052
    %v1063 = vadd.f32 %v1039, %v1054
    %v1064 = vadd.f32 %v1040, %v1056
    %v1065 = vmul.f32 %v893, %v54
    %v1066 = vmul.f32 %v893, %v55
    %v1067 = vmul.f32 %v893, %v56
    %v1068 = vmul.f32 %v893, %v57
    %v1069 = vadd.f32 %v1061, %v1065
    %v1070 = vadd.f32 %v1062, %v1066
    %v1071 = vadd.f32 %v1063, %v1067
    %v1072 = vadd.f32 %v1064, %v1068
    %v1073 = vmul.f32 %v902, %v49
    %v1074 = vmul.f32 %v902, %v50
    %v1075 = vmul.f32 %v902, %v51
    %v1076 = vmul.f32 %v902, %v52
    %1081 = vrot.lane.b32.xlu0 %v1073, 127
    %v1082 = vpop.permute.xlu0 %1081
    %1083 = vrot.lane.b32.xlu0 %v1074, 127
    %v1084 = vpop.permute.xlu0 %1083
    %1085 = vrot.lane.b32.xlu0 %v1075, 127
    %v1086 = vpop.permute.xlu0 %1085
    %1087 = vrot.lane.b32.xlu0 %v1076, 127
    %v1088 = vpop.permute.xlu0 %1087
    %v1093 = vadd.f32 %v1069, %v1082
    %v1094 = vadd.f32 %v1070, %v1084
    %v1095 = vadd.f32 %v1071, %v1086
    %v1096 = vadd.f32 %v1072, %v1088
    %v1097 = vmul.f32 %v911, %v54
    %v1098 = vmul.f32 %v911, %v55
    %v1099 = vmul.f32 %v911, %v56
    %v1100 = vmul.f32 %v911, %v57
    %1105 = vrot.lane.b32.xlu0 %v1097, 127
    %v1106 = vpop.permute.xlu0 %1105
    %1107 = vrot.lane.b32.xlu0 %v1098, 127
    %v1108 = vpop.permute.xlu0 %1107
    %1109 = vrot.lane.b32.xlu0 %v1099, 127
    %v1110 = vpop.permute.xlu0 %1109
    %1111 = vrot.lane.b32.xlu0 %v1100, 127
    %v1112 = vpop.permute.xlu0 %1111
    %v1117 = vadd.f32 %v1093, %v1106
    %v1118 = vadd.f32 %v1094, %v1108
    %v1119 = vadd.f32 %v1095, %v1110
    %v1120 = vadd.f32 %v1096, %v1112
    %v1121 = vmul.f32 %v936, %v44
    %v1122 = vmul.f32 %v936, %v45
    %v1123 = vmul.f32 %v936, %v46
    %v1124 = vmul.f32 %v936, %v47
    %v1129 = vrot.slane %v1121, 1
    %v1130 = vrot.slane %v1122, 1
    %v1131 = vsel %vm158, %v1129, %v1130
    %v1132 = vrot.slane %v1123, 1
    %v1133 = vrot.slane %v1124, 1
    %v1134 = vsel %vm158, %v1132, %v1133
    %v1139 = vadd.f32 %v1117, %v1131
    %v1140 = vadd.f32 %v1118, %v1130
    %v1141 = vadd.f32 %v1119, %v1134
    %v1142 = vadd.f32 %v1120, %v1133
    %v1143 = vmul.f32 %v959, %v39
    %v1144 = vmul.f32 %v959, %v40
    %v1145 = vmul.f32 %v959, %v41
    %v1146 = vmul.f32 %v959, %v42
    %v1151 = vrot.slane %v1143, 1
    %v1152 = vrot.slane %v1144, 1
    %v1153 = vsel %vm158, %v1151, %v1152
    %v1154 = vrot.slane %v1145, 1
    %v1155 = vrot.slane %v1146, 1
    %v1156 = vsel %vm158, %v1154, %v1155
    %1157 = vrot.lane.b32.xlu0 %v1153, 127
    %v1158 = vpop.permute.xlu0 %1157
    %1159 = vrot.lane.b32.xlu0 %v1152, 127
    %v1160 = vpop.permute.xlu0 %1159
    %1161 = vrot.lane.b32.xlu0 %v1156, 127
    %v1162 = vpop.permute.xlu0 %1161
    %1163 = vrot.lane.b32.xlu0 %v1155, 127
    %v1164 = vpop.permute.xlu0 %1163
    %v1169 = vadd.f32 %v1139, %v1158
    %v1170 = vadd.f32 %v1140, %v1160
    %v1171 = vadd.f32 %v1141, %v1162
    %v1172 = vadd.f32 %v1142, %v1164
    %v1173 = vmul.f32 %v982, %v44
    %v1174 = vmul.f32 %v982, %v45
    %v1175 = vmul.f32 %v982, %v46
    %v1176 = vmul.f32 %v982, %v47
    %v1181 = vrot.slane %v1173, 1
    %v1182 = vrot.slane %v1174, 1
    %v1183 = vsel %vm158, %v1181, %v1182
    %v1184 = vrot.slane %v1175, 1
    %v1185 = vrot.slane %v1176, 1
    %v1186 = vsel %vm158, %v1184, %v1185
    %1187 = vrot.lane.b32.xlu0 %v1183, 127
    %v1188 = vpop.permute.xlu0 %1187
    %1189 = vrot.lane.b32.xlu0 %v1182, 127
    %v1190 = vpop.permute.xlu0 %1189
    %1191 = vrot.lane.b32.xlu0 %v1186, 127
    %v1192 = vpop.permute.xlu0 %1191
    %1193 = vrot.lane.b32.xlu0 %v1185, 127
    %v1194 = vpop.permute.xlu0 %1193
    %v1199 = vadd.f32 %v1169, %v1188
    %v1200 = vadd.f32 %v1170, %v1190
    %v1201 = vadd.f32 %v1171, %v1192
    %v1202 = vadd.f32 %v1172, %v1194
    %v1203 = vmul.f32 %v854, %v49
    %v1204 = vmul.f32 %v854, %v50
    %v1205 = vmul.f32 %v854, %v51
    %v1206 = vmul.f32 %v854, %v52
    %v1207 = vmul.f32 %v859, %v54
    %v1208 = vmul.f32 %v859, %v55
    %v1209 = vmul.f32 %v859, %v56
    %v1210 = vmul.f32 %v859, %v57
    %v1211 = vadd.f32 %v1203, %v1207
    %v1212 = vadd.f32 %v1204, %v1208
    %v1213 = vadd.f32 %v1205, %v1209
    %v1214 = vadd.f32 %v1206, %v1210
    %v1215 = vmul.f32 %v868, %v49
    %v1216 = vmul.f32 %v868, %v50
    %v1217 = vmul.f32 %v868, %v51
    %v1218 = vmul.f32 %v868, %v52
    %1223 = vrot.lane.b32.xlu0 %v1215, 127
    %v1224 = vpop.permute.xlu0 %1223
    %1225 = vrot.lane.b32.xlu0 %v1216, 127
    %v1226 = vpop.permute.xlu0 %1225
    %1227 = vrot.lane.b32.xlu0 %v1217, 127
    %v1228 = vpop.permute.xlu0 %1227
    %1229 = vrot.lane.b32.xlu0 %v1218, 127
    %v1230 = vpop.permute.xlu0 %1229
    %v1235 = vadd.f32 %v1211, %v1224
    %v1236 = vadd.f32 %v1212, %v1226
    %v1237 = vadd.f32 %v1213, %v1228
    %v1238 = vadd.f32 %v1214, %v1230
    %v1239 = vmul.f32 %v893, %v39
    %v1240 = vmul.f32 %v893, %v40
    %v1241 = vmul.f32 %v893, %v41
    %v1242 = vmul.f32 %v893, %v42
    %v1247 = vrot.slane %v1239, 1
    %v1248 = vrot.slane %v1240, 1
    %v1249 = vsel %vm158, %v1247, %v1248
    %v1250 = vrot.slane %v1241, 1
    %v1251 = vrot.slane %v1242, 1
    %v1252 = vsel %vm158, %v1250, %v1251
    %v1257 = vadd.f32 %v1235, %v1249
    %v1258 = vadd.f32 %v1236, %v1248
    %v1259 = vadd.f32 %v1237, %v1252
    %v1260 = vadd.f32 %v1238, %v1251
    %v1261 = vmul.f32 %v902, %v44
    %v1262 = vmul.f32 %v902, %v45
    %v1263 = vmul.f32 %v902, %v46
    %v1264 = vmul.f32 %v902, %v47
    %v1269 = vrot.slane %v1261, 1
    %v1270 = vrot.slane %v1262, 1
    %v1271 = vsel %vm158, %v1269, %v1270
    %v1272 = vrot.slane %v1263, 1
    %v1273 = vrot.slane %v1264, 1
    %v1274 = vsel %vm158, %v1272, %v1273
    %v1279 = vadd.f32 %v1257, %v1271
    %v1280 = vadd.f32 %v1258, %v1270
    %v1281 = vadd.f32 %v1259, %v1274
    %v1282 = vadd.f32 %v1260, %v1273
    %v1283 = vmul.f32 %v911, %v39
    %v1284 = vmul.f32 %v911, %v40
    %v1285 = vmul.f32 %v911, %v41
    %v1286 = vmul.f32 %v911, %v42
    %v1291 = vrot.slane %v1283, 1
    %v1292 = vrot.slane %v1284, 1
    %v1293 = vsel %vm158, %v1291, %v1292
    %v1294 = vrot.slane %v1285, 1
    %v1295 = vrot.slane %v1286, 1
    %v1296 = vsel %vm158, %v1294, %v1295
    %1297 = vrot.lane.b32.xlu0 %v1293, 127
    %v1298 = vpop.permute.xlu0 %1297
    %1299 = vrot.lane.b32.xlu0 %v1292, 127
    %v1300 = vpop.permute.xlu0 %1299
    %1301 = vrot.lane.b32.xlu0 %v1296, 127
    %v1302 = vpop.permute.xlu0 %1301
    %1303 = vrot.lane.b32.xlu0 %v1295, 127
    %v1304 = vpop.permute.xlu0 %1303
    %v1309 = vadd.f32 %v1279, %v1298
    %v1310 = vadd.f32 %v1280, %v1300
    %v1311 = vadd.f32 %v1281, %v1302
    %v1312 = vadd.f32 %v1282, %v1304
    %v1313 = vmul.f32 %v936, %v49
    %v1314 = vmul.f32 %v936, %v50
    %v1315 = vmul.f32 %v936, %v51
    %v1316 = vmul.f32 %v936, %v52
    %v1321 = vrot.slane %v1313, 1
    %v1322 = vrot.slane %v1314, 1
    %v1323 = vsel %vm158, %v1321, %v1322
    %v1324 = vrot.slane %v1315, 1
    %v1325 = vrot.slane %v1316, 1
    %v1326 = vsel %vm158, %v1324, %v1325
    %v1331 = vadd.f32 %v1309, %v1323
    %v1332 = vadd.f32 %v1310, %v1322
    %v1333 = vadd.f32 %v1311, %v1326
    %v1334 = vadd.f32 %v1312, %v1325
    %v1335 = vmul.f32 %v959, %v54
    %v1336 = vmul.f32 %v959, %v55
    %v1337 = vmul.f32 %v959, %v56
    %v1338 = vmul.f32 %v959, %v57
    %v1343 = vrot.slane %v1335, 1
    %v1344 = vrot.slane %v1336, 1
    %v1345 = vsel %vm158, %v1343, %v1344
    %v1346 = vrot.slane %v1337, 1
    %v1347 = vrot.slane %v1338, 1
    %v1348 = vsel %vm158, %v1346, %v1347
    %v1353 = vadd.f32 %v1331, %v1345
    %v1354 = vadd.f32 %v1332, %v1344
    %v1355 = vadd.f32 %v1333, %v1348
    %v1356 = vadd.f32 %v1334, %v1347
    %v1357 = vmul.f32 %v982, %v49
    %v1358 = vmul.f32 %v982, %v50
    %v1359 = vmul.f32 %v982, %v51
    %v1360 = vmul.f32 %v982, %v52
    %v1365 = vrot.slane %v1357, 1
    %v1366 = vrot.slane %v1358, 1
    %v1367 = vsel %vm158, %v1365, %v1366
    %v1368 = vrot.slane %v1359, 1
    %v1369 = vrot.slane %v1360, 1
    %v1370 = vsel %vm158, %v1368, %v1369
    %1371 = vrot.lane.b32.xlu0 %v1367, 127
    %v1372 = vpop.permute.xlu0 %1371
    %1373 = vrot.lane.b32.xlu0 %v1366, 127
    %v1374 = vpop.permute.xlu0 %1373
    %1375 = vrot.lane.b32.xlu0 %v1370, 127
    %v1376 = vpop.permute.xlu0 %1375
    %1377 = vrot.lane.b32.xlu0 %v1369, 127
    %v1378 = vpop.permute.xlu0 %1377
    %v1383 = vadd.f32 %v1353, %v1372
    %v1384 = vadd.f32 %v1354, %v1374
    %v1385 = vadd.f32 %v1355, %v1376
    %v1386 = vadd.f32 %v1356, %v1378
    %v1387 = vmul.f32 %v854, %v54
    %v1388 = vmul.f32 %v854, %v55
    %v1389 = vmul.f32 %v854, %v56
    %v1390 = vmul.f32 %v854, %v57
    %v1391 = vmul.f32 %v859, %v49
    %v1392 = vmul.f32 %v859, %v50
    %v1393 = vmul.f32 %v859, %v51
    %v1394 = vmul.f32 %v859, %v52
    %1399 = vrot.lane.b32.xlu0 %v1391, 127
    %v1400 = vpop.permute.xlu0 %1399
    %1401 = vrot.lane.b32.xlu0 %v1392, 127
    %v1402 = vpop.permute.xlu0 %1401
    %1403 = vrot.lane.b32.xlu0 %v1393, 127
    %v1404 = vpop.permute.xlu0 %1403
    %1405 = vrot.lane.b32.xlu0 %v1394, 127
    %v1406 = vpop.permute.xlu0 %1405
    %v1411 = vadd.f32 %v1387, %v1400
    %v1412 = vadd.f32 %v1388, %v1402
    %v1413 = vadd.f32 %v1389, %v1404
    %v1414 = vadd.f32 %v1390, %v1406
    %v1415 = vmul.f32 %v868, %v54
    %v1416 = vmul.f32 %v868, %v55
    %v1417 = vmul.f32 %v868, %v56
    %v1418 = vmul.f32 %v868, %v57
    %1423 = vrot.lane.b32.xlu0 %v1415, 127
    %v1424 = vpop.permute.xlu0 %1423
    %1425 = vrot.lane.b32.xlu0 %v1416, 127
    %v1426 = vpop.permute.xlu0 %1425
    %1427 = vrot.lane.b32.xlu0 %v1417, 127
    %v1428 = vpop.permute.xlu0 %1427
    %1429 = vrot.lane.b32.xlu0 %v1418, 127
    %v1430 = vpop.permute.xlu0 %1429
    %v1435 = vadd.f32 %v1411, %v1424
    %v1436 = vadd.f32 %v1412, %v1426
    %v1437 = vadd.f32 %v1413, %v1428
    %v1438 = vadd.f32 %v1414, %v1430
    %v1439 = vmul.f32 %v893, %v44
    %v1440 = vmul.f32 %v893, %v45
    %v1441 = vmul.f32 %v893, %v46
    %v1442 = vmul.f32 %v893, %v47
    %v1447 = vrot.slane %v1439, 1
    %v1448 = vrot.slane %v1440, 1
    %v1449 = vsel %vm158, %v1447, %v1448
    %v1450 = vrot.slane %v1441, 1
    %v1451 = vrot.slane %v1442, 1
    %v1452 = vsel %vm158, %v1450, %v1451
    %v1457 = vadd.f32 %v1435, %v1449
    %v1458 = vadd.f32 %v1436, %v1448
    %v1459 = vadd.f32 %v1437, %v1452
    %v1460 = vadd.f32 %v1438, %v1451
    %v1461 = vmul.f32 %v902, %v39
    %v1462 = vmul.f32 %v902, %v40
    %v1463 = vmul.f32 %v902, %v41
    %v1464 = vmul.f32 %v902, %v42
    %v1469 = vrot.slane %v1461, 1
    %v1470 = vrot.slane %v1462, 1
    %v1471 = vsel %vm158, %v1469, %v1470
    %v1472 = vrot.slane %v1463, 1
    %v1473 = vrot.slane %v1464, 1
    %v1474 = vsel %vm158, %v1472, %v1473
    %1475 = vrot.lane.b32.xlu0 %v1471, 127
    %v1476 = vpop.permute.xlu0 %1475
    %1477 = vrot.lane.b32.xlu0 %v1470, 127
    %v1478 = vpop.permute.xlu0 %1477
    %1479 = vrot.lane.b32.xlu0 %v1474, 127
    %v1480 = vpop.permute.xlu0 %1479
    %1481 = vrot.lane.b32.xlu0 %v1473, 127
    %v1482 = vpop.permute.xlu0 %1481
    %v1487 = vadd.f32 %v1457, %v1476
    %v1488 = vadd.f32 %v1458, %v1478
    %v1489 = vadd.f32 %v1459, %v1480
    %v1490 = vadd.f32 %v1460, %v1482
    %v1491 = vmul.f32 %v911, %v44
    %v1492 = vmul.f32 %v911, %v45
    %v1493 = vmul.f32 %v911, %v46
    %v1494 = vmul.f32 %v911, %v47
    %v1499 = vrot.slane %v1491, 1
    %v1500 = vrot.slane %v1492, 1
    %v1501 = vsel %vm158, %v1499, %v1500
    %v1502 = vrot.slane %v1493, 1
    %v1503 = vrot.slane %v1494, 1
    %v1504 = vsel %vm158, %v1502, %v1503
    %1505 = vrot.lane.b32.xlu0 %v1501, 127
    %v1506 = vpop.permute.xlu0 %1505
    %1507 = vrot.lane.b32.xlu0 %v1500, 127
    %v1508 = vpop.permute.xlu0 %1507
    %1509 = vrot.lane.b32.xlu0 %v1504, 127
    %v1510 = vpop.permute.xlu0 %1509
    %1511 = vrot.lane.b32.xlu0 %v1503, 127
    %v1512 = vpop.permute.xlu0 %1511
    %v1517 = vadd.f32 %v1487, %v1506
    %v1518 = vadd.f32 %v1488, %v1508
    %v1519 = vadd.f32 %v1489, %v1510
    %v1520 = vadd.f32 %v1490, %v1512
    %v1521 = vmul.f32 %v936, %v54
    %v1522 = vmul.f32 %v936, %v55
    %v1523 = vmul.f32 %v936, %v56
    %v1524 = vmul.f32 %v936, %v57
    %v1529 = vrot.slane %v1521, 1
    %v1530 = vrot.slane %v1522, 1
    %v1531 = vsel %vm158, %v1529, %v1530
    %v1532 = vrot.slane %v1523, 1
    %v1533 = vrot.slane %v1524, 1
    %v1534 = vsel %vm158, %v1532, %v1533
    %v1539 = vadd.f32 %v1517, %v1531
    %v1540 = vadd.f32 %v1518, %v1530
    %v1541 = vadd.f32 %v1519, %v1534
    %v1542 = vadd.f32 %v1520, %v1533
    %v1543 = vmul.f32 %v959, %v49
    %v1544 = vmul.f32 %v959, %v50
    %v1545 = vmul.f32 %v959, %v51
    %v1546 = vmul.f32 %v959, %v52
    %v1551 = vrot.slane %v1543, 1
    %v1552 = vrot.slane %v1544, 1
    %v1553 = vsel %vm158, %v1551, %v1552
    %v1554 = vrot.slane %v1545, 1
    %v1555 = vrot.slane %v1546, 1
    %v1556 = vsel %vm158, %v1554, %v1555
    %1557 = vrot.lane.b32.xlu0 %v1553, 127
    %v1558 = vpop.permute.xlu0 %1557
    %1559 = vrot.lane.b32.xlu0 %v1552, 127
    %v1560 = vpop.permute.xlu0 %1559
    %1561 = vrot.lane.b32.xlu0 %v1556, 127
    %v1562 = vpop.permute.xlu0 %1561
    %1563 = vrot.lane.b32.xlu0 %v1555, 127
    %v1564 = vpop.permute.xlu0 %1563
    %v1569 = vadd.f32 %v1539, %v1558
    %v1570 = vadd.f32 %v1540, %v1560
    %v1571 = vadd.f32 %v1541, %v1562
    %v1572 = vadd.f32 %v1542, %v1564
    %v1573 = vmul.f32 %v982, %v54
    %v1574 = vmul.f32 %v982, %v55
    %v1575 = vmul.f32 %v982, %v56
    %v1576 = vmul.f32 %v982, %v57
    %v1581 = vrot.slane %v1573, 1
    %v1582 = vrot.slane %v1574, 1
    %v1583 = vsel %vm158, %v1581, %v1582
    %v1584 = vrot.slane %v1575, 1
    %v1585 = vrot.slane %v1576, 1
    %v1586 = vsel %vm158, %v1584, %v1585
    %1587 = vrot.lane.b32.xlu0 %v1583, 127
    %v1588 = vpop.permute.xlu0 %1587
    %1589 = vrot.lane.b32.xlu0 %v1582, 127
    %v1590 = vpop.permute.xlu0 %1589
    %1591 = vrot.lane.b32.xlu0 %v1586, 127
    %v1592 = vpop.permute.xlu0 %1591
    %1593 = vrot.lane.b32.xlu0 %v1585, 127
    %v1594 = vpop.permute.xlu0 %1593
    %v1599 = vadd.f32 %v1569, %v1588
    %v1600 = vadd.f32 %v1570, %v1590
    %v1601 = vadd.f32 %v1571, %v1592
    %v1602 = vadd.f32 %v1572, %v1594
    %v1603 = vmax.f32 %v1009, %v1199
    %v1604 = vmax.f32 %v1010, %v1200
    %v1605 = vmax.f32 %v1011, %v1201
    %v1606 = vmax.f32 %v1012, %v1202
    %v1607 = vmax.f32 %v1383, %v1599
    %v1608 = vmax.f32 %v1384, %v1600
    %v1609 = vmax.f32 %v1385, %v1601
    %v1610 = vmax.f32 %v1386, %v1602
    %v1611 = vmax.f32 %v1603, %v1607
    %v1612 = vmax.f32 %v1604, %v1608
    %v1613 = vmax.f32 %v1605, %v1609
    %v1614 = vmax.f32 %v1606, %v1610
    %s1615 = sld [smem:[#allocation4 + $0x1]]
    %v1616 = vstv %s1615
    %v1617 = vadd.f32 %v1611, %v1616
    %v1618 = vadd.f32 %v1612, %v1616
    %v1619 = vadd.f32 %v1613, %v1616
    %v1620 = vadd.f32 %v1614, %v1616
    %v1621 = vmax.f32 %v1617, 0.0
    %v1622 = vmax.f32 %v1618, 0.0
    %v1623 = vmax.f32 %v1619, 0.0
    %v1624 = vmax.f32 %v1620, 0.0
    %s1625 = scalar_lea.vmem %s3, 32
    %1626 = vst.msk [vmem:[%s1625] sm:$0xff] %vm839, %v1621
    %1627 = vst.msk [vmem:[%s1625 + $0x8] sm:$0x7f] %vm841, %v1622
    %1628 = vst.msk [vmem:[%s1625 + $0x10] sm:$0xff] %vm839, %v1623
    %1629 = vst.msk [vmem:[%s1625 + $0x18] sm:$0x7f] %vm841, %v1624
    %s1630 = sld [smem:[#allocation2 + $0x100]]
    %s1631 = sld [smem:[#allocation2 + $0x101]]
    %s1632 = sld [smem:[#allocation2 + $0x102]]
    %s1633 = sld [smem:[#allocation2 + $0x103]]
    %s1634 = sld [smem:[#allocation2 + $0x104]]
    %s1635 = sld [smem:[#allocation2 + $0x105]]
    %s1636 = sld [smem:[#allocation2 + $0x106]]
    %s1637 = sld [smem:[#allocation2 + $0x107]]
    %s1638 = sld [smem:[#allocation2 + $0x108]]
    %v1639 = vstv %s1630
    %v1640 = vmul.f32 %v1639, %v39
    %v1641 = vmul.f32 %v1639, %v40
    %v1642 = vmul.f32 %v1639, %v41
    %v1643 = vmul.f32 %v1639, %v42
    %v1644 = vstv %s1631
    %v1645 = vmul.f32 %v1644, %v44
    %v1646 = vmul.f32 %v1644, %v45
    %v1647 = vmul.f32 %v1644, %v46
    %v1648 = vmul.f32 %v1644, %v47
    %v1649 = vadd.f32 %v1640, %v1645
    %v1650 = vadd.f32 %v1641, %v1646
    %v1651 = vadd.f32 %v1642, %v1647
    %v1652 = vadd.f32 %v1643, %v1648
    %v1653 = vstv %s1632
    %v1654 = vmul.f32 %v1653, %v39
    %v1655 = vmul.f32 %v1653, %v40
    %v1656 = vmul.f32 %v1653, %v41
    %v1657 = vmul.f32 %v1653, %v42
    %1662 = vrot.lane.b32.xlu0 %v1654, 127
    %v1663 = vpop.permute.xlu0 %1662
    %1664 = vrot.lane.b32.xlu0 %v1655, 127
    %v1665 = vpop.permute.xlu0 %1664
    %1666 = vrot.lane.b32.xlu0 %v1656, 127
    %v1667 = vpop.permute.xlu0 %1666
    %1668 = vrot.lane.b32.xlu0 %v1657, 127
    %v1669 = vpop.permute.xlu0 %1668
    %v1674 = vadd.f32 %v1649, %v1663
    %v1675 = vadd.f32 %v1650, %v1665
    %v1676 = vadd.f32 %v1651, %v1667
    %v1677 = vadd.f32 %v1652, %v1669
    %v1678 = vstv %s1633
    %v1679 = vmul.f32 %v1678, %v49
    %v1680 = vmul.f32 %v1678, %v50
    %v1681 = vmul.f32 %v1678, %v51
    %v1682 = vmul.f32 %v1678, %v52
    %v1683 = vadd.f32 %v1674, %v1679
    %v1684 = vadd.f32 %v1675, %v1680
    %v1685 = vadd.f32 %v1676, %v1681
    %v1686 = vadd.f32 %v1677, %v1682
    %v1687 = vstv %s1634
    %v1688 = vmul.f32 %v1687, %v54
    %v1689 = vmul.f32 %v1687, %v55
    %v1690 = vmul.f32 %v1687, %v56
    %v1691 = vmul.f32 %v1687, %v57
    %v1692 = vadd.f32 %v1683, %v1688
    %v1693 = vadd.f32 %v1684, %v1689
    %v1694 = vadd.f32 %v1685, %v1690
    %v1695 = vadd.f32 %v1686, %v1691
    %v1696 = vstv %s1635
    %v1697 = vmul.f32 %v1696, %v49
    %v1698 = vmul.f32 %v1696, %v50
    %v1699 = vmul.f32 %v1696, %v51
    %v1700 = vmul.f32 %v1696, %v52
    %1705 = vrot.lane.b32.xlu0 %v1697, 127
    %v1706 = vpop.permute.xlu0 %1705
    %1707 = vrot.lane.b32.xlu0 %v1698, 127
    %v1708 = vpop.permute.xlu0 %1707
    %1709 = vrot.lane.b32.xlu0 %v1699, 127
    %v1710 = vpop.permute.xlu0 %1709
    %1711 = vrot.lane.b32.xlu0 %v1700, 127
    %v1712 = vpop.permute.xlu0 %1711
    %v1717 = vadd.f32 %v1692, %v1706
    %v1718 = vadd.f32 %v1693, %v1708
    %v1719 = vadd.f32 %v1694, %v1710
    %v1720 = vadd.f32 %v1695, %v1712
    %v1721 = vstv %s1636
    %v1722 = vmul.f32 %v1721, %v39
    %v1723 = vmul.f32 %v1721, %v40
    %v1724 = vmul.f32 %v1721, %v41
    %v1725 = vmul.f32 %v1721, %v42
    %v1730 = vrot.slane %v1722, 1
    %v1731 = vrot.slane %v1723, 1
    %v1732 = vsel %vm158, %v1730, %v1731
    %v1733 = vrot.slane %v1724, 1
    %v1734 = vrot.slane %v1725, 1
    %v1735 = vsel %vm158, %v1733, %v1734
    %v1740 = vadd.f32 %v1717, %v1732
    %v1741 = vadd.f32 %v1718, %v1731
    %v1742 = vadd.f32 %v1719, %v1735
    %v1743 = vadd.f32 %v1720, %v1734
    %v1744 = vstv %s1637
    %v1745 = vmul.f32 %v1744, %v44
    %v1746 = vmul.f32 %v1744, %v45
    %v1747 = vmul.f32 %v1744, %v46
    %v1748 = vmul.f32 %v1744, %v47
    %v1753 = vrot.slane %v1745, 1
    %v1754 = vrot.slane %v1746, 1
    %v1755 = vsel %vm158, %v1753, %v1754
    %v1756 = vrot.slane %v1747, 1
    %v1757 = vrot.slane %v1748, 1
    %v1758 = vsel %vm158, %v1756, %v1757
    %v1763 = vadd.f32 %v1740, %v1755
    %v1764 = vadd.f32 %v1741, %v1754
    %v1765 = vadd.f32 %v1742, %v1758
    %v1766 = vadd.f32 %v1743, %v1757
    %v1767 = vstv %s1638
    %v1768 = vmul.f32 %v1767, %v39
    %v1769 = vmul.f32 %v1767, %v40
    %v1770 = vmul.f32 %v1767, %v41
    %v1771 = vmul.f32 %v1767, %v42
    %v1776 = vrot.slane %v1768, 1
    %v1777 = vrot.slane %v1769, 1
    %v1778 = vsel %vm158, %v1776, %v1777
    %v1779 = vrot.slane %v1770, 1
    %v1780 = vrot.slane %v1771, 1
    %v1781 = vsel %vm158, %v1779, %v1780
    %1782 = vrot.lane.b32.xlu0 %v1778, 127
    %v1783 = vpop.permute.xlu0 %1782
    %1784 = vrot.lane.b32.xlu0 %v1777, 127
    %v1785 = vpop.permute.xlu0 %1784
    %1786 = vrot.lane.b32.xlu0 %v1781, 127
    %v1787 = vpop.permute.xlu0 %1786
    %1788 = vrot.lane.b32.xlu0 %v1780, 127
    %v1789 = vpop.permute.xlu0 %1788
    %v1794 = vadd.f32 %v1763, %v1783
    %v1795 = vadd.f32 %v1764, %v1785
    %v1796 = vadd.f32 %v1765, %v1787
    %v1797 = vadd.f32 %v1766, %v1789
    %v1798 = vmul.f32 %v1639, %v44
    %v1799 = vmul.f32 %v1639, %v45
    %v1800 = vmul.f32 %v1639, %v46
    %v1801 = vmul.f32 %v1639, %v47
    %v1802 = vmul.f32 %v1644, %v39
    %v1803 = vmul.f32 %v1644, %v40
    %v1804 = vmul.f32 %v1644, %v41
    %v1805 = vmul.f32 %v1644, %v42
    %1810 = vrot.lane.b32.xlu0 %v1802, 127
    %v1811 = vpop.permute.xlu0 %1810
    %1812 = vrot.lane.b32.xlu0 %v1803, 127
    %v1813 = vpop.permute.xlu0 %1812
    %1814 = vrot.lane.b32.xlu0 %v1804, 127
    %v1815 = vpop.permute.xlu0 %1814
    %1816 = vrot.lane.b32.xlu0 %v1805, 127
    %v1817 = vpop.permute.xlu0 %1816
    %v1822 = vadd.f32 %v1798, %v1811
    %v1823 = vadd.f32 %v1799, %v1813
    %v1824 = vadd.f32 %v1800, %v1815
    %v1825 = vadd.f32 %v1801, %v1817
    %v1826 = vmul.f32 %v1653, %v44
    %v1827 = vmul.f32 %v1653, %v45
    %v1828 = vmul.f32 %v1653, %v46
    %v1829 = vmul.f32 %v1653, %v47
    %1834 = vrot.lane.b32.xlu0 %v1826, 127
    %v1835 = vpop.permute.xlu0 %1834
    %1836 = vrot.lane.b32.xlu0 %v1827, 127
    %v1837 = vpop.permute.xlu0 %1836
    %1838 = vrot.lane.b32.xlu0 %v1828, 127
    %v1839 = vpop.permute.xlu0 %1838
    %1840 = vrot.lane.b32.xlu0 %v1829, 127
    %v1841 = vpop.permute.xlu0 %1840
    %v1846 = vadd.f32 %v1822, %v1835
    %v1847 = vadd.f32 %v1823, %v1837
    %v1848 = vadd.f32 %v1824, %v1839
    %v1849 = vadd.f32 %v1825, %v1841
    %v1850 = vmul.f32 %v1678, %v54
    %v1851 = vmul.f32 %v1678, %v55
    %v1852 = vmul.f32 %v1678, %v56
    %v1853 = vmul.f32 %v1678, %v57
    %v1854 = vadd.f32 %v1846, %v1850
    %v1855 = vadd.f32 %v1847, %v1851
    %v1856 = vadd.f32 %v1848, %v1852
    %v1857 = vadd.f32 %v1849, %v1853
    %v1858 = vmul.f32 %v1687, %v49
    %v1859 = vmul.f32 %v1687, %v50
    %v1860 = vmul.f32 %v1687, %v51
    %v1861 = vmul.f32 %v1687, %v52
    %1866 = vrot.lane.b32.xlu0 %v1858, 127
    %v1867 = vpop.permute.xlu0 %1866
    %1868 = vrot.lane.b32.xlu0 %v1859, 127
    %v1869 = vpop.permute.xlu0 %1868
    %1870 = vrot.lane.b32.xlu0 %v1860, 127
    %v1871 = vpop.permute.xlu0 %1870
    %1872 = vrot.lane.b32.xlu0 %v1861, 127
    %v1873 = vpop.permute.xlu0 %1872
    %v1878 = vadd.f32 %v1854, %v1867
    %v1879 = vadd.f32 %v1855, %v1869
    %v1880 = vadd.f32 %v1856, %v1871
    %v1881 = vadd.f32 %v1857, %v1873
    %v1882 = vmul.f32 %v1696, %v54
    %v1883 = vmul.f32 %v1696, %v55
    %v1884 = vmul.f32 %v1696, %v56
    %v1885 = vmul.f32 %v1696, %v57
    %1890 = vrot.lane.b32.xlu0 %v1882, 127
    %v1891 = vpop.permute.xlu0 %1890
    %1892 = vrot.lane.b32.xlu0 %v1883, 127
    %v1893 = vpop.permute.xlu0 %1892
    %1894 = vrot.lane.b32.xlu0 %v1884, 127
    %v1895 = vpop.permute.xlu0 %1894
    %1896 = vrot.lane.b32.xlu0 %v1885, 127
    %v1897 = vpop.permute.xlu0 %1896
    %v1902 = vadd.f32 %v1878, %v1891
    %v1903 = vadd.f32 %v1879, %v1893
    %v1904 = vadd.f32 %v1880, %v1895
    %v1905 = vadd.f32 %v1881, %v1897
    %v1906 = vmul.f32 %v1721, %v44
    %v1907 = vmul.f32 %v1721, %v45
    %v1908 = vmul.f32 %v1721, %v46
    %v1909 = vmul.f32 %v1721, %v47
    %v1914 = vrot.slane %v1906, 1
    %v1915 = vrot.slane %v1907, 1
    %v1916 = vsel %vm158, %v1914, %v1915
    %v1917 = vrot.slane %v1908, 1
    %v1918 = vrot.slane %v1909, 1
    %v1919 = vsel %vm158, %v1917, %v1918
    %v1924 = vadd.f32 %v1902, %v1916
    %v1925 = vadd.f32 %v1903, %v1915
    %v1926 = vadd.f32 %v1904, %v1919
    %v1927 = vadd.f32 %v1905, %v1918
    %v1928 = vmul.f32 %v1744, %v39
    %v1929 = vmul.f32 %v1744, %v40
    %v1930 = vmul.f32 %v1744, %v41
    %v1931 = vmul.f32 %v1744, %v42
    %v1936 = vrot.slane %v1928, 1
    %v1937 = vrot.slane %v1929, 1
    %v1938 = vsel %vm158, %v1936, %v1937
    %v1939 = vrot.slane %v1930, 1
    %v1940 = vrot.slane %v1931, 1
    %v1941 = vsel %vm158, %v1939, %v1940
    %1942 = vrot.lane.b32.xlu0 %v1938, 127
    %v1943 = vpop.permute.xlu0 %1942
    %1944 = vrot.lane.b32.xlu0 %v1937, 127
    %v1945 = vpop.permute.xlu0 %1944
    %1946 = vrot.lane.b32.xlu0 %v1941, 127
    %v1947 = vpop.permute.xlu0 %1946
    %1948 = vrot.lane.b32.xlu0 %v1940, 127
    %v1949 = vpop.permute.xlu0 %1948
    %v1954 = vadd.f32 %v1924, %v1943
    %v1955 = vadd.f32 %v1925, %v1945
    %v1956 = vadd.f32 %v1926, %v1947
    %v1957 = vadd.f32 %v1927, %v1949
    %v1958 = vmul.f32 %v1767, %v44
    %v1959 = vmul.f32 %v1767, %v45
    %v1960 = vmul.f32 %v1767, %v46
    %v1961 = vmul.f32 %v1767, %v47
    %v1966 = vrot.slane %v1958, 1
    %v1967 = vrot.slane %v1959, 1
    %v1968 = vsel %vm158, %v1966, %v1967
    %v1969 = vrot.slane %v1960, 1
    %v1970 = vrot.slane %v1961, 1
    %v1971 = vsel %vm158, %v1969, %v1970
    %1972 = vrot.lane.b32.xlu0 %v1968, 127
    %v1973 = vpop.permute.xlu0 %1972
    %1974 = vrot.lane.b32.xlu0 %v1967, 127
    %v1975 = vpop.permute.xlu0 %1974
    %1976 = vrot.lane.b32.xlu0 %v1971, 127
    %v1977 = vpop.permute.xlu0 %1976
    %1978 = vrot.lane.b32.xlu0 %v1970, 127
    %v1979 = vpop.permute.xlu0 %1978
    %v1984 = vadd.f32 %v1954, %v1973
    %v1985 = vadd.f32 %v1955, %v1975
    %v1986 = vadd.f32 %v1956, %v1977
    %v1987 = vadd.f32 %v1957, %v1979
    %v1988 = vmul.f32 %v1639, %v49
    %v1989 = vmul.f32 %v1639, %v50
    %v1990 = vmul.f32 %v1639, %v51
    %v1991 = vmul.f32 %v1639, %v52
    %v1992 = vmul.f32 %v1644, %v54
    %v1993 = vmul.f32 %v1644, %v55
    %v1994 = vmul.f32 %v1644, %v56
    %v1995 = vmul.f32 %v1644, %v57
    %v1996 = vadd.f32 %v1988, %v1992
    %v1997 = vadd.f32 %v1989, %v1993
    %v1998 = vadd.f32 %v1990, %v1994
    %v1999 = vadd.f32 %v1991, %v1995
    %v2000 = vmul.f32 %v1653, %v49
    %v2001 = vmul.f32 %v1653, %v50
    %v2002 = vmul.f32 %v1653, %v51
    %v2003 = vmul.f32 %v1653, %v52
    %2008 = vrot.lane.b32.xlu0 %v2000, 127
    %v2009 = vpop.permute.xlu0 %2008
    %2010 = vrot.lane.b32.xlu0 %v2001, 127
    %v2011 = vpop.permute.xlu0 %2010
    %2012 = vrot.lane.b32.xlu0 %v2002, 127
    %v2013 = vpop.permute.xlu0 %2012
    %2014 = vrot.lane.b32.xlu0 %v2003, 127
    %v2015 = vpop.permute.xlu0 %2014
    %v2020 = vadd.f32 %v1996, %v2009
    %v2021 = vadd.f32 %v1997, %v2011
    %v2022 = vadd.f32 %v1998, %v2013
    %v2023 = vadd.f32 %v1999, %v2015
    %v2024 = vmul.f32 %v1678, %v39
    %v2025 = vmul.f32 %v1678, %v40
    %v2026 = vmul.f32 %v1678, %v41
    %v2027 = vmul.f32 %v1678, %v42
    %v2032 = vrot.slane %v2024, 1
    %v2033 = vrot.slane %v2025, 1
    %v2034 = vsel %vm158, %v2032, %v2033
    %v2035 = vrot.slane %v2026, 1
    %v2036 = vrot.slane %v2027, 1
    %v2037 = vsel %vm158, %v2035, %v2036
    %v2042 = vadd.f32 %v2020, %v2034
    %v2043 = vadd.f32 %v2021, %v2033
    %v2044 = vadd.f32 %v2022, %v2037
    %v2045 = vadd.f32 %v2023, %v2036
    %v2046 = vmul.f32 %v1687, %v44
    %v2047 = vmul.f32 %v1687, %v45
    %v2048 = vmul.f32 %v1687, %v46
    %v2049 = vmul.f32 %v1687, %v47
    %v2054 = vrot.slane %v2046, 1
    %v2055 = vrot.slane %v2047, 1
    %v2056 = vsel %vm158, %v2054, %v2055
    %v2057 = vrot.slane %v2048, 1
    %v2058 = vrot.slane %v2049, 1
    %v2059 = vsel %vm158, %v2057, %v2058
    %v2064 = vadd.f32 %v2042, %v2056
    %v2065 = vadd.f32 %v2043, %v2055
    %v2066 = vadd.f32 %v2044, %v2059
    %v2067 = vadd.f32 %v2045, %v2058
    %v2068 = vmul.f32 %v1696, %v39
    %v2069 = vmul.f32 %v1696, %v40
    %v2070 = vmul.f32 %v1696, %v41
    %v2071 = vmul.f32 %v1696, %v42
    %v2076 = vrot.slane %v2068, 1
    %v2077 = vrot.slane %v2069, 1
    %v2078 = vsel %vm158, %v2076, %v2077
    %v2079 = vrot.slane %v2070, 1
    %v2080 = vrot.slane %v2071, 1
    %v2081 = vsel %vm158, %v2079, %v2080
    %2082 = vrot.lane.b32.xlu0 %v2078, 127
    %v2083 = vpop.permute.xlu0 %2082
    %2084 = vrot.lane.b32.xlu0 %v2077, 127
    %v2085 = vpop.permute.xlu0 %2084
    %2086 = vrot.lane.b32.xlu0 %v2081, 127
    %v2087 = vpop.permute.xlu0 %2086
    %2088 = vrot.lane.b32.xlu0 %v2080, 127
    %v2089 = vpop.permute.xlu0 %2088
    %v2094 = vadd.f32 %v2064, %v2083
    %v2095 = vadd.f32 %v2065, %v2085
    %v2096 = vadd.f32 %v2066, %v2087
    %v2097 = vadd.f32 %v2067, %v2089
    %v2098 = vmul.f32 %v1721, %v49
    %v2099 = vmul.f32 %v1721, %v50
    %v2100 = vmul.f32 %v1721, %v51
    %v2101 = vmul.f32 %v1721, %v52
    %v2106 = vrot.slane %v2098, 1
    %v2107 = vrot.slane %v2099, 1
    %v2108 = vsel %vm158, %v2106, %v2107
    %v2109 = vrot.slane %v2100, 1
    %v2110 = vrot.slane %v2101, 1
    %v2111 = vsel %vm158, %v2109, %v2110
    %v2116 = vadd.f32 %v2094, %v2108
    %v2117 = vadd.f32 %v2095, %v2107
    %v2118 = vadd.f32 %v2096, %v2111
    %v2119 = vadd.f32 %v2097, %v2110
    %v2120 = vmul.f32 %v1744, %v54
    %v2121 = vmul.f32 %v1744, %v55
    %v2122 = vmul.f32 %v1744, %v56
    %v2123 = vmul.f32 %v1744, %v57
    %v2128 = vrot.slane %v2120, 1
    %v2129 = vrot.slane %v2121, 1
    %v2130 = vsel %vm158, %v2128, %v2129
    %v2131 = vrot.slane %v2122, 1
    %v2132 = vrot.slane %v2123, 1
    %v2133 = vsel %vm158, %v2131, %v2132
    %v2138 = vadd.f32 %v2116, %v2130
    %v2139 = vadd.f32 %v2117, %v2129
    %v2140 = vadd.f32 %v2118, %v2133
    %v2141 = vadd.f32 %v2119, %v2132
    %v2142 = vmul.f32 %v1767, %v49
    %v2143 = vmul.f32 %v1767, %v50
    %v2144 = vmul.f32 %v1767, %v51
    %v2145 = vmul.f32 %v1767, %v52
    %v2150 = vrot.slane %v2142, 1
    %v2151 = vrot.slane %v2143, 1
    %v2152 = vsel %vm158, %v2150, %v2151
    %v2153 = vrot.slane %v2144, 1
    %v2154 = vrot.slane %v2145, 1
    %v2155 = vsel %vm158, %v2153, %v2154
    %2156 = vrot.lane.b32.xlu0 %v2152, 127
    %v2157 = vpop.permute.xlu0 %2156
    %2158 = vrot.lane.b32.xlu0 %v2151, 127
    %v2159 = vpop.permute.xlu0 %2158
    %2160 = vrot.lane.b32.xlu0 %v2155, 127
    %v2161 = vpop.permute.xlu0 %2160
    %2162 = vrot.lane.b32.xlu0 %v2154, 127
    %v2163 = vpop.permute.xlu0 %2162
    %v2168 = vadd.f32 %v2138, %v2157
    %v2169 = vadd.f32 %v2139, %v2159
    %v2170 = vadd.f32 %v2140, %v2161
    %v2171 = vadd.f32 %v2141, %v2163
    %v2172 = vmul.f32 %v1639, %v54
    %v2173 = vmul.f32 %v1639, %v55
    %v2174 = vmul.f32 %v1639, %v56
    %v2175 = vmul.f32 %v1639, %v57
    %v2176 = vmul.f32 %v1644, %v49
    %v2177 = vmul.f32 %v1644, %v50
    %v2178 = vmul.f32 %v1644, %v51
    %v2179 = vmul.f32 %v1644, %v52
    %2184 = vrot.lane.b32.xlu0 %v2176, 127
    %v2185 = vpop.permute.xlu0 %2184
    %2186 = vrot.lane.b32.xlu0 %v2177, 127
    %v2187 = vpop.permute.xlu0 %2186
    %2188 = vrot.lane.b32.xlu0 %v2178, 127
    %v2189 = vpop.permute.xlu0 %2188
    %2190 = vrot.lane.b32.xlu0 %v2179, 127
    %v2191 = vpop.permute.xlu0 %2190
    %v2196 = vadd.f32 %v2172, %v2185
    %v2197 = vadd.f32 %v2173, %v2187
    %v2198 = vadd.f32 %v2174, %v2189
    %v2199 = vadd.f32 %v2175, %v2191
    %v2200 = vmul.f32 %v1653, %v54
    %v2201 = vmul.f32 %v1653, %v55
    %v2202 = vmul.f32 %v1653, %v56
    %v2203 = vmul.f32 %v1653, %v57
    %2208 = vrot.lane.b32.xlu0 %v2200, 127
    %v2209 = vpop.permute.xlu0 %2208
    %2210 = vrot.lane.b32.xlu0 %v2201, 127
    %v2211 = vpop.permute.xlu0 %2210
    %2212 = vrot.lane.b32.xlu0 %v2202, 127
    %v2213 = vpop.permute.xlu0 %2212
    %2214 = vrot.lane.b32.xlu0 %v2203, 127
    %v2215 = vpop.permute.xlu0 %2214
    %v2220 = vadd.f32 %v2196, %v2209
    %v2221 = vadd.f32 %v2197, %v2211
    %v2222 = vadd.f32 %v2198, %v2213
    %v2223 = vadd.f32 %v2199, %v2215
    %v2224 = vmul.f32 %v1678, %v44
    %v2225 = vmul.f32 %v1678, %v45
    %v2226 = vmul.f32 %v1678, %v46
    %v2227 = vmul.f32 %v1678, %v47
    %v2232 = vrot.slane %v2224, 1
    %v2233 = vrot.slane %v2225, 1
    %v2234 = vsel %vm158, %v2232, %v2233
    %v2235 = vrot.slane %v2226, 1
    %v2236 = vrot.slane %v2227, 1
    %v2237 = vsel %vm158, %v2235, %v2236
    %v2242 = vadd.f32 %v2220, %v2234
    %v2243 = vadd.f32 %v2221, %v2233
    %v2244 = vadd.f32 %v2222, %v2237
    %v2245 = vadd.f32 %v2223, %v2236
    %v2246 = vmul.f32 %v1687, %v39
    %v2247 = vmul.f32 %v1687, %v40
    %v2248 = vmul.f32 %v1687, %v41
    %v2249 = vmul.f32 %v1687, %v42
    %v2254 = vrot.slane %v2246, 1
    %v2255 = vrot.slane %v2247, 1
    %v2256 = vsel %vm158, %v2254, %v2255
    %v2257 = vrot.slane %v2248, 1
    %v2258 = vrot.slane %v2249, 1
    %v2259 = vsel %vm158, %v2257, %v2258
    %2260 = vrot.lane.b32.xlu0 %v2256, 127
    %v2261 = vpop.permute.xlu0 %2260
    %2262 = vrot.lane.b32.xlu0 %v2255, 127
    %v2263 = vpop.permute.xlu0 %2262
    %2264 = vrot.lane.b32.xlu0 %v2259, 127
    %v2265 = vpop.permute.xlu0 %2264
    %2266 = vrot.lane.b32.xlu0 %v2258, 127
    %v2267 = vpop.permute.xlu0 %2266
    %v2272 = vadd.f32 %v2242, %v2261
    %v2273 = vadd.f32 %v2243, %v2263
    %v2274 = vadd.f32 %v2244, %v2265
    %v2275 = vadd.f32 %v2245, %v2267
    %v2276 = vmul.f32 %v1696, %v44
    %v2277 = vmul.f32 %v1696, %v45
    %v2278 = vmul.f32 %v1696, %v46
    %v2279 = vmul.f32 %v1696, %v47
    %v2284 = vrot.slane %v2276, 1
    %v2285 = vrot.slane %v2277, 1
    %v2286 = vsel %vm158, %v2284, %v2285
    %v2287 = vrot.slane %v2278, 1
    %v2288 = vrot.slane %v2279, 1
    %v2289 = vsel %vm158, %v2287, %v2288
    %2290 = vrot.lane.b32.xlu0 %v2286, 127
    %v2291 = vpop.permute.xlu0 %2290
    %2292 = vrot.lane.b32.xlu0 %v2285, 127
    %v2293 = vpop.permute.xlu0 %2292
    %2294 = vrot.lane.b32.xlu0 %v2289, 127
    %v2295 = vpop.permute.xlu0 %2294
    %2296 = vrot.lane.b32.xlu0 %v2288, 127
    %v2297 = vpop.permute.xlu0 %2296
    %v2302 = vadd.f32 %v2272, %v2291
    %v2303 = vadd.f32 %v2273, %v2293
    %v2304 = vadd.f32 %v2274, %v2295
    %v2305 = vadd.f32 %v2275, %v2297
    %v2306 = vmul.f32 %v1721, %v54
    %v2307 = vmul.f32 %v1721, %v55
    %v2308 = vmul.f32 %v1721, %v56
    %v2309 = vmul.f32 %v1721, %v57
    %v2314 = vrot.slane %v2306, 1
    %v2315 = vrot.slane %v2307, 1
    %v2316 = vsel %vm158, %v2314, %v2315
    %v2317 = vrot.slane %v2308, 1
    %v2318 = vrot.slane %v2309, 1
    %v2319 = vsel %vm158, %v2317, %v2318
    %v2324 = vadd.f32 %v2302, %v2316
    %v2325 = vadd.f32 %v2303, %v2315
    %v2326 = vadd.f32 %v2304, %v2319
    %v2327 = vadd.f32 %v2305, %v2318
    %v2328 = vmul.f32 %v1744, %v49
    %v2329 = vmul.f32 %v1744, %v50
    %v2330 = vmul.f32 %v1744, %v51
    %v2331 = vmul.f32 %v1744, %v52
    %v2336 = vrot.slane %v2328, 1
    %v2337 = vrot.slane %v2329, 1
    %v2338 = vsel %vm158, %v2336, %v2337
    %v2339 = vrot.slane %v2330, 1
    %v2340 = vrot.slane %v2331, 1
    %v2341 = vsel %vm158, %v2339, %v2340
    %2342 = vrot.lane.b32.xlu0 %v2338, 127
    %v2343 = vpop.permute.xlu0 %2342
    %2344 = vrot.lane.b32.xlu0 %v2337, 127
    %v2345 = vpop.permute.xlu0 %2344
    %2346 = vrot.lane.b32.xlu0 %v2341, 127
    %v2347 = vpop.permute.xlu0 %2346
    %2348 = vrot.lane.b32.xlu0 %v2340, 127
    %v2349 = vpop.permute.xlu0 %2348
    %v2354 = vadd.f32 %v2324, %v2343
    %v2355 = vadd.f32 %v2325, %v2345
    %v2356 = vadd.f32 %v2326, %v2347
    %v2357 = vadd.f32 %v2327, %v2349
    %v2358 = vmul.f32 %v1767, %v54
    %v2359 = vmul.f32 %v1767, %v55
    %v2360 = vmul.f32 %v1767, %v56
    %v2361 = vmul.f32 %v1767, %v57
    %v2366 = vrot.slane %v2358, 1
    %v2367 = vrot.slane %v2359, 1
    %v2368 = vsel %vm158, %v2366, %v2367
    %v2369 = vrot.slane %v2360, 1
    %v2370 = vrot.slane %v2361, 1
    %v2371 = vsel %vm158, %v2369, %v2370
    %2372 = vrot.lane.b32.xlu0 %v2368, 127
    %v2373 = vpop.permute.xlu0 %2372
    %2374 = vrot.lane.b32.xlu0 %v2367, 127
    %v2375 = vpop.permute.xlu0 %2374
    %2376 = vrot.lane.b32.xlu0 %v2371, 127
    %v2377 = vpop.permute.xlu0 %2376
    %2378 = vrot.lane.b32.xlu0 %v2370, 127
    %v2379 = vpop.permute.xlu0 %2378
    %v2384 = vadd.f32 %v2354, %v2373
    %v2385 = vadd.f32 %v2355, %v2375
    %v2386 = vadd.f32 %v2356, %v2377
    %v2387 = vadd.f32 %v2357, %v2379
    %v2388 = vmax.f32 %v1794, %v1984
    %v2389 = vmax.f32 %v1795, %v1985
    %v2390 = vmax.f32 %v1796, %v1986
    %v2391 = vmax.f32 %v1797, %v1987
    %v2392 = vmax.f32 %v2168, %v2384
    %v2393 = vmax.f32 %v2169, %v2385
    %v2394 = vmax.f32 %v2170, %v2386
    %v2395 = vmax.f32 %v2171, %v2387
    %v2396 = vmax.f32 %v2388, %v2392
    %v2397 = vmax.f32 %v2389, %v2393
    %v2398 = vmax.f32 %v2390, %v2394
    %v2399 = vmax.f32 %v2391, %v2395
    %s2400 = sld [smem:[#allocation4 + $0x2]]
    %v2401 = vstv %s2400
    %v2402 = vadd.f32 %v2396, %v2401
    %v2403 = vadd.f32 %v2397, %v2401
    %v2404 = vadd.f32 %v2398, %v2401
    %v2405 = vadd.f32 %v2399, %v2401
    %v2406 = vmax.f32 %v2402, 0.0
    %v2407 = vmax.f32 %v2403, 0.0
    %v2408 = vmax.f32 %v2404, 0.0
    %v2409 = vmax.f32 %v2405, 0.0
    %s2410 = scalar_lea.vmem %s3, 64
    %2411 = vst.msk [vmem:[%s2410] sm:$0xff] %vm839, %v2406
    %2412 = vst.msk [vmem:[%s2410 + $0x8] sm:$0x7f] %vm841, %v2407
    %2413 = vst.msk [vmem:[%s2410 + $0x10] sm:$0xff] %vm839, %v2408
    %2414 = vst.msk [vmem:[%s2410 + $0x18] sm:$0x7f] %vm841, %v2409
    %s2415 = sld [smem:[#allocation2 + $0x180]]
    %s2416 = sld [smem:[#allocation2 + $0x181]]
    %s2417 = sld [smem:[#allocation2 + $0x182]]
    %s2418 = sld [smem:[#allocation2 + $0x183]]
    %s2419 = sld [smem:[#allocation2 + $0x184]]
    %s2420 = sld [smem:[#allocation2 + $0x185]]
    %s2421 = sld [smem:[#allocation2 + $0x186]]
    %s2422 = sld [smem:[#allocation2 + $0x187]]
    %s2423 = sld [smem:[#allocation2 + $0x188]]
    %v2424 = vstv %s2415
    %v2425 = vmul.f32 %v2424, %v39
    %v2426 = vmul.f32 %v2424, %v40
    %v2427 = vmul.f32 %v2424, %v41
    %v2428 = vmul.f32 %v2424, %v42
    %v2429 = vstv %s2416
    %v2430 = vmul.f32 %v2429, %v44
    %v2431 = vmul.f32 %v2429, %v45
    %v2432 = vmul.f32 %v2429, %v46
    %v2433 = vmul.f32 %v2429, %v47
    %v2434 = vadd.f32 %v2425, %v2430
    %v2435 = vadd.f32 %v2426, %v2431
    %v2436 = vadd.f32 %v2427, %v2432
    %v2437 = vadd.f32 %v2428, %v2433
    %v2438 = vstv %s2417
    %v2439 = vmul.f32 %v2438, %v39
    %v2440 = vmul.f32 %v2438, %v40
    %v2441 = vmul.f32 %v2438, %v41
    %v2442 = vmul.f32 %v2438, %v42
    %2447 = vrot.lane.b32.xlu0 %v2439, 127
    %v2448 = vpop.permute.xlu0 %2447
    %2449 = vrot.lane.b32.xlu0 %v2440, 127
    %v2450 = vpop.permute.xlu0 %2449
    %2451 = vrot.lane.b32.xlu0 %v2441, 127
    %v2452 = vpop.permute.xlu0 %2451
    %2453 = vrot.lane.b32.xlu0 %v2442, 127
    %v2454 = vpop.permute.xlu0 %2453
    %v2459 = vadd.f32 %v2434, %v2448
    %v2460 = vadd.f32 %v2435, %v2450
    %v2461 = vadd.f32 %v2436, %v2452
    %v2462 = vadd.f32 %v2437, %v2454
    %v2463 = vstv %s2418
    %v2464 = vmul.f32 %v2463, %v49
    %v2465 = vmul.f32 %v2463, %v50
    %v2466 = vmul.f32 %v2463, %v51
    %v2467 = vmul.f32 %v2463, %v52
    %v2468 = vadd.f32 %v2459, %v2464
    %v2469 = vadd.f32 %v2460, %v2465
    %v2470 = vadd.f32 %v2461, %v2466
    %v2471 = vadd.f32 %v2462, %v2467
    %v2472 = vstv %s2419
    %v2473 = vmul.f32 %v2472, %v54
    %v2474 = vmul.f32 %v2472, %v55
    %v2475 = vmul.f32 %v2472, %v56
    %v2476 = vmul.f32 %v2472, %v57
    %v2477 = vadd.f32 %v2468, %v2473
    %v2478 = vadd.f32 %v2469, %v2474
    %v2479 = vadd.f32 %v2470, %v2475
    %v2480 = vadd.f32 %v2471, %v2476
    %v2481 = vstv %s2420
    %v2482 = vmul.f32 %v2481, %v49
    %v2483 = vmul.f32 %v2481, %v50
    %v2484 = vmul.f32 %v2481, %v51
    %v2485 = vmul.f32 %v2481, %v52
    %2490 = vrot.lane.b32.xlu0 %v2482, 127
    %v2491 = vpop.permute.xlu0 %2490
    %2492 = vrot.lane.b32.xlu0 %v2483, 127
    %v2493 = vpop.permute.xlu0 %2492
    %2494 = vrot.lane.b32.xlu0 %v2484, 127
    %v2495 = vpop.permute.xlu0 %2494
    %2496 = vrot.lane.b32.xlu0 %v2485, 127
    %v2497 = vpop.permute.xlu0 %2496
    %v2502 = vadd.f32 %v2477, %v2491
    %v2503 = vadd.f32 %v2478, %v2493
    %v2504 = vadd.f32 %v2479, %v2495
    %v2505 = vadd.f32 %v2480, %v2497
    %v2506 = vstv %s2421
    %v2507 = vmul.f32 %v2506, %v39
    %v2508 = vmul.f32 %v2506, %v40
    %v2509 = vmul.f32 %v2506, %v41
    %v2510 = vmul.f32 %v2506, %v42
    %v2515 = vrot.slane %v2507, 1
    %v2516 = vrot.slane %v2508, 1
    %v2517 = vsel %vm158, %v2515, %v2516
    %v2518 = vrot.slane %v2509, 1
    %v2519 = vrot.slane %v2510, 1
    %v2520 = vsel %vm158, %v2518, %v2519
    %v2525 = vadd.f32 %v2502, %v2517
    %v2526 = vadd.f32 %v2503, %v2516
    %v2527 = vadd.f32 %v2504, %v2520
    %v2528 = vadd.f32 %v2505, %v2519
    %v2529 = vstv %s2422
    %v2530 = vmul.f32 %v2529, %v44
    %v2531 = vmul.f32 %v2529, %v45
    %v2532 = vmul.f32 %v2529, %v46
    %v2533 = vmul.f32 %v2529, %v47
    %v2538 = vrot.slane %v2530, 1
    %v2539 = vrot.slane %v2531, 1
    %v2540 = vsel %vm158, %v2538, %v2539
    %v2541 = vrot.slane %v2532, 1
    %v2542 = vrot.slane %v2533, 1
    %v2543 = vsel %vm158, %v2541, %v2542
    %v2548 = vadd.f32 %v2525, %v2540
    %v2549 = vadd.f32 %v2526, %v2539
    %v2550 = vadd.f32 %v2527, %v2543
    %v2551 = vadd.f32 %v2528, %v2542
    %v2552 = vstv %s2423
    %v2553 = vmul.f32 %v2552, %v39
    %v2554 = vmul.f32 %v2552, %v40
    %v2555 = vmul.f32 %v2552, %v41
    %v2556 = vmul.f32 %v2552, %v42
    %v2561 = vrot.slane %v2553, 1
    %v2562 = vrot.slane %v2554, 1
    %v2563 = vsel %vm158, %v2561, %v2562
    %v2564 = vrot.slane %v2555, 1
    %v2565 = vrot.slane %v2556, 1
    %v2566 = vsel %vm158, %v2564, %v2565
    %2567 = vrot.lane.b32.xlu0 %v2563, 127
    %v2568 = vpop.permute.xlu0 %2567
    %2569 = vrot.lane.b32.xlu0 %v2562, 127
    %v2570 = vpop.permute.xlu0 %2569
    %2571 = vrot.lane.b32.xlu0 %v2566, 127
    %v2572 = vpop.permute.xlu0 %2571
    %2573 = vrot.lane.b32.xlu0 %v2565, 127
    %v2574 = vpop.permute.xlu0 %2573
    %v2579 = vadd.f32 %v2548, %v2568
    %v2580 = vadd.f32 %v2549, %v2570
    %v2581 = vadd.f32 %v2550, %v2572
    %v2582 = vadd.f32 %v2551, %v2574
    %v2583 = vmul.f32 %v2424, %v44
    %v2584 = vmul.f32 %v2424, %v45
    %v2585 = vmul.f32 %v2424, %v46
    %v2586 = vmul.f32 %v2424, %v47
    %v2587 = vmul.f32 %v2429, %v39
    %v2588 = vmul.f32 %v2429, %v40
    %v2589 = vmul.f32 %v2429, %v41
    %v2590 = vmul.f32 %v2429, %v42
    %2595 = vrot.lane.b32.xlu0 %v2587, 127
    %v2596 = vpop.permute.xlu0 %2595
    %2597 = vrot.lane.b32.xlu0 %v2588, 127
    %v2598 = vpop.permute.xlu0 %2597
    %2599 = vrot.lane.b32.xlu0 %v2589, 127
    %v2600 = vpop.permute.xlu0 %2599
    %2601 = vrot.lane.b32.xlu0 %v2590, 127
    %v2602 = vpop.permute.xlu0 %2601
    %v2607 = vadd.f32 %v2583, %v2596
    %v2608 = vadd.f32 %v2584, %v2598
    %v2609 = vadd.f32 %v2585, %v2600
    %v2610 = vadd.f32 %v2586, %v2602
    %v2611 = vmul.f32 %v2438, %v44
    %v2612 = vmul.f32 %v2438, %v45
    %v2613 = vmul.f32 %v2438, %v46
    %v2614 = vmul.f32 %v2438, %v47
    %2619 = vrot.lane.b32.xlu0 %v2611, 127
    %v2620 = vpop.permute.xlu0 %2619
    %2621 = vrot.lane.b32.xlu0 %v2612, 127
    %v2622 = vpop.permute.xlu0 %2621
    %2623 = vrot.lane.b32.xlu0 %v2613, 127
    %v2624 = vpop.permute.xlu0 %2623
    %2625 = vrot.lane.b32.xlu0 %v2614, 127
    %v2626 = vpop.permute.xlu0 %2625
    %v2631 = vadd.f32 %v2607, %v2620
    %v2632 = vadd.f32 %v2608, %v2622
    %v2633 = vadd.f32 %v2609, %v2624
    %v2634 = vadd.f32 %v2610, %v2626
    %v2635 = vmul.f32 %v2463, %v54
    %v2636 = vmul.f32 %v2463, %v55
    %v2637 = vmul.f32 %v2463, %v56
    %v2638 = vmul.f32 %v2463, %v57
    %v2639 = vadd.f32 %v2631, %v2635
    %v2640 = vadd.f32 %v2632, %v2636
    %v2641 = vadd.f32 %v2633, %v2637
    %v2642 = vadd.f32 %v2634, %v2638
    %v2643 = vmul.f32 %v2472, %v49
    %v2644 = vmul.f32 %v2472, %v50
    %v2645 = vmul.f32 %v2472, %v51
    %v2646 = vmul.f32 %v2472, %v52
    %2651 = vrot.lane.b32.xlu0 %v2643, 127
    %v2652 = vpop.permute.xlu0 %2651
    %2653 = vrot.lane.b32.xlu0 %v2644, 127
    %v2654 = vpop.permute.xlu0 %2653
    %2655 = vrot.lane.b32.xlu0 %v2645, 127
    %v2656 = vpop.permute.xlu0 %2655
    %2657 = vrot.lane.b32.xlu0 %v2646, 127
    %v2658 = vpop.permute.xlu0 %2657
    %v2663 = vadd.f32 %v2639, %v2652
    %v2664 = vadd.f32 %v2640, %v2654
    %v2665 = vadd.f32 %v2641, %v2656
    %v2666 = vadd.f32 %v2642, %v2658
    %v2667 = vmul.f32 %v2481, %v54
    %v2668 = vmul.f32 %v2481, %v55
    %v2669 = vmul.f32 %v2481, %v56
    %v2670 = vmul.f32 %v2481, %v57
    %2675 = vrot.lane.b32.xlu0 %v2667, 127
    %v2676 = vpop.permute.xlu0 %2675
    %2677 = vrot.lane.b32.xlu0 %v2668, 127
    %v2678 = vpop.permute.xlu0 %2677
    %2679 = vrot.lane.b32.xlu0 %v2669, 127
    %v2680 = vpop.permute.xlu0 %2679
    %2681 = vrot.lane.b32.xlu0 %v2670, 127
    %v2682 = vpop.permute.xlu0 %2681
    %v2687 = vadd.f32 %v2663, %v2676
    %v2688 = vadd.f32 %v2664, %v2678
    %v2689 = vadd.f32 %v2665, %v2680
    %v2690 = vadd.f32 %v2666, %v2682
    %v2691 = vmul.f32 %v2506, %v44
    %v2692 = vmul.f32 %v2506, %v45
    %v2693 = vmul.f32 %v2506, %v46
    %v2694 = vmul.f32 %v2506, %v47
    %v2699 = vrot.slane %v2691, 1
    %v2700 = vrot.slane %v2692, 1
    %v2701 = vsel %vm158, %v2699, %v2700
    %v2702 = vrot.slane %v2693, 1
    %v2703 = vrot.slane %v2694, 1
    %v2704 = vsel %vm158, %v2702, %v2703
    %v2709 = vadd.f32 %v2687, %v2701
    %v2710 = vadd.f32 %v2688, %v2700
    %v2711 = vadd.f32 %v2689, %v2704
    %v2712 = vadd.f32 %v2690, %v2703
    %v2713 = vmul.f32 %v2529, %v39
    %v2714 = vmul.f32 %v2529, %v40
    %v2715 = vmul.f32 %v2529, %v41
    %v2716 = vmul.f32 %v2529, %v42
    %v2721 = vrot.slane %v2713, 1
    %v2722 = vrot.slane %v2714, 1
    %v2723 = vsel %vm158, %v2721, %v2722
    %v2724 = vrot.slane %v2715, 1
    %v2725 = vrot.slane %v2716, 1
    %v2726 = vsel %vm158, %v2724, %v2725
    %2727 = vrot.lane.b32.xlu0 %v2723, 127
    %v2728 = vpop.permute.xlu0 %2727
    %2729 = vrot.lane.b32.xlu0 %v2722, 127
    %v2730 = vpop.permute.xlu0 %2729
    %2731 = vrot.lane.b32.xlu0 %v2726, 127
    %v2732 = vpop.permute.xlu0 %2731
    %2733 = vrot.lane.b32.xlu0 %v2725, 127
    %v2734 = vpop.permute.xlu0 %2733
    %v2739 = vadd.f32 %v2709, %v2728
    %v2740 = vadd.f32 %v2710, %v2730
    %v2741 = vadd.f32 %v2711, %v2732
    %v2742 = vadd.f32 %v2712, %v2734
    %v2743 = vmul.f32 %v2552, %v44
    %v2744 = vmul.f32 %v2552, %v45
    %v2745 = vmul.f32 %v2552, %v46
    %v2746 = vmul.f32 %v2552, %v47
    %v2751 = vrot.slane %v2743, 1
    %v2752 = vrot.slane %v2744, 1
    %v2753 = vsel %vm158, %v2751, %v2752
    %v2754 = vrot.slane %v2745, 1
    %v2755 = vrot.slane %v2746, 1
    %v2756 = vsel %vm158, %v2754, %v2755
    %2757 = vrot.lane.b32.xlu0 %v2753, 127
    %v2758 = vpop.permute.xlu0 %2757
    %2759 = vrot.lane.b32.xlu0 %v2752, 127
    %v2760 = vpop.permute.xlu0 %2759
    %2761 = vrot.lane.b32.xlu0 %v2756, 127
    %v2762 = vpop.permute.xlu0 %2761
    %2763 = vrot.lane.b32.xlu0 %v2755, 127
    %v2764 = vpop.permute.xlu0 %2763
    %v2769 = vadd.f32 %v2739, %v2758
    %v2770 = vadd.f32 %v2740, %v2760
    %v2771 = vadd.f32 %v2741, %v2762
    %v2772 = vadd.f32 %v2742, %v2764
    %v2773 = vmul.f32 %v2424, %v49
    %v2774 = vmul.f32 %v2424, %v50
    %v2775 = vmul.f32 %v2424, %v51
    %v2776 = vmul.f32 %v2424, %v52
    %v2777 = vmul.f32 %v2429, %v54
    %v2778 = vmul.f32 %v2429, %v55
    %v2779 = vmul.f32 %v2429, %v56
    %v2780 = vmul.f32 %v2429, %v57
    %v2781 = vadd.f32 %v2773, %v2777
    %v2782 = vadd.f32 %v2774, %v2778
    %v2783 = vadd.f32 %v2775, %v2779
    %v2784 = vadd.f32 %v2776, %v2780
    %v2785 = vmul.f32 %v2438, %v49
    %v2786 = vmul.f32 %v2438, %v50
    %v2787 = vmul.f32 %v2438, %v51
    %v2788 = vmul.f32 %v2438, %v52
    %2793 = vrot.lane.b32.xlu0 %v2785, 127
    %v2794 = vpop.permute.xlu0 %2793
    %2795 = vrot.lane.b32.xlu0 %v2786, 127
    %v2796 = vpop.permute.xlu0 %2795
    %2797 = vrot.lane.b32.xlu0 %v2787, 127
    %v2798 = vpop.permute.xlu0 %2797
    %2799 = vrot.lane.b32.xlu0 %v2788, 127
    %v2800 = vpop.permute.xlu0 %2799
    %v2805 = vadd.f32 %v2781, %v2794
    %v2806 = vadd.f32 %v2782, %v2796
    %v2807 = vadd.f32 %v2783, %v2798
    %v2808 = vadd.f32 %v2784, %v2800
    %v2809 = vmul.f32 %v2463, %v39
    %v2810 = vmul.f32 %v2463, %v40
    %v2811 = vmul.f32 %v2463, %v41
    %v2812 = vmul.f32 %v2463, %v42
    %v2817 = vrot.slane %v2809, 1
    %v2818 = vrot.slane %v2810, 1
    %v2819 = vsel %vm158, %v2817, %v2818
    %v2820 = vrot.slane %v2811, 1
    %v2821 = vrot.slane %v2812, 1
    %v2822 = vsel %vm158, %v2820, %v2821
    %v2827 = vadd.f32 %v2805, %v2819
    %v2828 = vadd.f32 %v2806, %v2818
    %v2829 = vadd.f32 %v2807, %v2822
    %v2830 = vadd.f32 %v2808, %v2821
    %v2831 = vmul.f32 %v2472, %v44
    %v2832 = vmul.f32 %v2472, %v45
    %v2833 = vmul.f32 %v2472, %v46
    %v2834 = vmul.f32 %v2472, %v47
    %v2839 = vrot.slane %v2831, 1
    %v2840 = vrot.slane %v2832, 1
    %v2841 = vsel %vm158, %v2839, %v2840
    %v2842 = vrot.slane %v2833, 1
    %v2843 = vrot.slane %v2834, 1
    %v2844 = vsel %vm158, %v2842, %v2843
    %v2849 = vadd.f32 %v2827, %v2841
    %v2850 = vadd.f32 %v2828, %v2840
    %v2851 = vadd.f32 %v2829, %v2844
    %v2852 = vadd.f32 %v2830, %v2843
    %v2853 = vmul.f32 %v2481, %v39
    %v2854 = vmul.f32 %v2481, %v40
    %v2855 = vmul.f32 %v2481, %v41
    %v2856 = vmul.f32 %v2481, %v42
    %v2861 = vrot.slane %v2853, 1
    %v2862 = vrot.slane %v2854, 1
    %v2863 = vsel %vm158, %v2861, %v2862
    %v2864 = vrot.slane %v2855, 1
    %v2865 = vrot.slane %v2856, 1
    %v2866 = vsel %vm158, %v2864, %v2865
    %2867 = vrot.lane.b32.xlu0 %v2863, 127
    %v2868 = vpop.permute.xlu0 %2867
    %2869 = vrot.lane.b32.xlu0 %v2862, 127
    %v2870 = vpop.permute.xlu0 %2869
    %2871 = vrot.lane.b32.xlu0 %v2866, 127
    %v2872 = vpop.permute.xlu0 %2871
    %2873 = vrot.lane.b32.xlu0 %v2865, 127
    %v2874 = vpop.permute.xlu0 %2873
    %v2879 = vadd.f32 %v2849, %v2868
    %v2880 = vadd.f32 %v2850, %v2870
    %v2881 = vadd.f32 %v2851, %v2872
    %v2882 = vadd.f32 %v2852, %v2874
    %v2883 = vmul.f32 %v2506, %v49
    %v2884 = vmul.f32 %v2506, %v50
    %v2885 = vmul.f32 %v2506, %v51
    %v2886 = vmul.f32 %v2506, %v52
    %v2891 = vrot.slane %v2883, 1
    %v2892 = vrot.slane %v2884, 1
    %v2893 = vsel %vm158, %v2891, %v2892
    %v2894 = vrot.slane %v2885, 1
    %v2895 = vrot.slane %v2886, 1
    %v2896 = vsel %vm158, %v2894, %v2895
    %v2901 = vadd.f32 %v2879, %v2893
    %v2902 = vadd.f32 %v2880, %v2892
    %v2903 = vadd.f32 %v2881, %v2896
    %v2904 = vadd.f32 %v2882, %v2895
    %v2905 = vmul.f32 %v2529, %v54
    %v2906 = vmul.f32 %v2529, %v55
    %v2907 = vmul.f32 %v2529, %v56
    %v2908 = vmul.f32 %v2529, %v57
    %v2913 = vrot.slane %v2905, 1
    %v2914 = vrot.slane %v2906, 1
    %v2915 = vsel %vm158, %v2913, %v2914
    %v2916 = vrot.slane %v2907, 1
    %v2917 = vrot.slane %v2908, 1
    %v2918 = vsel %vm158, %v2916, %v2917
    %v2923 = vadd.f32 %v2901, %v2915
    %v2924 = vadd.f32 %v2902, %v2914
    %v2925 = vadd.f32 %v2903, %v2918
    %v2926 = vadd.f32 %v2904, %v2917
    %v2927 = vmul.f32 %v2552, %v49
    %v2928 = vmul.f32 %v2552, %v50
    %v2929 = vmul.f32 %v2552, %v51
    %v2930 = vmul.f32 %v2552, %v52
    %v2935 = vrot.slane %v2927, 1
    %v2936 = vrot.slane %v2928, 1
    %v2937 = vsel %vm158, %v2935, %v2936
    %v2938 = vrot.slane %v2929, 1
    %v2939 = vrot.slane %v2930, 1
    %v2940 = vsel %vm158, %v2938, %v2939
    %2941 = vrot.lane.b32.xlu0 %v2937, 127
    %v2942 = vpop.permute.xlu0 %2941
    %2943 = vrot.lane.b32.xlu0 %v2936, 127
    %v2944 = vpop.permute.xlu0 %2943
    %2945 = vrot.lane.b32.xlu0 %v2940, 127
    %v2946 = vpop.permute.xlu0 %2945
    %2947 = vrot.lane.b32.xlu0 %v2939, 127
    %v2948 = vpop.permute.xlu0 %2947
    %v2953 = vadd.f32 %v2923, %v2942
    %v2954 = vadd.f32 %v2924, %v2944
    %v2955 = vadd.f32 %v2925, %v2946
    %v2956 = vadd.f32 %v2926, %v2948
    %v2957 = vmul.f32 %v2424, %v54
    %v2958 = vmul.f32 %v2424, %v55
    %v2959 = vmul.f32 %v2424, %v56
    %v2960 = vmul.f32 %v2424, %v57
    %v2961 = vmul.f32 %v2429, %v49
    %v2962 = vmul.f32 %v2429, %v50
    %v2963 = vmul.f32 %v2429, %v51
    %v2964 = vmul.f32 %v2429, %v52
    %2969 = vrot.lane.b32.xlu0 %v2961, 127
    %v2970 = vpop.permute.xlu0 %2969
    %2971 = vrot.lane.b32.xlu0 %v2962, 127
    %v2972 = vpop.permute.xlu0 %2971
    %2973 = vrot.lane.b32.xlu0 %v2963, 127
    %v2974 = vpop.permute.xlu0 %2973
    %2975 = vrot.lane.b32.xlu0 %v2964, 127
    %v2976 = vpop.permute.xlu0 %2975
    %v2981 = vadd.f32 %v2957, %v2970
    %v2982 = vadd.f32 %v2958, %v2972
    %v2983 = vadd.f32 %v2959, %v2974
    %v2984 = vadd.f32 %v2960, %v2976
    %v2985 = vmul.f32 %v2438, %v54
    %v2986 = vmul.f32 %v2438, %v55
    %v2987 = vmul.f32 %v2438, %v56
    %v2988 = vmul.f32 %v2438, %v57
    %2993 = vrot.lane.b32.xlu0 %v2985, 127
    %v2994 = vpop.permute.xlu0 %2993
    %2995 = vrot.lane.b32.xlu0 %v2986, 127
    %v2996 = vpop.permute.xlu0 %2995
    %2997 = vrot.lane.b32.xlu0 %v2987, 127
    %v2998 = vpop.permute.xlu0 %2997
    %2999 = vrot.lane.b32.xlu0 %v2988, 127
    %v3000 = vpop.permute.xlu0 %2999
    %v3005 = vadd.f32 %v2981, %v2994
    %v3006 = vadd.f32 %v2982, %v2996
    %v3007 = vadd.f32 %v2983, %v2998
    %v3008 = vadd.f32 %v2984, %v3000
    %v3009 = vmul.f32 %v2463, %v44
    %v3010 = vmul.f32 %v2463, %v45
    %v3011 = vmul.f32 %v2463, %v46
    %v3012 = vmul.f32 %v2463, %v47
    %v3017 = vrot.slane %v3009, 1
    %v3018 = vrot.slane %v3010, 1
    %v3019 = vsel %vm158, %v3017, %v3018
    %v3020 = vrot.slane %v3011, 1
    %v3021 = vrot.slane %v3012, 1
    %v3022 = vsel %vm158, %v3020, %v3021
    %v3027 = vadd.f32 %v3005, %v3019
    %v3028 = vadd.f32 %v3006, %v3018
    %v3029 = vadd.f32 %v3007, %v3022
    %v3030 = vadd.f32 %v3008, %v3021
    %v3031 = vmul.f32 %v2472, %v39
    %v3032 = vmul.f32 %v2472, %v40
    %v3033 = vmul.f32 %v2472, %v41
    %v3034 = vmul.f32 %v2472, %v42
    %v3039 = vrot.slane %v3031, 1
    %v3040 = vrot.slane %v3032, 1
    %v3041 = vsel %vm158, %v3039, %v3040
    %v3042 = vrot.slane %v3033, 1
    %v3043 = vrot.slane %v3034, 1
    %v3044 = vsel %vm158, %v3042, %v3043
    %3045 = vrot.lane.b32.xlu0 %v3041, 127
    %v3046 = vpop.permute.xlu0 %3045
    %3047 = vrot.lane.b32.xlu0 %v3040, 127
    %v3048 = vpop.permute.xlu0 %3047
    %3049 = vrot.lane.b32.xlu0 %v3044, 127
    %v3050 = vpop.permute.xlu0 %3049
    %3051 = vrot.lane.b32.xlu0 %v3043, 127
    %v3052 = vpop.permute.xlu0 %3051
    %v3057 = vadd.f32 %v3027, %v3046
    %v3058 = vadd.f32 %v3028, %v3048
    %v3059 = vadd.f32 %v3029, %v3050
    %v3060 = vadd.f32 %v3030, %v3052
    %v3061 = vmul.f32 %v2481, %v44
    %v3062 = vmul.f32 %v2481, %v45
    %v3063 = vmul.f32 %v2481, %v46
    %v3064 = vmul.f32 %v2481, %v47
    %v3069 = vrot.slane %v3061, 1
    %v3070 = vrot.slane %v3062, 1
    %v3071 = vsel %vm158, %v3069, %v3070
    %v3072 = vrot.slane %v3063, 1
    %v3073 = vrot.slane %v3064, 1
    %v3074 = vsel %vm158, %v3072, %v3073
    %3075 = vrot.lane.b32.xlu0 %v3071, 127
    %v3076 = vpop.permute.xlu0 %3075
    %3077 = vrot.lane.b32.xlu0 %v3070, 127
    %v3078 = vpop.permute.xlu0 %3077
    %3079 = vrot.lane.b32.xlu0 %v3074, 127
    %v3080 = vpop.permute.xlu0 %3079
    %3081 = vrot.lane.b32.xlu0 %v3073, 127
    %v3082 = vpop.permute.xlu0 %3081
    %v3087 = vadd.f32 %v3057, %v3076
    %v3088 = vadd.f32 %v3058, %v3078
    %v3089 = vadd.f32 %v3059, %v3080
    %v3090 = vadd.f32 %v3060, %v3082
    %v3091 = vmul.f32 %v2506, %v54
    %v3092 = vmul.f32 %v2506, %v55
    %v3093 = vmul.f32 %v2506, %v56
    %v3094 = vmul.f32 %v2506, %v57
    %v3099 = vrot.slane %v3091, 1
    %v3100 = vrot.slane %v3092, 1
    %v3101 = vsel %vm158, %v3099, %v3100
    %v3102 = vrot.slane %v3093, 1
    %v3103 = vrot.slane %v3094, 1
    %v3104 = vsel %vm158, %v3102, %v3103
    %v3109 = vadd.f32 %v3087, %v3101
    %v3110 = vadd.f32 %v3088, %v3100
    %v3111 = vadd.f32 %v3089, %v3104
    %v3112 = vadd.f32 %v3090, %v3103
    %v3113 = vmul.f32 %v2529, %v49
    %v3114 = vmul.f32 %v2529, %v50
    %v3115 = vmul.f32 %v2529, %v51
    %v3116 = vmul.f32 %v2529, %v52
    %v3121 = vrot.slane %v3113, 1
    %v3122 = vrot.slane %v3114, 1
    %v3123 = vsel %vm158, %v3121, %v3122
    %v3124 = vrot.slane %v3115, 1
    %v3125 = vrot.slane %v3116, 1
    %v3126 = vsel %vm158, %v3124, %v3125
    %3127 = vrot.lane.b32.xlu0 %v3123, 127
    %v3128 = vpop.permute.xlu0 %3127
    %3129 = vrot.lane.b32.xlu0 %v3122, 127
    %v3130 = vpop.permute.xlu0 %3129
    %3131 = vrot.lane.b32.xlu0 %v3126, 127
    %v3132 = vpop.permute.xlu0 %3131
    %3133 = vrot.lane.b32.xlu0 %v3125, 127
    %v3134 = vpop.permute.xlu0 %3133
    %v3139 = vadd.f32 %v3109, %v3128
    %v3140 = vadd.f32 %v3110, %v3130
    %v3141 = vadd.f32 %v3111, %v3132
    %v3142 = vadd.f32 %v3112, %v3134
    %v3143 = vmul.f32 %v2552, %v54
    %v3144 = vmul.f32 %v2552, %v55
    %v3145 = vmul.f32 %v2552, %v56
    %v3146 = vmul.f32 %v2552, %v57
    %v3151 = vrot.slane %v3143, 1
    %v3152 = vrot.slane %v3144, 1
    %v3153 = vsel %vm158, %v3151, %v3152
    %v3154 = vrot.slane %v3145, 1
    %v3155 = vrot.slane %v3146, 1
    %v3156 = vsel %vm158, %v3154, %v3155
    %3157 = vrot.lane.b32.xlu0 %v3153, 127
    %v3158 = vpop.permute.xlu0 %3157
    %3159 = vrot.lane.b32.xlu0 %v3152, 127
    %v3160 = vpop.permute.xlu0 %3159
    %3161 = vrot.lane.b32.xlu0 %v3156, 127
    %v3162 = vpop.permute.xlu0 %3161
    %3163 = vrot.lane.b32.xlu0 %v3155, 127
    %v3164 = vpop.permute.xlu0 %3163
    %v3169 = vadd.f32 %v3139, %v3158
    %v3170 = vadd.f32 %v3140, %v3160
    %v3171 = vadd.f32 %v3141, %v3162
    %v3172 = vadd.f32 %v3142, %v3164
    %v3173 = vmax.f32 %v2579, %v2769
    %v3174 = vmax.f32 %v2580, %v2770
    %v3175 = vmax.f32 %v2581, %v2771
    %v3176 = vmax.f32 %v2582, %v2772
    %v3177 = vmax.f32 %v2953, %v3169
    %v3178 = vmax.f32 %v2954, %v3170
    %v3179 = vmax.f32 %v2955, %v3171
    %v3180 = vmax.f32 %v2956, %v3172
    %v3181 = vmax.f32 %v3173, %v3177
    %v3182 = vmax.f32 %v3174, %v3178
    %v3183 = vmax.f32 %v3175, %v3179
    %v3184 = vmax.f32 %v3176, %v3180
    %s3185 = sld [smem:[#allocation4 + $0x3]]
    %v3186 = vstv %s3185
    %v3187 = vadd.f32 %v3181, %v3186
    %v3188 = vadd.f32 %v3182, %v3186
    %v3189 = vadd.f32 %v3183, %v3186
    %v3190 = vadd.f32 %v3184, %v3186
    %v3191 = vmax.f32 %v3187, 0.0
    %v3192 = vmax.f32 %v3188, 0.0
    %v3193 = vmax.f32 %v3189, 0.0
    %v3194 = vmax.f32 %v3190, 0.0
    %s3195 = scalar_lea.vmem %s3, 96
    %3196 = vst.msk [vmem:[%s3195] sm:$0xff] %vm839, %v3191
    %3197 = vst.msk [vmem:[%s3195 + $0x8] sm:$0x7f] %vm841, %v3192
    %3198 = vst.msk [vmem:[%s3195 + $0x10] sm:$0xff] %vm839, %v3193
    %3199 = vst.msk [vmem:[%s3195 + $0x18] sm:$0x7f] %vm841, %v3194
    %s3200 = sld [smem:[#allocation2 + $0x200]]
    %s3201 = sld [smem:[#allocation2 + $0x201]]
    %s3202 = sld [smem:[#allocation2 + $0x202]]
    %s3203 = sld [smem:[#allocation2 + $0x203]]
    %s3204 = sld [smem:[#allocation2 + $0x204]]
    %s3205 = sld [smem:[#allocation2 + $0x205]]
    %s3206 = sld [smem:[#allocation2 + $0x206]]
    %s3207 = sld [smem:[#allocation2 + $0x207]]
    %s3208 = sld [smem:[#allocation2 + $0x208]]
    %v3209 = vstv %s3200
    %v3210 = vmul.f32 %v3209, %v39
    %v3211 = vmul.f32 %v3209, %v40
    %v3212 = vmul.f32 %v3209, %v41
    %v3213 = vmul.f32 %v3209, %v42
    %v3214 = vstv %s3201
    %v3215 = vmul.f32 %v3214, %v44
    %v3216 = vmul.f32 %v3214, %v45
    %v3217 = vmul.f32 %v3214, %v46
    %v3218 = vmul.f32 %v3214, %v47
    %v3219 = vadd.f32 %v3210, %v3215
    %v3220 = vadd.f32 %v3211, %v3216
    %v3221 = vadd.f32 %v3212, %v3217
    %v3222 = vadd.f32 %v3213, %v3218
    %v3223 = vstv %s3202
    %v3224 = vmul.f32 %v3223, %v39
    %v3225 = vmul.f32 %v3223, %v40
    %v3226 = vmul.f32 %v3223, %v41
    %v3227 = vmul.f32 %v3223, %v42
    %3232 = vrot.lane.b32.xlu0 %v3224, 127
    %v3233 = vpop.permute.xlu0 %3232
    %3234 = vrot.lane.b32.xlu0 %v3225, 127
    %v3235 = vpop.permute.xlu0 %3234
    %3236 = vrot.lane.b32.xlu0 %v3226, 127
    %v3237 = vpop.permute.xlu0 %3236
    %3238 = vrot.lane.b32.xlu0 %v3227, 127
    %v3239 = vpop.permute.xlu0 %3238
    %v3244 = vadd.f32 %v3219, %v3233
    %v3245 = vadd.f32 %v3220, %v3235
    %v3246 = vadd.f32 %v3221, %v3237
    %v3247 = vadd.f32 %v3222, %v3239
    %v3248 = vstv %s3203
    %v3249 = vmul.f32 %v3248, %v49
    %v3250 = vmul.f32 %v3248, %v50
    %v3251 = vmul.f32 %v3248, %v51
    %v3252 = vmul.f32 %v3248, %v52
    %v3253 = vadd.f32 %v3244, %v3249
    %v3254 = vadd.f32 %v3245, %v3250
    %v3255 = vadd.f32 %v3246, %v3251
    %v3256 = vadd.f32 %v3247, %v3252
    %v3257 = vstv %s3204
    %v3258 = vmul.f32 %v3257, %v54
    %v3259 = vmul.f32 %v3257, %v55
    %v3260 = vmul.f32 %v3257, %v56
    %v3261 = vmul.f32 %v3257, %v57
    %v3262 = vadd.f32 %v3253, %v3258
    %v3263 = vadd.f32 %v3254, %v3259
    %v3264 = vadd.f32 %v3255, %v3260
    %v3265 = vadd.f32 %v3256, %v3261
    %v3266 = vstv %s3205
    %v3267 = vmul.f32 %v3266, %v49
    %v3268 = vmul.f32 %v3266, %v50
    %v3269 = vmul.f32 %v3266, %v51
    %v3270 = vmul.f32 %v3266, %v52
    %3275 = vrot.lane.b32.xlu0 %v3267, 127
    %v3276 = vpop.permute.xlu0 %3275
    %3277 = vrot.lane.b32.xlu0 %v3268, 127
    %v3278 = vpop.permute.xlu0 %3277
    %3279 = vrot.lane.b32.xlu0 %v3269, 127
    %v3280 = vpop.permute.xlu0 %3279
    %3281 = vrot.lane.b32.xlu0 %v3270, 127
    %v3282 = vpop.permute.xlu0 %3281
    %v3287 = vadd.f32 %v3262, %v3276
    %v3288 = vadd.f32 %v3263, %v3278
    %v3289 = vadd.f32 %v3264, %v3280
    %v3290 = vadd.f32 %v3265, %v3282
    %v3291 = vstv %s3206
    %v3292 = vmul.f32 %v3291, %v39
    %v3293 = vmul.f32 %v3291, %v40
    %v3294 = vmul.f32 %v3291, %v41
    %v3295 = vmul.f32 %v3291, %v42
    %v3300 = vrot.slane %v3292, 1
    %v3301 = vrot.slane %v3293, 1
    %v3302 = vsel %vm158, %v3300, %v3301
    %v3303 = vrot.slane %v3294, 1
    %v3304 = vrot.slane %v3295, 1
    %v3305 = vsel %vm158, %v3303, %v3304
    %v3310 = vadd.f32 %v3287, %v3302
    %v3311 = vadd.f32 %v3288, %v3301
    %v3312 = vadd.f32 %v3289, %v3305
    %v3313 = vadd.f32 %v3290, %v3304
    %v3314 = vstv %s3207
    %v3315 = vmul.f32 %v3314, %v44
    %v3316 = vmul.f32 %v3314, %v45
    %v3317 = vmul.f32 %v3314, %v46
    %v3318 = vmul.f32 %v3314, %v47
    %v3323 = vrot.slane %v3315, 1
    %v3324 = vrot.slane %v3316, 1
    %v3325 = vsel %vm158, %v3323, %v3324
    %v3326 = vrot.slane %v3317, 1
    %v3327 = vrot.slane %v3318, 1
    %v3328 = vsel %vm158, %v3326, %v3327
    %v3333 = vadd.f32 %v3310, %v3325
    %v3334 = vadd.f32 %v3311, %v3324
    %v3335 = vadd.f32 %v3312, %v3328
    %v3336 = vadd.f32 %v3313, %v3327
    %v3337 = vstv %s3208
    %v3338 = vmul.f32 %v3337, %v39
    %v3339 = vmul.f32 %v3337, %v40
    %v3340 = vmul.f32 %v3337, %v41
    %v3341 = vmul.f32 %v3337, %v42
    %v3346 = vrot.slane %v3338, 1
    %v3347 = vrot.slane %v3339, 1
    %v3348 = vsel %vm158, %v3346, %v3347
    %v3349 = vrot.slane %v3340, 1
    %v3350 = vrot.slane %v3341, 1
    %v3351 = vsel %vm158, %v3349, %v3350
    %3352 = vrot.lane.b32.xlu0 %v3348, 127
    %v3353 = vpop.permute.xlu0 %3352
    %3354 = vrot.lane.b32.xlu0 %v3347, 127
    %v3355 = vpop.permute.xlu0 %3354
    %3356 = vrot.lane.b32.xlu0 %v3351, 127
    %v3357 = vpop.permute.xlu0 %3356
    %3358 = vrot.lane.b32.xlu0 %v3350, 127
    %v3359 = vpop.permute.xlu0 %3358
    %v3364 = vadd.f32 %v3333, %v3353
    %v3365 = vadd.f32 %v3334, %v3355
    %v3366 = vadd.f32 %v3335, %v3357
    %v3367 = vadd.f32 %v3336, %v3359
    %v3368 = vmul.f32 %v3209, %v44
    %v3369 = vmul.f32 %v3209, %v45
    %v3370 = vmul.f32 %v3209, %v46
    %v3371 = vmul.f32 %v3209, %v47
    %v3372 = vmul.f32 %v3214, %v39
    %v3373 = vmul.f32 %v3214, %v40
    %v3374 = vmul.f32 %v3214, %v41
    %v3375 = vmul.f32 %v3214, %v42
    %3380 = vrot.lane.b32.xlu0 %v3372, 127
    %v3381 = vpop.permute.xlu0 %3380
    %3382 = vrot.lane.b32.xlu0 %v3373, 127
    %v3383 = vpop.permute.xlu0 %3382
    %3384 = vrot.lane.b32.xlu0 %v3374, 127
    %v3385 = vpop.permute.xlu0 %3384
    %3386 = vrot.lane.b32.xlu0 %v3375, 127
    %v3387 = vpop.permute.xlu0 %3386
    %v3392 = vadd.f32 %v3368, %v3381
    %v3393 = vadd.f32 %v3369, %v3383
    %v3394 = vadd.f32 %v3370, %v3385
    %v3395 = vadd.f32 %v3371, %v3387
    %v3396 = vmul.f32 %v3223, %v44
    %v3397 = vmul.f32 %v3223, %v45
    %v3398 = vmul.f32 %v3223, %v46
    %v3399 = vmul.f32 %v3223, %v47
    %3404 = vrot.lane.b32.xlu0 %v3396, 127
    %v3405 = vpop.permute.xlu0 %3404
    %3406 = vrot.lane.b32.xlu0 %v3397, 127
    %v3407 = vpop.permute.xlu0 %3406
    %3408 = vrot.lane.b32.xlu0 %v3398, 127
    %v3409 = vpop.permute.xlu0 %3408
    %3410 = vrot.lane.b32.xlu0 %v3399, 127
    %v3411 = vpop.permute.xlu0 %3410
    %v3416 = vadd.f32 %v3392, %v3405
    %v3417 = vadd.f32 %v3393, %v3407
    %v3418 = vadd.f32 %v3394, %v3409
    %v3419 = vadd.f32 %v3395, %v3411
    %v3420 = vmul.f32 %v3248, %v54
    %v3421 = vmul.f32 %v3248, %v55
    %v3422 = vmul.f32 %v3248, %v56
    %v3423 = vmul.f32 %v3248, %v57
    %v3424 = vadd.f32 %v3416, %v3420
    %v3425 = vadd.f32 %v3417, %v3421
    %v3426 = vadd.f32 %v3418, %v3422
    %v3427 = vadd.f32 %v3419, %v3423
    %v3428 = vmul.f32 %v3257, %v49
    %v3429 = vmul.f32 %v3257, %v50
    %v3430 = vmul.f32 %v3257, %v51
    %v3431 = vmul.f32 %v3257, %v52
    %3436 = vrot.lane.b32.xlu0 %v3428, 127
    %v3437 = vpop.permute.xlu0 %3436
    %3438 = vrot.lane.b32.xlu0 %v3429, 127
    %v3439 = vpop.permute.xlu0 %3438
    %3440 = vrot.lane.b32.xlu0 %v3430, 127
    %v3441 = vpop.permute.xlu0 %3440
    %3442 = vrot.lane.b32.xlu0 %v3431, 127
    %v3443 = vpop.permute.xlu0 %3442
    %v3448 = vadd.f32 %v3424, %v3437
    %v3449 = vadd.f32 %v3425, %v3439
    %v3450 = vadd.f32 %v3426, %v3441
    %v3451 = vadd.f32 %v3427, %v3443
    %v3452 = vmul.f32 %v3266, %v54
    %v3453 = vmul.f32 %v3266, %v55
    %v3454 = vmul.f32 %v3266, %v56
    %v3455 = vmul.f32 %v3266, %v57
    %3460 = vrot.lane.b32.xlu0 %v3452, 127
    %v3461 = vpop.permute.xlu0 %3460
    %3462 = vrot.lane.b32.xlu0 %v3453, 127
    %v3463 = vpop.permute.xlu0 %3462
    %3464 = vrot.lane.b32.xlu0 %v3454, 127
    %v3465 = vpop.permute.xlu0 %3464
    %3466 = vrot.lane.b32.xlu0 %v3455, 127
    %v3467 = vpop.permute.xlu0 %3466
    %v3472 = vadd.f32 %v3448, %v3461
    %v3473 = vadd.f32 %v3449, %v3463
    %v3474 = vadd.f32 %v3450, %v3465
    %v3475 = vadd.f32 %v3451, %v3467
    %v3476 = vmul.f32 %v3291, %v44
    %v3477 = vmul.f32 %v3291, %v45
    %v3478 = vmul.f32 %v3291, %v46
    %v3479 = vmul.f32 %v3291, %v47
    %v3484 = vrot.slane %v3476, 1
    %v3485 = vrot.slane %v3477, 1
    %v3486 = vsel %vm158, %v3484, %v3485
    %v3487 = vrot.slane %v3478, 1
    %v3488 = vrot.slane %v3479, 1
    %v3489 = vsel %vm158, %v3487, %v3488
    %v3494 = vadd.f32 %v3472, %v3486
    %v3495 = vadd.f32 %v3473, %v3485
    %v3496 = vadd.f32 %v3474, %v3489
    %v3497 = vadd.f32 %v3475, %v3488
    %v3498 = vmul.f32 %v3314, %v39
    %v3499 = vmul.f32 %v3314, %v40
    %v3500 = vmul.f32 %v3314, %v41
    %v3501 = vmul.f32 %v3314, %v42
    %v3506 = vrot.slane %v3498, 1
    %v3507 = vrot.slane %v3499, 1
    %v3508 = vsel %vm158, %v3506, %v3507
    %v3509 = vrot.slane %v3500, 1
    %v3510 = vrot.slane %v3501, 1
    %v3511 = vsel %vm158, %v3509, %v3510
    %3512 = vrot.lane.b32.xlu0 %v3508, 127
    %v3513 = vpop.permute.xlu0 %3512
    %3514 = vrot.lane.b32.xlu0 %v3507, 127
    %v3515 = vpop.permute.xlu0 %3514
    %3516 = vrot.lane.b32.xlu0 %v3511, 127
    %v3517 = vpop.permute.xlu0 %3516
    %3518 = vrot.lane.b32.xlu0 %v3510, 127
    %v3519 = vpop.permute.xlu0 %3518
    %v3524 = vadd.f32 %v3494, %v3513
    %v3525 = vadd.f32 %v3495, %v3515
    %v3526 = vadd.f32 %v3496, %v3517
    %v3527 = vadd.f32 %v3497, %v3519
    %v3528 = vmul.f32 %v3337, %v44
    %v3529 = vmul.f32 %v3337, %v45
    %v3530 = vmul.f32 %v3337, %v46
    %v3531 = vmul.f32 %v3337, %v47
    %v3536 = vrot.slane %v3528, 1
    %v3537 = vrot.slane %v3529, 1
    %v3538 = vsel %vm158, %v3536, %v3537
    %v3539 = vrot.slane %v3530, 1
    %v3540 = vrot.slane %v3531, 1
    %v3541 = vsel %vm158, %v3539, %v3540
    %3542 = vrot.lane.b32.xlu0 %v3538, 127
    %v3543 = vpop.permute.xlu0 %3542
    %3544 = vrot.lane.b32.xlu0 %v3537, 127
    %v3545 = vpop.permute.xlu0 %3544
    %3546 = vrot.lane.b32.xlu0 %v3541, 127
    %v3547 = vpop.permute.xlu0 %3546
    %3548 = vrot.lane.b32.xlu0 %v3540, 127
    %v3549 = vpop.permute.xlu0 %3548
    %v3554 = vadd.f32 %v3524, %v3543
    %v3555 = vadd.f32 %v3525, %v3545
    %v3556 = vadd.f32 %v3526, %v3547
    %v3557 = vadd.f32 %v3527, %v3549
    %v3558 = vmul.f32 %v3209, %v49
    %v3559 = vmul.f32 %v3209, %v50
    %v3560 = vmul.f32 %v3209, %v51
    %v3561 = vmul.f32 %v3209, %v52
    %v3562 = vmul.f32 %v3214, %v54
    %v3563 = vmul.f32 %v3214, %v55
    %v3564 = vmul.f32 %v3214, %v56
    %v3565 = vmul.f32 %v3214, %v57
    %v3566 = vadd.f32 %v3558, %v3562
    %v3567 = vadd.f32 %v3559, %v3563
    %v3568 = vadd.f32 %v3560, %v3564
    %v3569 = vadd.f32 %v3561, %v3565
    %v3570 = vmul.f32 %v3223, %v49
    %v3571 = vmul.f32 %v3223, %v50
    %v3572 = vmul.f32 %v3223, %v51
    %v3573 = vmul.f32 %v3223, %v52
    %3578 = vrot.lane.b32.xlu0 %v3570, 127
    %v3579 = vpop.permute.xlu0 %3578
    %3580 = vrot.lane.b32.xlu0 %v3571, 127
    %v3581 = vpop.permute.xlu0 %3580
    %3582 = vrot.lane.b32.xlu0 %v3572, 127
    %v3583 = vpop.permute.xlu0 %3582
    %3584 = vrot.lane.b32.xlu0 %v3573, 127
    %v3585 = vpop.permute.xlu0 %3584
    %v3590 = vadd.f32 %v3566, %v3579
    %v3591 = vadd.f32 %v3567, %v3581
    %v3592 = vadd.f32 %v3568, %v3583
    %v3593 = vadd.f32 %v3569, %v3585
    %v3594 = vmul.f32 %v3248, %v39
    %v3595 = vmul.f32 %v3248, %v40
    %v3596 = vmul.f32 %v3248, %v41
    %v3597 = vmul.f32 %v3248, %v42
    %v3602 = vrot.slane %v3594, 1
    %v3603 = vrot.slane %v3595, 1
    %v3604 = vsel %vm158, %v3602, %v3603
    %v3605 = vrot.slane %v3596, 1
    %v3606 = vrot.slane %v3597, 1
    %v3607 = vsel %vm158, %v3605, %v3606
    %v3612 = vadd.f32 %v3590, %v3604
    %v3613 = vadd.f32 %v3591, %v3603
    %v3614 = vadd.f32 %v3592, %v3607
    %v3615 = vadd.f32 %v3593, %v3606
    %v3616 = vmul.f32 %v3257, %v44
    %v3617 = vmul.f32 %v3257, %v45
    %v3618 = vmul.f32 %v3257, %v46
    %v3619 = vmul.f32 %v3257, %v47
    %v3624 = vrot.slane %v3616, 1
    %v3625 = vrot.slane %v3617, 1
    %v3626 = vsel %vm158, %v3624, %v3625
    %v3627 = vrot.slane %v3618, 1
    %v3628 = vrot.slane %v3619, 1
    %v3629 = vsel %vm158, %v3627, %v3628
    %v3634 = vadd.f32 %v3612, %v3626
    %v3635 = vadd.f32 %v3613, %v3625
    %v3636 = vadd.f32 %v3614, %v3629
    %v3637 = vadd.f32 %v3615, %v3628
    %v3638 = vmul.f32 %v3266, %v39
    %v3639 = vmul.f32 %v3266, %v40
    %v3640 = vmul.f32 %v3266, %v41
    %v3641 = vmul.f32 %v3266, %v42
    %v3646 = vrot.slane %v3638, 1
    %v3647 = vrot.slane %v3639, 1
    %v3648 = vsel %vm158, %v3646, %v3647
    %v3649 = vrot.slane %v3640, 1
    %v3650 = vrot.slane %v3641, 1
    %v3651 = vsel %vm158, %v3649, %v3650
    %3652 = vrot.lane.b32.xlu0 %v3648, 127
    %v3653 = vpop.permute.xlu0 %3652
    %3654 = vrot.lane.b32.xlu0 %v3647, 127
    %v3655 = vpop.permute.xlu0 %3654
    %3656 = vrot.lane.b32.xlu0 %v3651, 127
    %v3657 = vpop.permute.xlu0 %3656
    %3658 = vrot.lane.b32.xlu0 %v3650, 127
    %v3659 = vpop.permute.xlu0 %3658
    %v3664 = vadd.f32 %v3634, %v3653
    %v3665 = vadd.f32 %v3635, %v3655
    %v3666 = vadd.f32 %v3636, %v3657
    %v3667 = vadd.f32 %v3637, %v3659
    %v3668 = vmul.f32 %v3291, %v49
    %v3669 = vmul.f32 %v3291, %v50
    %v3670 = vmul.f32 %v3291, %v51
    %v3671 = vmul.f32 %v3291, %v52
    %v3676 = vrot.slane %v3668, 1
    %v3677 = vrot.slane %v3669, 1
    %v3678 = vsel %vm158, %v3676, %v3677
    %v3679 = vrot.slane %v3670, 1
    %v3680 = vrot.slane %v3671, 1
    %v3681 = vsel %vm158, %v3679, %v3680
    %v3686 = vadd.f32 %v3664, %v3678
    %v3687 = vadd.f32 %v3665, %v3677
    %v3688 = vadd.f32 %v3666, %v3681
    %v3689 = vadd.f32 %v3667, %v3680
    %v3690 = vmul.f32 %v3314, %v54
    %v3691 = vmul.f32 %v3314, %v55
    %v3692 = vmul.f32 %v3314, %v56
    %v3693 = vmul.f32 %v3314, %v57
    %v3698 = vrot.slane %v3690, 1
    %v3699 = vrot.slane %v3691, 1
    %v3700 = vsel %vm158, %v3698, %v3699
    %v3701 = vrot.slane %v3692, 1
    %v3702 = vrot.slane %v3693, 1
    %v3703 = vsel %vm158, %v3701, %v3702
    %v3708 = vadd.f32 %v3686, %v3700
    %v3709 = vadd.f32 %v3687, %v3699
    %v3710 = vadd.f32 %v3688, %v3703
    %v3711 = vadd.f32 %v3689, %v3702
    %v3712 = vmul.f32 %v3337, %v49
    %v3713 = vmul.f32 %v3337, %v50
    %v3714 = vmul.f32 %v3337, %v51
    %v3715 = vmul.f32 %v3337, %v52
    %v3720 = vrot.slane %v3712, 1
    %v3721 = vrot.slane %v3713, 1
    %v3722 = vsel %vm158, %v3720, %v3721
    %v3723 = vrot.slane %v3714, 1
    %v3724 = vrot.slane %v3715, 1
    %v3725 = vsel %vm158, %v3723, %v3724
    %3726 = vrot.lane.b32.xlu0 %v3722, 127
    %v3727 = vpop.permute.xlu0 %3726
    %3728 = vrot.lane.b32.xlu0 %v3721, 127
    %v3729 = vpop.permute.xlu0 %3728
    %3730 = vrot.lane.b32.xlu0 %v3725, 127
    %v3731 = vpop.permute.xlu0 %3730
    %3732 = vrot.lane.b32.xlu0 %v3724, 127
    %v3733 = vpop.permute.xlu0 %3732
    %v3738 = vadd.f32 %v3708, %v3727
    %v3739 = vadd.f32 %v3709, %v3729
    %v3740 = vadd.f32 %v3710, %v3731
    %v3741 = vadd.f32 %v3711, %v3733
    %v3742 = vmul.f32 %v3209, %v54
    %v3743 = vmul.f32 %v3209, %v55
    %v3744 = vmul.f32 %v3209, %v56
    %v3745 = vmul.f32 %v3209, %v57
    %v3746 = vmul.f32 %v3214, %v49
    %v3747 = vmul.f32 %v3214, %v50
    %v3748 = vmul.f32 %v3214, %v51
    %v3749 = vmul.f32 %v3214, %v52
    %3754 = vrot.lane.b32.xlu0 %v3746, 127
    %v3755 = vpop.permute.xlu0 %3754
    %3756 = vrot.lane.b32.xlu0 %v3747, 127
    %v3757 = vpop.permute.xlu0 %3756
    %3758 = vrot.lane.b32.xlu0 %v3748, 127
    %v3759 = vpop.permute.xlu0 %3758
    %3760 = vrot.lane.b32.xlu0 %v3749, 127
    %v3761 = vpop.permute.xlu0 %3760
    %v3766 = vadd.f32 %v3742, %v3755
    %v3767 = vadd.f32 %v3743, %v3757
    %v3768 = vadd.f32 %v3744, %v3759
    %v3769 = vadd.f32 %v3745, %v3761
    %v3770 = vmul.f32 %v3223, %v54
    %v3771 = vmul.f32 %v3223, %v55
    %v3772 = vmul.f32 %v3223, %v56
    %v3773 = vmul.f32 %v3223, %v57
    %3778 = vrot.lane.b32.xlu0 %v3770, 127
    %v3779 = vpop.permute.xlu0 %3778
    %3780 = vrot.lane.b32.xlu0 %v3771, 127
    %v3781 = vpop.permute.xlu0 %3780
    %3782 = vrot.lane.b32.xlu0 %v3772, 127
    %v3783 = vpop.permute.xlu0 %3782
    %3784 = vrot.lane.b32.xlu0 %v3773, 127
    %v3785 = vpop.permute.xlu0 %3784
    %v3790 = vadd.f32 %v3766, %v3779
    %v3791 = vadd.f32 %v3767, %v3781
    %v3792 = vadd.f32 %v3768, %v3783
    %v3793 = vadd.f32 %v3769, %v3785
    %v3794 = vmul.f32 %v3248, %v44
    %v3795 = vmul.f32 %v3248, %v45
    %v3796 = vmul.f32 %v3248, %v46
    %v3797 = vmul.f32 %v3248, %v47
    %v3802 = vrot.slane %v3794, 1
    %v3803 = vrot.slane %v3795, 1
    %v3804 = vsel %vm158, %v3802, %v3803
    %v3805 = vrot.slane %v3796, 1
    %v3806 = vrot.slane %v3797, 1
    %v3807 = vsel %vm158, %v3805, %v3806
    %v3812 = vadd.f32 %v3790, %v3804
    %v3813 = vadd.f32 %v3791, %v3803
    %v3814 = vadd.f32 %v3792, %v3807
    %v3815 = vadd.f32 %v3793, %v3806
    %v3816 = vmul.f32 %v3257, %v39
    %v3817 = vmul.f32 %v3257, %v40
    %v3818 = vmul.f32 %v3257, %v41
    %v3819 = vmul.f32 %v3257, %v42
    %v3824 = vrot.slane %v3816, 1
    %v3825 = vrot.slane %v3817, 1
    %v3826 = vsel %vm158, %v3824, %v3825
    %v3827 = vrot.slane %v3818, 1
    %v3828 = vrot.slane %v3819, 1
    %v3829 = vsel %vm158, %v3827, %v3828
    %3830 = vrot.lane.b32.xlu0 %v3826, 127
    %v3831 = vpop.permute.xlu0 %3830
    %3832 = vrot.lane.b32.xlu0 %v3825, 127
    %v3833 = vpop.permute.xlu0 %3832
    %3834 = vrot.lane.b32.xlu0 %v3829, 127
    %v3835 = vpop.permute.xlu0 %3834
    %3836 = vrot.lane.b32.xlu0 %v3828, 127
    %v3837 = vpop.permute.xlu0 %3836
    %v3842 = vadd.f32 %v3812, %v3831
    %v3843 = vadd.f32 %v3813, %v3833
    %v3844 = vadd.f32 %v3814, %v3835
    %v3845 = vadd.f32 %v3815, %v3837
    %v3846 = vmul.f32 %v3266, %v44
    %v3847 = vmul.f32 %v3266, %v45
    %v3848 = vmul.f32 %v3266, %v46
    %v3849 = vmul.f32 %v3266, %v47
    %v3854 = vrot.slane %v3846, 1
    %v3855 = vrot.slane %v3847, 1
    %v3856 = vsel %vm158, %v3854, %v3855
    %v3857 = vrot.slane %v3848, 1
    %v3858 = vrot.slane %v3849, 1
    %v3859 = vsel %vm158, %v3857, %v3858
    %3860 = vrot.lane.b32.xlu0 %v3856, 127
    %v3861 = vpop.permute.xlu0 %3860
    %3862 = vrot.lane.b32.xlu0 %v3855, 127
    %v3863 = vpop.permute.xlu0 %3862
    %3864 = vrot.lane.b32.xlu0 %v3859, 127
    %v3865 = vpop.permute.xlu0 %3864
    %3866 = vrot.lane.b32.xlu0 %v3858, 127
    %v3867 = vpop.permute.xlu0 %3866
    %v3872 = vadd.f32 %v3842, %v3861
    %v3873 = vadd.f32 %v3843, %v3863
    %v3874 = vadd.f32 %v3844, %v3865
    %v3875 = vadd.f32 %v3845, %v3867
    %v3876 = vmul.f32 %v3291, %v54
    %v3877 = vmul.f32 %v3291, %v55
    %v3878 = vmul.f32 %v3291, %v56
    %v3879 = vmul.f32 %v3291, %v57
    %v3884 = vrot.slane %v3876, 1
    %v3885 = vrot.slane %v3877, 1
    %v3886 = vsel %vm158, %v3884, %v3885
    %v3887 = vrot.slane %v3878, 1
    %v3888 = vrot.slane %v3879, 1
    %v3889 = vsel %vm158, %v3887, %v3888
    %v3894 = vadd.f32 %v3872, %v3886
    %v3895 = vadd.f32 %v3873, %v3885
    %v3896 = vadd.f32 %v3874, %v3889
    %v3897 = vadd.f32 %v3875, %v3888
    %v3898 = vmul.f32 %v3314, %v49
    %v3899 = vmul.f32 %v3314, %v50
    %v3900 = vmul.f32 %v3314, %v51
    %v3901 = vmul.f32 %v3314, %v52
    %v3906 = vrot.slane %v3898, 1
    %v3907 = vrot.slane %v3899, 1
    %v3908 = vsel %vm158, %v3906, %v3907
    %v3909 = vrot.slane %v3900, 1
    %v3910 = vrot.slane %v3901, 1
    %v3911 = vsel %vm158, %v3909, %v3910
    %3912 = vrot.lane.b32.xlu0 %v3908, 127
    %v3913 = vpop.permute.xlu0 %3912
    %3914 = vrot.lane.b32.xlu0 %v3907, 127
    %v3915 = vpop.permute.xlu0 %3914
    %3916 = vrot.lane.b32.xlu0 %v3911, 127
    %v3917 = vpop.permute.xlu0 %3916
    %3918 = vrot.lane.b32.xlu0 %v3910, 127
    %v3919 = vpop.permute.xlu0 %3918
    %v3924 = vadd.f32 %v3894, %v3913
    %v3925 = vadd.f32 %v3895, %v3915
    %v3926 = vadd.f32 %v3896, %v3917
    %v3927 = vadd.f32 %v3897, %v3919
    %v3928 = vmul.f32 %v3337, %v54
    %v3929 = vmul.f32 %v3337, %v55
    %v3930 = vmul.f32 %v3337, %v56
    %v3931 = vmul.f32 %v3337, %v57
    %v3936 = vrot.slane %v3928, 1
    %v3937 = vrot.slane %v3929, 1
    %v3938 = vsel %vm158, %v3936, %v3937
    %v3939 = vrot.slane %v3930, 1
    %v3940 = vrot.slane %v3931, 1
    %v3941 = vsel %vm158, %v3939, %v3940
    %3942 = vrot.lane.b32.xlu0 %v3938, 127
    %v3943 = vpop.permute.xlu0 %3942
    %3944 = vrot.lane.b32.xlu0 %v3937, 127
    %v3945 = vpop.permute.xlu0 %3944
    %3946 = vrot.lane.b32.xlu0 %v3941, 127
    %v3947 = vpop.permute.xlu0 %3946
    %3948 = vrot.lane.b32.xlu0 %v3940, 127
    %v3949 = vpop.permute.xlu0 %3948
    %v3954 = vadd.f32 %v3924, %v3943
    %v3955 = vadd.f32 %v3925, %v3945
    %v3956 = vadd.f32 %v3926, %v3947
    %v3957 = vadd.f32 %v3927, %v3949
    %v3958 = vmax.f32 %v3364, %v3554
    %v3959 = vmax.f32 %v3365, %v3555
    %v3960 = vmax.f32 %v3366, %v3556
    %v3961 = vmax.f32 %v3367, %v3557
    %v3962 = vmax.f32 %v3738, %v3954
    %v3963 = vmax.f32 %v3739, %v3955
    %v3964 = vmax.f32 %v3740, %v3956
    %v3965 = vmax.f32 %v3741, %v3957
    %v3966 = vmax.f32 %v3958, %v3962
    %v3967 = vmax.f32 %v3959, %v3963
    %v3968 = vmax.f32 %v3960, %v3964
    %v3969 = vmax.f32 %v3961, %v3965
    %s3970 = sld [smem:[#allocation4 + $0x4]]
    %v3971 = vstv %s3970
    %v3972 = vadd.f32 %v3966, %v3971
    %v3973 = vadd.f32 %v3967, %v3971
    %v3974 = vadd.f32 %v3968, %v3971
    %v3975 = vadd.f32 %v3969, %v3971
    %v3976 = vmax.f32 %v3972, 0.0
    %v3977 = vmax.f32 %v3973, 0.0
    %v3978 = vmax.f32 %v3974, 0.0
    %v3979 = vmax.f32 %v3975, 0.0
    %s3980 = scalar_lea.vmem %s3, 128
    %3981 = vst.msk [vmem:[%s3980] sm:$0xff] %vm839, %v3976
    %3982 = vst.msk [vmem:[%s3980 + $0x8] sm:$0x7f] %vm841, %v3977
    %3983 = vst.msk [vmem:[%s3980 + $0x10] sm:$0xff] %vm839, %v3978
    %3984 = vst.msk [vmem:[%s3980 + $0x18] sm:$0x7f] %vm841, %v3979
    %s3985 = sld [smem:[#allocation2 + $0x280]]
    %s3986 = sld [smem:[#allocation2 + $0x281]]
    %s3987 = sld [smem:[#allocation2 + $0x282]]
    %s3988 = sld [smem:[#allocation2 + $0x283]]
    %s3989 = sld [smem:[#allocation2 + $0x284]]
    %s3990 = sld [smem:[#allocation2 + $0x285]]
    %s3991 = sld [smem:[#allocation2 + $0x286]]
    %s3992 = sld [smem:[#allocation2 + $0x287]]
    %s3993 = sld [smem:[#allocation2 + $0x288]]
    %v3994 = vstv %s3985
    %v3995 = vmul.f32 %v3994, %v39
    %v3996 = vmul.f32 %v3994, %v40
    %v3997 = vmul.f32 %v3994, %v41
    %v3998 = vmul.f32 %v3994, %v42
    %v3999 = vstv %s3986
    %v4000 = vmul.f32 %v3999, %v44
    %v4001 = vmul.f32 %v3999, %v45
    %v4002 = vmul.f32 %v3999, %v46
    %v4003 = vmul.f32 %v3999, %v47
    %v4004 = vadd.f32 %v3995, %v4000
    %v4005 = vadd.f32 %v3996, %v4001
    %v4006 = vadd.f32 %v3997, %v4002
    %v4007 = vadd.f32 %v3998, %v4003
    %v4008 = vstv %s3987
    %v4009 = vmul.f32 %v4008, %v39
    %v4010 = vmul.f32 %v4008, %v40
    %v4011 = vmul.f32 %v4008, %v41
    %v4012 = vmul.f32 %v4008, %v42
    %4017 = vrot.lane.b32.xlu0 %v4009, 127
    %v4018 = vpop.permute.xlu0 %4017
    %4019 = vrot.lane.b32.xlu0 %v4010, 127
    %v4020 = vpop.permute.xlu0 %4019
    %4021 = vrot.lane.b32.xlu0 %v4011, 127
    %v4022 = vpop.permute.xlu0 %4021
    %4023 = vrot.lane.b32.xlu0 %v4012, 127
    %v4024 = vpop.permute.xlu0 %4023
    %v4029 = vadd.f32 %v4004, %v4018
    %v4030 = vadd.f32 %v4005, %v4020
    %v4031 = vadd.f32 %v4006, %v4022
    %v4032 = vadd.f32 %v4007, %v4024
    %v4033 = vstv %s3988
    %v4034 = vmul.f32 %v4033, %v49
    %v4035 = vmul.f32 %v4033, %v50
    %v4036 = vmul.f32 %v4033, %v51
    %v4037 = vmul.f32 %v4033, %v52
    %v4038 = vadd.f32 %v4029, %v4034
    %v4039 = vadd.f32 %v4030, %v4035
    %v4040 = vadd.f32 %v4031, %v4036
    %v4041 = vadd.f32 %v4032, %v4037
    %v4042 = vstv %s3989
    %v4043 = vmul.f32 %v4042, %v54
    %v4044 = vmul.f32 %v4042, %v55
    %v4045 = vmul.f32 %v4042, %v56
    %v4046 = vmul.f32 %v4042, %v57
    %v4047 = vadd.f32 %v4038, %v4043
    %v4048 = vadd.f32 %v4039, %v4044
    %v4049 = vadd.f32 %v4040, %v4045
    %v4050 = vadd.f32 %v4041, %v4046
    %v4051 = vstv %s3990
    %v4052 = vmul.f32 %v4051, %v49
    %v4053 = vmul.f32 %v4051, %v50
    %v4054 = vmul.f32 %v4051, %v51
    %v4055 = vmul.f32 %v4051, %v52
    %4060 = vrot.lane.b32.xlu0 %v4052, 127
    %v4061 = vpop.permute.xlu0 %4060
    %4062 = vrot.lane.b32.xlu0 %v4053, 127
    %v4063 = vpop.permute.xlu0 %4062
    %4064 = vrot.lane.b32.xlu0 %v4054, 127
    %v4065 = vpop.permute.xlu0 %4064
    %4066 = vrot.lane.b32.xlu0 %v4055, 127
    %v4067 = vpop.permute.xlu0 %4066
    %v4072 = vadd.f32 %v4047, %v4061
    %v4073 = vadd.f32 %v4048, %v4063
    %v4074 = vadd.f32 %v4049, %v4065
    %v4075 = vadd.f32 %v4050, %v4067
    %v4076 = vstv %s3991
    %v4077 = vmul.f32 %v4076, %v39
    %v4078 = vmul.f32 %v4076, %v40
    %v4079 = vmul.f32 %v4076, %v41
    %v4080 = vmul.f32 %v4076, %v42
    %v4085 = vrot.slane %v4077, 1
    %v4086 = vrot.slane %v4078, 1
    %v4087 = vsel %vm158, %v4085, %v4086
    %v4088 = vrot.slane %v4079, 1
    %v4089 = vrot.slane %v4080, 1
    %v4090 = vsel %vm158, %v4088, %v4089
    %v4095 = vadd.f32 %v4072, %v4087
    %v4096 = vadd.f32 %v4073, %v4086
    %v4097 = vadd.f32 %v4074, %v4090
    %v4098 = vadd.f32 %v4075, %v4089
    %v4099 = vstv %s3992
    %v4100 = vmul.f32 %v4099, %v44
    %v4101 = vmul.f32 %v4099, %v45
    %v4102 = vmul.f32 %v4099, %v46
    %v4103 = vmul.f32 %v4099, %v47
    %v4108 = vrot.slane %v4100, 1
    %v4109 = vrot.slane %v4101, 1
    %v4110 = vsel %vm158, %v4108, %v4109
    %v4111 = vrot.slane %v4102, 1
    %v4112 = vrot.slane %v4103, 1
    %v4113 = vsel %vm158, %v4111, %v4112
    %v4118 = vadd.f32 %v4095, %v4110
    %v4119 = vadd.f32 %v4096, %v4109
    %v4120 = vadd.f32 %v4097, %v4113
    %v4121 = vadd.f32 %v4098, %v4112
    %v4122 = vstv %s3993
    %v4123 = vmul.f32 %v4122, %v39
    %v4124 = vmul.f32 %v4122, %v40
    %v4125 = vmul.f32 %v4122, %v41
    %v4126 = vmul.f32 %v4122, %v42
    %v4131 = vrot.slane %v4123, 1
    %v4132 = vrot.slane %v4124, 1
    %v4133 = vsel %vm158, %v4131, %v4132
    %v4134 = vrot.slane %v4125, 1
    %v4135 = vrot.slane %v4126, 1
    %v4136 = vsel %vm158, %v4134, %v4135
    %4137 = vrot.lane.b32.xlu0 %v4133, 127
    %v4138 = vpop.permute.xlu0 %4137
    %4139 = vrot.lane.b32.xlu0 %v4132, 127
    %v4140 = vpop.permute.xlu0 %4139
    %4141 = vrot.lane.b32.xlu0 %v4136, 127
    %v4142 = vpop.permute.xlu0 %4141
    %4143 = vrot.lane.b32.xlu0 %v4135, 127
    %v4144 = vpop.permute.xlu0 %4143
    %v4149 = vadd.f32 %v4118, %v4138
    %v4150 = vadd.f32 %v4119, %v4140
    %v4151 = vadd.f32 %v4120, %v4142
    %v4152 = vadd.f32 %v4121, %v4144
    %v4153 = vmul.f32 %v3994, %v44
    %v4154 = vmul.f32 %v3994, %v45
    %v4155 = vmul.f32 %v3994, %v46
    %v4156 = vmul.f32 %v3994, %v47
    %v4157 = vmul.f32 %v3999, %v39
    %v4158 = vmul.f32 %v3999, %v40
    %v4159 = vmul.f32 %v3999, %v41
    %v4160 = vmul.f32 %v3999, %v42
    %4165 = vrot.lane.b32.xlu0 %v4157, 127
    %v4166 = vpop.permute.xlu0 %4165
    %4167 = vrot.lane.b32.xlu0 %v4158, 127
    %v4168 = vpop.permute.xlu0 %4167
    %4169 = vrot.lane.b32.xlu0 %v4159, 127
    %v4170 = vpop.permute.xlu0 %4169
    %4171 = vrot.lane.b32.xlu0 %v4160, 127
    %v4172 = vpop.permute.xlu0 %4171
    %v4177 = vadd.f32 %v4153, %v4166
    %v4178 = vadd.f32 %v4154, %v4168
    %v4179 = vadd.f32 %v4155, %v4170
    %v4180 = vadd.f32 %v4156, %v4172
    %v4181 = vmul.f32 %v4008, %v44
    %v4182 = vmul.f32 %v4008, %v45
    %v4183 = vmul.f32 %v4008, %v46
    %v4184 = vmul.f32 %v4008, %v47
    %4189 = vrot.lane.b32.xlu0 %v4181, 127
    %v4190 = vpop.permute.xlu0 %4189
    %4191 = vrot.lane.b32.xlu0 %v4182, 127
    %v4192 = vpop.permute.xlu0 %4191
    %4193 = vrot.lane.b32.xlu0 %v4183, 127
    %v4194 = vpop.permute.xlu0 %4193
    %4195 = vrot.lane.b32.xlu0 %v4184, 127
    %v4196 = vpop.permute.xlu0 %4195
    %v4201 = vadd.f32 %v4177, %v4190
    %v4202 = vadd.f32 %v4178, %v4192
    %v4203 = vadd.f32 %v4179, %v4194
    %v4204 = vadd.f32 %v4180, %v4196
    %v4205 = vmul.f32 %v4033, %v54
    %v4206 = vmul.f32 %v4033, %v55
    %v4207 = vmul.f32 %v4033, %v56
    %v4208 = vmul.f32 %v4033, %v57
    %v4209 = vadd.f32 %v4201, %v4205
    %v4210 = vadd.f32 %v4202, %v4206
    %v4211 = vadd.f32 %v4203, %v4207
    %v4212 = vadd.f32 %v4204, %v4208
    %v4213 = vmul.f32 %v4042, %v49
    %v4214 = vmul.f32 %v4042, %v50
    %v4215 = vmul.f32 %v4042, %v51
    %v4216 = vmul.f32 %v4042, %v52
    %4221 = vrot.lane.b32.xlu0 %v4213, 127
    %v4222 = vpop.permute.xlu0 %4221
    %4223 = vrot.lane.b32.xlu0 %v4214, 127
    %v4224 = vpop.permute.xlu0 %4223
    %4225 = vrot.lane.b32.xlu0 %v4215, 127
    %v4226 = vpop.permute.xlu0 %4225
    %4227 = vrot.lane.b32.xlu0 %v4216, 127
    %v4228 = vpop.permute.xlu0 %4227
    %v4233 = vadd.f32 %v4209, %v4222
    %v4234 = vadd.f32 %v4210, %v4224
    %v4235 = vadd.f32 %v4211, %v4226
    %v4236 = vadd.f32 %v4212, %v4228
    %v4237 = vmul.f32 %v4051, %v54
    %v4238 = vmul.f32 %v4051, %v55
    %v4239 = vmul.f32 %v4051, %v56
    %v4240 = vmul.f32 %v4051, %v57
    %4245 = vrot.lane.b32.xlu0 %v4237, 127
    %v4246 = vpop.permute.xlu0 %4245
    %4247 = vrot.lane.b32.xlu0 %v4238, 127
    %v4248 = vpop.permute.xlu0 %4247
    %4249 = vrot.lane.b32.xlu0 %v4239, 127
    %v4250 = vpop.permute.xlu0 %4249
    %4251 = vrot.lane.b32.xlu0 %v4240, 127
    %v4252 = vpop.permute.xlu0 %4251
    %v4257 = vadd.f32 %v4233, %v4246
    %v4258 = vadd.f32 %v4234, %v4248
    %v4259 = vadd.f32 %v4235, %v4250
    %v4260 = vadd.f32 %v4236, %v4252
    %v4261 = vmul.f32 %v4076, %v44
    %v4262 = vmul.f32 %v4076, %v45
    %v4263 = vmul.f32 %v4076, %v46
    %v4264 = vmul.f32 %v4076, %v47
    %v4269 = vrot.slane %v4261, 1
    %v4270 = vrot.slane %v4262, 1
    %v4271 = vsel %vm158, %v4269, %v4270
    %v4272 = vrot.slane %v4263, 1
    %v4273 = vrot.slane %v4264, 1
    %v4274 = vsel %vm158, %v4272, %v4273
    %v4279 = vadd.f32 %v4257, %v4271
    %v4280 = vadd.f32 %v4258, %v4270
    %v4281 = vadd.f32 %v4259, %v4274
    %v4282 = vadd.f32 %v4260, %v4273
    %v4283 = vmul.f32 %v4099, %v39
    %v4284 = vmul.f32 %v4099, %v40
    %v4285 = vmul.f32 %v4099, %v41
    %v4286 = vmul.f32 %v4099, %v42
    %v4291 = vrot.slane %v4283, 1
    %v4292 = vrot.slane %v4284, 1
    %v4293 = vsel %vm158, %v4291, %v4292
    %v4294 = vrot.slane %v4285, 1
    %v4295 = vrot.slane %v4286, 1
    %v4296 = vsel %vm158, %v4294, %v4295
    %4297 = vrot.lane.b32.xlu0 %v4293, 127
    %v4298 = vpop.permute.xlu0 %4297
    %4299 = vrot.lane.b32.xlu0 %v4292, 127
    %v4300 = vpop.permute.xlu0 %4299
    %4301 = vrot.lane.b32.xlu0 %v4296, 127
    %v4302 = vpop.permute.xlu0 %4301
    %4303 = vrot.lane.b32.xlu0 %v4295, 127
    %v4304 = vpop.permute.xlu0 %4303
    %v4309 = vadd.f32 %v4279, %v4298
    %v4310 = vadd.f32 %v4280, %v4300
    %v4311 = vadd.f32 %v4281, %v4302
    %v4312 = vadd.f32 %v4282, %v4304
    %v4313 = vmul.f32 %v4122, %v44
    %v4314 = vmul.f32 %v4122, %v45
    %v4315 = vmul.f32 %v4122, %v46
    %v4316 = vmul.f32 %v4122, %v47
    %v4321 = vrot.slane %v4313, 1
    %v4322 = vrot.slane %v4314, 1
    %v4323 = vsel %vm158, %v4321, %v4322
    %v4324 = vrot.slane %v4315, 1
    %v4325 = vrot.slane %v4316, 1
    %v4326 = vsel %vm158, %v4324, %v4325
    %4327 = vrot.lane.b32.xlu0 %v4323, 127
    %v4328 = vpop.permute.xlu0 %4327
    %4329 = vrot.lane.b32.xlu0 %v4322, 127
    %v4330 = vpop.permute.xlu0 %4329
    %4331 = vrot.lane.b32.xlu0 %v4326, 127
    %v4332 = vpop.permute.xlu0 %4331
    %4333 = vrot.lane.b32.xlu0 %v4325, 127
    %v4334 = vpop.permute.xlu0 %4333
    %v4339 = vadd.f32 %v4309, %v4328
    %v4340 = vadd.f32 %v4310, %v4330
    %v4341 = vadd.f32 %v4311, %v4332
    %v4342 = vadd.f32 %v4312, %v4334
    %v4343 = vmul.f32 %v3994, %v49
    %v4344 = vmul.f32 %v3994, %v50
    %v4345 = vmul.f32 %v3994, %v51
    %v4346 = vmul.f32 %v3994, %v52
    %v4347 = vmul.f32 %v3999, %v54
    %v4348 = vmul.f32 %v3999, %v55
    %v4349 = vmul.f32 %v3999, %v56
    %v4350 = vmul.f32 %v3999, %v57
    %v4351 = vadd.f32 %v4343, %v4347
    %v4352 = vadd.f32 %v4344, %v4348
    %v4353 = vadd.f32 %v4345, %v4349
    %v4354 = vadd.f32 %v4346, %v4350
    %v4355 = vmul.f32 %v4008, %v49
    %v4356 = vmul.f32 %v4008, %v50
    %v4357 = vmul.f32 %v4008, %v51
    %v4358 = vmul.f32 %v4008, %v52
    %4363 = vrot.lane.b32.xlu0 %v4355, 127
    %v4364 = vpop.permute.xlu0 %4363
    %4365 = vrot.lane.b32.xlu0 %v4356, 127
    %v4366 = vpop.permute.xlu0 %4365
    %4367 = vrot.lane.b32.xlu0 %v4357, 127
    %v4368 = vpop.permute.xlu0 %4367
    %4369 = vrot.lane.b32.xlu0 %v4358, 127
    %v4370 = vpop.permute.xlu0 %4369
    %v4375 = vadd.f32 %v4351, %v4364
    %v4376 = vadd.f32 %v4352, %v4366
    %v4377 = vadd.f32 %v4353, %v4368
    %v4378 = vadd.f32 %v4354, %v4370
    %v4379 = vmul.f32 %v4033, %v39
    %v4380 = vmul.f32 %v4033, %v40
    %v4381 = vmul.f32 %v4033, %v41
    %v4382 = vmul.f32 %v4033, %v42
    %v4387 = vrot.slane %v4379, 1
    %v4388 = vrot.slane %v4380, 1
    %v4389 = vsel %vm158, %v4387, %v4388
    %v4390 = vrot.slane %v4381, 1
    %v4391 = vrot.slane %v4382, 1
    %v4392 = vsel %vm158, %v4390, %v4391
    %v4397 = vadd.f32 %v4375, %v4389
    %v4398 = vadd.f32 %v4376, %v4388
    %v4399 = vadd.f32 %v4377, %v4392
    %v4400 = vadd.f32 %v4378, %v4391
    %v4401 = vmul.f32 %v4042, %v44
    %v4402 = vmul.f32 %v4042, %v45
    %v4403 = vmul.f32 %v4042, %v46
    %v4404 = vmul.f32 %v4042, %v47
    %v4409 = vrot.slane %v4401, 1
    %v4410 = vrot.slane %v4402, 1
    %v4411 = vsel %vm158, %v4409, %v4410
    %v4412 = vrot.slane %v4403, 1
    %v4413 = vrot.slane %v4404, 1
    %v4414 = vsel %vm158, %v4412, %v4413
    %v4419 = vadd.f32 %v4397, %v4411
    %v4420 = vadd.f32 %v4398, %v4410
    %v4421 = vadd.f32 %v4399, %v4414
    %v4422 = vadd.f32 %v4400, %v4413
    %v4423 = vmul.f32 %v4051, %v39
    %v4424 = vmul.f32 %v4051, %v40
    %v4425 = vmul.f32 %v4051, %v41
    %v4426 = vmul.f32 %v4051, %v42
    %v4431 = vrot.slane %v4423, 1
    %v4432 = vrot.slane %v4424, 1
    %v4433 = vsel %vm158, %v4431, %v4432
    %v4434 = vrot.slane %v4425, 1
    %v4435 = vrot.slane %v4426, 1
    %v4436 = vsel %vm158, %v4434, %v4435
    %4437 = vrot.lane.b32.xlu0 %v4433, 127
    %v4438 = vpop.permute.xlu0 %4437
    %4439 = vrot.lane.b32.xlu0 %v4432, 127
    %v4440 = vpop.permute.xlu0 %4439
    %4441 = vrot.lane.b32.xlu0 %v4436, 127
    %v4442 = vpop.permute.xlu0 %4441
    %4443 = vrot.lane.b32.xlu0 %v4435, 127
    %v4444 = vpop.permute.xlu0 %4443
    %v4449 = vadd.f32 %v4419, %v4438
    %v4450 = vadd.f32 %v4420, %v4440
    %v4451 = vadd.f32 %v4421, %v4442
    %v4452 = vadd.f32 %v4422, %v4444
    %v4453 = vmul.f32 %v4076, %v49
    %v4454 = vmul.f32 %v4076, %v50
    %v4455 = vmul.f32 %v4076, %v51
    %v4456 = vmul.f32 %v4076, %v52
    %v4461 = vrot.slane %v4453, 1
    %v4462 = vrot.slane %v4454, 1
    %v4463 = vsel %vm158, %v4461, %v4462
    %v4464 = vrot.slane %v4455, 1
    %v4465 = vrot.slane %v4456, 1
    %v4466 = vsel %vm158, %v4464, %v4465
    %v4471 = vadd.f32 %v4449, %v4463
    %v4472 = vadd.f32 %v4450, %v4462
    %v4473 = vadd.f32 %v4451, %v4466
    %v4474 = vadd.f32 %v4452, %v4465
    %v4475 = vmul.f32 %v4099, %v54
    %v4476 = vmul.f32 %v4099, %v55
    %v4477 = vmul.f32 %v4099, %v56
    %v4478 = vmul.f32 %v4099, %v57
    %v4483 = vrot.slane %v4475, 1
    %v4484 = vrot.slane %v4476, 1
    %v4485 = vsel %vm158, %v4483, %v4484
    %v4486 = vrot.slane %v4477, 1
    %v4487 = vrot.slane %v4478, 1
    %v4488 = vsel %vm158, %v4486, %v4487
    %v4493 = vadd.f32 %v4471, %v4485
    %v4494 = vadd.f32 %v4472, %v4484
    %v4495 = vadd.f32 %v4473, %v4488
    %v4496 = vadd.f32 %v4474, %v4487
    %v4497 = vmul.f32 %v4122, %v49
    %v4498 = vmul.f32 %v4122, %v50
    %v4499 = vmul.f32 %v4122, %v51
    %v4500 = vmul.f32 %v4122, %v52
    %v4505 = vrot.slane %v4497, 1
    %v4506 = vrot.slane %v4498, 1
    %v4507 = vsel %vm158, %v4505, %v4506
    %v4508 = vrot.slane %v4499, 1
    %v4509 = vrot.slane %v4500, 1
    %v4510 = vsel %vm158, %v4508, %v4509
    %4511 = vrot.lane.b32.xlu0 %v4507, 127
    %v4512 = vpop.permute.xlu0 %4511
    %4513 = vrot.lane.b32.xlu0 %v4506, 127
    %v4514 = vpop.permute.xlu0 %4513
    %4515 = vrot.lane.b32.xlu0 %v4510, 127
    %v4516 = vpop.permute.xlu0 %4515
    %4517 = vrot.lane.b32.xlu0 %v4509, 127
    %v4518 = vpop.permute.xlu0 %4517
    %v4523 = vadd.f32 %v4493, %v4512
    %v4524 = vadd.f32 %v4494, %v4514
    %v4525 = vadd.f32 %v4495, %v4516
    %v4526 = vadd.f32 %v4496, %v4518
    %v4527 = vmul.f32 %v3994, %v54
    %v4528 = vmul.f32 %v3994, %v55
    %v4529 = vmul.f32 %v3994, %v56
    %v4530 = vmul.f32 %v3994, %v57
    %v4531 = vmul.f32 %v3999, %v49
    %v4532 = vmul.f32 %v3999, %v50
    %v4533 = vmul.f32 %v3999, %v51
    %v4534 = vmul.f32 %v3999, %v52
    %4539 = vrot.lane.b32.xlu0 %v4531, 127
    %v4540 = vpop.permute.xlu0 %4539
    %4541 = vrot.lane.b32.xlu0 %v4532, 127
    %v4542 = vpop.permute.xlu0 %4541
    %4543 = vrot.lane.b32.xlu0 %v4533, 127
    %v4544 = vpop.permute.xlu0 %4543
    %4545 = vrot.lane.b32.xlu0 %v4534, 127
    %v4546 = vpop.permute.xlu0 %4545
    %v4551 = vadd.f32 %v4527, %v4540
    %v4552 = vadd.f32 %v4528, %v4542
    %v4553 = vadd.f32 %v4529, %v4544
    %v4554 = vadd.f32 %v4530, %v4546
    %v4555 = vmul.f32 %v4008, %v54
    %v4556 = vmul.f32 %v4008, %v55
    %v4557 = vmul.f32 %v4008, %v56
    %v4558 = vmul.f32 %v4008, %v57
    %4563 = vrot.lane.b32.xlu0 %v4555, 127
    %v4564 = vpop.permute.xlu0 %4563
    %4565 = vrot.lane.b32.xlu0 %v4556, 127
    %v4566 = vpop.permute.xlu0 %4565
    %4567 = vrot.lane.b32.xlu0 %v4557, 127
    %v4568 = vpop.permute.xlu0 %4567
    %4569 = vrot.lane.b32.xlu0 %v4558, 127
    %v4570 = vpop.permute.xlu0 %4569
    %v4575 = vadd.f32 %v4551, %v4564
    %v4576 = vadd.f32 %v4552, %v4566
    %v4577 = vadd.f32 %v4553, %v4568
    %v4578 = vadd.f32 %v4554, %v4570
    %v4579 = vmul.f32 %v4033, %v44
    %v4580 = vmul.f32 %v4033, %v45
    %v4581 = vmul.f32 %v4033, %v46
    %v4582 = vmul.f32 %v4033, %v47
    %v4587 = vrot.slane %v4579, 1
    %v4588 = vrot.slane %v4580, 1
    %v4589 = vsel %vm158, %v4587, %v4588
    %v4590 = vrot.slane %v4581, 1
    %v4591 = vrot.slane %v4582, 1
    %v4592 = vsel %vm158, %v4590, %v4591
    %v4597 = vadd.f32 %v4575, %v4589
    %v4598 = vadd.f32 %v4576, %v4588
    %v4599 = vadd.f32 %v4577, %v4592
    %v4600 = vadd.f32 %v4578, %v4591
    %v4601 = vmul.f32 %v4042, %v39
    %v4602 = vmul.f32 %v4042, %v40
    %v4603 = vmul.f32 %v4042, %v41
    %v4604 = vmul.f32 %v4042, %v42
    %v4609 = vrot.slane %v4601, 1
    %v4610 = vrot.slane %v4602, 1
    %v4611 = vsel %vm158, %v4609, %v4610
    %v4612 = vrot.slane %v4603, 1
    %v4613 = vrot.slane %v4604, 1
    %v4614 = vsel %vm158, %v4612, %v4613
    %4615 = vrot.lane.b32.xlu0 %v4611, 127
    %v4616 = vpop.permute.xlu0 %4615
    %4617 = vrot.lane.b32.xlu0 %v4610, 127
    %v4618 = vpop.permute.xlu0 %4617
    %4619 = vrot.lane.b32.xlu0 %v4614, 127
    %v4620 = vpop.permute.xlu0 %4619
    %4621 = vrot.lane.b32.xlu0 %v4613, 127
    %v4622 = vpop.permute.xlu0 %4621
    %v4627 = vadd.f32 %v4597, %v4616
    %v4628 = vadd.f32 %v4598, %v4618
    %v4629 = vadd.f32 %v4599, %v4620
    %v4630 = vadd.f32 %v4600, %v4622
    %v4631 = vmul.f32 %v4051, %v44
    %v4632 = vmul.f32 %v4051, %v45
    %v4633 = vmul.f32 %v4051, %v46
    %v4634 = vmul.f32 %v4051, %v47
    %v4639 = vrot.slane %v4631, 1
    %v4640 = vrot.slane %v4632, 1
    %v4641 = vsel %vm158, %v4639, %v4640
    %v4642 = vrot.slane %v4633, 1
    %v4643 = vrot.slane %v4634, 1
    %v4644 = vsel %vm158, %v4642, %v4643
    %4645 = vrot.lane.b32.xlu0 %v4641, 127
    %v4646 = vpop.permute.xlu0 %4645
    %4647 = vrot.lane.b32.xlu0 %v4640, 127
    %v4648 = vpop.permute.xlu0 %4647
    %4649 = vrot.lane.b32.xlu0 %v4644, 127
    %v4650 = vpop.permute.xlu0 %4649
    %4651 = vrot.lane.b32.xlu0 %v4643, 127
    %v4652 = vpop.permute.xlu0 %4651
    %v4657 = vadd.f32 %v4627, %v4646
    %v4658 = vadd.f32 %v4628, %v4648
    %v4659 = vadd.f32 %v4629, %v4650
    %v4660 = vadd.f32 %v4630, %v4652
    %v4661 = vmul.f32 %v4076, %v54
    %v4662 = vmul.f32 %v4076, %v55
    %v4663 = vmul.f32 %v4076, %v56
    %v4664 = vmul.f32 %v4076, %v57
    %v4669 = vrot.slane %v4661, 1
    %v4670 = vrot.slane %v4662, 1
    %v4671 = vsel %vm158, %v4669, %v4670
    %v4672 = vrot.slane %v4663, 1
    %v4673 = vrot.slane %v4664, 1
    %v4674 = vsel %vm158, %v4672, %v4673
    %v4679 = vadd.f32 %v4657, %v4671
    %v4680 = vadd.f32 %v4658, %v4670
    %v4681 = vadd.f32 %v4659, %v4674
    %v4682 = vadd.f32 %v4660, %v4673
    %v4683 = vmul.f32 %v4099, %v49
    %v4684 = vmul.f32 %v4099, %v50
    %v4685 = vmul.f32 %v4099, %v51
    %v4686 = vmul.f32 %v4099, %v52
    %v4691 = vrot.slane %v4683, 1
    %v4692 = vrot.slane %v4684, 1
    %v4693 = vsel %vm158, %v4691, %v4692
    %v4694 = vrot.slane %v4685, 1
    %v4695 = vrot.slane %v4686, 1
    %v4696 = vsel %vm158, %v4694, %v4695
    %4697 = vrot.lane.b32.xlu0 %v4693, 127
    %v4698 = vpop.permute.xlu0 %4697
    %4699 = vrot.lane.b32.xlu0 %v4692, 127
    %v4700 = vpop.permute.xlu0 %4699
    %4701 = vrot.lane.b32.xlu0 %v4696, 127
    %v4702 = vpop.permute.xlu0 %4701
    %4703 = vrot.lane.b32.xlu0 %v4695, 127
    %v4704 = vpop.permute.xlu0 %4703
    %v4709 = vadd.f32 %v4679, %v4698
    %v4710 = vadd.f32 %v4680, %v4700
    %v4711 = vadd.f32 %v4681, %v4702
    %v4712 = vadd.f32 %v4682, %v4704
    %v4713 = vmul.f32 %v4122, %v54
    %v4714 = vmul.f32 %v4122, %v55
    %v4715 = vmul.f32 %v4122, %v56
    %v4716 = vmul.f32 %v4122, %v57
    %v4721 = vrot.slane %v4713, 1
    %v4722 = vrot.slane %v4714, 1
    %v4723 = vsel %vm158, %v4721, %v4722
    %v4724 = vrot.slane %v4715, 1
    %v4725 = vrot.slane %v4716, 1
    %v4726 = vsel %vm158, %v4724, %v4725
    %4727 = vrot.lane.b32.xlu0 %v4723, 127
    %v4728 = vpop.permute.xlu0 %4727
    %4729 = vrot.lane.b32.xlu0 %v4722, 127
    %v4730 = vpop.permute.xlu0 %4729
    %4731 = vrot.lane.b32.xlu0 %v4726, 127
    %v4732 = vpop.permute.xlu0 %4731
    %4733 = vrot.lane.b32.xlu0 %v4725, 127
    %v4734 = vpop.permute.xlu0 %4733
    %v4739 = vadd.f32 %v4709, %v4728
    %v4740 = vadd.f32 %v4710, %v4730
    %v4741 = vadd.f32 %v4711, %v4732
    %v4742 = vadd.f32 %v4712, %v4734
    %v4743 = vmax.f32 %v4149, %v4339
    %v4744 = vmax.f32 %v4150, %v4340
    %v4745 = vmax.f32 %v4151, %v4341
    %v4746 = vmax.f32 %v4152, %v4342
    %v4747 = vmax.f32 %v4523, %v4739
    %v4748 = vmax.f32 %v4524, %v4740
    %v4749 = vmax.f32 %v4525, %v4741
    %v4750 = vmax.f32 %v4526, %v4742
    %v4751 = vmax.f32 %v4743, %v4747
    %v4752 = vmax.f32 %v4744, %v4748
    %v4753 = vmax.f32 %v4745, %v4749
    %v4754 = vmax.f32 %v4746, %v4750
    %s4755 = sld [smem:[#allocation4 + $0x5]]
    %v4756 = vstv %s4755
    %v4757 = vadd.f32 %v4751, %v4756
    %v4758 = vadd.f32 %v4752, %v4756
    %v4759 = vadd.f32 %v4753, %v4756
    %v4760 = vadd.f32 %v4754, %v4756
    %v4761 = vmax.f32 %v4757, 0.0
    %v4762 = vmax.f32 %v4758, 0.0
    %v4763 = vmax.f32 %v4759, 0.0
    %v4764 = vmax.f32 %v4760, 0.0
    %s4765 = scalar_lea.vmem %s3, 160
    %4766 = vst.msk [vmem:[%s4765] sm:$0xff] %vm839, %v4761
    %4767 = vst.msk [vmem:[%s4765 + $0x8] sm:$0x7f] %vm841, %v4762
    %4768 = vst.msk [vmem:[%s4765 + $0x10] sm:$0xff] %vm839, %v4763
    %4769 = vst.msk [vmem:[%s4765 + $0x18] sm:$0x7f] %vm841, %v4764
    // Predicated region
    $region22: #{net_forward.2} parent=1 // pred_check
      _
    $region23: #{net_forward.2} parent=1 // pred_check_branch
      %4771 = sbr.rel (0) target = $region25
    $region24: #{net_forward.2} parent=1 // pred_region
      _
    $region25: #{net_forward.2} parent=1 // pred_fallthru
      _
    // Predicated region
    $region26: #{net_forward.2} parent=1 // pred_check
      _
    $region27: #{net_forward.2} parent=1 // pred_check_branch
      %4773 = sbr.rel (0) target = $region29
    $region28: #{net_forward.2} parent=1 // pred_region
      _
    $region29: #{net_forward.2} parent=1 // pred_fallthru
      _
    %4774 = vsyncpa [#allocation3], 1
    %4775 = vsyncpa [#allocation5], 1

// kernel: net_forward.3
$region0: #{net_forward.3}
  #allocation0 [shape = 'u32[]', space=smem, size = 0x4, offset = 0x4, fixed_abs, tag = 'smem constant byte address 0x4 - core index']
  #allocation1 [shape = 'u32[144,128]{1,0:T(1,128)}', space=vmem, size = 0x12000, scoped, tag = 'internal scratch']
  %s0 = inlined_call_operand.vmem [shape: f32[4,72,54], index: 0, kind: input, shape index: {}]
  %s1 = inlined_call_operand.vmem [shape: f32[54,16], index: 1, kind: input, shape index: {}]
  %s2 = inlined_call_operand.vmem [shape: f32[1,16], index: 2, kind: input, shape index: {}]
  %s3 = inlined_call_operand.vmem [shape: f32[576,120], index: 3, kind: input, shape index: {}]
  %s4 = inlined_call_operand.vmem [shape: f32[1,120], index: 4, kind: input, shape index: {}]
  %s5 = inlined_call_operand.vmem [shape: f32[120,84], index: 5, kind: input, shape index: {}]
  %s6 = inlined_call_operand.vmem [shape: f32[1,84], index: 6, kind: input, shape index: {}]
  %s7 = inlined_call_operand.vmem [shape: f32[84,10], index: 7, kind: input, shape index: {}]
  %s8 = inlined_call_operand.vmem [shape: f32[1,10], index: 8, kind: input, shape index: {}]
  %s9 = inlined_call_operand.hbm [shape: f32[2,10], index: 9, kind: output, shape index: {}]
  %s10 = sld [smem:[#allocation0]]
  $region46: #{net_forward.3} parent=0
    _
  %s12 = ssub.s32 1, %s10
  %s13 = scalar_select 0, %s12, %s10
  $region1: #{net_forward.3} parent=0
    #allocation2 [shape = 'u8[1024]{0}', space=vmem, size = 0x400, scoped, tag = 'output window, operand 0, single buffered']
    #allocation3 [shape = 's32[1]{0}', space=sflag, size = 0x4, scoped, tag = 'scoped memory for net_forward.3']
    %14 = vsyncpa [#allocation3], 0
    // Predicated region
    $region2: #{net_forward.3} parent=1 // pred_check
      _
    $region3: #{net_forward.3} parent=1 // pred_check_branch
      %16 = sbr.rel (0) target = $region5
    $region4: #{net_forward.3} parent=1 // pred_region
      _
    $region5: #{net_forward.3} parent=1 // pred_fallthru
      _
    // Predicated region
    $region6: #{net_forward.3} parent=1 // pred_check
      _
    $region7: #{net_forward.3} parent=1 // pred_check_branch
      %18 = sbr.rel (0) target = $region9
    $region8: #{net_forward.3} parent=1 // pred_region
      _
    $region9: #{net_forward.3} parent=1 // pred_fallthru
      _
    // Predicated region
    $region10: #{net_forward.3} parent=1 // pred_check
      _
    $region11: #{net_forward.3} parent=1 // pred_check_branch
      %20 = sbr.rel (0) target = $region13
    $region12: #{net_forward.3} parent=1 // pred_region
      _
    $region13: #{net_forward.3} parent=1 // pred_fallthru
      _
    // Predicated region
    $region14: #{net_forward.3} parent=1 // pred_check
      _
    $region15: #{net_forward.3} parent=1 // pred_check_branch
      %22 = sbr.rel (0) target = $region17
    $region16: #{net_forward.3} parent=1 // pred_region
      _
    $region17: #{net_forward.3} parent=1 // pred_fallthru
      _
    // Predicated region
    $region18: #{net_forward.3} parent=1 // pred_check
      _
    $region19: #{net_forward.3} parent=1 // pred_check_branch
      %24 = sbr.rel (0) target = $region21
    $region20: #{net_forward.3} parent=1 // pred_region
      _
    $region21: #{net_forward.3} parent=1 // pred_fallthru
      _
    // Predicated region
    $region22: #{net_forward.3} parent=1 // pred_check
      _
    $region23: #{net_forward.3} parent=1 // pred_check_branch
      %26 = sbr.rel (0) target = $region25
    $region24: #{net_forward.3} parent=1 // pred_region
      _
    $region25: #{net_forward.3} parent=1 // pred_fallthru
      _
    // Predicated region
    $region26: #{net_forward.3} parent=1 // pred_check
      _
    $region27: #{net_forward.3} parent=1 // pred_check_branch
      %28 = sbr.rel (0) target = $region29
    $region28: #{net_forward.3} parent=1 // pred_region
      _
    $region29: #{net_forward.3} parent=1 // pred_fallthru
      _
    // Predicated region
    $region30: #{net_forward.3} parent=1 // pred_check
      _
    $region31: #{net_forward.3} parent=1 // pred_check_branch
      %30 = sbr.rel (0) target = $region33
    $region32: #{net_forward.3} parent=1 // pred_region
      _
    $region33: #{net_forward.3} parent=1 // pred_fallthru
      _
    // Predicated region
    $region34: #{net_forward.3} parent=1 // pred_check
      _
    $region35: #{net_forward.3} parent=1 // pred_check_branch
      %32 = sbr.rel (0) target = $region37
    $region36: #{net_forward.3} parent=1 // pred_region
      _
    $region37: #{net_forward.3} parent=1 // pred_fallthru
      _
    %v33 = vld [vmem:[%s1] sm:$0xff]
    %v34 = vld [vmem:[%s1 + $0x8] sm:$0xff]
    %v35 = vld [vmem:[%s1 + $0x10] sm:$0xff]
    %v36 = vld [vmem:[%s1 + $0x18] sm:$0xff]
    %v37 = vld [vmem:[%s1 + $0x20] sm:$0xff]
    %v38 = vld [vmem:[%s1 + $0x28] sm:$0xff]
    %v39 = vld [vmem:[%s1 + $0x30] sm:$0x3f]
    %v40 = vld [vmem:[%s0] sm:$0xff]
    %v41 = vld [vmem:[%s0 + $0x8] sm:$0xff]
    %v42 = vld [vmem:[%s0 + $0x10] sm:$0xff]
    %v43 = vld [vmem:[%s0 + $0x18] sm:$0xff]
    %v44 = vld [vmem:[%s0 + $0x20] sm:$0xff]
    %v45 = vld [vmem:[%s0 + $0x28] sm:$0xff]
    %v46 = vld [vmem:[%s0 + $0x30] sm:$0xff]
    %v47 = vld [vmem:[%s0 + $0x38] sm:$0xff]
    %v48 = vld [vmem:[%s0 + $0x40] sm:$0xff]
    %vm49 = vcmask 441344
    %v51 = vsel %vm49, %v40, 0
    %v54 = vsel %vm49, %v41, 0
    %v57 = vsel %vm49, %v42, 0
    %v60 = vsel %vm49, %v43, 0
    %v63 = vsel %vm49, %v44, 0
    %v66 = vsel %vm49, %v45, 0
    %v69 = vsel %vm49, %v46, 0
    %v72 = vsel %vm49, %v47, 0
    %v75 = vsel %vm49, %v48, 0
    %vm77 = vcmask 1045504
    %v79 = vsel %vm77, %v39, 0
    %81 = vmatprep.subr.mxu0 0.0
    %82 = vmatpush1.msra.mxu0 %v33
    %83 = vmatprep.subr.mxu0 0.0
    %84 = vmatpush1.msra.mxu0 %v34
    %85 = vmatprep.subr.mxu0 0.0
    %86 = vmatpush1.msra.mxu0 %v35
    %87 = vmatprep.subr.mxu0 0.0
    %88 = vmatpush1.msra.mxu0 %v36
    %89 = vmatprep.subr.mxu0 0.0
    %90 = vmatpush1.msra.mxu0 %v37
    %91 = vmatprep.subr.mxu0 0.0
    %92 = vmatpush1.msra.mxu0 %v38
    %93 = vmatprep.subr.mxu0 0.0
    %94 = vmatpush1.msra.mxu0 %v79
    %95 = vmatprep.subr.mxu0 0.0
    %96 = vmatpush1.msra.mxu0 0.0
    %97 = vmatprep.subr.mxu0 0.0
    %98 = vmatpush1.msra.mxu0 0.0
    %99 = vmatprep.subr.mxu0 0.0
    %100 = vmatpush1.msra.mxu0 0.0
    %101 = vmatprep.subr.mxu0 0.0
    %102 = vmatpush1.msra.mxu0 0.0
    %103 = vmatprep.subr.mxu0 0.0
    %104 = vmatpush1.msra.mxu0 0.0
    %105 = vmatprep.subr.mxu0 0.0
    %106 = vmatpush1.msra.mxu0 0.0
    %107 = vmatprep.subr.mxu0 0.0
    %108 = vmatpush1.msra.mxu0 0.0
    %109 = vmatprep.subr.mxu0 0.0
    %110 = vmatpush1.msra.mxu0 0.0
    %111 = vmatprep.subr.mxu0 0.0
    %112 = vmatpush1.msra.mxu0 0.0
    %113 = vmatprep.subr.mxu0 0.0
    %114 = vmatpush1.msra.mxu0 0.0
    %115 = vmatprep.subr.mxu0 0.0
    %116 = vmatpush1.msra.mxu0 0.0
    %117 = vmatprep.subr.mxu0 0.0
    %118 = vmatpush1.msra.mxu0 0.0
    %119 = vmatprep.subr.mxu0 0.0
    %120 = vmatpush1.msra.mxu0 0.0
    %121 = vmatprep.subr.mxu0 0.0
    %122 = vmatpush1.msra.mxu0 0.0
    %123 = vmatprep.subr.mxu0 0.0
    %124 = vmatpush1.msra.mxu0 0.0
    %125 = vmatprep.subr.mxu0 0.0
    %126 = vmatpush1.msra.mxu0 0.0
    %127 = vmatprep.subr.mxu0 0.0
    %128 = vmatpush1.msra.mxu0 0.0
    %129 = vmatprep.subr.mxu0 0.0
    %130 = vmatpush1.msra.mxu0 0.0
    %131 = vmatprep.subr.mxu0 0.0
    %132 = vmatpush1.msra.mxu0 0.0
    %133 = vmatprep.subr.mxu0 0.0
    %134 = vmatpush1.msra.mxu0 0.0
    %135 = vmatprep.subr.mxu0 0.0
    %136 = vmatpush1.msra.mxu0 0.0
    %137 = vmatprep.subr.mxu0 0.0
    %138 = vmatpush1.msra.mxu0 0.0
    %139 = vmatprep.subr.mxu0 0.0
    %140 = vmatpush1.msra.mxu0 0.0
    %141 = vmatprep.subr.mxu0 0.0
    %142 = vmatpush1.msra.mxu0 0.0
    %143 = vmatprep.subr.mxu0 0.0
    %144 = vmatpush1.msra.mxu0 0.0
    %145 = vmatprep.mubr.f32.mxu0 0.0
    %146 = vmatmul.mubr.f32.gmra.mrb[0].mxu0 %v51
    %v147 = vpop.f32.mrb[0].mxu0
    %v148 = vadd.f32 0.0, %v147
    %v149 = vpop.f32.mrb[0].mxu0
    %150 = vmatprep.mubr.f32.mxu0 0.0
    %151 = vmatmul.mubr.f32.gmra.mrb[0].mxu0 %v54
    %v152 = vpop.f32.mrb[0].mxu0
    %v153 = vadd.f32 0.0, %v152
    %v154 = vpop.f32.mrb[0].mxu0
    %155 = vmatprep.mubr.f32.mxu0 0.0
    %156 = vmatmul.mubr.f32.gmra.mrb[0].mxu0 %v57
    %v157 = vpop.f32.mrb[0].mxu0
    %v158 = vadd.f32 0.0, %v157
    %v159 = vpop.f32.mrb[0].mxu0
    %160 = vmatprep.mubr.f32.mxu0 0.0
    %161 = vmatmul.mubr.f32.gmra.mrb[0].mxu0 %v60
    %v162 = vpop.f32.mrb[0].mxu0
    %v163 = vadd.f32 0.0, %v162
    %v164 = vpop.f32.mrb[0].mxu0
    %165 = vmatprep.mubr.f32.mxu0 0.0
    %166 = vmatmul.mubr.f32.gmra.mrb[0].mxu0 %v63
    %v167 = vpop.f32.mrb[0].mxu0
    %v168 = vadd.f32 0.0, %v167
    %v169 = vpop.f32.mrb[0].mxu0
    %170 = vmatprep.mubr.f32.mxu0 0.0
    %171 = vmatmul.mubr.f32.gmra.mrb[0].mxu0 %v66
    %v172 = vpop.f32.mrb[0].mxu0
    %v173 = vadd.f32 0.0, %v172
    %v174 = vpop.f32.mrb[0].mxu0
    %175 = vmatprep.mubr.f32.mxu0 0.0
    %176 = vmatmul.mubr.f32.gmra.mrb[0].mxu0 %v69
    %v177 = vpop.f32.mrb[0].mxu0
    %v178 = vadd.f32 0.0, %v177
    %v179 = vpop.f32.mrb[0].mxu0
    %180 = vmatprep.mubr.f32.mxu0 0.0
    %181 = vmatmul.mubr.f32.gmra.mrb[0].mxu0 %v72
    %v182 = vpop.f32.mrb[0].mxu0
    %v183 = vadd.f32 0.0, %v182
    %v184 = vpop.f32.mrb[0].mxu0
    %185 = vmatprep.mubr.f32.mxu0 0.0
    %186 = vmatmul.mubr.f32.gmra.mrb[0].mxu0 %v75
    %v187 = vpop.f32.mrb[0].mxu0
    %v188 = vadd.f32 0.0, %v187
    %v189 = vpop.f32.mrb[0].mxu0
    %190 = vdwg.mxu0
    %s191 = scalar_lea.vmem %s0, 72
    %v192 = vld [vmem:[%s191] sm:$0xff]
    %v193 = vld [vmem:[%s191 + $0x8] sm:$0xff]
    %v194 = vld [vmem:[%s191 + $0x10] sm:$0xff]
    %v195 = vld [vmem:[%s191 + $0x18] sm:$0xff]
    %v196 = vld [vmem:[%s191 + $0x20] sm:$0xff]
    %v197 = vld [vmem:[%s191 + $0x28] sm:$0xff]
    %v198 = vld [vmem:[%s191 + $0x30] sm:$0xff]
    %v199 = vld [vmem:[%s191 + $0x38] sm:$0xff]
    %v200 = vld [vmem:[%s191 + $0x40] sm:$0xff]
    %v202 = vsel %vm49, %v192, 0
    %v205 = vsel %vm49, %v193, 0
    %v208 = vsel %vm49, %v194, 0
    %v211 = vsel %vm49, %v195, 0
    %v214 = vsel %vm49, %v196, 0
    %v217 = vsel %vm49, %v197, 0
    %v220 = vsel %vm49, %v198, 0
    %v223 = vsel %vm49, %v199, 0
    %v226 = vsel %vm49, %v200, 0
    %228 = vmatprep.subr.mxu0 0.0
    %229 = vmatpush1.msra.mxu0 %v33
    %230 = vmatprep.subr.mxu0 0.0
    %231 = vmatpush1.msra.mxu0 %v34
    %232 = vmatprep.subr.mxu0 0.0
    %233 = vmatpush1.msra.mxu0 %v35
    %234 = vmatprep.subr.mxu0 0.0
    %235 = vmatpush1.msra.mxu0 %v36
    %236 = vmatprep.subr.mxu0 0.0
    %237 = vmatpush1.msra.mxu0 %v37
    %238 = vmatprep.subr.mxu0 0.0
    %239 = vmatpush1.msra.mxu0 %v38
    %240 = vmatprep.subr.mxu0 0.0
    %241 = vmatpush1.msra.mxu0 %v79
    %242 = vmatprep.subr.mxu0 0.0
    %243 = vmatpush1.msra.mxu0 0.0
    %244 = vmatprep.subr.mxu0 0.0
    %245 = vmatpush1.msra.mxu0 0.0
    %246 = vmatprep.subr.mxu0 0.0
    %247 = vmatpush1.msra.mxu0 0.0
    %248 = vmatprep.subr.mxu0 0.0
    %249 = vmatpush1.msra.mxu0 0.0
    %250 = vmatprep.subr.mxu0 0.0
    %251 = vmatpush1.msra.mxu0 0.0
    %252 = vmatprep.subr.mxu0 0.0
    %253 = vmatpush1.msra.mxu0 0.0
    %254 = vmatprep.subr.mxu0 0.0
    %255 = vmatpush1.msra.mxu0 0.0
    %256 = vmatprep.subr.mxu0 0.0
    %257 = vmatpush1.msra.mxu0 0.0
    %258 = vmatprep.subr.mxu0 0.0
    %259 = vmatpush1.msra.mxu0 0.0
    %260 = vmatprep.subr.mxu0 0.0
    %261 = vmatpush1.msra.mxu0 0.0
    %262 = vmatprep.subr.mxu0 0.0
    %263 = vmatpush1.msra.mxu0 0.0
    %264 = vmatprep.subr.mxu0 0.0
    %265 = vmatpush1.msra.mxu0 0.0
    %266 = vmatprep.subr.mxu0 0.0
    %267 = vmatpush1.msra.mxu0 0.0
    %268 = vmatprep.subr.mxu0 0.0
    %269 = vmatpush1.msra.mxu0 0.0
    %270 = vmatprep.subr.mxu0 0.0
    %271 = vmatpush1.msra.mxu0 0.0
    %272 = vmatprep.subr.mxu0 0.0
    %273 = vmatpush1.msra.mxu0 0.0
    %274 = vmatprep.subr.mxu0 0.0
    %275 = vmatpush1.msra.mxu0 0.0
    %276 = vmatprep.subr.mxu0 0.0
    %277 = vmatpush1.msra.mxu0 0.0
    %278 = vmatprep.subr.mxu0 0.0
    %279 = vmatpush1.msra.mxu0 0.0
    %280 = vmatprep.subr.mxu0 0.0
    %281 = vmatpush1.msra.mxu0 0.0
    %282 = vmatprep.subr.mxu0 0.0
    %283 = vmatpush1.msra.mxu0 0.0
    %284 = vmatprep.subr.mxu0 0.0
    %285 = vmatpush1.msra.mxu0 0.0
    %286 = vmatprep.subr.mxu0 0.0
    %287 = vmatpush1.msra.mxu0 0.0
    %288 = vmatprep.subr.mxu0 0.0
    %289 = vmatpush1.msra.mxu0 0.0
    %290 = vmatprep.subr.mxu0 0.0
    %291 = vmatpush1.msra.mxu0 0.0
    %292 = vmatprep.mubr.f32.mxu0 0.0
    %293 = vmatmul.mubr.f32.gmra.mrb[0].mxu0 %v202
    %v294 = vpop.f32.mrb[0].mxu0
    %v295 = vadd.f32 0.0, %v294
    %v296 = vpop.f32.mrb[0].mxu0
    %297 = vmatprep.mubr.f32.mxu0 0.0
    %298 = vmatmul.mubr.f32.gmra.mrb[0].mxu0 %v205
    %v299 = vpop.f32.mrb[0].mxu0
    %v300 = vadd.f32 0.0, %v299
    %v301 = vpop.f32.mrb[0].mxu0
    %302 = vmatprep.mubr.f32.mxu0 0.0
    %303 = vmatmul.mubr.f32.gmra.mrb[0].mxu0 %v208
    %v304 = vpop.f32.mrb[0].mxu0
    %v305 = vadd.f32 0.0, %v304
    %v306 = vpop.f32.mrb[0].mxu0
    %307 = vmatprep.mubr.f32.mxu0 0.0
    %308 = vmatmul.mubr.f32.gmra.mrb[0].mxu0 %v211
    %v309 = vpop.f32.mrb[0].mxu0
    %v310 = vadd.f32 0.0, %v309
    %v311 = vpop.f32.mrb[0].mxu0
    %312 = vmatprep.mubr.f32.mxu0 0.0
    %313 = vmatmul.mubr.f32.gmra.mrb[0].mxu0 %v214
    %v314 = vpop.f32.mrb[0].mxu0
    %v315 = vadd.f32 0.0, %v314
    %v316 = vpop.f32.mrb[0].mxu0
    %317 = vmatprep.mubr.f32.mxu0 0.0
    %318 = vmatmul.mubr.f32.gmra.mrb[0].mxu0 %v217
    %v319 = vpop.f32.mrb[0].mxu0
    %v320 = vadd.f32 0.0, %v319
    %v321 = vpop.f32.mrb[0].mxu0
    %322 = vmatprep.mubr.f32.mxu0 0.0
    %323 = vmatmul.mubr.f32.gmra.mrb[0].mxu0 %v220
    %v324 = vpop.f32.mrb[0].mxu0
    %v325 = vadd.f32 0.0, %v324
    %v326 = vpop.f32.mrb[0].mxu0
    %327 = vmatprep.mubr.f32.mxu0 0.0
    %328 = vmatmul.mubr.f32.gmra.mrb[0].mxu0 %v223
    %v329 = vpop.f32.mrb[0].mxu0
    %v330 = vadd.f32 0.0, %v329
    %v331 = vpop.f32.mrb[0].mxu0
    %332 = vmatprep.mubr.f32.mxu0 0.0
    %333 = vmatmul.mubr.f32.gmra.mrb[0].mxu0 %v226
    %v334 = vpop.f32.mrb[0].mxu0
    %v335 = vadd.f32 0.0, %v334
    %v336 = vpop.f32.mrb[0].mxu0
    %337 = vdwg.mxu0
    %v338 = vmax.f32 %v148, %v295
    %v339 = vmax.f32 %v153, %v300
    %v340 = vmax.f32 %v158, %v305
    %v341 = vmax.f32 %v163, %v310
    %v342 = vmax.f32 %v168, %v315
    %v343 = vmax.f32 %v173, %v320
    %v344 = vmax.f32 %v178, %v325
    %v345 = vmax.f32 %v183, %v330
    %v346 = vmax.f32 %v188, %v335
    %s347 = scalar_lea.vmem %s0, 144
    %v348 = vld [vmem:[%s347] sm:$0xff]
    %v349 = vld [vmem:[%s347 + $0x8] sm:$0xff]
    %v350 = vld [vmem:[%s347 + $0x10] sm:$0xff]
    %v351 = vld [vmem:[%s347 + $0x18] sm:$0xff]
    %v352 = vld [vmem:[%s347 + $0x20] sm:$0xff]
    %v353 = vld [vmem:[%s347 + $0x28] sm:$0xff]
    %v354 = vld [vmem:[%s347 + $0x30] sm:$0xff]
    %v355 = vld [vmem:[%s347 + $0x38] sm:$0xff]
    %v356 = vld [vmem:[%s347 + $0x40] sm:$0xff]
    %v358 = vsel %vm49, %v348, 0
    %v361 = vsel %vm49, %v349, 0
    %v364 = vsel %vm49, %v350, 0
    %v367 = vsel %vm49, %v351, 0
    %v370 = vsel %vm49, %v352, 0
    %v373 = vsel %vm49, %v353, 0
    %v376 = vsel %vm49, %v354, 0
    %v379 = vsel %vm49, %v355, 0
    %v382 = vsel %vm49, %v356, 0
    %384 = vmatprep.subr.mxu0 0.0
    %385 = vmatpush1.msra.mxu0 %v33
    %386 = vmatprep.subr.mxu0 0.0
    %387 = vmatpush1.msra.mxu0 %v34
    %388 = vmatprep.subr.mxu0 0.0
    %389 = vmatpush1.msra.mxu0 %v35
    %390 = vmatprep.subr.mxu0 0.0
    %391 = vmatpush1.msra.mxu0 %v36
    %392 = vmatprep.subr.mxu0 0.0
    %393 = vmatpush1.msra.mxu0 %v37
    %394 = vmatprep.subr.mxu0 0.0
    %395 = vmatpush1.msra.mxu0 %v38
    %396 = vmatprep.subr.mxu0 0.0
    %397 = vmatpush1.msra.mxu0 %v79
    %398 = vmatprep.subr.mxu0 0.0
    %399 = vmatpush1.msra.mxu0 0.0
    %400 = vmatprep.subr.mxu0 0.0
    %401 = vmatpush1.msra.mxu0 0.0
    %402 = vmatprep.subr.mxu0 0.0
    %403 = vmatpush1.msra.mxu0 0.0
    %404 = vmatprep.subr.mxu0 0.0
    %405 = vmatpush1.msra.mxu0 0.0
    %406 = vmatprep.subr.mxu0 0.0
    %407 = vmatpush1.msra.mxu0 0.0
    %408 = vmatprep.subr.mxu0 0.0
    %409 = vmatpush1.msra.mxu0 0.0
    %410 = vmatprep.subr.mxu0 0.0
    %411 = vmatpush1.msra.mxu0 0.0
    %412 = vmatprep.subr.mxu0 0.0
    %413 = vmatpush1.msra.mxu0 0.0
    %414 = vmatprep.subr.mxu0 0.0
    %415 = vmatpush1.msra.mxu0 0.0
    %416 = vmatprep.subr.mxu0 0.0
    %417 = vmatpush1.msra.mxu0 0.0
    %418 = vmatprep.subr.mxu0 0.0
    %419 = vmatpush1.msra.mxu0 0.0
    %420 = vmatprep.subr.mxu0 0.0
    %421 = vmatpush1.msra.mxu0 0.0
    %422 = vmatprep.subr.mxu0 0.0
    %423 = vmatpush1.msra.mxu0 0.0
    %424 = vmatprep.subr.mxu0 0.0
    %425 = vmatpush1.msra.mxu0 0.0
    %426 = vmatprep.subr.mxu0 0.0
    %427 = vmatpush1.msra.mxu0 0.0
    %428 = vmatprep.subr.mxu0 0.0
    %429 = vmatpush1.msra.mxu0 0.0
    %430 = vmatprep.subr.mxu0 0.0
    %431 = vmatpush1.msra.mxu0 0.0
    %432 = vmatprep.subr.mxu0 0.0
    %433 = vmatpush1.msra.mxu0 0.0
    %434 = vmatprep.subr.mxu0 0.0
    %435 = vmatpush1.msra.mxu0 0.0
    %436 = vmatprep.subr.mxu0 0.0
    %437 = vmatpush1.msra.mxu0 0.0
    %438 = vmatprep.subr.mxu0 0.0
    %439 = vmatpush1.msra.mxu0 0.0
    %440 = vmatprep.subr.mxu0 0.0
    %441 = vmatpush1.msra.mxu0 0.0
    %442 = vmatprep.subr.mxu0 0.0
    %443 = vmatpush1.msra.mxu0 0.0
    %444 = vmatprep.subr.mxu0 0.0
    %445 = vmatpush1.msra.mxu0 0.0
    %446 = vmatprep.subr.mxu0 0.0
    %447 = vmatpush1.msra.mxu0 0.0
    %448 = vmatprep.mubr.f32.mxu0 0.0
    %449 = vmatmul.mubr.f32.gmra.mrb[0].mxu0 %v358
    %v450 = vpop.f32.mrb[0].mxu0
    %v451 = vadd.f32 0.0, %v450
    %v452 = vpop.f32.mrb[0].mxu0
    %453 = vmatprep.mubr.f32.mxu0 0.0
    %454 = vmatmul.mubr.f32.gmra.mrb[0].mxu0 %v361
    %v455 = vpop.f32.mrb[0].mxu0
    %v456 = vadd.f32 0.0, %v455
    %v457 = vpop.f32.mrb[0].mxu0
    %458 = vmatprep.mubr.f32.mxu0 0.0
    %459 = vmatmul.mubr.f32.gmra.mrb[0].mxu0 %v364
    %v460 = vpop.f32.mrb[0].mxu0
    %v461 = vadd.f32 0.0, %v460
    %v462 = vpop.f32.mrb[0].mxu0
    %463 = vmatprep.mubr.f32.mxu0 0.0
    %464 = vmatmul.mubr.f32.gmra.mrb[0].mxu0 %v367
    %v465 = vpop.f32.mrb[0].mxu0
    %v466 = vadd.f32 0.0, %v465
    %v467 = vpop.f32.mrb[0].mxu0
    %468 = vmatprep.mubr.f32.mxu0 0.0
    %469 = vmatmul.mubr.f32.gmra.mrb[0].mxu0 %v370
    %v470 = vpop.f32.mrb[0].mxu0
    %v471 = vadd.f32 0.0, %v470
    %v472 = vpop.f32.mrb[0].mxu0
    %473 = vmatprep.mubr.f32.mxu0 0.0
    %474 = vmatmul.mubr.f32.gmra.mrb[0].mxu0 %v373
    %v475 = vpop.f32.mrb[0].mxu0
    %v476 = vadd.f32 0.0, %v475
    %v477 = vpop.f32.mrb[0].mxu0
    %478 = vmatprep.mubr.f32.mxu0 0.0
    %479 = vmatmul.mubr.f32.gmra.mrb[0].mxu0 %v376
    %v480 = vpop.f32.mrb[0].mxu0
    %v481 = vadd.f32 0.0, %v480
    %v482 = vpop.f32.mrb[0].mxu0
    %483 = vmatprep.mubr.f32.mxu0 0.0
    %484 = vmatmul.mubr.f32.gmra.mrb[0].mxu0 %v379
    %v485 = vpop.f32.mrb[0].mxu0
    %v486 = vadd.f32 0.0, %v485
    %v487 = vpop.f32.mrb[0].mxu0
    %488 = vmatprep.mubr.f32.mxu0 0.0
    %489 = vmatmul.mubr.f32.gmra.mrb[0].mxu0 %v382
    %v490 = vpop.f32.mrb[0].mxu0
    %v491 = vadd.f32 0.0, %v490
    %v492 = vpop.f32.mrb[0].mxu0
    %493 = vdwg.mxu0
    %v494 = vmax.f32 %v338, %v451
    %v495 = vmax.f32 %v339, %v456
    %v496 = vmax.f32 %v340, %v461
    %v497 = vmax.f32 %v341, %v466
    %v498 = vmax.f32 %v342, %v471
    %v499 = vmax.f32 %v343, %v476
    %v500 = vmax.f32 %v344, %v481
    %v501 = vmax.f32 %v345, %v486
    %v502 = vmax.f32 %v346, %v491
    %s503 = scalar_lea.vmem %s0, 216
    %v504 = vld [vmem:[%s503] sm:$0xff]
    %v505 = vld [vmem:[%s503 + $0x8] sm:$0xff]
    %v506 = vld [vmem:[%s503 + $0x10] sm:$0xff]
    %v507 = vld [vmem:[%s503 + $0x18] sm:$0xff]
    %v508 = vld [vmem:[%s503 + $0x20] sm:$0xff]
    %v509 = vld [vmem:[%s503 + $0x28] sm:$0xff]
    %v510 = vld [vmem:[%s503 + $0x30] sm:$0xff]
    %v511 = vld [vmem:[%s503 + $0x38] sm:$0xff]
    %v512 = vld [vmem:[%s503 + $0x40] sm:$0xff]
    %v514 = vsel %vm49, %v504, 0
    %v517 = vsel %vm49, %v505, 0
    %v520 = vsel %vm49, %v506, 0
    %v523 = vsel %vm49, %v507, 0
    %v526 = vsel %vm49, %v508, 0
    %v529 = vsel %vm49, %v509, 0
    %v532 = vsel %vm49, %v510, 0
    %v535 = vsel %vm49, %v511, 0
    %v538 = vsel %vm49, %v512, 0
    %540 = vmatprep.subr.mxu0 0.0
    %541 = vmatpush1.msra.mxu0 %v33
    %542 = vmatprep.subr.mxu0 0.0
    %543 = vmatpush1.msra.mxu0 %v34
    %544 = vmatprep.subr.mxu0 0.0
    %545 = vmatpush1.msra.mxu0 %v35
    %546 = vmatprep.subr.mxu0 0.0
    %547 = vmatpush1.msra.mxu0 %v36
    %548 = vmatprep.subr.mxu0 0.0
    %549 = vmatpush1.msra.mxu0 %v37
    %550 = vmatprep.subr.mxu0 0.0
    %551 = vmatpush1.msra.mxu0 %v38
    %552 = vmatprep.subr.mxu0 0.0
    %553 = vmatpush1.msra.mxu0 %v79
    %554 = vmatprep.subr.mxu0 0.0
    %555 = vmatpush1.msra.mxu0 0.0
    %556 = vmatprep.subr.mxu0 0.0
    %557 = vmatpush1.msra.mxu0 0.0
    %558 = vmatprep.subr.mxu0 0.0
    %559 = vmatpush1.msra.mxu0 0.0
    %560 = vmatprep.subr.mxu0 0.0
    %561 = vmatpush1.msra.mxu0 0.0
    %562 = vmatprep.subr.mxu0 0.0
    %563 = vmatpush1.msra.mxu0 0.0
    %564 = vmatprep.subr.mxu0 0.0
    %565 = vmatpush1.msra.mxu0 0.0
    %566 = vmatprep.subr.mxu0 0.0
    %567 = vmatpush1.msra.mxu0 0.0
    %568 = vmatprep.subr.mxu0 0.0
    %569 = vmatpush1.msra.mxu0 0.0
    %570 = vmatprep.subr.mxu0 0.0
    %571 = vmatpush1.msra.mxu0 0.0
    %572 = vmatprep.subr.mxu0 0.0
    %573 = vmatpush1.msra.mxu0 0.0
    %574 = vmatprep.subr.mxu0 0.0
    %575 = vmatpush1.msra.mxu0 0.0
    %576 = vmatprep.subr.mxu0 0.0
    %577 = vmatpush1.msra.mxu0 0.0
    %578 = vmatprep.subr.mxu0 0.0
    %579 = vmatpush1.msra.mxu0 0.0
    %580 = vmatprep.subr.mxu0 0.0
    %581 = vmatpush1.msra.mxu0 0.0
    %582 = vmatprep.subr.mxu0 0.0
    %583 = vmatpush1.msra.mxu0 0.0
    %584 = vmatprep.subr.mxu0 0.0
    %585 = vmatpush1.msra.mxu0 0.0
    %586 = vmatprep.subr.mxu0 0.0
    %587 = vmatpush1.msra.mxu0 0.0
    %588 = vmatprep.subr.mxu0 0.0
    %589 = vmatpush1.msra.mxu0 0.0
    %590 = vmatprep.subr.mxu0 0.0
    %591 = vmatpush1.msra.mxu0 0.0
    %592 = vmatprep.subr.mxu0 0.0
    %593 = vmatpush1.msra.mxu0 0.0
    %594 = vmatprep.subr.mxu0 0.0
    %595 = vmatpush1.msra.mxu0 0.0
    %596 = vmatprep.subr.mxu0 0.0
    %597 = vmatpush1.msra.mxu0 0.0
    %598 = vmatprep.subr.mxu0 0.0
    %599 = vmatpush1.msra.mxu0 0.0
    %600 = vmatprep.subr.mxu0 0.0
    %601 = vmatpush1.msra.mxu0 0.0
    %602 = vmatprep.subr.mxu0 0.0
    %603 = vmatpush1.msra.mxu0 0.0
    %604 = vmatprep.mubr.f32.mxu0 0.0
    %605 = vmatmul.mubr.f32.gmra.mrb[0].mxu0 %v514
    %v606 = vpop.f32.mrb[0].mxu0
    %v607 = vadd.f32 0.0, %v606
    %v608 = vpop.f32.mrb[0].mxu0
    %609 = vmatprep.mubr.f32.mxu0 0.0
    %610 = vmatmul.mubr.f32.gmra.mrb[0].mxu0 %v517
    %v611 = vpop.f32.mrb[0].mxu0
    %v612 = vadd.f32 0.0, %v611
    %v613 = vpop.f32.mrb[0].mxu0
    %614 = vmatprep.mubr.f32.mxu0 0.0
    %615 = vmatmul.mubr.f32.gmra.mrb[0].mxu0 %v520
    %v616 = vpop.f32.mrb[0].mxu0
    %v617 = vadd.f32 0.0, %v616
    %v618 = vpop.f32.mrb[0].mxu0
    %619 = vmatprep.mubr.f32.mxu0 0.0
    %620 = vmatmul.mubr.f32.gmra.mrb[0].mxu0 %v523
    %v621 = vpop.f32.mrb[0].mxu0
    %v622 = vadd.f32 0.0, %v621
    %v623 = vpop.f32.mrb[0].mxu0
    %624 = vmatprep.mubr.f32.mxu0 0.0
    %625 = vmatmul.mubr.f32.gmra.mrb[0].mxu0 %v526
    %v626 = vpop.f32.mrb[0].mxu0
    %v627 = vadd.f32 0.0, %v626
    %v628 = vpop.f32.mrb[0].mxu0
    %629 = vmatprep.mubr.f32.mxu0 0.0
    %630 = vmatmul.mubr.f32.gmra.mrb[0].mxu0 %v529
    %v631 = vpop.f32.mrb[0].mxu0
    %v632 = vadd.f32 0.0, %v631
    %v633 = vpop.f32.mrb[0].mxu0
    %634 = vmatprep.mubr.f32.mxu0 0.0
    %635 = vmatmul.mubr.f32.gmra.mrb[0].mxu0 %v532
    %v636 = vpop.f32.mrb[0].mxu0
    %v637 = vadd.f32 0.0, %v636
    %v638 = vpop.f32.mrb[0].mxu0
    %639 = vmatprep.mubr.f32.mxu0 0.0
    %640 = vmatmul.mubr.f32.gmra.mrb[0].mxu0 %v535
    %v641 = vpop.f32.mrb[0].mxu0
    %v642 = vadd.f32 0.0, %v641
    %v643 = vpop.f32.mrb[0].mxu0
    %644 = vmatprep.mubr.f32.mxu0 0.0
    %645 = vmatmul.mubr.f32.gmra.mrb[0].mxu0 %v538
    %v646 = vpop.f32.mrb[0].mxu0
    %v647 = vadd.f32 0.0, %v646
    %v648 = vpop.f32.mrb[0].mxu0
    %649 = vdwg.mxu0
    %v650 = vmax.f32 %v494, %v607
    %v651 = vmax.f32 %v495, %v612
    %v652 = vmax.f32 %v496, %v617
    %v653 = vmax.f32 %v497, %v622
    %v654 = vmax.f32 %v498, %v627
    %v655 = vmax.f32 %v499, %v632
    %v656 = vmax.f32 %v500, %v637
    %v657 = vmax.f32 %v501, %v642
    %v658 = vmax.f32 %v502, %v647
    %v659 = vld [vmem:[%s2] sm:$0x1]
    %v661 = vlaneseq
    %v662 = vshrl.u32 %v661, 7
    %v663 = vsub.s32 0, %v662
    %v664 = vrot.slane %v659, %v663
    %v666 = vadd.f32 %v650, %v664
    %v667 = vadd.f32 %v651, %v664
    %v668 = vadd.f32 %v652, %v664
    %v669 = vadd.f32 %v653, %v664
    %v670 = vadd.f32 %v654, %v664
    %v671 = vadd.f32 %v655, %v664
    %v672 = vadd.f32 %v656, %v664
    %v673 = vadd.f32 %v657, %v664
    %v674 = vadd.f32 %v658, %v664
    %v675 = vmax.f32 %v666, 0.0
    %v676 = vmax.f32 %v667, 0.0
    %v677 = vmax.f32 %v668, 0.0
    %v678 = vmax.f32 %v669, 0.0
    %v679 = vmax.f32 %v670, 0.0
    %v680 = vmax.f32 %v671, 0.0
    %v681 = vmax.f32 %v672, 0.0
    %v682 = vmax.f32 %v673, 0.0
    %v683 = vmax.f32 %v674, 0.0
    %v684 = vld [vmem:[%s3] sm:$0xff]
    %v685 = vld [vmem:[%s3 + $0x8] sm:$0xff]
    %v686 = vld [vmem:[%s3 + $0x10] sm:$0xff]
    %v687 = vld [vmem:[%s3 + $0x18] sm:$0xff]
    %v689 = vrot.slane %v675, 2
    %vm690 = vcmask 130048
    %v691 = vsel %vm690, %v689, 0
    %693 = vmatprep.subr.mxu0 0.0
    %694 = vmatpush1.msra.mxu0 %v686
    %695 = vmatprep.subr.mxu0 0.0
    %696 = vmatpush1.msra.mxu0 %v687
    %697 = vmatprep.subr.mxu0 0.0
    %698 = vmatpush1.msra.mxu0 0.0
    %699 = vmatprep.subr.mxu0 0.0
    %700 = vmatpush1.msra.mxu0 0.0
    %701 = vmatprep.subr.mxu0 0.0
    %702 = vmatpush1.msra.mxu0 0.0
    %703 = vmatprep.subr.mxu0 0.0
    %704 = vmatpush1.msra.mxu0 0.0
    %705 = vmatprep.subr.mxu0 0.0
    %706 = vmatpush1.msra.mxu0 0.0
    %707 = vmatprep.subr.mxu0 0.0
    %708 = vmatpush1.msra.mxu0 0.0
    %709 = vmatprep.subr.mxu0 0.0
    %710 = vmatpush1.msra.mxu0 0.0
    %711 = vmatprep.subr.mxu0 0.0
    %712 = vmatpush1.msra.mxu0 0.0
    %713 = vmatprep.subr.mxu0 0.0
    %714 = vmatpush1.msra.mxu0 0.0
    %715 = vmatprep.subr.mxu0 0.0
    %716 = vmatpush1.msra.mxu0 0.0
    %717 = vmatprep.subr.mxu0 0.0
    %718 = vmatpush1.msra.mxu0 0.0
    %719 = vmatprep.subr.mxu0 0.0
    %720 = vmatpush1.msra.mxu0 0.0
    %721 = vmatprep.subr.mxu0 0.0
    %722 = vmatpush1.msra.mxu0 0.0
    %723 = vmatprep.subr.mxu0 0.0
    %724 = vmatpush1.msra.mxu0 0.0
    %725 = vmatprep.subr.mxu0 0.0
    %726 = vmatpush1.msra.mxu0 0.0
    %727 = vmatprep.subr.mxu0 0.0
    %728 = vmatpush1.msra.mxu0 0.0
    %729 = vmatprep.subr.mxu0 0.0
    %730 = vmatpush1.msra.mxu0 0.0
    %731 = vmatprep.subr.mxu0 0.0
    %732 = vmatpush1.msra.mxu0 0.0
    %733 = vmatprep.subr.mxu0 0.0
    %734 = vmatpush1.msra.mxu0 0.0
    %735 = vmatprep.subr.mxu0 0.0
    %736 = vmatpush1.msra.mxu0 0.0
    %737 = vmatprep.subr.mxu0 0.0
    %738 = vmatpush1.msra.mxu0 0.0
    %739 = vmatprep.subr.mxu0 0.0
    %740 = vmatpush1.msra.mxu0 0.0
    %741 = vmatprep.subr.mxu0 0.0
    %742 = vmatpush1.msra.mxu0 0.0
    %743 = vmatprep.subr.mxu0 0.0
    %744 = vmatpush1.msra.mxu0 0.0
    %745 = vmatprep.subr.mxu0 0.0
    %746 = vmatpush1.msra.mxu0 0.0
    %747 = vmatprep.subr.mxu0 0.0
    %748 = vmatpush1.msra.mxu0 0.0
    %749 = vmatprep.subr.mxu0 0.0
    %750 = vmatpush1.msra.mxu0 0.0
    %751 = vmatprep.subr.mxu0 0.0
    %752 = vmatpush1.msra.mxu0 0.0
    %753 = vmatprep.subr.mxu0 0.0
    %754 = vmatpush1.msra.mxu0 0.0
    %755 = vmatprep.subr.mxu0 0.0
    %756 = vmatpush1.msra.mxu0 0.0
    %757 = vmatprep.mubr.f32.mxu0 0.0
    %758 = vmatmul.mubr.f32.gmra.mrb[0].mxu0 %v691
    %v759 = vpop.f32.mrb[0].mxu0
    %v760 = vadd.f32 0.0, %v759
    %v761 = vpop.f32.mrb[0].mxu0
    %762 = vdwg.mxu0
    %v763 = vsel %vm690, %v675, 0
    %765 = vmatprep.subr.mxu0 0.0
    %766 = vmatpush1.msra.mxu0 %v684
    %767 = vmatprep.subr.mxu0 0.0
    %768 = vmatpush1.msra.mxu0 %v685
    %769 = vmatprep.subr.mxu0 0.0
    %770 = vmatpush1.msra.mxu0 0.0
    %771 = vmatprep.subr.mxu0 0.0
    %772 = vmatpush1.msra.mxu0 0.0
    %773 = vmatprep.subr.mxu0 0.0
    %774 = vmatpush1.msra.mxu0 0.0
    %775 = vmatprep.subr.mxu0 0.0
    %776 = vmatpush1.msra.mxu0 0.0
    %777 = vmatprep.subr.mxu0 0.0
    %778 = vmatpush1.msra.mxu0 0.0
    %779 = vmatprep.subr.mxu0 0.0
    %780 = vmatpush1.msra.mxu0 0.0
    %781 = vmatprep.subr.mxu0 0.0
    %782 = vmatpush1.msra.mxu0 0.0
    %783 = vmatprep.subr.mxu0 0.0
    %784 = vmatpush1.msra.mxu0 0.0
    %785 = vmatprep.subr.mxu0 0.0
    %786 = vmatpush1.msra.mxu0 0.0
    %787 = vmatprep.subr.mxu0 0.0
    %788 = vmatpush1.msra.mxu0 0.0
    %789 = vmatprep.subr.mxu0 0.0
    %790 = vmatpush1.msra.mxu0 0.0
    %791 = vmatprep.subr.mxu0 0.0
    %792 = vmatpush1.msra.mxu0 0.0
    %793 = vmatprep.subr.mxu0 0.0
    %794 = vmatpush1.msra.mxu0 0.0
    %795 = vmatprep.subr.mxu0 0.0
    %796 = vmatpush1.msra.mxu0 0.0
    %797 = vmatprep.subr.mxu0 0.0
    %798 = vmatpush1.msra.mxu0 0.0
    %799 = vmatprep.subr.mxu0 0.0
    %800 = vmatpush1.msra.mxu0 0.0
    %801 = vmatprep.subr.mxu0 0.0
    %802 = vmatpush1.msra.mxu0 0.0
    %803 = vmatprep.subr.mxu0 0.0
    %804 = vmatpush1.msra.mxu0 0.0
    %805 = vmatprep.subr.mxu0 0.0
    %806 = vmatpush1.msra.mxu0 0.0
    %807 = vmatprep.subr.mxu0 0.0
    %808 = vmatpush1.msra.mxu0 0.0
    %809 = vmatprep.subr.mxu0 0.0
    %810 = vmatpush1.msra.mxu0 0.0
    %811 = vmatprep.subr.mxu0 0.0
    %812 = vmatpush1.msra.mxu0 0.0
    %813 = vmatprep.subr.mxu0 0.0
    %814 = vmatpush1.msra.mxu0 0.0
    %815 = vmatprep.subr.mxu0 0.0
    %816 = vmatpush1.msra.mxu0 0.0
    %817 = vmatprep.subr.mxu0 0.0
    %818 = vmatpush1.msra.mxu0 0.0
    %819 = vmatprep.subr.mxu0 0.0
    %820 = vmatpush1.msra.mxu0 0.0
    %821 = vmatprep.subr.mxu0 0.0
    %822 = vmatpush1.msra.mxu0 0.0
    %823 = vmatprep.subr.mxu0 0.0
    %824 = vmatpush1.msra.mxu0 0.0
    %825 = vmatprep.subr.mxu0 0.0
    %826 = vmatpush1.msra.mxu0 0.0
    %827 = vmatprep.subr.mxu0 0.0
    %828 = vmatpush1.msra.mxu0 0.0
    %829 = vmatprep.mubr.f32.mxu0 0.0
    %830 = vmatmul.mubr.f32.gmra.mrb[0].mxu0 %v763
    %v831 = vpop.f32.mrb[0].mxu0
    %v832 = vadd.f32 %v760, %v831
    %v833 = vpop.f32.mrb[0].mxu0
    %834 = vdwg.mxu0
    %v835 = vld [vmem:[%s3 + $0x20] sm:$0xff]
    %v836 = vld [vmem:[%s3 + $0x28] sm:$0xff]
    %v837 = vrot.slane %v675, 4
    %v838 = vsel %vm690, %v837, 0
    %840 = vmatprep.subr.mxu0 0.0
    %841 = vmatpush1.msra.mxu0 %v835
    %842 = vmatprep.subr.mxu0 0.0
    %843 = vmatpush1.msra.mxu0 %v836
    %844 = vmatprep.subr.mxu0 0.0
    %845 = vmatpush1.msra.mxu0 0.0
    %846 = vmatprep.subr.mxu0 0.0
    %847 = vmatpush1.msra.mxu0 0.0
    %848 = vmatprep.subr.mxu0 0.0
    %849 = vmatpush1.msra.mxu0 0.0
    %850 = vmatprep.subr.mxu0 0.0
    %851 = vmatpush1.msra.mxu0 0.0
    %852 = vmatprep.subr.mxu0 0.0
    %853 = vmatpush1.msra.mxu0 0.0
    %854 = vmatprep.subr.mxu0 0.0
    %855 = vmatpush1.msra.mxu0 0.0
    %856 = vmatprep.subr.mxu0 0.0
    %857 = vmatpush1.msra.mxu0 0.0
    %858 = vmatprep.subr.mxu0 0.0
    %859 = vmatpush1.msra.mxu0 0.0
    %860 = vmatprep.subr.mxu0 0.0
    %861 = vmatpush1.msra.mxu0 0.0
    %862 = vmatprep.subr.mxu0 0.0
    %863 = vmatpush1.msra.mxu0 0.0
    %864 = vmatprep.subr.mxu0 0.0
    %865 = vmatpush1.msra.mxu0 0.0
    %866 = vmatprep.subr.mxu0 0.0
    %867 = vmatpush1.msra.mxu0 0.0
    %868 = vmatprep.subr.mxu0 0.0
    %869 = vmatpush1.msra.mxu0 0.0
    %870 = vmatprep.subr.mxu0 0.0
    %871 = vmatpush1.msra.mxu0 0.0
    %872 = vmatprep.subr.mxu0 0.0
    %873 = vmatpush1.msra.mxu0 0.0
    %874 = vmatprep.subr.mxu0 0.0
    %875 = vmatpush1.msra.mxu0 0.0
    %876 = vmatprep.subr.mxu0 0.0
    %877 = vmatpush1.msra.mxu0 0.0
    %878 = vmatprep.subr.mxu0 0.0
    %879 = vmatpush1.msra.mxu0 0.0
    %880 = vmatprep.subr.mxu0 0.0
    %881 = vmatpush1.msra.mxu0 0.0
    %882 = vmatprep.subr.mxu0 0.0
    %883 = vmatpush1.msra.mxu0 0.0
    %884 = vmatprep.subr.mxu0 0.0
    %885 = vmatpush1.msra.mxu0 0.0
    %886 = vmatprep.subr.mxu0 0.0
    %887 = vmatpush1.msra.mxu0 0.0
    %888 = vmatprep.subr.mxu0 0.0
    %889 = vmatpush1.msra.mxu0 0.0
    %890 = vmatprep.subr.mxu0 0.0
    %891 = vmatpush1.msra.mxu0 0.0
    %892 = vmatprep.subr.mxu0 0.0
    %893 = vmatpush1.msra.mxu0 0.0
    %894 = vmatprep.subr.mxu0 0.0
    %895 = vmatpush1.msra.mxu0 0.0
    %896 = vmatprep.subr.mxu0 0.0
    %897 = vmatpush1.msra.mxu0 0.0
    %898 = vmatprep.subr.mxu0 0.0
    %899 = vmatpush1.msra.mxu0 0.0
    %900 = vmatprep.subr.mxu0 0.0
    %901 = vmatpush1.msra.mxu0 0.0
    %902 = vmatprep.subr.mxu0 0.0
    %903 = vmatpush1.msra.mxu0 0.0
    %904 = vmatprep.mubr.f32.mxu0 0.0
    %905 = vmatmul.mubr.f32.gmra.mrb[0].mxu0 %v838
    %v906 = vpop.f32.mrb[0].mxu0
    %v907 = vadd.f32 0.0, %v906
    %v908 = vpop.f32.mrb[0].mxu0
    %909 = vdwg.mxu0
    %v910 = vadd.f32 %v832, %v907
    %v911 = vld [vmem:[%s3 + $0x30] sm:$0xff]
    %v912 = vld [vmem:[%s3 + $0x38] sm:$0xff]
    %v913 = vrot.slane %v675, 6
    %v914 = vsel %vm690, %v913, 0
    %916 = vmatprep.subr.mxu0 0.0
    %917 = vmatpush1.msra.mxu0 %v911
    %918 = vmatprep.subr.mxu0 0.0
    %919 = vmatpush1.msra.mxu0 %v912
    %920 = vmatprep.subr.mxu0 0.0
    %921 = vmatpush1.msra.mxu0 0.0
    %922 = vmatprep.subr.mxu0 0.0
    %923 = vmatpush1.msra.mxu0 0.0
    %924 = vmatprep.subr.mxu0 0.0
    %925 = vmatpush1.msra.mxu0 0.0
    %926 = vmatprep.subr.mxu0 0.0
    %927 = vmatpush1.msra.mxu0 0.0
    %928 = vmatprep.subr.mxu0 0.0
    %929 = vmatpush1.msra.mxu0 0.0
    %930 = vmatprep.subr.mxu0 0.0
    %931 = vmatpush1.msra.mxu0 0.0
    %932 = vmatprep.subr.mxu0 0.0
    %933 = vmatpush1.msra.mxu0 0.0
    %934 = vmatprep.subr.mxu0 0.0
    %935 = vmatpush1.msra.mxu0 0.0
    %936 = vmatprep.subr.mxu0 0.0
    %937 = vmatpush1.msra.mxu0 0.0
    %938 = vmatprep.subr.mxu0 0.0
    %939 = vmatpush1.msra.mxu0 0.0
    %940 = vmatprep.subr.mxu0 0.0
    %941 = vmatpush1.msra.mxu0 0.0
    %942 = vmatprep.subr.mxu0 0.0
    %943 = vmatpush1.msra.mxu0 0.0
    %944 = vmatprep.subr.mxu0 0.0
    %945 = vmatpush1.msra.mxu0 0.0
    %946 = vmatprep.subr.mxu0 0.0
    %947 = vmatpush1.msra.mxu0 0.0
    %948 = vmatprep.subr.mxu0 0.0
    %949 = vmatpush1.msra.mxu0 0.0
    %950 = vmatprep.subr.mxu0 0.0
    %951 = vmatpush1.msra.mxu0 0.0
    %952 = vmatprep.subr.mxu0 0.0
    %953 = vmatpush1.msra.mxu0 0.0
    %954 = vmatprep.subr.mxu0 0.0
    %955 = vmatpush1.msra.mxu0 0.0
    %956 = vmatprep.subr.mxu0 0.0
    %957 = vmatpush1.msra.mxu0 0.0
    %958 = vmatprep.subr.mxu0 0.0
    %959 = vmatpush1.msra.mxu0 0.0
    %960 = vmatprep.subr.mxu0 0.0
    %961 = vmatpush1.msra.mxu0 0.0
    %962 = vmatprep.subr.mxu0 0.0
    %963 = vmatpush1.msra.mxu0 0.0
    %964 = vmatprep.subr.mxu0 0.0
    %965 = vmatpush1.msra.mxu0 0.0
    %966 = vmatprep.subr.mxu0 0.0
    %967 = vmatpush1.msra.mxu0 0.0
    %968 = vmatprep.subr.mxu0 0.0
    %969 = vmatpush1.msra.mxu0 0.0
    %970 = vmatprep.subr.mxu0 0.0
    %971 = vmatpush1.msra.mxu0 0.0
    %972 = vmatprep.subr.mxu0 0.0
    %973 = vmatpush1.msra.mxu0 0.0
    %974 = vmatprep.subr.mxu0 0.0
    %975 = vmatpush1.msra.mxu0 0.0
    %976 = vmatprep.subr.mxu0 0.0
    %977 = vmatpush1.msra.mxu0 0.0
    %978 = vmatprep.subr.mxu0 0.0
    %979 = vmatpush1.msra.mxu0 0.0
    %980 = vmatprep.mubr.f32.mxu0 0.0
    %981 = vmatmul.mubr.f32.gmra.mrb[0].mxu0 %v914
    %v982 = vpop.f32.mrb[0].mxu0
    %v983 = vadd.f32 0.0, %v982
    %v984 = vpop.f32.mrb[0].mxu0
    %985 = vdwg.mxu0
    %v986 = vadd.f32 %v910, %v983
    %v987 = vld [vmem:[%s3 + $0x40] sm:$0xff]
    %v988 = vld [vmem:[%s3 + $0x48] sm:$0xff]
    %v990 = vsel %vm690, %v676, 0
    %992 = vmatprep.subr.mxu0 0.0
    %993 = vmatpush1.msra.mxu0 %v987
    %994 = vmatprep.subr.mxu0 0.0
    %995 = vmatpush1.msra.mxu0 %v988
    %996 = vmatprep.subr.mxu0 0.0
    %997 = vmatpush1.msra.mxu0 0.0
    %998 = vmatprep.subr.mxu0 0.0
    %999 = vmatpush1.msra.mxu0 0.0
    %1000 = vmatprep.subr.mxu0 0.0
    %1001 = vmatpush1.msra.mxu0 0.0
    %1002 = vmatprep.subr.mxu0 0.0
    %1003 = vmatpush1.msra.mxu0 0.0
    %1004 = vmatprep.subr.mxu0 0.0
    %1005 = vmatpush1.msra.mxu0 0.0
    %1006 = vmatprep.subr.mxu0 0.0
    %1007 = vmatpush1.msra.mxu0 0.0
    %1008 = vmatprep.subr.mxu0 0.0
    %1009 = vmatpush1.msra.mxu0 0.0
    %1010 = vmatprep.subr.mxu0 0.0
    %1011 = vmatpush1.msra.mxu0 0.0
    %1012 = vmatprep.subr.mxu0 0.0
    %1013 = vmatpush1.msra.mxu0 0.0
    %1014 = vmatprep.subr.mxu0 0.0
    %1015 = vmatpush1.msra.mxu0 0.0
    %1016 = vmatprep.subr.mxu0 0.0
    %1017 = vmatpush1.msra.mxu0 0.0
    %1018 = vmatprep.subr.mxu0 0.0
    %1019 = vmatpush1.msra.mxu0 0.0
    %1020 = vmatprep.subr.mxu0 0.0
    %1021 = vmatpush1.msra.mxu0 0.0
    %1022 = vmatprep.subr.mxu0 0.0
    %1023 = vmatpush1.msra.mxu0 0.0
    %1024 = vmatprep.subr.mxu0 0.0
    %1025 = vmatpush1.msra.mxu0 0.0
    %1026 = vmatprep.subr.mxu0 0.0
    %1027 = vmatpush1.msra.mxu0 0.0
    %1028 = vmatprep.subr.mxu0 0.0
    %1029 = vmatpush1.msra.mxu0 0.0
    %1030 = vmatprep.subr.mxu0 0.0
    %1031 = vmatpush1.msra.mxu0 0.0
    %1032 = vmatprep.subr.mxu0 0.0
    %1033 = vmatpush1.msra.mxu0 0.0
    %1034 = vmatprep.subr.mxu0 0.0
    %1035 = vmatpush1.msra.mxu0 0.0
    %1036 = vmatprep.subr.mxu0 0.0
    %1037 = vmatpush1.msra.mxu0 0.0
    %1038 = vmatprep.subr.mxu0 0.0
    %1039 = vmatpush1.msra.mxu0 0.0
    %1040 = vmatprep.subr.mxu0 0.0
    %1041 = vmatpush1.msra.mxu0 0.0
    %1042 = vmatprep.subr.mxu0 0.0
    %1043 = vmatpush1.msra.mxu0 0.0
    %1044 = vmatprep.subr.mxu0 0.0
    %1045 = vmatpush1.msra.mxu0 0.0
    %1046 = vmatprep.subr.mxu0 0.0
    %1047 = vmatpush1.msra.mxu0 0.0
    %1048 = vmatprep.subr.mxu0 0.0
    %1049 = vmatpush1.msra.mxu0 0.0
    %1050 = vmatprep.subr.mxu0 0.0
    %1051 = vmatpush1.msra.mxu0 0.0
    %1052 = vmatprep.subr.mxu0 0.0
    %1053 = vmatpush1.msra.mxu0 0.0
    %1054 = vmatprep.subr.mxu0 0.0
    %1055 = vmatpush1.msra.mxu0 0.0
    %1056 = vmatprep.mubr.f32.mxu0 0.0
    %1057 = vmatmul.mubr.f32.gmra.mrb[0].mxu0 %v990
    %v1058 = vpop.f32.mrb[0].mxu0
    %v1059 = vadd.f32 0.0, %v1058
    %v1060 = vpop.f32.mrb[0].mxu0
    %1061 = vdwg.mxu0
    %v1062 = vadd.f32 %v986, %v1059
    %v1063 = vld [vmem:[%s3 + $0x50] sm:$0xff]
    %v1064 = vld [vmem:[%s3 + $0x58] sm:$0xff]
    %v1065 = vrot.slane %v676, 2
    %v1066 = vsel %vm690, %v1065, 0
    %1068 = vmatprep.subr.mxu0 0.0
    %1069 = vmatpush1.msra.mxu0 %v1063
    %1070 = vmatprep.subr.mxu0 0.0
    %1071 = vmatpush1.msra.mxu0 %v1064
    %1072 = vmatprep.subr.mxu0 0.0
    %1073 = vmatpush1.msra.mxu0 0.0
    %1074 = vmatprep.subr.mxu0 0.0
    %1075 = vmatpush1.msra.mxu0 0.0
    %1076 = vmatprep.subr.mxu0 0.0
    %1077 = vmatpush1.msra.mxu0 0.0
    %1078 = vmatprep.subr.mxu0 0.0
    %1079 = vmatpush1.msra.mxu0 0.0
    %1080 = vmatprep.subr.mxu0 0.0
    %1081 = vmatpush1.msra.mxu0 0.0
    %1082 = vmatprep.subr.mxu0 0.0
    %1083 = vmatpush1.msra.mxu0 0.0
    %1084 = vmatprep.subr.mxu0 0.0
    %1085 = vmatpush1.msra.mxu0 0.0
    %1086 = vmatprep.subr.mxu0 0.0
    %1087 = vmatpush1.msra.mxu0 0.0
    %1088 = vmatprep.subr.mxu0 0.0
    %1089 = vmatpush1.msra.mxu0 0.0
    %1090 = vmatprep.subr.mxu0 0.0
    %1091 = vmatpush1.msra.mxu0 0.0
    %1092 = vmatprep.subr.mxu0 0.0
    %1093 = vmatpush1.msra.mxu0 0.0
    %1094 = vmatprep.subr.mxu0 0.0
    %1095 = vmatpush1.msra.mxu0 0.0
    %1096 = vmatprep.subr.mxu0 0.0
    %1097 = vmatpush1.msra.mxu0 0.0
    %1098 = vmatprep.subr.mxu0 0.0
    %1099 = vmatpush1.msra.mxu0 0.0
    %1100 = vmatprep.subr.mxu0 0.0
    %1101 = vmatpush1.msra.mxu0 0.0
    %1102 = vmatprep.subr.mxu0 0.0
    %1103 = vmatpush1.msra.mxu0 0.0
    %1104 = vmatprep.subr.mxu0 0.0
    %1105 = vmatpush1.msra.mxu0 0.0
    %1106 = vmatprep.subr.mxu0 0.0
    %1107 = vmatpush1.msra.mxu0 0.0
    %1108 = vmatprep.subr.mxu0 0.0
    %1109 = vmatpush1.msra.mxu0 0.0
    %1110 = vmatprep.subr.mxu0 0.0
    %1111 = vmatpush1.msra.mxu0 0.0
    %1112 = vmatprep.subr.mxu0 0.0
    %1113 = vmatpush1.msra.mxu0 0.0
    %1114 = vmatprep.subr.mxu0 0.0
    %1115 = vmatpush1.msra.mxu0 0.0
    %1116 = vmatprep.subr.mxu0 0.0
    %1117 = vmatpush1.msra.mxu0 0.0
    %1118 = vmatprep.subr.mxu0 0.0
    %1119 = vmatpush1.msra.mxu0 0.0
    %1120 = vmatprep.subr.mxu0 0.0
    %1121 = vmatpush1.msra.mxu0 0.0
    %1122 = vmatprep.subr.mxu0 0.0
    %1123 = vmatpush1.msra.mxu0 0.0
    %1124 = vmatprep.subr.mxu0 0.0
    %1125 = vmatpush1.msra.mxu0 0.0
    %1126 = vmatprep.subr.mxu0 0.0
    %1127 = vmatpush1.msra.mxu0 0.0
    %1128 = vmatprep.subr.mxu0 0.0
    %1129 = vmatpush1.msra.mxu0 0.0
    %1130 = vmatprep.subr.mxu0 0.0
    %1131 = vmatpush1.msra.mxu0 0.0
    %1132 = vmatprep.mubr.f32.mxu0 0.0
    %1133 = vmatmul.mubr.f32.gmra.mrb[0].mxu0 %v1066
    %v1134 = vpop.f32.mrb[0].mxu0
    %v1135 = vadd.f32 0.0, %v1134
    %v1136 = vpop.f32.mrb[0].mxu0
    %1137 = vdwg.mxu0
    %v1138 = vadd.f32 %v1062, %v1135
    %v1139 = vld [vmem:[%s3 + $0x60] sm:$0xff]
    %v1140 = vld [vmem:[%s3 + $0x68] sm:$0xff]
    %v1141 = vrot.slane %v676, 4
    %v1142 = vsel %vm690, %v1141, 0
    %1144 = vmatprep.subr.mxu0 0.0
    %1145 = vmatpush1.msra.mxu0 %v1139
    %1146 = vmatprep.subr.mxu0 0.0
    %1147 = vmatpush1.msra.mxu0 %v1140
    %1148 = vmatprep.subr.mxu0 0.0
    %1149 = vmatpush1.msra.mxu0 0.0
    %1150 = vmatprep.subr.mxu0 0.0
    %1151 = vmatpush1.msra.mxu0 0.0
    %1152 = vmatprep.subr.mxu0 0.0
    %1153 = vmatpush1.msra.mxu0 0.0
    %1154 = vmatprep.subr.mxu0 0.0
    %1155 = vmatpush1.msra.mxu0 0.0
    %1156 = vmatprep.subr.mxu0 0.0
    %1157 = vmatpush1.msra.mxu0 0.0
    %1158 = vmatprep.subr.mxu0 0.0
    %1159 = vmatpush1.msra.mxu0 0.0
    %1160 = vmatprep.subr.mxu0 0.0
    %1161 = vmatpush1.msra.mxu0 0.0
    %1162 = vmatprep.subr.mxu0 0.0
    %1163 = vmatpush1.msra.mxu0 0.0
    %1164 = vmatprep.subr.mxu0 0.0
    %1165 = vmatpush1.msra.mxu0 0.0
    %1166 = vmatprep.subr.mxu0 0.0
    %1167 = vmatpush1.msra.mxu0 0.0
    %1168 = vmatprep.subr.mxu0 0.0
    %1169 = vmatpush1.msra.mxu0 0.0
    %1170 = vmatprep.subr.mxu0 0.0
    %1171 = vmatpush1.msra.mxu0 0.0
    %1172 = vmatprep.subr.mxu0 0.0
    %1173 = vmatpush1.msra.mxu0 0.0
    %1174 = vmatprep.subr.mxu0 0.0
    %1175 = vmatpush1.msra.mxu0 0.0
    %1176 = vmatprep.subr.mxu0 0.0
    %1177 = vmatpush1.msra.mxu0 0.0
    %1178 = vmatprep.subr.mxu0 0.0
    %1179 = vmatpush1.msra.mxu0 0.0
    %1180 = vmatprep.subr.mxu0 0.0
    %1181 = vmatpush1.msra.mxu0 0.0
    %1182 = vmatprep.subr.mxu0 0.0
    %1183 = vmatpush1.msra.mxu0 0.0
    %1184 = vmatprep.subr.mxu0 0.0
    %1185 = vmatpush1.msra.mxu0 0.0
    %1186 = vmatprep.subr.mxu0 0.0
    %1187 = vmatpush1.msra.mxu0 0.0
    %1188 = vmatprep.subr.mxu0 0.0
    %1189 = vmatpush1.msra.mxu0 0.0
    %1190 = vmatprep.subr.mxu0 0.0
    %1191 = vmatpush1.msra.mxu0 0.0
    %1192 = vmatprep.subr.mxu0 0.0
    %1193 = vmatpush1.msra.mxu0 0.0
    %1194 = vmatprep.subr.mxu0 0.0
    %1195 = vmatpush1.msra.mxu0 0.0
    %1196 = vmatprep.subr.mxu0 0.0
    %1197 = vmatpush1.msra.mxu0 0.0
    %1198 = vmatprep.subr.mxu0 0.0
    %1199 = vmatpush1.msra.mxu0 0.0
    %1200 = vmatprep.subr.mxu0 0.0
    %1201 = vmatpush1.msra.mxu0 0.0
    %1202 = vmatprep.subr.mxu0 0.0
    %1203 = vmatpush1.msra.mxu0 0.0
    %1204 = vmatprep.subr.mxu0 0.0
    %1205 = vmatpush1.msra.mxu0 0.0
    %1206 = vmatprep.subr.mxu0 0.0
    %1207 = vmatpush1.msra.mxu0 0.0
    %1208 = vmatprep.mubr.f32.mxu0 0.0
    %1209 = vmatmul.mubr.f32.gmra.mrb[0].mxu0 %v1142
    %v1210 = vpop.f32.mrb[0].mxu0
    %v1211 = vadd.f32 0.0, %v1210
    %v1212 = vpop.f32.mrb[0].mxu0
    %1213 = vdwg.mxu0
    %v1214 = vadd.f32 %v1138, %v1211
    %v1215 = vld [vmem:[%s3 + $0x70] sm:$0xff]
    %v1216 = vld [vmem:[%s3 + $0x78] sm:$0xff]
    %v1217 = vrot.slane %v676, 6
    %v1218 = vsel %vm690, %v1217, 0
    %1220 = vmatprep.subr.mxu0 0.0
    %1221 = vmatpush1.msra.mxu0 %v1215
    %1222 = vmatprep.subr.mxu0 0.0
    %1223 = vmatpush1.msra.mxu0 %v1216
    %1224 = vmatprep.subr.mxu0 0.0
    %1225 = vmatpush1.msra.mxu0 0.0
    %1226 = vmatprep.subr.mxu0 0.0
    %1227 = vmatpush1.msra.mxu0 0.0
    %1228 = vmatprep.subr.mxu0 0.0
    %1229 = vmatpush1.msra.mxu0 0.0
    %1230 = vmatprep.subr.mxu0 0.0
    %1231 = vmatpush1.msra.mxu0 0.0
    %1232 = vmatprep.subr.mxu0 0.0
    %1233 = vmatpush1.msra.mxu0 0.0
    %1234 = vmatprep.subr.mxu0 0.0
    %1235 = vmatpush1.msra.mxu0 0.0
    %1236 = vmatprep.subr.mxu0 0.0
    %1237 = vmatpush1.msra.mxu0 0.0
    %1238 = vmatprep.subr.mxu0 0.0
    %1239 = vmatpush1.msra.mxu0 0.0
    %1240 = vmatprep.subr.mxu0 0.0
    %1241 = vmatpush1.msra.mxu0 0.0
    %1242 = vmatprep.subr.mxu0 0.0
    %1243 = vmatpush1.msra.mxu0 0.0
    %1244 = vmatprep.subr.mxu0 0.0
    %1245 = vmatpush1.msra.mxu0 0.0
    %1246 = vmatprep.subr.mxu0 0.0
    %1247 = vmatpush1.msra.mxu0 0.0
    %1248 = vmatprep.subr.mxu0 0.0
    %1249 = vmatpush1.msra.mxu0 0.0
    %1250 = vmatprep.subr.mxu0 0.0
    %1251 = vmatpush1.msra.mxu0 0.0
    %1252 = vmatprep.subr.mxu0 0.0
    %1253 = vmatpush1.msra.mxu0 0.0
    %1254 = vmatprep.subr.mxu0 0.0
    %1255 = vmatpush1.msra.mxu0 0.0
    %1256 = vmatprep.subr.mxu0 0.0
    %1257 = vmatpush1.msra.mxu0 0.0
    %1258 = vmatprep.subr.mxu0 0.0
    %1259 = vmatpush1.msra.mxu0 0.0
    %1260 = vmatprep.subr.mxu0 0.0
    %1261 = vmatpush1.msra.mxu0 0.0
    %1262 = vmatprep.subr.mxu0 0.0
    %1263 = vmatpush1.msra.mxu0 0.0
    %1264 = vmatprep.subr.mxu0 0.0
    %1265 = vmatpush1.msra.mxu0 0.0
    %1266 = vmatprep.subr.mxu0 0.0
    %1267 = vmatpush1.msra.mxu0 0.0
    %1268 = vmatprep.subr.mxu0 0.0
    %1269 = vmatpush1.msra.mxu0 0.0
    %1270 = vmatprep.subr.mxu0 0.0
    %1271 = vmatpush1.msra.mxu0 0.0
    %1272 = vmatprep.subr.mxu0 0.0
    %1273 = vmatpush1.msra.mxu0 0.0
    %1274 = vmatprep.subr.mxu0 0.0
    %1275 = vmatpush1.msra.mxu0 0.0
    %1276 = vmatprep.subr.mxu0 0.0
    %1277 = vmatpush1.msra.mxu0 0.0
    %1278 = vmatprep.subr.mxu0 0.0
    %1279 = vmatpush1.msra.mxu0 0.0
    %1280 = vmatprep.subr.mxu0 0.0
    %1281 = vmatpush1.msra.mxu0 0.0
    %1282 = vmatprep.subr.mxu0 0.0
    %1283 = vmatpush1.msra.mxu0 0.0
    %1284 = vmatprep.mubr.f32.mxu0 0.0
    %1285 = vmatmul.mubr.f32.gmra.mrb[0].mxu0 %v1218
    %v1286 = vpop.f32.mrb[0].mxu0
    %v1287 = vadd.f32 0.0, %v1286
    %v1288 = vpop.f32.mrb[0].mxu0
    %1289 = vdwg.mxu0
    %v1290 = vadd.f32 %v1214, %v1287
    %v1291 = vld [vmem:[%s3 + $0x80] sm:$0xff]
    %v1292 = vld [vmem:[%s3 + $0x88] sm:$0xff]
    %v1294 = vsel %vm690, %v677, 0
    %1296 = vmatprep.subr.mxu0 0.0
    %1297 = vmatpush1.msra.mxu0 %v1291
    %1298 = vmatprep.subr.mxu0 0.0
    %1299 = vmatpush1.msra.mxu0 %v1292
    %1300 = vmatprep.subr.mxu0 0.0
    %1301 = vmatpush1.msra.mxu0 0.0
    %1302 = vmatprep.subr.mxu0 0.0
    %1303 = vmatpush1.msra.mxu0 0.0
    %1304 = vmatprep.subr.mxu0 0.0
    %1305 = vmatpush1.msra.mxu0 0.0
    %1306 = vmatprep.subr.mxu0 0.0
    %1307 = vmatpush1.msra.mxu0 0.0
    %1308 = vmatprep.subr.mxu0 0.0
    %1309 = vmatpush1.msra.mxu0 0.0
    %1310 = vmatprep.subr.mxu0 0.0
    %1311 = vmatpush1.msra.mxu0 0.0
    %1312 = vmatprep.subr.mxu0 0.0
    %1313 = vmatpush1.msra.mxu0 0.0
    %1314 = vmatprep.subr.mxu0 0.0
    %1315 = vmatpush1.msra.mxu0 0.0
    %1316 = vmatprep.subr.mxu0 0.0
    %1317 = vmatpush1.msra.mxu0 0.0
    %1318 = vmatprep.subr.mxu0 0.0
    %1319 = vmatpush1.msra.mxu0 0.0
    %1320 = vmatprep.subr.mxu0 0.0
    %1321 = vmatpush1.msra.mxu0 0.0
    %1322 = vmatprep.subr.mxu0 0.0
    %1323 = vmatpush1.msra.mxu0 0.0
    %1324 = vmatprep.subr.mxu0 0.0
    %1325 = vmatpush1.msra.mxu0 0.0
    %1326 = vmatprep.subr.mxu0 0.0
    %1327 = vmatpush1.msra.mxu0 0.0
    %1328 = vmatprep.subr.mxu0 0.0
    %1329 = vmatpush1.msra.mxu0 0.0
    %1330 = vmatprep.subr.mxu0 0.0
    %1331 = vmatpush1.msra.mxu0 0.0
    %1332 = vmatprep.subr.mxu0 0.0
    %1333 = vmatpush1.msra.mxu0 0.0
    %1334 = vmatprep.subr.mxu0 0.0
    %1335 = vmatpush1.msra.mxu0 0.0
    %1336 = vmatprep.subr.mxu0 0.0
    %1337 = vmatpush1.msra.mxu0 0.0
    %1338 = vmatprep.subr.mxu0 0.0
    %1339 = vmatpush1.msra.mxu0 0.0
    %1340 = vmatprep.subr.mxu0 0.0
    %1341 = vmatpush1.msra.mxu0 0.0
    %1342 = vmatprep.subr.mxu0 0.0
    %1343 = vmatpush1.msra.mxu0 0.0
    %1344 = vmatprep.subr.mxu0 0.0
    %1345 = vmatpush1.msra.mxu0 0.0
    %1346 = vmatprep.subr.mxu0 0.0
    %1347 = vmatpush1.msra.mxu0 0.0
    %1348 = vmatprep.subr.mxu0 0.0
    %1349 = vmatpush1.msra.mxu0 0.0
    %1350 = vmatprep.subr.mxu0 0.0
    %1351 = vmatpush1.msra.mxu0 0.0
    %1352 = vmatprep.subr.mxu0 0.0
    %1353 = vmatpush1.msra.mxu0 0.0
    %1354 = vmatprep.subr.mxu0 0.0
    %1355 = vmatpush1.msra.mxu0 0.0
    %1356 = vmatprep.subr.mxu0 0.0
    %1357 = vmatpush1.msra.mxu0 0.0
    %1358 = vmatprep.subr.mxu0 0.0
    %1359 = vmatpush1.msra.mxu0 0.0
    %1360 = vmatprep.mubr.f32.mxu0 0.0
    %1361 = vmatmul.mubr.f32.gmra.mrb[0].mxu0 %v1294
    %v1362 = vpop.f32.mrb[0].mxu0
    %v1363 = vadd.f32 0.0, %v1362
    %v1364 = vpop.f32.mrb[0].mxu0
    %1365 = vdwg.mxu0
    %v1366 = vadd.f32 %v1290, %v1363
    %v1367 = vld [vmem:[%s3 + $0x90] sm:$0xff]
    %v1368 = vld [vmem:[%s3 + $0x98] sm:$0xff]
    %v1369 = vrot.slane %v677, 2
    %v1370 = vsel %vm690, %v1369, 0
    %1372 = vmatprep.subr.mxu0 0.0
    %1373 = vmatpush1.msra.mxu0 %v1367
    %1374 = vmatprep.subr.mxu0 0.0
    %1375 = vmatpush1.msra.mxu0 %v1368
    %1376 = vmatprep.subr.mxu0 0.0
    %1377 = vmatpush1.msra.mxu0 0.0
    %1378 = vmatprep.subr.mxu0 0.0
    %1379 = vmatpush1.msra.mxu0 0.0
    %1380 = vmatprep.subr.mxu0 0.0
    %1381 = vmatpush1.msra.mxu0 0.0
    %1382 = vmatprep.subr.mxu0 0.0
    %1383 = vmatpush1.msra.mxu0 0.0
    %1384 = vmatprep.subr.mxu0 0.0
    %1385 = vmatpush1.msra.mxu0 0.0
    %1386 = vmatprep.subr.mxu0 0.0
    %1387 = vmatpush1.msra.mxu0 0.0
    %1388 = vmatprep.subr.mxu0 0.0
    %1389 = vmatpush1.msra.mxu0 0.0
    %1390 = vmatprep.subr.mxu0 0.0
    %1391 = vmatpush1.msra.mxu0 0.0
    %1392 = vmatprep.subr.mxu0 0.0
    %1393 = vmatpush1.msra.mxu0 0.0
    %1394 = vmatprep.subr.mxu0 0.0
    %1395 = vmatpush1.msra.mxu0 0.0
    %1396 = vmatprep.subr.mxu0 0.0
    %1397 = vmatpush1.msra.mxu0 0.0
    %1398 = vmatprep.subr.mxu0 0.0
    %1399 = vmatpush1.msra.mxu0 0.0
    %1400 = vmatprep.subr.mxu0 0.0
    %1401 = vmatpush1.msra.mxu0 0.0
    %1402 = vmatprep.subr.mxu0 0.0
    %1403 = vmatpush1.msra.mxu0 0.0
    %1404 = vmatprep.subr.mxu0 0.0
    %1405 = vmatpush1.msra.mxu0 0.0
    %1406 = vmatprep.subr.mxu0 0.0
    %1407 = vmatpush1.msra.mxu0 0.0
    %1408 = vmatprep.subr.mxu0 0.0
    %1409 = vmatpush1.msra.mxu0 0.0
    %1410 = vmatprep.subr.mxu0 0.0
    %1411 = vmatpush1.msra.mxu0 0.0
    %1412 = vmatprep.subr.mxu0 0.0
    %1413 = vmatpush1.msra.mxu0 0.0
    %1414 = vmatprep.subr.mxu0 0.0
    %1415 = vmatpush1.msra.mxu0 0.0
    %1416 = vmatprep.subr.mxu0 0.0
    %1417 = vmatpush1.msra.mxu0 0.0
    %1418 = vmatprep.subr.mxu0 0.0
    %1419 = vmatpush1.msra.mxu0 0.0
    %1420 = vmatprep.subr.mxu0 0.0
    %1421 = vmatpush1.msra.mxu0 0.0
    %1422 = vmatprep.subr.mxu0 0.0
    %1423 = vmatpush1.msra.mxu0 0.0
    %1424 = vmatprep.subr.mxu0 0.0
    %1425 = vmatpush1.msra.mxu0 0.0
    %1426 = vmatprep.subr.mxu0 0.0
    %1427 = vmatpush1.msra.mxu0 0.0
    %1428 = vmatprep.subr.mxu0 0.0
    %1429 = vmatpush1.msra.mxu0 0.0
    %1430 = vmatprep.subr.mxu0 0.0
    %1431 = vmatpush1.msra.mxu0 0.0
    %1432 = vmatprep.subr.mxu0 0.0
    %1433 = vmatpush1.msra.mxu0 0.0
    %1434 = vmatprep.subr.mxu0 0.0
    %1435 = vmatpush1.msra.mxu0 0.0
    %1436 = vmatprep.mubr.f32.mxu0 0.0
    %1437 = vmatmul.mubr.f32.gmra.mrb[0].mxu0 %v1370
    %v1438 = vpop.f32.mrb[0].mxu0
    %v1439 = vadd.f32 0.0, %v1438
    %v1440 = vpop.f32.mrb[0].mxu0
    %1441 = vdwg.mxu0
    %v1442 = vadd.f32 %v1366, %v1439
    %v1443 = vld [vmem:[%s3 + $0xa0] sm:$0xff]
    %v1444 = vld [vmem:[%s3 + $0xa8] sm:$0xff]
    %v1445 = vrot.slane %v677, 4
    %v1446 = vsel %vm690, %v1445, 0
    %1448 = vmatprep.subr.mxu0 0.0
    %1449 = vmatpush1.msra.mxu0 %v1443
    %1450 = vmatprep.subr.mxu0 0.0
    %1451 = vmatpush1.msra.mxu0 %v1444
    %1452 = vmatprep.subr.mxu0 0.0
    %1453 = vmatpush1.msra.mxu0 0.0
    %1454 = vmatprep.subr.mxu0 0.0
    %1455 = vmatpush1.msra.mxu0 0.0
    %1456 = vmatprep.subr.mxu0 0.0
    %1457 = vmatpush1.msra.mxu0 0.0
    %1458 = vmatprep.subr.mxu0 0.0
    %1459 = vmatpush1.msra.mxu0 0.0
    %1460 = vmatprep.subr.mxu0 0.0
    %1461 = vmatpush1.msra.mxu0 0.0
    %1462 = vmatprep.subr.mxu0 0.0
    %1463 = vmatpush1.msra.mxu0 0.0
    %1464 = vmatprep.subr.mxu0 0.0
    %1465 = vmatpush1.msra.mxu0 0.0
    %1466 = vmatprep.subr.mxu0 0.0
    %1467 = vmatpush1.msra.mxu0 0.0
    %1468 = vmatprep.subr.mxu0 0.0
    %1469 = vmatpush1.msra.mxu0 0.0
    %1470 = vmatprep.subr.mxu0 0.0
    %1471 = vmatpush1.msra.mxu0 0.0
    %1472 = vmatprep.subr.mxu0 0.0
    %1473 = vmatpush1.msra.mxu0 0.0
    %1474 = vmatprep.subr.mxu0 0.0
    %1475 = vmatpush1.msra.mxu0 0.0
    %1476 = vmatprep.subr.mxu0 0.0
    %1477 = vmatpush1.msra.mxu0 0.0
    %1478 = vmatprep.subr.mxu0 0.0
    %1479 = vmatpush1.msra.mxu0 0.0
    %1480 = vmatprep.subr.mxu0 0.0
    %1481 = vmatpush1.msra.mxu0 0.0
    %1482 = vmatprep.subr.mxu0 0.0
    %1483 = vmatpush1.msra.mxu0 0.0
    %1484 = vmatprep.subr.mxu0 0.0
    %1485 = vmatpush1.msra.mxu0 0.0
    %1486 = vmatprep.subr.mxu0 0.0
    %1487 = vmatpush1.msra.mxu0 0.0
    %1488 = vmatprep.subr.mxu0 0.0
    %1489 = vmatpush1.msra.mxu0 0.0
    %1490 = vmatprep.subr.mxu0 0.0
    %1491 = vmatpush1.msra.mxu0 0.0
    %1492 = vmatprep.subr.mxu0 0.0
    %1493 = vmatpush1.msra.mxu0 0.0
    %1494 = vmatprep.subr.mxu0 0.0
    %1495 = vmatpush1.msra.mxu0 0.0
    %1496 = vmatprep.subr.mxu0 0.0
    %1497 = vmatpush1.msra.mxu0 0.0
    %1498 = vmatprep.subr.mxu0 0.0
    %1499 = vmatpush1.msra.mxu0 0.0
    %1500 = vmatprep.subr.mxu0 0.0
    %1501 = vmatpush1.msra.mxu0 0.0
    %1502 = vmatprep.subr.mxu0 0.0
    %1503 = vmatpush1.msra.mxu0 0.0
    %1504 = vmatprep.subr.mxu0 0.0
    %1505 = vmatpush1.msra.mxu0 0.0
    %1506 = vmatprep.subr.mxu0 0.0
    %1507 = vmatpush1.msra.mxu0 0.0
    %1508 = vmatprep.subr.mxu0 0.0
    %1509 = vmatpush1.msra.mxu0 0.0
    %1510 = vmatprep.subr.mxu0 0.0
    %1511 = vmatpush1.msra.mxu0 0.0
    %1512 = vmatprep.mubr.f32.mxu0 0.0
    %1513 = vmatmul.mubr.f32.gmra.mrb[0].mxu0 %v1446
    %v1514 = vpop.f32.mrb[0].mxu0
    %v1515 = vadd.f32 0.0, %v1514
    %v1516 = vpop.f32.mrb[0].mxu0
    %1517 = vdwg.mxu0
    %v1518 = vadd.f32 %v1442, %v1515
    %v1519 = vld [vmem:[%s3 + $0xb0] sm:$0xff]
    %v1520 = vld [vmem:[%s3 + $0xb8] sm:$0xff]
    %v1521 = vrot.slane %v677, 6
    %v1522 = vsel %vm690, %v1521, 0
    %1524 = vmatprep.subr.mxu0 0.0
    %1525 = vmatpush1.msra.mxu0 %v1519
    %1526 = vmatprep.subr.mxu0 0.0
    %1527 = vmatpush1.msra.mxu0 %v1520
    %1528 = vmatprep.subr.mxu0 0.0
    %1529 = vmatpush1.msra.mxu0 0.0
    %1530 = vmatprep.subr.mxu0 0.0
    %1531 = vmatpush1.msra.mxu0 0.0
    %1532 = vmatprep.subr.mxu0 0.0
    %1533 = vmatpush1.msra.mxu0 0.0
    %1534 = vmatprep.subr.mxu0 0.0
    %1535 = vmatpush1.msra.mxu0 0.0
    %1536 = vmatprep.subr.mxu0 0.0
    %1537 = vmatpush1.msra.mxu0 0.0
    %1538 = vmatprep.subr.mxu0 0.0
    %1539 = vmatpush1.msra.mxu0 0.0
    %1540 = vmatprep.subr.mxu0 0.0
    %1541 = vmatpush1.msra.mxu0 0.0
    %1542 = vmatprep.subr.mxu0 0.0
    %1543 = vmatpush1.msra.mxu0 0.0
    %1544 = vmatprep.subr.mxu0 0.0
    %1545 = vmatpush1.msra.mxu0 0.0
    %1546 = vmatprep.subr.mxu0 0.0
    %1547 = vmatpush1.msra.mxu0 0.0
    %1548 = vmatprep.subr.mxu0 0.0
    %1549 = vmatpush1.msra.mxu0 0.0
    %1550 = vmatprep.subr.mxu0 0.0
    %1551 = vmatpush1.msra.mxu0 0.0
    %1552 = vmatprep.subr.mxu0 0.0
    %1553 = vmatpush1.msra.mxu0 0.0
    %1554 = vmatprep.subr.mxu0 0.0
    %1555 = vmatpush1.msra.mxu0 0.0
    %1556 = vmatprep.subr.mxu0 0.0
    %1557 = vmatpush1.msra.mxu0 0.0
    %1558 = vmatprep.subr.mxu0 0.0
    %1559 = vmatpush1.msra.mxu0 0.0
    %1560 = vmatprep.subr.mxu0 0.0
    %1561 = vmatpush1.msra.mxu0 0.0
    %1562 = vmatprep.subr.mxu0 0.0
    %1563 = vmatpush1.msra.mxu0 0.0
    %1564 = vmatprep.subr.mxu0 0.0
    %1565 = vmatpush1.msra.mxu0 0.0
    %1566 = vmatprep.subr.mxu0 0.0
    %1567 = vmatpush1.msra.mxu0 0.0
    %1568 = vmatprep.subr.mxu0 0.0
    %1569 = vmatpush1.msra.mxu0 0.0
    %1570 = vmatprep.subr.mxu0 0.0
    %1571 = vmatpush1.msra.mxu0 0.0
    %1572 = vmatprep.subr.mxu0 0.0
    %1573 = vmatpush1.msra.mxu0 0.0
    %1574 = vmatprep.subr.mxu0 0.0
    %1575 = vmatpush1.msra.mxu0 0.0
    %1576 = vmatprep.subr.mxu0 0.0
    %1577 = vmatpush1.msra.mxu0 0.0
    %1578 = vmatprep.subr.mxu0 0.0
    %1579 = vmatpush1.msra.mxu0 0.0
    %1580 = vmatprep.subr.mxu0 0.0
    %1581 = vmatpush1.msra.mxu0 0.0
    %1582 = vmatprep.subr.mxu0 0.0
    %1583 = vmatpush1.msra.mxu0 0.0
    %1584 = vmatprep.subr.mxu0 0.0
    %1585 = vmatpush1.msra.mxu0 0.0
    %1586 = vmatprep.subr.mxu0 0.0
    %1587 = vmatpush1.msra.mxu0 0.0
    %1588 = vmatprep.mubr.f32.mxu0 0.0
    %1589 = vmatmul.mubr.f32.gmra.mrb[0].mxu0 %v1522
    %v1590 = vpop.f32.mrb[0].mxu0
    %v1591 = vadd.f32 0.0, %v1590
    %v1592 = vpop.f32.mrb[0].mxu0
    %1593 = vdwg.mxu0
    %v1594 = vadd.f32 %v1518, %v1591
    %v1595 = vld [vmem:[%s3 + $0xc0] sm:$0xff]
    %v1596 = vld [vmem:[%s3 + $0xc8] sm:$0xff]
    %v1598 = vsel %vm690, %v678, 0
    %1600 = vmatprep.subr.mxu0 0.0
    %1601 = vmatpush1.msra.mxu0 %v1595
    %1602 = vmatprep.subr.mxu0 0.0
    %1603 = vmatpush1.msra.mxu0 %v1596
    %1604 = vmatprep.subr.mxu0 0.0
    %1605 = vmatpush1.msra.mxu0 0.0
    %1606 = vmatprep.subr.mxu0 0.0
    %1607 = vmatpush1.msra.mxu0 0.0
    %1608 = vmatprep.subr.mxu0 0.0
    %1609 = vmatpush1.msra.mxu0 0.0
    %1610 = vmatprep.subr.mxu0 0.0
    %1611 = vmatpush1.msra.mxu0 0.0
    %1612 = vmatprep.subr.mxu0 0.0
    %1613 = vmatpush1.msra.mxu0 0.0
    %1614 = vmatprep.subr.mxu0 0.0
    %1615 = vmatpush1.msra.mxu0 0.0
    %1616 = vmatprep.subr.mxu0 0.0
    %1617 = vmatpush1.msra.mxu0 0.0
    %1618 = vmatprep.subr.mxu0 0.0
    %1619 = vmatpush1.msra.mxu0 0.0
    %1620 = vmatprep.subr.mxu0 0.0
    %1621 = vmatpush1.msra.mxu0 0.0
    %1622 = vmatprep.subr.mxu0 0.0
    %1623 = vmatpush1.msra.mxu0 0.0
    %1624 = vmatprep.subr.mxu0 0.0
    %1625 = vmatpush1.msra.mxu0 0.0
    %1626 = vmatprep.subr.mxu0 0.0
    %1627 = vmatpush1.msra.mxu0 0.0
    %1628 = vmatprep.subr.mxu0 0.0
    %1629 = vmatpush1.msra.mxu0 0.0
    %1630 = vmatprep.subr.mxu0 0.0
    %1631 = vmatpush1.msra.mxu0 0.0
    %1632 = vmatprep.subr.mxu0 0.0
    %1633 = vmatpush1.msra.mxu0 0.0
    %1634 = vmatprep.subr.mxu0 0.0
    %1635 = vmatpush1.msra.mxu0 0.0
    %1636 = vmatprep.subr.mxu0 0.0
    %1637 = vmatpush1.msra.mxu0 0.0
    %1638 = vmatprep.subr.mxu0 0.0
    %1639 = vmatpush1.msra.mxu0 0.0
    %1640 = vmatprep.subr.mxu0 0.0
    %1641 = vmatpush1.msra.mxu0 0.0
    %1642 = vmatprep.subr.mxu0 0.0
    %1643 = vmatpush1.msra.mxu0 0.0
    %1644 = vmatprep.subr.mxu0 0.0
    %1645 = vmatpush1.msra.mxu0 0.0
    %1646 = vmatprep.subr.mxu0 0.0
    %1647 = vmatpush1.msra.mxu0 0.0
    %1648 = vmatprep.subr.mxu0 0.0
    %1649 = vmatpush1.msra.mxu0 0.0
    %1650 = vmatprep.subr.mxu0 0.0
    %1651 = vmatpush1.msra.mxu0 0.0
    %1652 = vmatprep.subr.mxu0 0.0
    %1653 = vmatpush1.msra.mxu0 0.0
    %1654 = vmatprep.subr.mxu0 0.0
    %1655 = vmatpush1.msra.mxu0 0.0
    %1656 = vmatprep.subr.mxu0 0.0
    %1657 = vmatpush1.msra.mxu0 0.0
    %1658 = vmatprep.subr.mxu0 0.0
    %1659 = vmatpush1.msra.mxu0 0.0
    %1660 = vmatprep.subr.mxu0 0.0
    %1661 = vmatpush1.msra.mxu0 0.0
    %1662 = vmatprep.subr.mxu0 0.0
    %1663 = vmatpush1.msra.mxu0 0.0
    %1664 = vmatprep.mubr.f32.mxu0 0.0
    %1665 = vmatmul.mubr.f32.gmra.mrb[0].mxu0 %v1598
    %v1666 = vpop.f32.mrb[0].mxu0
    %v1667 = vadd.f32 0.0, %v1666
    %v1668 = vpop.f32.mrb[0].mxu0
    %1669 = vdwg.mxu0
    %v1670 = vadd.f32 %v1594, %v1667
    %v1671 = vld [vmem:[%s3 + $0xd0] sm:$0xff]
    %v1672 = vld [vmem:[%s3 + $0xd8] sm:$0xff]
    %v1673 = vrot.slane %v678, 2
    %v1674 = vsel %vm690, %v1673, 0
    %1676 = vmatprep.subr.mxu0 0.0
    %1677 = vmatpush1.msra.mxu0 %v1671
    %1678 = vmatprep.subr.mxu0 0.0
    %1679 = vmatpush1.msra.mxu0 %v1672
    %1680 = vmatprep.subr.mxu0 0.0
    %1681 = vmatpush1.msra.mxu0 0.0
    %1682 = vmatprep.subr.mxu0 0.0
    %1683 = vmatpush1.msra.mxu0 0.0
    %1684 = vmatprep.subr.mxu0 0.0
    %1685 = vmatpush1.msra.mxu0 0.0
    %1686 = vmatprep.subr.mxu0 0.0
    %1687 = vmatpush1.msra.mxu0 0.0
    %1688 = vmatprep.subr.mxu0 0.0
    %1689 = vmatpush1.msra.mxu0 0.0
    %1690 = vmatprep.subr.mxu0 0.0
    %1691 = vmatpush1.msra.mxu0 0.0
    %1692 = vmatprep.subr.mxu0 0.0
    %1693 = vmatpush1.msra.mxu0 0.0
    %1694 = vmatprep.subr.mxu0 0.0
    %1695 = vmatpush1.msra.mxu0 0.0
    %1696 = vmatprep.subr.mxu0 0.0
    %1697 = vmatpush1.msra.mxu0 0.0
    %1698 = vmatprep.subr.mxu0 0.0
    %1699 = vmatpush1.msra.mxu0 0.0
    %1700 = vmatprep.subr.mxu0 0.0
    %1701 = vmatpush1.msra.mxu0 0.0
    %1702 = vmatprep.subr.mxu0 0.0
    %1703 = vmatpush1.msra.mxu0 0.0
    %1704 = vmatprep.subr.mxu0 0.0
    %1705 = vmatpush1.msra.mxu0 0.0
    %1706 = vmatprep.subr.mxu0 0.0
    %1707 = vmatpush1.msra.mxu0 0.0
    %1708 = vmatprep.subr.mxu0 0.0
    %1709 = vmatpush1.msra.mxu0 0.0
    %1710 = vmatprep.subr.mxu0 0.0
    %1711 = vmatpush1.msra.mxu0 0.0
    %1712 = vmatprep.subr.mxu0 0.0
    %1713 = vmatpush1.msra.mxu0 0.0
    %1714 = vmatprep.subr.mxu0 0.0
    %1715 = vmatpush1.msra.mxu0 0.0
    %1716 = vmatprep.subr.mxu0 0.0
    %1717 = vmatpush1.msra.mxu0 0.0
    %1718 = vmatprep.subr.mxu0 0.0
    %1719 = vmatpush1.msra.mxu0 0.0
    %1720 = vmatprep.subr.mxu0 0.0
    %1721 = vmatpush1.msra.mxu0 0.0
    %1722 = vmatprep.subr.mxu0 0.0
    %1723 = vmatpush1.msra.mxu0 0.0
    %1724 = vmatprep.subr.mxu0 0.0
    %1725 = vmatpush1.msra.mxu0 0.0
    %1726 = vmatprep.subr.mxu0 0.0
    %1727 = vmatpush1.msra.mxu0 0.0
    %1728 = vmatprep.subr.mxu0 0.0
    %1729 = vmatpush1.msra.mxu0 0.0
    %1730 = vmatprep.subr.mxu0 0.0
    %1731 = vmatpush1.msra.mxu0 0.0
    %1732 = vmatprep.subr.mxu0 0.0
    %1733 = vmatpush1.msra.mxu0 0.0
    %1734 = vmatprep.subr.mxu0 0.0
    %1735 = vmatpush1.msra.mxu0 0.0
    %1736 = vmatprep.subr.mxu0 0.0
    %1737 = vmatpush1.msra.mxu0 0.0
    %1738 = vmatprep.subr.mxu0 0.0
    %1739 = vmatpush1.msra.mxu0 0.0
    %1740 = vmatprep.mubr.f32.mxu0 0.0
    %1741 = vmatmul.mubr.f32.gmra.mrb[0].mxu0 %v1674
    %v1742 = vpop.f32.mrb[0].mxu0
    %v1743 = vadd.f32 0.0, %v1742
    %v1744 = vpop.f32.mrb[0].mxu0
    %1745 = vdwg.mxu0
    %v1746 = vadd.f32 %v1670, %v1743
    %v1747 = vld [vmem:[%s3 + $0xe0] sm:$0xff]
    %v1748 = vld [vmem:[%s3 + $0xe8] sm:$0xff]
    %v1749 = vrot.slane %v678, 4
    %v1750 = vsel %vm690, %v1749, 0
    %1752 = vmatprep.subr.mxu0 0.0
    %1753 = vmatpush1.msra.mxu0 %v1747
    %1754 = vmatprep.subr.mxu0 0.0
    %1755 = vmatpush1.msra.mxu0 %v1748
    %1756 = vmatprep.subr.mxu0 0.0
    %1757 = vmatpush1.msra.mxu0 0.0
    %1758 = vmatprep.subr.mxu0 0.0
    %1759 = vmatpush1.msra.mxu0 0.0
    %1760 = vmatprep.subr.mxu0 0.0
    %1761 = vmatpush1.msra.mxu0 0.0
    %1762 = vmatprep.subr.mxu0 0.0
    %1763 = vmatpush1.msra.mxu0 0.0
    %1764 = vmatprep.subr.mxu0 0.0
    %1765 = vmatpush1.msra.mxu0 0.0
    %1766 = vmatprep.subr.mxu0 0.0
    %1767 = vmatpush1.msra.mxu0 0.0
    %1768 = vmatprep.subr.mxu0 0.0
    %1769 = vmatpush1.msra.mxu0 0.0
    %1770 = vmatprep.subr.mxu0 0.0
    %1771 = vmatpush1.msra.mxu0 0.0
    %1772 = vmatprep.subr.mxu0 0.0
    %1773 = vmatpush1.msra.mxu0 0.0
    %1774 = vmatprep.subr.mxu0 0.0
    %1775 = vmatpush1.msra.mxu0 0.0
    %1776 = vmatprep.subr.mxu0 0.0
    %1777 = vmatpush1.msra.mxu0 0.0
    %1778 = vmatprep.subr.mxu0 0.0
    %1779 = vmatpush1.msra.mxu0 0.0
    %1780 = vmatprep.subr.mxu0 0.0
    %1781 = vmatpush1.msra.mxu0 0.0
    %1782 = vmatprep.subr.mxu0 0.0
    %1783 = vmatpush1.msra.mxu0 0.0
    %1784 = vmatprep.subr.mxu0 0.0
    %1785 = vmatpush1.msra.mxu0 0.0
    %1786 = vmatprep.subr.mxu0 0.0
    %1787 = vmatpush1.msra.mxu0 0.0
    %1788 = vmatprep.subr.mxu0 0.0
    %1789 = vmatpush1.msra.mxu0 0.0
    %1790 = vmatprep.subr.mxu0 0.0
    %1791 = vmatpush1.msra.mxu0 0.0
    %1792 = vmatprep.subr.mxu0 0.0
    %1793 = vmatpush1.msra.mxu0 0.0
    %1794 = vmatprep.subr.mxu0 0.0
    %1795 = vmatpush1.msra.mxu0 0.0
    %1796 = vmatprep.subr.mxu0 0.0
    %1797 = vmatpush1.msra.mxu0 0.0
    %1798 = vmatprep.subr.mxu0 0.0
    %1799 = vmatpush1.msra.mxu0 0.0
    %1800 = vmatprep.subr.mxu0 0.0
    %1801 = vmatpush1.msra.mxu0 0.0
    %1802 = vmatprep.subr.mxu0 0.0
    %1803 = vmatpush1.msra.mxu0 0.0
    %1804 = vmatprep.subr.mxu0 0.0
    %1805 = vmatpush1.msra.mxu0 0.0
    %1806 = vmatprep.subr.mxu0 0.0
    %1807 = vmatpush1.msra.mxu0 0.0
    %1808 = vmatprep.subr.mxu0 0.0
    %1809 = vmatpush1.msra.mxu0 0.0
    %1810 = vmatprep.subr.mxu0 0.0
    %1811 = vmatpush1.msra.mxu0 0.0
    %1812 = vmatprep.subr.mxu0 0.0
    %1813 = vmatpush1.msra.mxu0 0.0
    %1814 = vmatprep.subr.mxu0 0.0
    %1815 = vmatpush1.msra.mxu0 0.0
    %1816 = vmatprep.mubr.f32.mxu0 0.0
    %1817 = vmatmul.mubr.f32.gmra.mrb[0].mxu0 %v1750
    %v1818 = vpop.f32.mrb[0].mxu0
    %v1819 = vadd.f32 0.0, %v1818
    %v1820 = vpop.f32.mrb[0].mxu0
    %1821 = vdwg.mxu0
    %v1822 = vadd.f32 %v1746, %v1819
    %v1823 = vld [vmem:[%s3 + $0xf0] sm:$0xff]
    %v1824 = vld [vmem:[%s3 + $0xf8] sm:$0xff]
    %v1825 = vrot.slane %v678, 6
    %v1826 = vsel %vm690, %v1825, 0
    %1828 = vmatprep.subr.mxu0 0.0
    %1829 = vmatpush1.msra.mxu0 %v1823
    %1830 = vmatprep.subr.mxu0 0.0
    %1831 = vmatpush1.msra.mxu0 %v1824
    %1832 = vmatprep.subr.mxu0 0.0
    %1833 = vmatpush1.msra.mxu0 0.0
    %1834 = vmatprep.subr.mxu0 0.0
    %1835 = vmatpush1.msra.mxu0 0.0
    %1836 = vmatprep.subr.mxu0 0.0
    %1837 = vmatpush1.msra.mxu0 0.0
    %1838 = vmatprep.subr.mxu0 0.0
    %1839 = vmatpush1.msra.mxu0 0.0
    %1840 = vmatprep.subr.mxu0 0.0
    %1841 = vmatpush1.msra.mxu0 0.0
    %1842 = vmatprep.subr.mxu0 0.0
    %1843 = vmatpush1.msra.mxu0 0.0
    %1844 = vmatprep.subr.mxu0 0.0
    %1845 = vmatpush1.msra.mxu0 0.0
    %1846 = vmatprep.subr.mxu0 0.0
    %1847 = vmatpush1.msra.mxu0 0.0
    %1848 = vmatprep.subr.mxu0 0.0
    %1849 = vmatpush1.msra.mxu0 0.0
    %1850 = vmatprep.subr.mxu0 0.0
    %1851 = vmatpush1.msra.mxu0 0.0
    %1852 = vmatprep.subr.mxu0 0.0
    %1853 = vmatpush1.msra.mxu0 0.0
    %1854 = vmatprep.subr.mxu0 0.0
    %1855 = vmatpush1.msra.mxu0 0.0
    %1856 = vmatprep.subr.mxu0 0.0
    %1857 = vmatpush1.msra.mxu0 0.0
    %1858 = vmatprep.subr.mxu0 0.0
    %1859 = vmatpush1.msra.mxu0 0.0
    %1860 = vmatprep.subr.mxu0 0.0
    %1861 = vmatpush1.msra.mxu0 0.0
    %1862 = vmatprep.subr.mxu0 0.0
    %1863 = vmatpush1.msra.mxu0 0.0
    %1864 = vmatprep.subr.mxu0 0.0
    %1865 = vmatpush1.msra.mxu0 0.0
    %1866 = vmatprep.subr.mxu0 0.0
    %1867 = vmatpush1.msra.mxu0 0.0
    %1868 = vmatprep.subr.mxu0 0.0
    %1869 = vmatpush1.msra.mxu0 0.0
    %1870 = vmatprep.subr.mxu0 0.0
    %1871 = vmatpush1.msra.mxu0 0.0
    %1872 = vmatprep.subr.mxu0 0.0
    %1873 = vmatpush1.msra.mxu0 0.0
    %1874 = vmatprep.subr.mxu0 0.0
    %1875 = vmatpush1.msra.mxu0 0.0
    %1876 = vmatprep.subr.mxu0 0.0
    %1877 = vmatpush1.msra.mxu0 0.0
    %1878 = vmatprep.subr.mxu0 0.0
    %1879 = vmatpush1.msra.mxu0 0.0
    %1880 = vmatprep.subr.mxu0 0.0
    %1881 = vmatpush1.msra.mxu0 0.0
    %1882 = vmatprep.subr.mxu0 0.0
    %1883 = vmatpush1.msra.mxu0 0.0
    %1884 = vmatprep.subr.mxu0 0.0
    %1885 = vmatpush1.msra.mxu0 0.0
    %1886 = vmatprep.subr.mxu0 0.0
    %1887 = vmatpush1.msra.mxu0 0.0
    %1888 = vmatprep.subr.mxu0 0.0
    %1889 = vmatpush1.msra.mxu0 0.0
    %1890 = vmatprep.subr.mxu0 0.0
    %1891 = vmatpush1.msra.mxu0 0.0
    %1892 = vmatprep.mubr.f32.mxu0 0.0
    %1893 = vmatmul.mubr.f32.gmra.mrb[0].mxu0 %v1826
    %v1894 = vpop.f32.mrb[0].mxu0
    %v1895 = vadd.f32 0.0, %v1894
    %v1896 = vpop.f32.mrb[0].mxu0
    %1897 = vdwg.mxu0
    %v1898 = vadd.f32 %v1822, %v1895
    %v1899 = vld [vmem:[%s3 + $0x100] sm:$0xff]
    %v1900 = vld [vmem:[%s3 + $0x108] sm:$0xff]
    %v1902 = vsel %vm690, %v679, 0
    %1904 = vmatprep.subr.mxu0 0.0
    %1905 = vmatpush1.msra.mxu0 %v1899
    %1906 = vmatprep.subr.mxu0 0.0
    %1907 = vmatpush1.msra.mxu0 %v1900
    %1908 = vmatprep.subr.mxu0 0.0
    %1909 = vmatpush1.msra.mxu0 0.0
    %1910 = vmatprep.subr.mxu0 0.0
    %1911 = vmatpush1.msra.mxu0 0.0
    %1912 = vmatprep.subr.mxu0 0.0
    %1913 = vmatpush1.msra.mxu0 0.0
    %1914 = vmatprep.subr.mxu0 0.0
    %1915 = vmatpush1.msra.mxu0 0.0
    %1916 = vmatprep.subr.mxu0 0.0
    %1917 = vmatpush1.msra.mxu0 0.0
    %1918 = vmatprep.subr.mxu0 0.0
    %1919 = vmatpush1.msra.mxu0 0.0
    %1920 = vmatprep.subr.mxu0 0.0
    %1921 = vmatpush1.msra.mxu0 0.0
    %1922 = vmatprep.subr.mxu0 0.0
    %1923 = vmatpush1.msra.mxu0 0.0
    %1924 = vmatprep.subr.mxu0 0.0
    %1925 = vmatpush1.msra.mxu0 0.0
    %1926 = vmatprep.subr.mxu0 0.0
    %1927 = vmatpush1.msra.mxu0 0.0
    %1928 = vmatprep.subr.mxu0 0.0
    %1929 = vmatpush1.msra.mxu0 0.0
    %1930 = vmatprep.subr.mxu0 0.0
    %1931 = vmatpush1.msra.mxu0 0.0
    %1932 = vmatprep.subr.mxu0 0.0
    %1933 = vmatpush1.msra.mxu0 0.0
    %1934 = vmatprep.subr.mxu0 0.0
    %1935 = vmatpush1.msra.mxu0 0.0
    %1936 = vmatprep.subr.mxu0 0.0
    %1937 = vmatpush1.msra.mxu0 0.0
    %1938 = vmatprep.subr.mxu0 0.0
    %1939 = vmatpush1.msra.mxu0 0.0
    %1940 = vmatprep.subr.mxu0 0.0
    %1941 = vmatpush1.msra.mxu0 0.0
    %1942 = vmatprep.subr.mxu0 0.0
    %1943 = vmatpush1.msra.mxu0 0.0
    %1944 = vmatprep.subr.mxu0 0.0
    %1945 = vmatpush1.msra.mxu0 0.0
    %1946 = vmatprep.subr.mxu0 0.0
    %1947 = vmatpush1.msra.mxu0 0.0
    %1948 = vmatprep.subr.mxu0 0.0
    %1949 = vmatpush1.msra.mxu0 0.0
    %1950 = vmatprep.subr.mxu0 0.0
    %1951 = vmatpush1.msra.mxu0 0.0
    %1952 = vmatprep.subr.mxu0 0.0
    %1953 = vmatpush1.msra.mxu0 0.0
    %1954 = vmatprep.subr.mxu0 0.0
    %1955 = vmatpush1.msra.mxu0 0.0
    %1956 = vmatprep.subr.mxu0 0.0
    %1957 = vmatpush1.msra.mxu0 0.0
    %1958 = vmatprep.subr.mxu0 0.0
    %1959 = vmatpush1.msra.mxu0 0.0
    %1960 = vmatprep.subr.mxu0 0.0
    %1961 = vmatpush1.msra.mxu0 0.0
    %1962 = vmatprep.subr.mxu0 0.0
    %1963 = vmatpush1.msra.mxu0 0.0
    %1964 = vmatprep.subr.mxu0 0.0
    %1965 = vmatpush1.msra.mxu0 0.0
    %1966 = vmatprep.subr.mxu0 0.0
    %1967 = vmatpush1.msra.mxu0 0.0
    %1968 = vmatprep.mubr.f32.mxu0 0.0
    %1969 = vmatmul.mubr.f32.gmra.mrb[0].mxu0 %v1902
    %v1970 = vpop.f32.mrb[0].mxu0
    %v1971 = vadd.f32 0.0, %v1970
    %v1972 = vpop.f32.mrb[0].mxu0
    %1973 = vdwg.mxu0
    %v1974 = vadd.f32 %v1898, %v1971
    %v1975 = vld [vmem:[%s3 + $0x110] sm:$0xff]
    %v1976 = vld [vmem:[%s3 + $0x118] sm:$0xff]
    %v1977 = vrot.slane %v679, 2
    %v1978 = vsel %vm690, %v1977, 0
    %1980 = vmatprep.subr.mxu0 0.0
    %1981 = vmatpush1.msra.mxu0 %v1975
    %1982 = vmatprep.subr.mxu0 0.0
    %1983 = vmatpush1.msra.mxu0 %v1976
    %1984 = vmatprep.subr.mxu0 0.0
    %1985 = vmatpush1.msra.mxu0 0.0
    %1986 = vmatprep.subr.mxu0 0.0
    %1987 = vmatpush1.msra.mxu0 0.0
    %1988 = vmatprep.subr.mxu0 0.0
    %1989 = vmatpush1.msra.mxu0 0.0
    %1990 = vmatprep.subr.mxu0 0.0
    %1991 = vmatpush1.msra.mxu0 0.0
    %1992 = vmatprep.subr.mxu0 0.0
    %1993 = vmatpush1.msra.mxu0 0.0
    %1994 = vmatprep.subr.mxu0 0.0
    %1995 = vmatpush1.msra.mxu0 0.0
    %1996 = vmatprep.subr.mxu0 0.0
    %1997 = vmatpush1.msra.mxu0 0.0
    %1998 = vmatprep.subr.mxu0 0.0
    %1999 = vmatpush1.msra.mxu0 0.0
    %2000 = vmatprep.subr.mxu0 0.0
    %2001 = vmatpush1.msra.mxu0 0.0
    %2002 = vmatprep.subr.mxu0 0.0
    %2003 = vmatpush1.msra.mxu0 0.0
    %2004 = vmatprep.subr.mxu0 0.0
    %2005 = vmatpush1.msra.mxu0 0.0
    %2006 = vmatprep.subr.mxu0 0.0
    %2007 = vmatpush1.msra.mxu0 0.0
    %2008 = vmatprep.subr.mxu0 0.0
    %2009 = vmatpush1.msra.mxu0 0.0
    %2010 = vmatprep.subr.mxu0 0.0
    %2011 = vmatpush1.msra.mxu0 0.0
    %2012 = vmatprep.subr.mxu0 0.0
    %2013 = vmatpush1.msra.mxu0 0.0
    %2014 = vmatprep.subr.mxu0 0.0
    %2015 = vmatpush1.msra.mxu0 0.0
    %2016 = vmatprep.subr.mxu0 0.0
    %2017 = vmatpush1.msra.mxu0 0.0
    %2018 = vmatprep.subr.mxu0 0.0
    %2019 = vmatpush1.msra.mxu0 0.0
    %2020 = vmatprep.subr.mxu0 0.0
    %2021 = vmatpush1.msra.mxu0 0.0
    %2022 = vmatprep.subr.mxu0 0.0
    %2023 = vmatpush1.msra.mxu0 0.0
    %2024 = vmatprep.subr.mxu0 0.0
    %2025 = vmatpush1.msra.mxu0 0.0
    %2026 = vmatprep.subr.mxu0 0.0
    %2027 = vmatpush1.msra.mxu0 0.0
    %2028 = vmatprep.subr.mxu0 0.0
    %2029 = vmatpush1.msra.mxu0 0.0
    %2030 = vmatprep.subr.mxu0 0.0
    %2031 = vmatpush1.msra.mxu0 0.0
    %2032 = vmatprep.subr.mxu0 0.0
    %2033 = vmatpush1.msra.mxu0 0.0
    %2034 = vmatprep.subr.mxu0 0.0
    %2035 = vmatpush1.msra.mxu0 0.0
    %2036 = vmatprep.subr.mxu0 0.0
    %2037 = vmatpush1.msra.mxu0 0.0
    %2038 = vmatprep.subr.mxu0 0.0
    %2039 = vmatpush1.msra.mxu0 0.0
    %2040 = vmatprep.subr.mxu0 0.0
    %2041 = vmatpush1.msra.mxu0 0.0
    %2042 = vmatprep.subr.mxu0 0.0
    %2043 = vmatpush1.msra.mxu0 0.0
    %2044 = vmatprep.mubr.f32.mxu0 0.0
    %2045 = vmatmul.mubr.f32.gmra.mrb[0].mxu0 %v1978
    %v2046 = vpop.f32.mrb[0].mxu0
    %v2047 = vadd.f32 0.0, %v2046
    %v2048 = vpop.f32.mrb[0].mxu0
    %2049 = vdwg.mxu0
    %v2050 = vadd.f32 %v1974, %v2047
    %v2051 = vld [vmem:[%s3 + $0x120] sm:$0xff]
    %v2052 = vld [vmem:[%s3 + $0x128] sm:$0xff]
    %v2053 = vrot.slane %v679, 4
    %v2054 = vsel %vm690, %v2053, 0
    %2056 = vmatprep.subr.mxu0 0.0
    %2057 = vmatpush1.msra.mxu0 %v2051
    %2058 = vmatprep.subr.mxu0 0.0
    %2059 = vmatpush1.msra.mxu0 %v2052
    %2060 = vmatprep.subr.mxu0 0.0
    %2061 = vmatpush1.msra.mxu0 0.0
    %2062 = vmatprep.subr.mxu0 0.0
    %2063 = vmatpush1.msra.mxu0 0.0
    %2064 = vmatprep.subr.mxu0 0.0
    %2065 = vmatpush1.msra.mxu0 0.0
    %2066 = vmatprep.subr.mxu0 0.0
    %2067 = vmatpush1.msra.mxu0 0.0
    %2068 = vmatprep.subr.mxu0 0.0
    %2069 = vmatpush1.msra.mxu0 0.0
    %2070 = vmatprep.subr.mxu0 0.0
    %2071 = vmatpush1.msra.mxu0 0.0
    %2072 = vmatprep.subr.mxu0 0.0
    %2073 = vmatpush1.msra.mxu0 0.0
    %2074 = vmatprep.subr.mxu0 0.0
    %2075 = vmatpush1.msra.mxu0 0.0
    %2076 = vmatprep.subr.mxu0 0.0
    %2077 = vmatpush1.msra.mxu0 0.0
    %2078 = vmatprep.subr.mxu0 0.0
    %2079 = vmatpush1.msra.mxu0 0.0
    %2080 = vmatprep.subr.mxu0 0.0
    %2081 = vmatpush1.msra.mxu0 0.0
    %2082 = vmatprep.subr.mxu0 0.0
    %2083 = vmatpush1.msra.mxu0 0.0
    %2084 = vmatprep.subr.mxu0 0.0
    %2085 = vmatpush1.msra.mxu0 0.0
    %2086 = vmatprep.subr.mxu0 0.0
    %2087 = vmatpush1.msra.mxu0 0.0
    %2088 = vmatprep.subr.mxu0 0.0
    %2089 = vmatpush1.msra.mxu0 0.0
    %2090 = vmatprep.subr.mxu0 0.0
    %2091 = vmatpush1.msra.mxu0 0.0
    %2092 = vmatprep.subr.mxu0 0.0
    %2093 = vmatpush1.msra.mxu0 0.0
    %2094 = vmatprep.subr.mxu0 0.0
    %2095 = vmatpush1.msra.mxu0 0.0
    %2096 = vmatprep.subr.mxu0 0.0
    %2097 = vmatpush1.msra.mxu0 0.0
    %2098 = vmatprep.subr.mxu0 0.0
    %2099 = vmatpush1.msra.mxu0 0.0
    %2100 = vmatprep.subr.mxu0 0.0
    %2101 = vmatpush1.msra.mxu0 0.0
    %2102 = vmatprep.subr.mxu0 0.0
    %2103 = vmatpush1.msra.mxu0 0.0
    %2104 = vmatprep.subr.mxu0 0.0
    %2105 = vmatpush1.msra.mxu0 0.0
    %2106 = vmatprep.subr.mxu0 0.0
    %2107 = vmatpush1.msra.mxu0 0.0
    %2108 = vmatprep.subr.mxu0 0.0
    %2109 = vmatpush1.msra.mxu0 0.0
    %2110 = vmatprep.subr.mxu0 0.0
    %2111 = vmatpush1.msra.mxu0 0.0
    %2112 = vmatprep.subr.mxu0 0.0
    %2113 = vmatpush1.msra.mxu0 0.0
    %2114 = vmatprep.subr.mxu0 0.0
    %2115 = vmatpush1.msra.mxu0 0.0
    %2116 = vmatprep.subr.mxu0 0.0
    %2117 = vmatpush1.msra.mxu0 0.0
    %2118 = vmatprep.subr.mxu0 0.0
    %2119 = vmatpush1.msra.mxu0 0.0
    %2120 = vmatprep.mubr.f32.mxu0 0.0
    %2121 = vmatmul.mubr.f32.gmra.mrb[0].mxu0 %v2054
    %v2122 = vpop.f32.mrb[0].mxu0
    %v2123 = vadd.f32 0.0, %v2122
    %v2124 = vpop.f32.mrb[0].mxu0
    %2125 = vdwg.mxu0
    %v2126 = vadd.f32 %v2050, %v2123
    %v2127 = vld [vmem:[%s3 + $0x130] sm:$0xff]
    %v2128 = vld [vmem:[%s3 + $0x138] sm:$0xff]
    %v2129 = vrot.slane %v679, 6
    %v2130 = vsel %vm690, %v2129, 0
    %2132 = vmatprep.subr.mxu0 0.0
    %2133 = vmatpush1.msra.mxu0 %v2127
    %2134 = vmatprep.subr.mxu0 0.0
    %2135 = vmatpush1.msra.mxu0 %v2128
    %2136 = vmatprep.subr.mxu0 0.0
    %2137 = vmatpush1.msra.mxu0 0.0
    %2138 = vmatprep.subr.mxu0 0.0
    %2139 = vmatpush1.msra.mxu0 0.0
    %2140 = vmatprep.subr.mxu0 0.0
    %2141 = vmatpush1.msra.mxu0 0.0
    %2142 = vmatprep.subr.mxu0 0.0
    %2143 = vmatpush1.msra.mxu0 0.0
    %2144 = vmatprep.subr.mxu0 0.0
    %2145 = vmatpush1.msra.mxu0 0.0
    %2146 = vmatprep.subr.mxu0 0.0
    %2147 = vmatpush1.msra.mxu0 0.0
    %2148 = vmatprep.subr.mxu0 0.0
    %2149 = vmatpush1.msra.mxu0 0.0
    %2150 = vmatprep.subr.mxu0 0.0
    %2151 = vmatpush1.msra.mxu0 0.0
    %2152 = vmatprep.subr.mxu0 0.0
    %2153 = vmatpush1.msra.mxu0 0.0
    %2154 = vmatprep.subr.mxu0 0.0
    %2155 = vmatpush1.msra.mxu0 0.0
    %2156 = vmatprep.subr.mxu0 0.0
    %2157 = vmatpush1.msra.mxu0 0.0
    %2158 = vmatprep.subr.mxu0 0.0
    %2159 = vmatpush1.msra.mxu0 0.0
    %2160 = vmatprep.subr.mxu0 0.0
    %2161 = vmatpush1.msra.mxu0 0.0
    %2162 = vmatprep.subr.mxu0 0.0
    %2163 = vmatpush1.msra.mxu0 0.0
    %2164 = vmatprep.subr.mxu0 0.0
    %2165 = vmatpush1.msra.mxu0 0.0
    %2166 = vmatprep.subr.mxu0 0.0
    %2167 = vmatpush1.msra.mxu0 0.0
    %2168 = vmatprep.subr.mxu0 0.0
    %2169 = vmatpush1.msra.mxu0 0.0
    %2170 = vmatprep.subr.mxu0 0.0
    %2171 = vmatpush1.msra.mxu0 0.0
    %2172 = vmatprep.subr.mxu0 0.0
    %2173 = vmatpush1.msra.mxu0 0.0
    %2174 = vmatprep.subr.mxu0 0.0
    %2175 = vmatpush1.msra.mxu0 0.0
    %2176 = vmatprep.subr.mxu0 0.0
    %2177 = vmatpush1.msra.mxu0 0.0
    %2178 = vmatprep.subr.mxu0 0.0
    %2179 = vmatpush1.msra.mxu0 0.0
    %2180 = vmatprep.subr.mxu0 0.0
    %2181 = vmatpush1.msra.mxu0 0.0
    %2182 = vmatprep.subr.mxu0 0.0
    %2183 = vmatpush1.msra.mxu0 0.0
    %2184 = vmatprep.subr.mxu0 0.0
    %2185 = vmatpush1.msra.mxu0 0.0
    %2186 = vmatprep.subr.mxu0 0.0
    %2187 = vmatpush1.msra.mxu0 0.0
    %2188 = vmatprep.subr.mxu0 0.0
    %2189 = vmatpush1.msra.mxu0 0.0
    %2190 = vmatprep.subr.mxu0 0.0
    %2191 = vmatpush1.msra.mxu0 0.0
    %2192 = vmatprep.subr.mxu0 0.0
    %2193 = vmatpush1.msra.mxu0 0.0
    %2194 = vmatprep.subr.mxu0 0.0
    %2195 = vmatpush1.msra.mxu0 0.0
    %2196 = vmatprep.mubr.f32.mxu0 0.0
    %2197 = vmatmul.mubr.f32.gmra.mrb[0].mxu0 %v2130
    %v2198 = vpop.f32.mrb[0].mxu0
    %v2199 = vadd.f32 0.0, %v2198
    %v2200 = vpop.f32.mrb[0].mxu0
    %2201 = vdwg.mxu0
    %v2202 = vadd.f32 %v2126, %v2199
    %v2203 = vld [vmem:[%s3 + $0x140] sm:$0xff]
    %v2204 = vld [vmem:[%s3 + $0x148] sm:$0xff]
    %v2206 = vsel %vm690, %v680, 0
    %2208 = vmatprep.subr.mxu0 0.0
    %2209 = vmatpush1.msra.mxu0 %v2203
    %2210 = vmatprep.subr.mxu0 0.0
    %2211 = vmatpush1.msra.mxu0 %v2204
    %2212 = vmatprep.subr.mxu0 0.0
    %2213 = vmatpush1.msra.mxu0 0.0
    %2214 = vmatprep.subr.mxu0 0.0
    %2215 = vmatpush1.msra.mxu0 0.0
    %2216 = vmatprep.subr.mxu0 0.0
    %2217 = vmatpush1.msra.mxu0 0.0
    %2218 = vmatprep.subr.mxu0 0.0
    %2219 = vmatpush1.msra.mxu0 0.0
    %2220 = vmatprep.subr.mxu0 0.0
    %2221 = vmatpush1.msra.mxu0 0.0
    %2222 = vmatprep.subr.mxu0 0.0
    %2223 = vmatpush1.msra.mxu0 0.0
    %2224 = vmatprep.subr.mxu0 0.0
    %2225 = vmatpush1.msra.mxu0 0.0
    %2226 = vmatprep.subr.mxu0 0.0
    %2227 = vmatpush1.msra.mxu0 0.0
    %2228 = vmatprep.subr.mxu0 0.0
    %2229 = vmatpush1.msra.mxu0 0.0
    %2230 = vmatprep.subr.mxu0 0.0
    %2231 = vmatpush1.msra.mxu0 0.0
    %2232 = vmatprep.subr.mxu0 0.0
    %2233 = vmatpush1.msra.mxu0 0.0
    %2234 = vmatprep.subr.mxu0 0.0
    %2235 = vmatpush1.msra.mxu0 0.0
    %2236 = vmatprep.subr.mxu0 0.0
    %2237 = vmatpush1.msra.mxu0 0.0
    %2238 = vmatprep.subr.mxu0 0.0
    %2239 = vmatpush1.msra.mxu0 0.0
    %2240 = vmatprep.subr.mxu0 0.0
    %2241 = vmatpush1.msra.mxu0 0.0
    %2242 = vmatprep.subr.mxu0 0.0
    %2243 = vmatpush1.msra.mxu0 0.0
    %2244 = vmatprep.subr.mxu0 0.0
    %2245 = vmatpush1.msra.mxu0 0.0
    %2246 = vmatprep.subr.mxu0 0.0
    %2247 = vmatpush1.msra.mxu0 0.0
    %2248 = vmatprep.subr.mxu0 0.0
    %2249 = vmatpush1.msra.mxu0 0.0
    %2250 = vmatprep.subr.mxu0 0.0
    %2251 = vmatpush1.msra.mxu0 0.0
    %2252 = vmatprep.subr.mxu0 0.0
    %2253 = vmatpush1.msra.mxu0 0.0
    %2254 = vmatprep.subr.mxu0 0.0
    %2255 = vmatpush1.msra.mxu0 0.0
    %2256 = vmatprep.subr.mxu0 0.0
    %2257 = vmatpush1.msra.mxu0 0.0
    %2258 = vmatprep.subr.mxu0 0.0
    %2259 = vmatpush1.msra.mxu0 0.0
    %2260 = vmatprep.subr.mxu0 0.0
    %2261 = vmatpush1.msra.mxu0 0.0
    %2262 = vmatprep.subr.mxu0 0.0
    %2263 = vmatpush1.msra.mxu0 0.0
    %2264 = vmatprep.subr.mxu0 0.0
    %2265 = vmatpush1.msra.mxu0 0.0
    %2266 = vmatprep.subr.mxu0 0.0
    %2267 = vmatpush1.msra.mxu0 0.0
    %2268 = vmatprep.subr.mxu0 0.0
    %2269 = vmatpush1.msra.mxu0 0.0
    %2270 = vmatprep.subr.mxu0 0.0
    %2271 = vmatpush1.msra.mxu0 0.0
    %2272 = vmatprep.mubr.f32.mxu0 0.0
    %2273 = vmatmul.mubr.f32.gmra.mrb[0].mxu0 %v2206
    %v2274 = vpop.f32.mrb[0].mxu0
    %v2275 = vadd.f32 0.0, %v2274
    %v2276 = vpop.f32.mrb[0].mxu0
    %2277 = vdwg.mxu0
    %v2278 = vadd.f32 %v2202, %v2275
    %v2279 = vld [vmem:[%s3 + $0x150] sm:$0xff]
    %v2280 = vld [vmem:[%s3 + $0x158] sm:$0xff]
    %v2281 = vrot.slane %v680, 2
    %v2282 = vsel %vm690, %v2281, 0
    %2284 = vmatprep.subr.mxu0 0.0
    %2285 = vmatpush1.msra.mxu0 %v2279
    %2286 = vmatprep.subr.mxu0 0.0
    %2287 = vmatpush1.msra.mxu0 %v2280
    %2288 = vmatprep.subr.mxu0 0.0
    %2289 = vmatpush1.msra.mxu0 0.0
    %2290 = vmatprep.subr.mxu0 0.0
    %2291 = vmatpush1.msra.mxu0 0.0
    %2292 = vmatprep.subr.mxu0 0.0
    %2293 = vmatpush1.msra.mxu0 0.0
    %2294 = vmatprep.subr.mxu0 0.0
    %2295 = vmatpush1.msra.mxu0 0.0
    %2296 = vmatprep.subr.mxu0 0.0
    %2297 = vmatpush1.msra.mxu0 0.0
    %2298 = vmatprep.subr.mxu0 0.0
    %2299 = vmatpush1.msra.mxu0 0.0
    %2300 = vmatprep.subr.mxu0 0.0
    %2301 = vmatpush1.msra.mxu0 0.0
    %2302 = vmatprep.subr.mxu0 0.0
    %2303 = vmatpush1.msra.mxu0 0.0
    %2304 = vmatprep.subr.mxu0 0.0
    %2305 = vmatpush1.msra.mxu0 0.0
    %2306 = vmatprep.subr.mxu0 0.0
    %2307 = vmatpush1.msra.mxu0 0.0
    %2308 = vmatprep.subr.mxu0 0.0
    %2309 = vmatpush1.msra.mxu0 0.0
    %2310 = vmatprep.subr.mxu0 0.0
    %2311 = vmatpush1.msra.mxu0 0.0
    %2312 = vmatprep.subr.mxu0 0.0
    %2313 = vmatpush1.msra.mxu0 0.0
    %2314 = vmatprep.subr.mxu0 0.0
    %2315 = vmatpush1.msra.mxu0 0.0
    %2316 = vmatprep.subr.mxu0 0.0
    %2317 = vmatpush1.msra.mxu0 0.0
    %2318 = vmatprep.subr.mxu0 0.0
    %2319 = vmatpush1.msra.mxu0 0.0
    %2320 = vmatprep.subr.mxu0 0.0
    %2321 = vmatpush1.msra.mxu0 0.0
    %2322 = vmatprep.subr.mxu0 0.0
    %2323 = vmatpush1.msra.mxu0 0.0
    %2324 = vmatprep.subr.mxu0 0.0
    %2325 = vmatpush1.msra.mxu0 0.0
    %2326 = vmatprep.subr.mxu0 0.0
    %2327 = vmatpush1.msra.mxu0 0.0
    %2328 = vmatprep.subr.mxu0 0.0
    %2329 = vmatpush1.msra.mxu0 0.0
    %2330 = vmatprep.subr.mxu0 0.0
    %2331 = vmatpush1.msra.mxu0 0.0
    %2332 = vmatprep.subr.mxu0 0.0
    %2333 = vmatpush1.msra.mxu0 0.0
    %2334 = vmatprep.subr.mxu0 0.0
    %2335 = vmatpush1.msra.mxu0 0.0
    %2336 = vmatprep.subr.mxu0 0.0
    %2337 = vmatpush1.msra.mxu0 0.0
    %2338 = vmatprep.subr.mxu0 0.0
    %2339 = vmatpush1.msra.mxu0 0.0
    %2340 = vmatprep.subr.mxu0 0.0
    %2341 = vmatpush1.msra.mxu0 0.0
    %2342 = vmatprep.subr.mxu0 0.0
    %2343 = vmatpush1.msra.mxu0 0.0
    %2344 = vmatprep.subr.mxu0 0.0
    %2345 = vmatpush1.msra.mxu0 0.0
    %2346 = vmatprep.subr.mxu0 0.0
    %2347 = vmatpush1.msra.mxu0 0.0
    %2348 = vmatprep.mubr.f32.mxu0 0.0
    %2349 = vmatmul.mubr.f32.gmra.mrb[0].mxu0 %v2282
    %v2350 = vpop.f32.mrb[0].mxu0
    %v2351 = vadd.f32 0.0, %v2350
    %v2352 = vpop.f32.mrb[0].mxu0
    %2353 = vdwg.mxu0
    %v2354 = vadd.f32 %v2278, %v2351
    %v2355 = vld [vmem:[%s3 + $0x160] sm:$0xff]
    %v2356 = vld [vmem:[%s3 + $0x168] sm:$0xff]
    %v2357 = vrot.slane %v680, 4
    %v2358 = vsel %vm690, %v2357, 0
    %2360 = vmatprep.subr.mxu0 0.0
    %2361 = vmatpush1.msra.mxu0 %v2355
    %2362 = vmatprep.subr.mxu0 0.0
    %2363 = vmatpush1.msra.mxu0 %v2356
    %2364 = vmatprep.subr.mxu0 0.0
    %2365 = vmatpush1.msra.mxu0 0.0
    %2366 = vmatprep.subr.mxu0 0.0
    %2367 = vmatpush1.msra.mxu0 0.0
    %2368 = vmatprep.subr.mxu0 0.0
    %2369 = vmatpush1.msra.mxu0 0.0
    %2370 = vmatprep.subr.mxu0 0.0
    %2371 = vmatpush1.msra.mxu0 0.0
    %2372 = vmatprep.subr.mxu0 0.0
    %2373 = vmatpush1.msra.mxu0 0.0
    %2374 = vmatprep.subr.mxu0 0.0
    %2375 = vmatpush1.msra.mxu0 0.0
    %2376 = vmatprep.subr.mxu0 0.0
    %2377 = vmatpush1.msra.mxu0 0.0
    %2378 = vmatprep.subr.mxu0 0.0
    %2379 = vmatpush1.msra.mxu0 0.0
    %2380 = vmatprep.subr.mxu0 0.0
    %2381 = vmatpush1.msra.mxu0 0.0
    %2382 = vmatprep.subr.mxu0 0.0
    %2383 = vmatpush1.msra.mxu0 0.0
    %2384 = vmatprep.subr.mxu0 0.0
    %2385 = vmatpush1.msra.mxu0 0.0
    %2386 = vmatprep.subr.mxu0 0.0
    %2387 = vmatpush1.msra.mxu0 0.0
    %2388 = vmatprep.subr.mxu0 0.0
    %2389 = vmatpush1.msra.mxu0 0.0
    %2390 = vmatprep.subr.mxu0 0.0
    %2391 = vmatpush1.msra.mxu0 0.0
    %2392 = vmatprep.subr.mxu0 0.0
    %2393 = vmatpush1.msra.mxu0 0.0
    %2394 = vmatprep.subr.mxu0 0.0
    %2395 = vmatpush1.msra.mxu0 0.0
    %2396 = vmatprep.subr.mxu0 0.0
    %2397 = vmatpush1.msra.mxu0 0.0
    %2398 = vmatprep.subr.mxu0 0.0
    %2399 = vmatpush1.msra.mxu0 0.0
    %2400 = vmatprep.subr.mxu0 0.0
    %2401 = vmatpush1.msra.mxu0 0.0
    %2402 = vmatprep.subr.mxu0 0.0
    %2403 = vmatpush1.msra.mxu0 0.0
    %2404 = vmatprep.subr.mxu0 0.0
    %2405 = vmatpush1.msra.mxu0 0.0
    %2406 = vmatprep.subr.mxu0 0.0
    %2407 = vmatpush1.msra.mxu0 0.0
    %2408 = vmatprep.subr.mxu0 0.0
    %2409 = vmatpush1.msra.mxu0 0.0
    %2410 = vmatprep.subr.mxu0 0.0
    %2411 = vmatpush1.msra.mxu0 0.0
    %2412 = vmatprep.subr.mxu0 0.0
    %2413 = vmatpush1.msra.mxu0 0.0
    %2414 = vmatprep.subr.mxu0 0.0
    %2415 = vmatpush1.msra.mxu0 0.0
    %2416 = vmatprep.subr.mxu0 0.0
    %2417 = vmatpush1.msra.mxu0 0.0
    %2418 = vmatprep.subr.mxu0 0.0
    %2419 = vmatpush1.msra.mxu0 0.0
    %2420 = vmatprep.subr.mxu0 0.0
    %2421 = vmatpush1.msra.mxu0 0.0
    %2422 = vmatprep.subr.mxu0 0.0
    %2423 = vmatpush1.msra.mxu0 0.0
    %2424 = vmatprep.mubr.f32.mxu0 0.0
    %2425 = vmatmul.mubr.f32.gmra.mrb[0].mxu0 %v2358
    %v2426 = vpop.f32.mrb[0].mxu0
    %v2427 = vadd.f32 0.0, %v2426
    %v2428 = vpop.f32.mrb[0].mxu0
    %2429 = vdwg.mxu0
    %v2430 = vadd.f32 %v2354, %v2427
    %v2431 = vld [vmem:[%s3 + $0x170] sm:$0xff]
    %v2432 = vld [vmem:[%s3 + $0x178] sm:$0xff]
    %v2433 = vrot.slane %v680, 6
    %v2434 = vsel %vm690, %v2433, 0
    %2436 = vmatprep.subr.mxu0 0.0
    %2437 = vmatpush1.msra.mxu0 %v2431
    %2438 = vmatprep.subr.mxu0 0.0
    %2439 = vmatpush1.msra.mxu0 %v2432
    %2440 = vmatprep.subr.mxu0 0.0
    %2441 = vmatpush1.msra.mxu0 0.0
    %2442 = vmatprep.subr.mxu0 0.0
    %2443 = vmatpush1.msra.mxu0 0.0
    %2444 = vmatprep.subr.mxu0 0.0
    %2445 = vmatpush1.msra.mxu0 0.0
    %2446 = vmatprep.subr.mxu0 0.0
    %2447 = vmatpush1.msra.mxu0 0.0
    %2448 = vmatprep.subr.mxu0 0.0
    %2449 = vmatpush1.msra.mxu0 0.0
    %2450 = vmatprep.subr.mxu0 0.0
    %2451 = vmatpush1.msra.mxu0 0.0
    %2452 = vmatprep.subr.mxu0 0.0
    %2453 = vmatpush1.msra.mxu0 0.0
    %2454 = vmatprep.subr.mxu0 0.0
    %2455 = vmatpush1.msra.mxu0 0.0
    %2456 = vmatprep.subr.mxu0 0.0
    %2457 = vmatpush1.msra.mxu0 0.0
    %2458 = vmatprep.subr.mxu0 0.0
    %2459 = vmatpush1.msra.mxu0 0.0
    %2460 = vmatprep.subr.mxu0 0.0
    %2461 = vmatpush1.msra.mxu0 0.0
    %2462 = vmatprep.subr.mxu0 0.0
    %2463 = vmatpush1.msra.mxu0 0.0
    %2464 = vmatprep.subr.mxu0 0.0
    %2465 = vmatpush1.msra.mxu0 0.0
    %2466 = vmatprep.subr.mxu0 0.0
    %2467 = vmatpush1.msra.mxu0 0.0
    %2468 = vmatprep.subr.mxu0 0.0
    %2469 = vmatpush1.msra.mxu0 0.0
    %2470 = vmatprep.subr.mxu0 0.0
    %2471 = vmatpush1.msra.mxu0 0.0
    %2472 = vmatprep.subr.mxu0 0.0
    %2473 = vmatpush1.msra.mxu0 0.0
    %2474 = vmatprep.subr.mxu0 0.0
    %2475 = vmatpush1.msra.mxu0 0.0
    %2476 = vmatprep.subr.mxu0 0.0
    %2477 = vmatpush1.msra.mxu0 0.0
    %2478 = vmatprep.subr.mxu0 0.0
    %2479 = vmatpush1.msra.mxu0 0.0
    %2480 = vmatprep.subr.mxu0 0.0
    %2481 = vmatpush1.msra.mxu0 0.0
    %2482 = vmatprep.subr.mxu0 0.0
    %2483 = vmatpush1.msra.mxu0 0.0
    %2484 = vmatprep.subr.mxu0 0.0
    %2485 = vmatpush1.msra.mxu0 0.0
    %2486 = vmatprep.subr.mxu0 0.0
    %2487 = vmatpush1.msra.mxu0 0.0
    %2488 = vmatprep.subr.mxu0 0.0
    %2489 = vmatpush1.msra.mxu0 0.0
    %2490 = vmatprep.subr.mxu0 0.0
    %2491 = vmatpush1.msra.mxu0 0.0
    %2492 = vmatprep.subr.mxu0 0.0
    %2493 = vmatpush1.msra.mxu0 0.0
    %2494 = vmatprep.subr.mxu0 0.0
    %2495 = vmatpush1.msra.mxu0 0.0
    %2496 = vmatprep.subr.mxu0 0.0
    %2497 = vmatpush1.msra.mxu0 0.0
    %2498 = vmatprep.subr.mxu0 0.0
    %2499 = vmatpush1.msra.mxu0 0.0
    %2500 = vmatprep.mubr.f32.mxu0 0.0
    %2501 = vmatmul.mubr.f32.gmra.mrb[0].mxu0 %v2434
    %v2502 = vpop.f32.mrb[0].mxu0
    %v2503 = vadd.f32 0.0, %v2502
    %v2504 = vpop.f32.mrb[0].mxu0
    %2505 = vdwg.mxu0
    %v2506 = vadd.f32 %v2430, %v2503
    %v2507 = vld [vmem:[%s3 + $0x180] sm:$0xff]
    %v2508 = vld [vmem:[%s3 + $0x188] sm:$0xff]
    %v2510 = vsel %vm690, %v681, 0
    %2512 = vmatprep.subr.mxu0 0.0
    %2513 = vmatpush1.msra.mxu0 %v2507
    %2514 = vmatprep.subr.mxu0 0.0
    %2515 = vmatpush1.msra.mxu0 %v2508
    %2516 = vmatprep.subr.mxu0 0.0
    %2517 = vmatpush1.msra.mxu0 0.0
    %2518 = vmatprep.subr.mxu0 0.0
    %2519 = vmatpush1.msra.mxu0 0.0
    %2520 = vmatprep.subr.mxu0 0.0
    %2521 = vmatpush1.msra.mxu0 0.0
    %2522 = vmatprep.subr.mxu0 0.0
    %2523 = vmatpush1.msra.mxu0 0.0
    %2524 = vmatprep.subr.mxu0 0.0
    %2525 = vmatpush1.msra.mxu0 0.0
    %2526 = vmatprep.subr.mxu0 0.0
    %2527 = vmatpush1.msra.mxu0 0.0
    %2528 = vmatprep.subr.mxu0 0.0
    %2529 = vmatpush1.msra.mxu0 0.0
    %2530 = vmatprep.subr.mxu0 0.0
    %2531 = vmatpush1.msra.mxu0 0.0
    %2532 = vmatprep.subr.mxu0 0.0
    %2533 = vmatpush1.msra.mxu0 0.0
    %2534 = vmatprep.subr.mxu0 0.0
    %2535 = vmatpush1.msra.mxu0 0.0
    %2536 = vmatprep.subr.mxu0 0.0
    %2537 = vmatpush1.msra.mxu0 0.0
    %2538 = vmatprep.subr.mxu0 0.0
    %2539 = vmatpush1.msra.mxu0 0.0
    %2540 = vmatprep.subr.mxu0 0.0
    %2541 = vmatpush1.msra.mxu0 0.0
    %2542 = vmatprep.subr.mxu0 0.0
    %2543 = vmatpush1.msra.mxu0 0.0
    %2544 = vmatprep.subr.mxu0 0.0
    %2545 = vmatpush1.msra.mxu0 0.0
    %2546 = vmatprep.subr.mxu0 0.0
    %2547 = vmatpush1.msra.mxu0 0.0
    %2548 = vmatprep.subr.mxu0 0.0
    %2549 = vmatpush1.msra.mxu0 0.0
    %2550 = vmatprep.subr.mxu0 0.0
    %2551 = vmatpush1.msra.mxu0 0.0
    %2552 = vmatprep.subr.mxu0 0.0
    %2553 = vmatpush1.msra.mxu0 0.0
    %2554 = vmatprep.subr.mxu0 0.0
    %2555 = vmatpush1.msra.mxu0 0.0
    %2556 = vmatprep.subr.mxu0 0.0
    %2557 = vmatpush1.msra.mxu0 0.0
    %2558 = vmatprep.subr.mxu0 0.0
    %2559 = vmatpush1.msra.mxu0 0.0
    %2560 = vmatprep.subr.mxu0 0.0
    %2561 = vmatpush1.msra.mxu0 0.0
    %2562 = vmatprep.subr.mxu0 0.0
    %2563 = vmatpush1.msra.mxu0 0.0
    %2564 = vmatprep.subr.mxu0 0.0
    %2565 = vmatpush1.msra.mxu0 0.0
    %2566 = vmatprep.subr.mxu0 0.0
    %2567 = vmatpush1.msra.mxu0 0.0
    %2568 = vmatprep.subr.mxu0 0.0
    %2569 = vmatpush1.msra.mxu0 0.0
    %2570 = vmatprep.subr.mxu0 0.0
    %2571 = vmatpush1.msra.mxu0 0.0
    %2572 = vmatprep.subr.mxu0 0.0
    %2573 = vmatpush1.msra.mxu0 0.0
    %2574 = vmatprep.subr.mxu0 0.0
    %2575 = vmatpush1.msra.mxu0 0.0
    %2576 = vmatprep.mubr.f32.mxu0 0.0
    %2577 = vmatmul.mubr.f32.gmra.mrb[0].mxu0 %v2510
    %v2578 = vpop.f32.mrb[0].mxu0
    %v2579 = vadd.f32 0.0, %v2578
    %v2580 = vpop.f32.mrb[0].mxu0
    %2581 = vdwg.mxu0
    %v2582 = vadd.f32 %v2506, %v2579
    %v2583 = vld [vmem:[%s3 + $0x190] sm:$0xff]
    %v2584 = vld [vmem:[%s3 + $0x198] sm:$0xff]
    %v2585 = vrot.slane %v681, 2
    %v2586 = vsel %vm690, %v2585, 0
    %2588 = vmatprep.subr.mxu0 0.0
    %2589 = vmatpush1.msra.mxu0 %v2583
    %2590 = vmatprep.subr.mxu0 0.0
    %2591 = vmatpush1.msra.mxu0 %v2584
    %2592 = vmatprep.subr.mxu0 0.0
    %2593 = vmatpush1.msra.mxu0 0.0
    %2594 = vmatprep.subr.mxu0 0.0
    %2595 = vmatpush1.msra.mxu0 0.0
    %2596 = vmatprep.subr.mxu0 0.0
    %2597 = vmatpush1.msra.mxu0 0.0
    %2598 = vmatprep.subr.mxu0 0.0
    %2599 = vmatpush1.msra.mxu0 0.0
    %2600 = vmatprep.subr.mxu0 0.0
    %2601 = vmatpush1.msra.mxu0 0.0
    %2602 = vmatprep.subr.mxu0 0.0
    %2603 = vmatpush1.msra.mxu0 0.0
    %2604 = vmatprep.subr.mxu0 0.0
    %2605 = vmatpush1.msra.mxu0 0.0
    %2606 = vmatprep.subr.mxu0 0.0
    %2607 = vmatpush1.msra.mxu0 0.0
    %2608 = vmatprep.subr.mxu0 0.0
    %2609 = vmatpush1.msra.mxu0 0.0
    %2610 = vmatprep.subr.mxu0 0.0
    %2611 = vmatpush1.msra.mxu0 0.0
    %2612 = vmatprep.subr.mxu0 0.0
    %2613 = vmatpush1.msra.mxu0 0.0
    %2614 = vmatprep.subr.mxu0 0.0
    %2615 = vmatpush1.msra.mxu0 0.0
    %2616 = vmatprep.subr.mxu0 0.0
    %2617 = vmatpush1.msra.mxu0 0.0
    %2618 = vmatprep.subr.mxu0 0.0
    %2619 = vmatpush1.msra.mxu0 0.0
    %2620 = vmatprep.subr.mxu0 0.0
    %2621 = vmatpush1.msra.mxu0 0.0
    %2622 = vmatprep.subr.mxu0 0.0
    %2623 = vmatpush1.msra.mxu0 0.0
    %2624 = vmatprep.subr.mxu0 0.0
    %2625 = vmatpush1.msra.mxu0 0.0
    %2626 = vmatprep.subr.mxu0 0.0
    %2627 = vmatpush1.msra.mxu0 0.0
    %2628 = vmatprep.subr.mxu0 0.0
    %2629 = vmatpush1.msra.mxu0 0.0
    %2630 = vmatprep.subr.mxu0 0.0
    %2631 = vmatpush1.msra.mxu0 0.0
    %2632 = vmatprep.subr.mxu0 0.0
    %2633 = vmatpush1.msra.mxu0 0.0
    %2634 = vmatprep.subr.mxu0 0.0
    %2635 = vmatpush1.msra.mxu0 0.0
    %2636 = vmatprep.subr.mxu0 0.0
    %2637 = vmatpush1.msra.mxu0 0.0
    %2638 = vmatprep.subr.mxu0 0.0
    %2639 = vmatpush1.msra.mxu0 0.0
    %2640 = vmatprep.subr.mxu0 0.0
    %2641 = vmatpush1.msra.mxu0 0.0
    %2642 = vmatprep.subr.mxu0 0.0
    %2643 = vmatpush1.msra.mxu0 0.0
    %2644 = vmatprep.subr.mxu0 0.0
    %2645 = vmatpush1.msra.mxu0 0.0
    %2646 = vmatprep.subr.mxu0 0.0
    %2647 = vmatpush1.msra.mxu0 0.0
    %2648 = vmatprep.subr.mxu0 0.0
    %2649 = vmatpush1.msra.mxu0 0.0
    %2650 = vmatprep.subr.mxu0 0.0
    %2651 = vmatpush1.msra.mxu0 0.0
    %2652 = vmatprep.mubr.f32.mxu0 0.0
    %2653 = vmatmul.mubr.f32.gmra.mrb[0].mxu0 %v2586
    %v2654 = vpop.f32.mrb[0].mxu0
    %v2655 = vadd.f32 0.0, %v2654
    %v2656 = vpop.f32.mrb[0].mxu0
    %2657 = vdwg.mxu0
    %v2658 = vadd.f32 %v2582, %v2655
    %v2659 = vld [vmem:[%s3 + $0x1a0] sm:$0xff]
    %v2660 = vld [vmem:[%s3 + $0x1a8] sm:$0xff]
    %v2661 = vrot.slane %v681, 4
    %v2662 = vsel %vm690, %v2661, 0
    %2664 = vmatprep.subr.mxu0 0.0
    %2665 = vmatpush1.msra.mxu0 %v2659
    %2666 = vmatprep.subr.mxu0 0.0
    %2667 = vmatpush1.msra.mxu0 %v2660
    %2668 = vmatprep.subr.mxu0 0.0
    %2669 = vmatpush1.msra.mxu0 0.0
    %2670 = vmatprep.subr.mxu0 0.0
    %2671 = vmatpush1.msra.mxu0 0.0
    %2672 = vmatprep.subr.mxu0 0.0
    %2673 = vmatpush1.msra.mxu0 0.0
    %2674 = vmatprep.subr.mxu0 0.0
    %2675 = vmatpush1.msra.mxu0 0.0
    %2676 = vmatprep.subr.mxu0 0.0
    %2677 = vmatpush1.msra.mxu0 0.0
    %2678 = vmatprep.subr.mxu0 0.0
    %2679 = vmatpush1.msra.mxu0 0.0
    %2680 = vmatprep.subr.mxu0 0.0
    %2681 = vmatpush1.msra.mxu0 0.0
    %2682 = vmatprep.subr.mxu0 0.0
    %2683 = vmatpush1.msra.mxu0 0.0
    %2684 = vmatprep.subr.mxu0 0.0
    %2685 = vmatpush1.msra.mxu0 0.0
    %2686 = vmatprep.subr.mxu0 0.0
    %2687 = vmatpush1.msra.mxu0 0.0
    %2688 = vmatprep.subr.mxu0 0.0
    %2689 = vmatpush1.msra.mxu0 0.0
    %2690 = vmatprep.subr.mxu0 0.0
    %2691 = vmatpush1.msra.mxu0 0.0
    %2692 = vmatprep.subr.mxu0 0.0
    %2693 = vmatpush1.msra.mxu0 0.0
    %2694 = vmatprep.subr.mxu0 0.0
    %2695 = vmatpush1.msra.mxu0 0.0
    %2696 = vmatprep.subr.mxu0 0.0
    %2697 = vmatpush1.msra.mxu0 0.0
    %2698 = vmatprep.subr.mxu0 0.0
    %2699 = vmatpush1.msra.mxu0 0.0
    %2700 = vmatprep.subr.mxu0 0.0
    %2701 = vmatpush1.msra.mxu0 0.0
    %2702 = vmatprep.subr.mxu0 0.0
    %2703 = vmatpush1.msra.mxu0 0.0
    %2704 = vmatprep.subr.mxu0 0.0
    %2705 = vmatpush1.msra.mxu0 0.0
    %2706 = vmatprep.subr.mxu0 0.0
    %2707 = vmatpush1.msra.mxu0 0.0
    %2708 = vmatprep.subr.mxu0 0.0
    %2709 = vmatpush1.msra.mxu0 0.0
    %2710 = vmatprep.subr.mxu0 0.0
    %2711 = vmatpush1.msra.mxu0 0.0
    %2712 = vmatprep.subr.mxu0 0.0
    %2713 = vmatpush1.msra.mxu0 0.0
    %2714 = vmatprep.subr.mxu0 0.0
    %2715 = vmatpush1.msra.mxu0 0.0
    %2716 = vmatprep.subr.mxu0 0.0
    %2717 = vmatpush1.msra.mxu0 0.0
    %2718 = vmatprep.subr.mxu0 0.0
    %2719 = vmatpush1.msra.mxu0 0.0
    %2720 = vmatprep.subr.mxu0 0.0
    %2721 = vmatpush1.msra.mxu0 0.0
    %2722 = vmatprep.subr.mxu0 0.0
    %2723 = vmatpush1.msra.mxu0 0.0
    %2724 = vmatprep.subr.mxu0 0.0
    %2725 = vmatpush1.msra.mxu0 0.0
    %2726 = vmatprep.subr.mxu0 0.0
    %2727 = vmatpush1.msra.mxu0 0.0
    %2728 = vmatprep.mubr.f32.mxu0 0.0
    %2729 = vmatmul.mubr.f32.gmra.mrb[0].mxu0 %v2662
    %v2730 = vpop.f32.mrb[0].mxu0
    %v2731 = vadd.f32 0.0, %v2730
    %v2732 = vpop.f32.mrb[0].mxu0
    %2733 = vdwg.mxu0
    %v2734 = vadd.f32 %v2658, %v2731
    %v2735 = vld [vmem:[%s3 + $0x1b0] sm:$0xff]
    %v2736 = vld [vmem:[%s3 + $0x1b8] sm:$0xff]
    %v2737 = vrot.slane %v681, 6
    %v2738 = vsel %vm690, %v2737, 0
    %2740 = vmatprep.subr.mxu0 0.0
    %2741 = vmatpush1.msra.mxu0 %v2735
    %2742 = vmatprep.subr.mxu0 0.0
    %2743 = vmatpush1.msra.mxu0 %v2736
    %2744 = vmatprep.subr.mxu0 0.0
    %2745 = vmatpush1.msra.mxu0 0.0
    %2746 = vmatprep.subr.mxu0 0.0
    %2747 = vmatpush1.msra.mxu0 0.0
    %2748 = vmatprep.subr.mxu0 0.0
    %2749 = vmatpush1.msra.mxu0 0.0
    %2750 = vmatprep.subr.mxu0 0.0
    %2751 = vmatpush1.msra.mxu0 0.0
    %2752 = vmatprep.subr.mxu0 0.0
    %2753 = vmatpush1.msra.mxu0 0.0
    %2754 = vmatprep.subr.mxu0 0.0
    %2755 = vmatpush1.msra.mxu0 0.0
    %2756 = vmatprep.subr.mxu0 0.0
    %2757 = vmatpush1.msra.mxu0 0.0
    %2758 = vmatprep.subr.mxu0 0.0
    %2759 = vmatpush1.msra.mxu0 0.0
    %2760 = vmatprep.subr.mxu0 0.0
    %2761 = vmatpush1.msra.mxu0 0.0
    %2762 = vmatprep.subr.mxu0 0.0
    %2763 = vmatpush1.msra.mxu0 0.0
    %2764 = vmatprep.subr.mxu0 0.0
    %2765 = vmatpush1.msra.mxu0 0.0
    %2766 = vmatprep.subr.mxu0 0.0
    %2767 = vmatpush1.msra.mxu0 0.0
    %2768 = vmatprep.subr.mxu0 0.0
    %2769 = vmatpush1.msra.mxu0 0.0
    %2770 = vmatprep.subr.mxu0 0.0
    %2771 = vmatpush1.msra.mxu0 0.0
    %2772 = vmatprep.subr.mxu0 0.0
    %2773 = vmatpush1.msra.mxu0 0.0
    %2774 = vmatprep.subr.mxu0 0.0
    %2775 = vmatpush1.msra.mxu0 0.0
    %2776 = vmatprep.subr.mxu0 0.0
    %2777 = vmatpush1.msra.mxu0 0.0
    %2778 = vmatprep.subr.mxu0 0.0
    %2779 = vmatpush1.msra.mxu0 0.0
    %2780 = vmatprep.subr.mxu0 0.0
    %2781 = vmatpush1.msra.mxu0 0.0
    %2782 = vmatprep.subr.mxu0 0.0
    %2783 = vmatpush1.msra.mxu0 0.0
    %2784 = vmatprep.subr.mxu0 0.0
    %2785 = vmatpush1.msra.mxu0 0.0
    %2786 = vmatprep.subr.mxu0 0.0
    %2787 = vmatpush1.msra.mxu0 0.0
    %2788 = vmatprep.subr.mxu0 0.0
    %2789 = vmatpush1.msra.mxu0 0.0
    %2790 = vmatprep.subr.mxu0 0.0
    %2791 = vmatpush1.msra.mxu0 0.0
    %2792 = vmatprep.subr.mxu0 0.0
    %2793 = vmatpush1.msra.mxu0 0.0
    %2794 = vmatprep.subr.mxu0 0.0
    %2795 = vmatpush1.msra.mxu0 0.0
    %2796 = vmatprep.subr.mxu0 0.0
    %2797 = vmatpush1.msra.mxu0 0.0
    %2798 = vmatprep.subr.mxu0 0.0
    %2799 = vmatpush1.msra.mxu0 0.0
    %2800 = vmatprep.subr.mxu0 0.0
    %2801 = vmatpush1.msra.mxu0 0.0
    %2802 = vmatprep.subr.mxu0 0.0
    %2803 = vmatpush1.msra.mxu0 0.0
    %2804 = vmatprep.mubr.f32.mxu0 0.0
    %2805 = vmatmul.mubr.f32.gmra.mrb[0].mxu0 %v2738
    %v2806 = vpop.f32.mrb[0].mxu0
    %v2807 = vadd.f32 0.0, %v2806
    %v2808 = vpop.f32.mrb[0].mxu0
    %2809 = vdwg.mxu0
    %v2810 = vadd.f32 %v2734, %v2807
    %v2811 = vld [vmem:[%s3 + $0x1c0] sm:$0xff]
    %v2812 = vld [vmem:[%s3 + $0x1c8] sm:$0xff]
    %v2814 = vsel %vm690, %v682, 0
    %2816 = vmatprep.subr.mxu0 0.0
    %2817 = vmatpush1.msra.mxu0 %v2811
    %2818 = vmatprep.subr.mxu0 0.0
    %2819 = vmatpush1.msra.mxu0 %v2812
    %2820 = vmatprep.subr.mxu0 0.0
    %2821 = vmatpush1.msra.mxu0 0.0
    %2822 = vmatprep.subr.mxu0 0.0
    %2823 = vmatpush1.msra.mxu0 0.0
    %2824 = vmatprep.subr.mxu0 0.0
    %2825 = vmatpush1.msra.mxu0 0.0
    %2826 = vmatprep.subr.mxu0 0.0
    %2827 = vmatpush1.msra.mxu0 0.0
    %2828 = vmatprep.subr.mxu0 0.0
    %2829 = vmatpush1.msra.mxu0 0.0
    %2830 = vmatprep.subr.mxu0 0.0
    %2831 = vmatpush1.msra.mxu0 0.0
    %2832 = vmatprep.subr.mxu0 0.0
    %2833 = vmatpush1.msra.mxu0 0.0
    %2834 = vmatprep.subr.mxu0 0.0
    %2835 = vmatpush1.msra.mxu0 0.0
    %2836 = vmatprep.subr.mxu0 0.0
    %2837 = vmatpush1.msra.mxu0 0.0
    %2838 = vmatprep.subr.mxu0 0.0
    %2839 = vmatpush1.msra.mxu0 0.0
    %2840 = vmatprep.subr.mxu0 0.0
    %2841 = vmatpush1.msra.mxu0 0.0
    %2842 = vmatprep.subr.mxu0 0.0
    %2843 = vmatpush1.msra.mxu0 0.0
    %2844 = vmatprep.subr.mxu0 0.0
    %2845 = vmatpush1.msra.mxu0 0.0
    %2846 = vmatprep.subr.mxu0 0.0
    %2847 = vmatpush1.msra.mxu0 0.0
    %2848 = vmatprep.subr.mxu0 0.0
    %2849 = vmatpush1.msra.mxu0 0.0
    %2850 = vmatprep.subr.mxu0 0.0
    %2851 = vmatpush1.msra.mxu0 0.0
    %2852 = vmatprep.subr.mxu0 0.0
    %2853 = vmatpush1.msra.mxu0 0.0
    %2854 = vmatprep.subr.mxu0 0.0
    %2855 = vmatpush1.msra.mxu0 0.0
    %2856 = vmatprep.subr.mxu0 0.0
    %2857 = vmatpush1.msra.mxu0 0.0
    %2858 = vmatprep.subr.mxu0 0.0
    %2859 = vmatpush1.msra.mxu0 0.0
    %2860 = vmatprep.subr.mxu0 0.0
    %2861 = vmatpush1.msra.mxu0 0.0
    %2862 = vmatprep.subr.mxu0 0.0
    %2863 = vmatpush1.msra.mxu0 0.0
    %2864 = vmatprep.subr.mxu0 0.0
    %2865 = vmatpush1.msra.mxu0 0.0
    %2866 = vmatprep.subr.mxu0 0.0
    %2867 = vmatpush1.msra.mxu0 0.0
    %2868 = vmatprep.subr.mxu0 0.0
    %2869 = vmatpush1.msra.mxu0 0.0
    %2870 = vmatprep.subr.mxu0 0.0
    %2871 = vmatpush1.msra.mxu0 0.0
    %2872 = vmatprep.subr.mxu0 0.0
    %2873 = vmatpush1.msra.mxu0 0.0
    %2874 = vmatprep.subr.mxu0 0.0
    %2875 = vmatpush1.msra.mxu0 0.0
    %2876 = vmatprep.subr.mxu0 0.0
    %2877 = vmatpush1.msra.mxu0 0.0
    %2878 = vmatprep.subr.mxu0 0.0
    %2879 = vmatpush1.msra.mxu0 0.0
    %2880 = vmatprep.mubr.f32.mxu0 0.0
    %2881 = vmatmul.mubr.f32.gmra.mrb[0].mxu0 %v2814
    %v2882 = vpop.f32.mrb[0].mxu0
    %v2883 = vadd.f32 0.0, %v2882
    %v2884 = vpop.f32.mrb[0].mxu0
    %2885 = vdwg.mxu0
    %v2886 = vadd.f32 %v2810, %v2883
    %v2887 = vld [vmem:[%s3 + $0x1d0] sm:$0xff]
    %v2888 = vld [vmem:[%s3 + $0x1d8] sm:$0xff]
    %v2889 = vrot.slane %v682, 2
    %v2890 = vsel %vm690, %v2889, 0
    %2892 = vmatprep.subr.mxu0 0.0
    %2893 = vmatpush1.msra.mxu0 %v2887
    %2894 = vmatprep.subr.mxu0 0.0
    %2895 = vmatpush1.msra.mxu0 %v2888
    %2896 = vmatprep.subr.mxu0 0.0
    %2897 = vmatpush1.msra.mxu0 0.0
    %2898 = vmatprep.subr.mxu0 0.0
    %2899 = vmatpush1.msra.mxu0 0.0
    %2900 = vmatprep.subr.mxu0 0.0
    %2901 = vmatpush1.msra.mxu0 0.0
    %2902 = vmatprep.subr.mxu0 0.0
    %2903 = vmatpush1.msra.mxu0 0.0
    %2904 = vmatprep.subr.mxu0 0.0
    %2905 = vmatpush1.msra.mxu0 0.0
    %2906 = vmatprep.subr.mxu0 0.0
    %2907 = vmatpush1.msra.mxu0 0.0
    %2908 = vmatprep.subr.mxu0 0.0
    %2909 = vmatpush1.msra.mxu0 0.0
    %2910 = vmatprep.subr.mxu0 0.0
    %2911 = vmatpush1.msra.mxu0 0.0
    %2912 = vmatprep.subr.mxu0 0.0
    %2913 = vmatpush1.msra.mxu0 0.0
    %2914 = vmatprep.subr.mxu0 0.0
    %2915 = vmatpush1.msra.mxu0 0.0
    %2916 = vmatprep.subr.mxu0 0.0
    %2917 = vmatpush1.msra.mxu0 0.0
    %2918 = vmatprep.subr.mxu0 0.0
    %2919 = vmatpush1.msra.mxu0 0.0
    %2920 = vmatprep.subr.mxu0 0.0
    %2921 = vmatpush1.msra.mxu0 0.0
    %2922 = vmatprep.subr.mxu0 0.0
    %2923 = vmatpush1.msra.mxu0 0.0
    %2924 = vmatprep.subr.mxu0 0.0
    %2925 = vmatpush1.msra.mxu0 0.0
    %2926 = vmatprep.subr.mxu0 0.0
    %2927 = vmatpush1.msra.mxu0 0.0
    %2928 = vmatprep.subr.mxu0 0.0
    %2929 = vmatpush1.msra.mxu0 0.0
    %2930 = vmatprep.subr.mxu0 0.0
    %2931 = vmatpush1.msra.mxu0 0.0
    %2932 = vmatprep.subr.mxu0 0.0
    %2933 = vmatpush1.msra.mxu0 0.0
    %2934 = vmatprep.subr.mxu0 0.0
    %2935 = vmatpush1.msra.mxu0 0.0
    %2936 = vmatprep.subr.mxu0 0.0
    %2937 = vmatpush1.msra.mxu0 0.0
    %2938 = vmatprep.subr.mxu0 0.0
    %2939 = vmatpush1.msra.mxu0 0.0
    %2940 = vmatprep.subr.mxu0 0.0
    %2941 = vmatpush1.msra.mxu0 0.0
    %2942 = vmatprep.subr.mxu0 0.0
    %2943 = vmatpush1.msra.mxu0 0.0
    %2944 = vmatprep.subr.mxu0 0.0
    %2945 = vmatpush1.msra.mxu0 0.0
    %2946 = vmatprep.subr.mxu0 0.0
    %2947 = vmatpush1.msra.mxu0 0.0
    %2948 = vmatprep.subr.mxu0 0.0
    %2949 = vmatpush1.msra.mxu0 0.0
    %2950 = vmatprep.subr.mxu0 0.0
    %2951 = vmatpush1.msra.mxu0 0.0
    %2952 = vmatprep.subr.mxu0 0.0
    %2953 = vmatpush1.msra.mxu0 0.0
    %2954 = vmatprep.subr.mxu0 0.0
    %2955 = vmatpush1.msra.mxu0 0.0
    %2956 = vmatprep.mubr.f32.mxu0 0.0
    %2957 = vmatmul.mubr.f32.gmra.mrb[0].mxu0 %v2890
    %v2958 = vpop.f32.mrb[0].mxu0
    %v2959 = vadd.f32 0.0, %v2958
    %v2960 = vpop.f32.mrb[0].mxu0
    %2961 = vdwg.mxu0
    %v2962 = vadd.f32 %v2886, %v2959
    %v2963 = vld [vmem:[%s3 + $0x1e0] sm:$0xff]
    %v2964 = vld [vmem:[%s3 + $0x1e8] sm:$0xff]
    %v2965 = vrot.slane %v682, 4
    %v2966 = vsel %vm690, %v2965, 0
    %2968 = vmatprep.subr.mxu0 0.0
    %2969 = vmatpush1.msra.mxu0 %v2963
    %2970 = vmatprep.subr.mxu0 0.0
    %2971 = vmatpush1.msra.mxu0 %v2964
    %2972 = vmatprep.subr.mxu0 0.0
    %2973 = vmatpush1.msra.mxu0 0.0
    %2974 = vmatprep.subr.mxu0 0.0
    %2975 = vmatpush1.msra.mxu0 0.0
    %2976 = vmatprep.subr.mxu0 0.0
    %2977 = vmatpush1.msra.mxu0 0.0
    %2978 = vmatprep.subr.mxu0 0.0
    %2979 = vmatpush1.msra.mxu0 0.0
    %2980 = vmatprep.subr.mxu0 0.0
    %2981 = vmatpush1.msra.mxu0 0.0
    %2982 = vmatprep.subr.mxu0 0.0
    %2983 = vmatpush1.msra.mxu0 0.0
    %2984 = vmatprep.subr.mxu0 0.0
    %2985 = vmatpush1.msra.mxu0 0.0
    %2986 = vmatprep.subr.mxu0 0.0
    %2987 = vmatpush1.msra.mxu0 0.0
    %2988 = vmatprep.subr.mxu0 0.0
    %2989 = vmatpush1.msra.mxu0 0.0
    %2990 = vmatprep.subr.mxu0 0.0
    %2991 = vmatpush1.msra.mxu0 0.0
    %2992 = vmatprep.subr.mxu0 0.0
    %2993 = vmatpush1.msra.mxu0 0.0
    %2994 = vmatprep.subr.mxu0 0.0
    %2995 = vmatpush1.msra.mxu0 0.0
    %2996 = vmatprep.subr.mxu0 0.0
    %2997 = vmatpush1.msra.mxu0 0.0
    %2998 = vmatprep.subr.mxu0 0.0
    %2999 = vmatpush1.msra.mxu0 0.0
    %3000 = vmatprep.subr.mxu0 0.0
    %3001 = vmatpush1.msra.mxu0 0.0
    %3002 = vmatprep.subr.mxu0 0.0
    %3003 = vmatpush1.msra.mxu0 0.0
    %3004 = vmatprep.subr.mxu0 0.0
    %3005 = vmatpush1.msra.mxu0 0.0
    %3006 = vmatprep.subr.mxu0 0.0
    %3007 = vmatpush1.msra.mxu0 0.0
    %3008 = vmatprep.subr.mxu0 0.0
    %3009 = vmatpush1.msra.mxu0 0.0
    %3010 = vmatprep.subr.mxu0 0.0
    %3011 = vmatpush1.msra.mxu0 0.0
    %3012 = vmatprep.subr.mxu0 0.0
    %3013 = vmatpush1.msra.mxu0 0.0
    %3014 = vmatprep.subr.mxu0 0.0
    %3015 = vmatpush1.msra.mxu0 0.0
    %3016 = vmatprep.subr.mxu0 0.0
    %3017 = vmatpush1.msra.mxu0 0.0
    %3018 = vmatprep.subr.mxu0 0.0
    %3019 = vmatpush1.msra.mxu0 0.0
    %3020 = vmatprep.subr.mxu0 0.0
    %3021 = vmatpush1.msra.mxu0 0.0
    %3022 = vmatprep.subr.mxu0 0.0
    %3023 = vmatpush1.msra.mxu0 0.0
    %3024 = vmatprep.subr.mxu0 0.0
    %3025 = vmatpush1.msra.mxu0 0.0
    %3026 = vmatprep.subr.mxu0 0.0
    %3027 = vmatpush1.msra.mxu0 0.0
    %3028 = vmatprep.subr.mxu0 0.0
    %3029 = vmatpush1.msra.mxu0 0.0
    %3030 = vmatprep.subr.mxu0 0.0
    %3031 = vmatpush1.msra.mxu0 0.0
    %3032 = vmatprep.mubr.f32.mxu0 0.0
    %3033 = vmatmul.mubr.f32.gmra.mrb[0].mxu0 %v2966
    %v3034 = vpop.f32.mrb[0].mxu0
    %v3035 = vadd.f32 0.0, %v3034
    %v3036 = vpop.f32.mrb[0].mxu0
    %3037 = vdwg.mxu0
    %v3038 = vadd.f32 %v2962, %v3035
    %v3039 = vld [vmem:[%s3 + $0x1f0] sm:$0xff]
    %v3040 = vld [vmem:[%s3 + $0x1f8] sm:$0xff]
    %v3041 = vrot.slane %v682, 6
    %v3042 = vsel %vm690, %v3041, 0
    %3044 = vmatprep.subr.mxu0 0.0
    %3045 = vmatpush1.msra.mxu0 %v3039
    %3046 = vmatprep.subr.mxu0 0.0
    %3047 = vmatpush1.msra.mxu0 %v3040
    %3048 = vmatprep.subr.mxu0 0.0
    %3049 = vmatpush1.msra.mxu0 0.0
    %3050 = vmatprep.subr.mxu0 0.0
    %3051 = vmatpush1.msra.mxu0 0.0
    %3052 = vmatprep.subr.mxu0 0.0
    %3053 = vmatpush1.msra.mxu0 0.0
    %3054 = vmatprep.subr.mxu0 0.0
    %3055 = vmatpush1.msra.mxu0 0.0
    %3056 = vmatprep.subr.mxu0 0.0
    %3057 = vmatpush1.msra.mxu0 0.0
    %3058 = vmatprep.subr.mxu0 0.0
    %3059 = vmatpush1.msra.mxu0 0.0
    %3060 = vmatprep.subr.mxu0 0.0
    %3061 = vmatpush1.msra.mxu0 0.0
    %3062 = vmatprep.subr.mxu0 0.0
    %3063 = vmatpush1.msra.mxu0 0.0
    %3064 = vmatprep.subr.mxu0 0.0
    %3065 = vmatpush1.msra.mxu0 0.0
    %3066 = vmatprep.subr.mxu0 0.0
    %3067 = vmatpush1.msra.mxu0 0.0
    %3068 = vmatprep.subr.mxu0 0.0
    %3069 = vmatpush1.msra.mxu0 0.0
    %3070 = vmatprep.subr.mxu0 0.0
    %3071 = vmatpush1.msra.mxu0 0.0
    %3072 = vmatprep.subr.mxu0 0.0
    %3073 = vmatpush1.msra.mxu0 0.0
    %3074 = vmatprep.subr.mxu0 0.0
    %3075 = vmatpush1.msra.mxu0 0.0
    %3076 = vmatprep.subr.mxu0 0.0
    %3077 = vmatpush1.msra.mxu0 0.0
    %3078 = vmatprep.subr.mxu0 0.0
    %3079 = vmatpush1.msra.mxu0 0.0
    %3080 = vmatprep.subr.mxu0 0.0
    %3081 = vmatpush1.msra.mxu0 0.0
    %3082 = vmatprep.subr.mxu0 0.0
    %3083 = vmatpush1.msra.mxu0 0.0
    %3084 = vmatprep.subr.mxu0 0.0
    %3085 = vmatpush1.msra.mxu0 0.0
    %3086 = vmatprep.subr.mxu0 0.0
    %3087 = vmatpush1.msra.mxu0 0.0
    %3088 = vmatprep.subr.mxu0 0.0
    %3089 = vmatpush1.msra.mxu0 0.0
    %3090 = vmatprep.subr.mxu0 0.0
    %3091 = vmatpush1.msra.mxu0 0.0
    %3092 = vmatprep.subr.mxu0 0.0
    %3093 = vmatpush1.msra.mxu0 0.0
    %3094 = vmatprep.subr.mxu0 0.0
    %3095 = vmatpush1.msra.mxu0 0.0
    %3096 = vmatprep.subr.mxu0 0.0
    %3097 = vmatpush1.msra.mxu0 0.0
    %3098 = vmatprep.subr.mxu0 0.0
    %3099 = vmatpush1.msra.mxu0 0.0
    %3100 = vmatprep.subr.mxu0 0.0
    %3101 = vmatpush1.msra.mxu0 0.0
    %3102 = vmatprep.subr.mxu0 0.0
    %3103 = vmatpush1.msra.mxu0 0.0
    %3104 = vmatprep.subr.mxu0 0.0
    %3105 = vmatpush1.msra.mxu0 0.0
    %3106 = vmatprep.subr.mxu0 0.0
    %3107 = vmatpush1.msra.mxu0 0.0
    %3108 = vmatprep.mubr.f32.mxu0 0.0
    %3109 = vmatmul.mubr.f32.gmra.mrb[0].mxu0 %v3042
    %v3110 = vpop.f32.mrb[0].mxu0
    %v3111 = vadd.f32 0.0, %v3110
    %v3112 = vpop.f32.mrb[0].mxu0
    %3113 = vdwg.mxu0
    %v3114 = vadd.f32 %v3038, %v3111
    %v3115 = vld [vmem:[%s3 + $0x200] sm:$0xff]
    %v3116 = vld [vmem:[%s3 + $0x208] sm:$0xff]
    %v3118 = vsel %vm690, %v683, 0
    %3120 = vmatprep.subr.mxu0 0.0
    %3121 = vmatpush1.msra.mxu0 %v3115
    %3122 = vmatprep.subr.mxu0 0.0
    %3123 = vmatpush1.msra.mxu0 %v3116
    %3124 = vmatprep.subr.mxu0 0.0
    %3125 = vmatpush1.msra.mxu0 0.0
    %3126 = vmatprep.subr.mxu0 0.0
    %3127 = vmatpush1.msra.mxu0 0.0
    %3128 = vmatprep.subr.mxu0 0.0
    %3129 = vmatpush1.msra.mxu0 0.0
    %3130 = vmatprep.subr.mxu0 0.0
    %3131 = vmatpush1.msra.mxu0 0.0
    %3132 = vmatprep.subr.mxu0 0.0
    %3133 = vmatpush1.msra.mxu0 0.0
    %3134 = vmatprep.subr.mxu0 0.0
    %3135 = vmatpush1.msra.mxu0 0.0
    %3136 = vmatprep.subr.mxu0 0.0
    %3137 = vmatpush1.msra.mxu0 0.0
    %3138 = vmatprep.subr.mxu0 0.0
    %3139 = vmatpush1.msra.mxu0 0.0
    %3140 = vmatprep.subr.mxu0 0.0
    %3141 = vmatpush1.msra.mxu0 0.0
    %3142 = vmatprep.subr.mxu0 0.0
    %3143 = vmatpush1.msra.mxu0 0.0
    %3144 = vmatprep.subr.mxu0 0.0
    %3145 = vmatpush1.msra.mxu0 0.0
    %3146 = vmatprep.subr.mxu0 0.0
    %3147 = vmatpush1.msra.mxu0 0.0
    %3148 = vmatprep.subr.mxu0 0.0
    %3149 = vmatpush1.msra.mxu0 0.0
    %3150 = vmatprep.subr.mxu0 0.0
    %3151 = vmatpush1.msra.mxu0 0.0
    %3152 = vmatprep.subr.mxu0 0.0
    %3153 = vmatpush1.msra.mxu0 0.0
    %3154 = vmatprep.subr.mxu0 0.0
    %3155 = vmatpush1.msra.mxu0 0.0
    %3156 = vmatprep.subr.mxu0 0.0
    %3157 = vmatpush1.msra.mxu0 0.0
    %3158 = vmatprep.subr.mxu0 0.0
    %3159 = vmatpush1.msra.mxu0 0.0
    %3160 = vmatprep.subr.mxu0 0.0
    %3161 = vmatpush1.msra.mxu0 0.0
    %3162 = vmatprep.subr.mxu0 0.0
    %3163 = vmatpush1.msra.mxu0 0.0
    %3164 = vmatprep.subr.mxu0 0.0
    %3165 = vmatpush1.msra.mxu0 0.0
    %3166 = vmatprep.subr.mxu0 0.0
    %3167 = vmatpush1.msra.mxu0 0.0
    %3168 = vmatprep.subr.mxu0 0.0
    %3169 = vmatpush1.msra.mxu0 0.0
    %3170 = vmatprep.subr.mxu0 0.0
    %3171 = vmatpush1.msra.mxu0 0.0
    %3172 = vmatprep.subr.mxu0 0.0
    %3173 = vmatpush1.msra.mxu0 0.0
    %3174 = vmatprep.subr.mxu0 0.0
    %3175 = vmatpush1.msra.mxu0 0.0
    %3176 = vmatprep.subr.mxu0 0.0
    %3177 = vmatpush1.msra.mxu0 0.0
    %3178 = vmatprep.subr.mxu0 0.0
    %3179 = vmatpush1.msra.mxu0 0.0
    %3180 = vmatprep.subr.mxu0 0.0
    %3181 = vmatpush1.msra.mxu0 0.0
    %3182 = vmatprep.subr.mxu0 0.0
    %3183 = vmatpush1.msra.mxu0 0.0
    %3184 = vmatprep.mubr.f32.mxu0 0.0
    %3185 = vmatmul.mubr.f32.gmra.mrb[0].mxu0 %v3118
    %v3186 = vpop.f32.mrb[0].mxu0
    %v3187 = vadd.f32 0.0, %v3186
    %v3188 = vpop.f32.mrb[0].mxu0
    %3189 = vdwg.mxu0
    %v3190 = vadd.f32 %v3114, %v3187
    %v3191 = vld [vmem:[%s3 + $0x210] sm:$0xff]
    %v3192 = vld [vmem:[%s3 + $0x218] sm:$0xff]
    %v3193 = vrot.slane %v683, 2
    %v3194 = vsel %vm690, %v3193, 0
    %3196 = vmatprep.subr.mxu0 0.0
    %3197 = vmatpush1.msra.mxu0 %v3191
    %3198 = vmatprep.subr.mxu0 0.0
    %3199 = vmatpush1.msra.mxu0 %v3192
    %3200 = vmatprep.subr.mxu0 0.0
    %3201 = vmatpush1.msra.mxu0 0.0
    %3202 = vmatprep.subr.mxu0 0.0
    %3203 = vmatpush1.msra.mxu0 0.0
    %3204 = vmatprep.subr.mxu0 0.0
    %3205 = vmatpush1.msra.mxu0 0.0
    %3206 = vmatprep.subr.mxu0 0.0
    %3207 = vmatpush1.msra.mxu0 0.0
    %3208 = vmatprep.subr.mxu0 0.0
    %3209 = vmatpush1.msra.mxu0 0.0
    %3210 = vmatprep.subr.mxu0 0.0
    %3211 = vmatpush1.msra.mxu0 0.0
    %3212 = vmatprep.subr.mxu0 0.0
    %3213 = vmatpush1.msra.mxu0 0.0
    %3214 = vmatprep.subr.mxu0 0.0
    %3215 = vmatpush1.msra.mxu0 0.0
    %3216 = vmatprep.subr.mxu0 0.0
    %3217 = vmatpush1.msra.mxu0 0.0
    %3218 = vmatprep.subr.mxu0 0.0
    %3219 = vmatpush1.msra.mxu0 0.0
    %3220 = vmatprep.subr.mxu0 0.0
    %3221 = vmatpush1.msra.mxu0 0.0
    %3222 = vmatprep.subr.mxu0 0.0
    %3223 = vmatpush1.msra.mxu0 0.0
    %3224 = vmatprep.subr.mxu0 0.0
    %3225 = vmatpush1.msra.mxu0 0.0
    %3226 = vmatprep.subr.mxu0 0.0
    %3227 = vmatpush1.msra.mxu0 0.0
    %3228 = vmatprep.subr.mxu0 0.0
    %3229 = vmatpush1.msra.mxu0 0.0
    %3230 = vmatprep.subr.mxu0 0.0
    %3231 = vmatpush1.msra.mxu0 0.0
    %3232 = vmatprep.subr.mxu0 0.0
    %3233 = vmatpush1.msra.mxu0 0.0
    %3234 = vmatprep.subr.mxu0 0.0
    %3235 = vmatpush1.msra.mxu0 0.0
    %3236 = vmatprep.subr.mxu0 0.0
    %3237 = vmatpush1.msra.mxu0 0.0
    %3238 = vmatprep.subr.mxu0 0.0
    %3239 = vmatpush1.msra.mxu0 0.0
    %3240 = vmatprep.subr.mxu0 0.0
    %3241 = vmatpush1.msra.mxu0 0.0
    %3242 = vmatprep.subr.mxu0 0.0
    %3243 = vmatpush1.msra.mxu0 0.0
    %3244 = vmatprep.subr.mxu0 0.0
    %3245 = vmatpush1.msra.mxu0 0.0
    %3246 = vmatprep.subr.mxu0 0.0
    %3247 = vmatpush1.msra.mxu0 0.0
    %3248 = vmatprep.subr.mxu0 0.0
    %3249 = vmatpush1.msra.mxu0 0.0
    %3250 = vmatprep.subr.mxu0 0.0
    %3251 = vmatpush1.msra.mxu0 0.0
    %3252 = vmatprep.subr.mxu0 0.0
    %3253 = vmatpush1.msra.mxu0 0.0
    %3254 = vmatprep.subr.mxu0 0.0
    %3255 = vmatpush1.msra.mxu0 0.0
    %3256 = vmatprep.subr.mxu0 0.0
    %3257 = vmatpush1.msra.mxu0 0.0
    %3258 = vmatprep.subr.mxu0 0.0
    %3259 = vmatpush1.msra.mxu0 0.0
    %3260 = vmatprep.mubr.f32.mxu0 0.0
    %3261 = vmatmul.mubr.f32.gmra.mrb[0].mxu0 %v3194
    %v3262 = vpop.f32.mrb[0].mxu0
    %v3263 = vadd.f32 0.0, %v3262
    %v3264 = vpop.f32.mrb[0].mxu0
    %3265 = vdwg.mxu0
    %v3266 = vadd.f32 %v3190, %v3263
    %v3267 = vld [vmem:[%s3 + $0x220] sm:$0xff]
    %v3268 = vld [vmem:[%s3 + $0x228] sm:$0xff]
    %v3269 = vrot.slane %v683, 4
    %v3270 = vsel %vm690, %v3269, 0
    %3272 = vmatprep.subr.mxu0 0.0
    %3273 = vmatpush1.msra.mxu0 %v3267
    %3274 = vmatprep.subr.mxu0 0.0
    %3275 = vmatpush1.msra.mxu0 %v3268
    %3276 = vmatprep.subr.mxu0 0.0
    %3277 = vmatpush1.msra.mxu0 0.0
    %3278 = vmatprep.subr.mxu0 0.0
    %3279 = vmatpush1.msra.mxu0 0.0
    %3280 = vmatprep.subr.mxu0 0.0
    %3281 = vmatpush1.msra.mxu0 0.0
    %3282 = vmatprep.subr.mxu0 0.0
    %3283 = vmatpush1.msra.mxu0 0.0
    %3284 = vmatprep.subr.mxu0 0.0
    %3285 = vmatpush1.msra.mxu0 0.0
    %3286 = vmatprep.subr.mxu0 0.0
    %3287 = vmatpush1.msra.mxu0 0.0
    %3288 = vmatprep.subr.mxu0 0.0
    %3289 = vmatpush1.msra.mxu0 0.0
    %3290 = vmatprep.subr.mxu0 0.0
    %3291 = vmatpush1.msra.mxu0 0.0
    %3292 = vmatprep.subr.mxu0 0.0
    %3293 = vmatpush1.msra.mxu0 0.0
    %3294 = vmatprep.subr.mxu0 0.0
    %3295 = vmatpush1.msra.mxu0 0.0
    %3296 = vmatprep.subr.mxu0 0.0
    %3297 = vmatpush1.msra.mxu0 0.0
    %3298 = vmatprep.subr.mxu0 0.0
    %3299 = vmatpush1.msra.mxu0 0.0
    %3300 = vmatprep.subr.mxu0 0.0
    %3301 = vmatpush1.msra.mxu0 0.0
    %3302 = vmatprep.subr.mxu0 0.0
    %3303 = vmatpush1.msra.mxu0 0.0
    %3304 = vmatprep.subr.mxu0 0.0
    %3305 = vmatpush1.msra.mxu0 0.0
    %3306 = vmatprep.subr.mxu0 0.0
    %3307 = vmatpush1.msra.mxu0 0.0
    %3308 = vmatprep.subr.mxu0 0.0
    %3309 = vmatpush1.msra.mxu0 0.0
    %3310 = vmatprep.subr.mxu0 0.0
    %3311 = vmatpush1.msra.mxu0 0.0
    %3312 = vmatprep.subr.mxu0 0.0
    %3313 = vmatpush1.msra.mxu0 0.0
    %3314 = vmatprep.subr.mxu0 0.0
    %3315 = vmatpush1.msra.mxu0 0.0
    %3316 = vmatprep.subr.mxu0 0.0
    %3317 = vmatpush1.msra.mxu0 0.0
    %3318 = vmatprep.subr.mxu0 0.0
    %3319 = vmatpush1.msra.mxu0 0.0
    %3320 = vmatprep.subr.mxu0 0.0
    %3321 = vmatpush1.msra.mxu0 0.0
    %3322 = vmatprep.subr.mxu0 0.0
    %3323 = vmatpush1.msra.mxu0 0.0
    %3324 = vmatprep.subr.mxu0 0.0
    %3325 = vmatpush1.msra.mxu0 0.0
    %3326 = vmatprep.subr.mxu0 0.0
    %3327 = vmatpush1.msra.mxu0 0.0
    %3328 = vmatprep.subr.mxu0 0.0
    %3329 = vmatpush1.msra.mxu0 0.0
    %3330 = vmatprep.subr.mxu0 0.0
    %3331 = vmatpush1.msra.mxu0 0.0
    %3332 = vmatprep.subr.mxu0 0.0
    %3333 = vmatpush1.msra.mxu0 0.0
    %3334 = vmatprep.subr.mxu0 0.0
    %3335 = vmatpush1.msra.mxu0 0.0
    %3336 = vmatprep.mubr.f32.mxu0 0.0
    %3337 = vmatmul.mubr.f32.gmra.mrb[0].mxu0 %v3270
    %v3338 = vpop.f32.mrb[0].mxu0
    %v3339 = vadd.f32 0.0, %v3338
    %v3340 = vpop.f32.mrb[0].mxu0
    %3341 = vdwg.mxu0
    %v3342 = vadd.f32 %v3266, %v3339
    %v3343 = vld [vmem:[%s3 + $0x230] sm:$0xff]
    %v3344 = vld [vmem:[%s3 + $0x238] sm:$0xff]
    %v3345 = vrot.slane %v683, 6
    %v3346 = vsel %vm690, %v3345, 0
    %3348 = vmatprep.subr.mxu0 0.0
    %3349 = vmatpush1.msra.mxu0 %v3343
    %3350 = vmatprep.subr.mxu0 0.0
    %3351 = vmatpush1.msra.mxu0 %v3344
    %3352 = vmatprep.subr.mxu0 0.0
    %3353 = vmatpush1.msra.mxu0 0.0
    %3354 = vmatprep.subr.mxu0 0.0
    %3355 = vmatpush1.msra.mxu0 0.0
    %3356 = vmatprep.subr.mxu0 0.0
    %3357 = vmatpush1.msra.mxu0 0.0
    %3358 = vmatprep.subr.mxu0 0.0
    %3359 = vmatpush1.msra.mxu0 0.0
    %3360 = vmatprep.subr.mxu0 0.0
    %3361 = vmatpush1.msra.mxu0 0.0
    %3362 = vmatprep.subr.mxu0 0.0
    %3363 = vmatpush1.msra.mxu0 0.0
    %3364 = vmatprep.subr.mxu0 0.0
    %3365 = vmatpush1.msra.mxu0 0.0
    %3366 = vmatprep.subr.mxu0 0.0
    %3367 = vmatpush1.msra.mxu0 0.0
    %3368 = vmatprep.subr.mxu0 0.0
    %3369 = vmatpush1.msra.mxu0 0.0
    %3370 = vmatprep.subr.mxu0 0.0
    %3371 = vmatpush1.msra.mxu0 0.0
    %3372 = vmatprep.subr.mxu0 0.0
    %3373 = vmatpush1.msra.mxu0 0.0
    %3374 = vmatprep.subr.mxu0 0.0
    %3375 = vmatpush1.msra.mxu0 0.0
    %3376 = vmatprep.subr.mxu0 0.0
    %3377 = vmatpush1.msra.mxu0 0.0
    %3378 = vmatprep.subr.mxu0 0.0
    %3379 = vmatpush1.msra.mxu0 0.0
    %3380 = vmatprep.subr.mxu0 0.0
    %3381 = vmatpush1.msra.mxu0 0.0
    %3382 = vmatprep.subr.mxu0 0.0
    %3383 = vmatpush1.msra.mxu0 0.0
    %3384 = vmatprep.subr.mxu0 0.0
    %3385 = vmatpush1.msra.mxu0 0.0
    %3386 = vmatprep.subr.mxu0 0.0
    %3387 = vmatpush1.msra.mxu0 0.0
    %3388 = vmatprep.subr.mxu0 0.0
    %3389 = vmatpush1.msra.mxu0 0.0
    %3390 = vmatprep.subr.mxu0 0.0
    %3391 = vmatpush1.msra.mxu0 0.0
    %3392 = vmatprep.subr.mxu0 0.0
    %3393 = vmatpush1.msra.mxu0 0.0
    %3394 = vmatprep.subr.mxu0 0.0
    %3395 = vmatpush1.msra.mxu0 0.0
    %3396 = vmatprep.subr.mxu0 0.0
    %3397 = vmatpush1.msra.mxu0 0.0
    %3398 = vmatprep.subr.mxu0 0.0
    %3399 = vmatpush1.msra.mxu0 0.0
    %3400 = vmatprep.subr.mxu0 0.0
    %3401 = vmatpush1.msra.mxu0 0.0
    %3402 = vmatprep.subr.mxu0 0.0
    %3403 = vmatpush1.msra.mxu0 0.0
    %3404 = vmatprep.subr.mxu0 0.0
    %3405 = vmatpush1.msra.mxu0 0.0
    %3406 = vmatprep.subr.mxu0 0.0
    %3407 = vmatpush1.msra.mxu0 0.0
    %3408 = vmatprep.subr.mxu0 0.0
    %3409 = vmatpush1.msra.mxu0 0.0
    %3410 = vmatprep.subr.mxu0 0.0
    %3411 = vmatpush1.msra.mxu0 0.0
    %3412 = vmatprep.mubr.f32.mxu0 0.0
    %3413 = vmatmul.mubr.f32.gmra.mrb[0].mxu0 %v3346
    %v3414 = vpop.f32.mrb[0].mxu0
    %v3415 = vadd.f32 0.0, %v3414
    %v3416 = vpop.f32.mrb[0].mxu0
    %3417 = vdwg.mxu0
    %v3418 = vadd.f32 %v3342, %v3415
    %v3419 = vld [vmem:[%s4] sm:$0x1]
    %v3421 = vlaneseq
    %v3422 = vshrl.u32 %v3421, 7
    %v3423 = vsub.s32 0, %v3422
    %v3424 = vrot.slane %v3419, %v3423
    %v3426 = vadd.f32 %v3418, %v3424
    %v3427 = vmax.f32 %v3426, 0.0
    %v3428 = vld [vmem:[%s5] sm:$0xff]
    %v3429 = vld [vmem:[%s5 + $0x8] sm:$0xff]
    %v3430 = vld [vmem:[%s5 + $0x10] sm:$0xff]
    %v3431 = vld [vmem:[%s5 + $0x18] sm:$0xff]
    %v3432 = vld [vmem:[%s5 + $0x20] sm:$0xff]
    %v3433 = vld [vmem:[%s5 + $0x28] sm:$0xff]
    %v3434 = vld [vmem:[%s5 + $0x30] sm:$0xff]
    %v3435 = vld [vmem:[%s5 + $0x38] sm:$0xff]
    %v3436 = vld [vmem:[%s5 + $0x40] sm:$0xff]
    %v3437 = vld [vmem:[%s5 + $0x48] sm:$0xff]
    %v3438 = vld [vmem:[%s5 + $0x50] sm:$0xff]
    %v3439 = vld [vmem:[%s5 + $0x58] sm:$0xff]
    %v3440 = vld [vmem:[%s5 + $0x60] sm:$0xff]
    %v3441 = vld [vmem:[%s5 + $0x68] sm:$0xff]
    %v3442 = vld [vmem:[%s5 + $0x70] sm:$0xff]
    %v3443 = vld [vmem:[%s6] sm:$0x1]
    %v3445 = vlaneseq
    %v3446 = vshrl.u32 %v3445, 7
    %v3447 = vsub.s32 0, %v3446
    %v3448 = vrot.slane %v3443, %v3447
    %vm3450 = vcmask 982016
    %v3452 = vsel %vm3450, %v3427, 0
    %3454 = vmatprep.subr.mxu0 0.0
    %3455 = vmatpush1.msra.mxu0 %v3428
    %3456 = vmatprep.subr.mxu0 0.0
    %3457 = vmatpush1.msra.mxu0 %v3429
    %3458 = vmatprep.subr.mxu0 0.0
    %3459 = vmatpush1.msra.mxu0 %v3430
    %3460 = vmatprep.subr.mxu0 0.0
    %3461 = vmatpush1.msra.mxu0 %v3431
    %3462 = vmatprep.subr.mxu0 0.0
    %3463 = vmatpush1.msra.mxu0 %v3432
    %3464 = vmatprep.subr.mxu0 0.0
    %3465 = vmatpush1.msra.mxu0 %v3433
    %3466 = vmatprep.subr.mxu0 0.0
    %3467 = vmatpush1.msra.mxu0 %v3434
    %3468 = vmatprep.subr.mxu0 0.0
    %3469 = vmatpush1.msra.mxu0 %v3435
    %3470 = vmatprep.subr.mxu0 0.0
    %3471 = vmatpush1.msra.mxu0 %v3436
    %3472 = vmatprep.subr.mxu0 0.0
    %3473 = vmatpush1.msra.mxu0 %v3437
    %3474 = vmatprep.subr.mxu0 0.0
    %3475 = vmatpush1.msra.mxu0 %v3438
    %3476 = vmatprep.subr.mxu0 0.0
    %3477 = vmatpush1.msra.mxu0 %v3439
    %3478 = vmatprep.subr.mxu0 0.0
    %3479 = vmatpush1.msra.mxu0 %v3440
    %3480 = vmatprep.subr.mxu0 0.0
    %3481 = vmatpush1.msra.mxu0 %v3441
    %3482 = vmatprep.subr.mxu0 0.0
    %3483 = vmatpush1.msra.mxu0 %v3442
    %3484 = vmatprep.subr.mxu0 0.0
    %3485 = vmatpush1.msra.mxu0 0.0
    %3486 = vmatprep.subr.mxu0 0.0
    %3487 = vmatpush1.msra.mxu0 0.0
    %3488 = vmatprep.subr.mxu0 0.0
    %3489 = vmatpush1.msra.mxu0 0.0
    %3490 = vmatprep.subr.mxu0 0.0
    %3491 = vmatpush1.msra.mxu0 0.0
    %3492 = vmatprep.subr.mxu0 0.0
    %3493 = vmatpush1.msra.mxu0 0.0
    %3494 = vmatprep.subr.mxu0 0.0
    %3495 = vmatpush1.msra.mxu0 0.0
    %3496 = vmatprep.subr.mxu0 0.0
    %3497 = vmatpush1.msra.mxu0 0.0
    %3498 = vmatprep.subr.mxu0 0.0
    %3499 = vmatpush1.msra.mxu0 0.0
    %3500 = vmatprep.subr.mxu0 0.0
    %3501 = vmatpush1.msra.mxu0 0.0
    %3502 = vmatprep.subr.mxu0 0.0
    %3503 = vmatpush1.msra.mxu0 0.0
    %3504 = vmatprep.subr.mxu0 0.0
    %3505 = vmatpush1.msra.mxu0 0.0
    %3506 = vmatprep.subr.mxu0 0.0
    %3507 = vmatpush1.msra.mxu0 0.0
    %3508 = vmatprep.subr.mxu0 0.0
    %3509 = vmatpush1.msra.mxu0 0.0
    %3510 = vmatprep.subr.mxu0 0.0
    %3511 = vmatpush1.msra.mxu0 0.0
    %3512 = vmatprep.subr.mxu0 0.0
    %3513 = vmatpush1.msra.mxu0 0.0
    %3514 = vmatprep.subr.mxu0 0.0
    %3515 = vmatpush1.msra.mxu0 0.0
    %3516 = vmatprep.subr.mxu0 0.0
    %3517 = vmatpush1.msra.mxu0 0.0
    %3518 = vmatprep.mubr.f32.mxu0 0.0
    %3519 = vmatmul.mubr.f32.gmra.mrb[0].mxu0 %v3452
    %v3520 = vpop.f32.mrb[0].mxu0
    %v3521 = vadd.f32 %v3448, %v3520
    %v3522 = vpop.f32.mrb[0].mxu0
    %3523 = vdwg.mxu0
    %v3524 = vmax.f32 %v3521, 0.0
    %v3525 = vld [vmem:[%s7] sm:$0xff]
    %v3526 = vld [vmem:[%s7 + $0x8] sm:$0xff]
    %v3527 = vld [vmem:[%s7 + $0x10] sm:$0xff]
    %v3528 = vld [vmem:[%s7 + $0x18] sm:$0xff]
    %v3529 = vld [vmem:[%s7 + $0x20] sm:$0xff]
    %v3530 = vld [vmem:[%s7 + $0x28] sm:$0xff]
    %v3531 = vld [vmem:[%s7 + $0x30] sm:$0xff]
    %v3532 = vld [vmem:[%s7 + $0x38] sm:$0xff]
    %v3533 = vld [vmem:[%s7 + $0x40] sm:$0xff]
    %v3534 = vld [vmem:[%s7 + $0x48] sm:$0xff]
    %v3535 = vld [vmem:[%s7 + $0x50] sm:$0xf]
    %v3536 = vld [vmem:[%s8] sm:$0x1]
    %v3538 = vlaneseq
    %v3539 = vshrl.u32 %v3538, 7
    %v3540 = vsub.s32 0, %v3539
    %v3541 = vrot.slane %v3536, %v3540
    %vm3543 = vcmask 687104
    %v3545 = vsel %vm3543, %v3524, 0
    %vm3547 = vcmask 1043456
    %v3549 = vsel %vm3547, %v3535, 0
    %3551 = vmatprep.subr.mxu0 0.0
    %3552 = vmatpush1.msra.mxu0 %v3525
    %3553 = vmatprep.subr.mxu0 0.0
    %3554 = vmatpush1.msra.mxu0 %v3526
    %3555 = vmatprep.subr.mxu0 0.0
    %3556 = vmatpush1.msra.mxu0 %v3527
    %3557 = vmatprep.subr.mxu0 0.0
    %3558 = vmatpush1.msra.mxu0 %v3528
    %3559 = vmatprep.subr.mxu0 0.0
    %3560 = vmatpush1.msra.mxu0 %v3529
    %3561 = vmatprep.subr.mxu0 0.0
    %3562 = vmatpush1.msra.mxu0 %v3530
    %3563 = vmatprep.subr.mxu0 0.0
    %3564 = vmatpush1.msra.mxu0 %v3531
    %3565 = vmatprep.subr.mxu0 0.0
    %3566 = vmatpush1.msra.mxu0 %v3532
    %3567 = vmatprep.subr.mxu0 0.0
    %3568 = vmatpush1.msra.mxu0 %v3533
    %3569 = vmatprep.subr.mxu0 0.0
    %3570 = vmatpush1.msra.mxu0 %v3534
    %3571 = vmatprep.subr.mxu0 0.0
    %3572 = vmatpush1.msra.mxu0 %v3549
    %3573 = vmatprep.subr.mxu0 0.0
    %3574 = vmatpush1.msra.mxu0 0.0
    %3575 = vmatprep.subr.mxu0 0.0
    %3576 = vmatpush1.msra.mxu0 0.0
    %3577 = vmatprep.subr.mxu0 0.0
    %3578 = vmatpush1.msra.mxu0 0.0
    %3579 = vmatprep.subr.mxu0 0.0
    %3580 = vmatpush1.msra.mxu0 0.0
    %3581 = vmatprep.subr.mxu0 0.0
    %3582 = vmatpush1.msra.mxu0 0.0
    %3583 = vmatprep.subr.mxu0 0.0
    %3584 = vmatpush1.msra.mxu0 0.0
    %3585 = vmatprep.subr.mxu0 0.0
    %3586 = vmatpush1.msra.mxu0 0.0
    %3587 = vmatprep.subr.mxu0 0.0
    %3588 = vmatpush1.msra.mxu0 0.0
    %3589 = vmatprep.subr.mxu0 0.0
    %3590 = vmatpush1.msra.mxu0 0.0
    %3591 = vmatprep.subr.mxu0 0.0
    %3592 = vmatpush1.msra.mxu0 0.0
    %3593 = vmatprep.subr.mxu0 0.0
    %3594 = vmatpush1.msra.mxu0 0.0
    %3595 = vmatprep.subr.mxu0 0.0
    %3596 = vmatpush1.msra.mxu0 0.0
    %3597 = vmatprep.subr.mxu0 0.0
    %3598 = vmatpush1.msra.mxu0 0.0
    %3599 = vmatprep.subr.mxu0 0.0
    %3600 = vmatpush1.msra.mxu0 0.0
    %3601 = vmatprep.subr.mxu0 0.0
    %3602 = vmatpush1.msra.mxu0 0.0
    %3603 = vmatprep.subr.mxu0 0.0
    %3604 = vmatpush1.msra.mxu0 0.0
    %3605 = vmatprep.subr.mxu0 0.0
    %3606 = vmatpush1.msra.mxu0 0.0
    %3607 = vmatprep.subr.mxu0 0.0
    %3608 = vmatpush1.msra.mxu0 0.0
    %3609 = vmatprep.subr.mxu0 0.0
    %3610 = vmatpush1.msra.mxu0 0.0
    %3611 = vmatprep.subr.mxu0 0.0
    %3612 = vmatpush1.msra.mxu0 0.0
    %3613 = vmatprep.subr.mxu0 0.0
    %3614 = vmatpush1.msra.mxu0 0.0
    %3615 = vmatprep.mubr.f32.mxu0 0.0
    %3616 = vmatmul.mubr.f32.gmra.mrb[0].mxu0 %v3545
    %v3617 = vpop.f32.mrb[0].mxu0
    %v3618 = vadd.f32 %v3541, %v3617
    %v3619 = vpop.f32.mrb[0].mxu0
    %3620 = vdwg.mxu0
    %vm3621 = vcmask 74752
    %3622 = vst.msk [vmem:[#allocation2] sm:$0x3] %vm3621, %v3618
    // Predicated region
    $region38: #{net_forward.3} parent=1 // pred_check
      _
    $region39: #{net_forward.3} parent=1 // pred_check_branch
      %3624 = sbr.rel (0) target = $region41
    $region40: #{net_forward.3} parent=1 // pred_region
      %s3626 = ssub.s32 32, 32
      %3627 = vsyncadd [#allocation3], %s3626
      %s3629 = sshll.u32 [#allocation2], 4
      %s3630 = int_to_ptr.vmem [resolvable:$true] %s3629
      %3632 = dma.vmem_to_hbm [thread:$0]  %s3630, 32, %s9, [#allocation3]
    $region41: #{net_forward.3} parent=1 // pred_fallthru
      _
    // Predicated region
    $region42: #{net_forward.3} parent=1 // pred_check
      _
    $region43: #{net_forward.3} parent=1 // pred_check_branch
      %3634 = sbr.rel (0) target = $region45
    $region44: #{net_forward.3} parent=1 // pred_region
      %3635 = dma.done [#allocation3], 32
    $region45: #{net_forward.3} parent=1 // pred_fallthru
      _
    %3636 = vsyncpa [#allocation3], 1

</llo_original>
